<compile_context>
chip_gen: v6e
topology: v6e:2x2x1
jax: 0.10.0
libtpu: 0.0.40
codegen_flags: <defaults>
</compile_context>

<pallas_src>
import math
import functools

import jax
import jax.numpy as jnp
from jax import lax
from jax.experimental import pallas as pl
from jax.experimental.pallas import tpu as pltpu

_LANE = 128
_MiB = 1024 * 1024


def _round_up(x, m):
    return ((x + m - 1) // m) * m


def _vmem_capacity_bytes():
    try:
        return int(pltpu.get_tpu_info().vmem_capacity_bytes)
    except Exception:
        return 128 * _MiB  # conservative v5e/v6e default


# ----------------------------------------------------------------------------
# Kernel 1: six fused GNN layers, VMEM resident, adj DMA overlapped.
# ----------------------------------------------------------------------------

def _igae_layers_kernel(x_ref, adj_hbm,
                        w1_ref, w2_ref, w3_ref, w4_ref, w5_ref, w6_ref,
                        zi_ref, zh_ref,
                        adj_vmem, sem,
                        *, mm_dtype, act_dtype, precision):
    # Kick off the (largest) HBM->VMEM transfer immediately; it overlaps with
    # the first feature matmul, which is the only work not needing adj.
    cp = pltpu.make_async_copy(adj_hbm, adj_vmem, sem.at[0])
    cp.start()

    def support(feat, w_ref):
        s = jnp.dot(feat.astype(mm_dtype), w_ref[...],
                    preferred_element_type=jnp.float32, precision=precision)
        return jnp.tanh(s.astype(act_dtype)).astype(mm_dtype)

    s1 = support(x_ref[...], w1_ref)

    cp.wait()
    adj = adj_vmem[...]

    def propagate(s):
        return jnp.dot(adj, s, preferred_element_type=jnp.float32,
                       precision=precision)

    def layer(feat, w_ref):
        return propagate(support(feat, w_ref))

    z = propagate(s1)            # layer 1 (support already computed)
    z = layer(z, w2_ref)         # layer 2
    z_igae = layer(z, w3_ref)    # layer 3  (encoder output)
    z = layer(z_igae, w4_ref)    # layer 4
    z = layer(z, w5_ref)         # layer 5
    z_hat = layer(z, w6_ref)     # layer 6  (decoder output)

    zi_ref[...] = z_igae.astype(zi_ref.dtype)
    zh_ref[...] = z_hat.astype(zh_ref.dtype)


# ----------------------------------------------------------------------------
# Kernel 2: adj_hat = sigmoid(z z^T) + sigmoid(zh zh^T), row-tiled over output.
# ----------------------------------------------------------------------------

def _adj_hat_kernel(zi_ref, zh_ref, ah_ref,
                    *, tile, mm_dtype, act_dtype, precision):
    i = pl.program_id(0)
    r = pl.multiple_of(i * tile, tile)
    dn = (((1,), (1,)), ((), ()))   # contract last dims == A @ B.T, no transpose

    def gram_sigmoid(z_ref):
        z_rows = z_ref[pl.ds(r, tile), :].astype(mm_dtype)
        z_all = z_ref[...].astype(mm_dtype)
        g = lax.dot_general(z_rows, z_all, dn,
                            preferred_element_type=jnp.float32,
                            precision=precision)
        return jax.nn.sigmoid(g.astype(act_dtype)).astype(ah_ref.dtype)

    # Store then accumulate in place: never keep both sigmoid slabs live.
    ah_ref[...] = gram_sigmoid(zi_ref)
    ah_ref[...] += gram_sigmoid(zh_ref)


# ----------------------------------------------------------------------------
# Wrapper
# ----------------------------------------------------------------------------

def _fold_weight(p):
    # (f @ (0.9 I + 0.1 W1)) @ W  ==  f @ (0.9 W + 0.1 W1 @ W)   (exact)
    return 0.9 * p["weight"] + 0.1 * jnp.dot(
        p["weight1"], p["weight"], precision=lax.Precision.HIGHEST)


def _pad2d(a, rows, cols, dtype):
    out = jnp.zeros((rows, cols), dtype)
    return out.at[:a.shape[0], :a.shape[1]].set(a.astype(dtype))


def _pick_row_tile(n_pad, max_tile=256):
    """Largest multiple-of-8 divisor of n_pad not exceeding max_tile."""
    if n_pad <= max_tile:
        return n_pad
    t = (max_tile // 8) * 8
    while t > 8 and n_pad % t != 0:
        t -= 8
    return t


@functools.partial(jax.jit, static_argnames=("use_bf16",))
def igae_forward(params, x, adj, *, use_bf16=False):
    n, n_input = x.shape
    dims = [n_input] + [p["weight"].shape[1] for p in params]   # 7 entries
    enc3 = dims[3]

    mm_dtype = jnp.bfloat16 if use_bf16 else jnp.float32
    precision = lax.Precision.DEFAULT if use_bf16 else lax.Precision.HIGHEST

    vmem_cap = _vmem_capacity_bytes()
    usable = min(vmem_cap - 12 * _MiB, int(vmem_cap * 0.85))
    # bf16 transcendentals only where the EUP supports them.  Heuristic:
    # 64 MiB VMEM per core => v7x.  v5e keeps f32 tanh/sigmoid.
    # TODO(synk): enable bf16 transcendentals on v6e once the generation can
    # be distinguished from v5e via TpuInfo.
    bf16_eup = vmem_cap <= 64 * _MiB
    act_dtype = jnp.bfloat16 if (use_bf16 and bf16_eup) else jnp.float32

    # Row (sublane) padding only needs the dtype packing granularity; lane
    # (feature) dims are padded to 128 for dense stores / MXU-friendly widths.
    row_gran = 16 if use_bf16 else 8
    n_pad = _round_up(n, row_gran)
    d_pad = [_round_up(d, _LANE) for d in dims]

    # Fold + zero-pad each weight to its own (in_pad, out_pad); zero padding
    # is exact (padded lanes stay zero through tanh and adj mixing).
    wcs = [_pad2d(_fold_weight(p), d_pad[i], d_pad[i + 1], mm_dtype)
           for i, p in enumerate(params)]
    x_p = _pad2d(x, n_pad, d_pad[0], mm_dtype)
    adj_p = _pad2d(adj, n_pad, n_pad, mm_dtype)

    esz = jnp.dtype(mm_dtype).itemsize
    max_d = max(d_pad)
    bytes_zi = n_pad * d_pad[3] * 4
    bytes_zh = n_pad * d_pad[6] * 4

    # VMEM budget, call 1 (no double-buffer factor: single-step, VMEM specs).
    need1 = (x_p.size * esz + sum(w.size for w in wcs) * esz
             + n_pad * n_pad * esz              # adj VMEM scratch (1 buffer)
             + bytes_zi + bytes_zh              # resident outputs
             + 3 * n_pad * max_d * 4)           # live activation temporaries
    need1 = int(need1 * 1.15)

    tile = _pick_row_tile(n_pad)
    # VMEM budget, call 2 (double-buffered output slab + gram temporaries).
    need2 = (2 * (bytes_zi + bytes_zh)
             + 2 * tile * n_pad * 4
             + 2 * tile * n_pad * 4)
    need2 = int(need2 * 1.15)

    if max(need1, need2) > usable:
        # TODO(synk): large-graph fallback -- stream adj from HBM in row tiles
        # per layer (adj read 6x, kept in bf16) and keep only the activations
        # resident, instead of requiring the full adjacency to fit VMEM.
        raise ValueError("graph too large for the fused VMEM-resident kernel")

    vmem_spec = pl.BlockSpec(memory_space=pltpu.MemorySpace.VMEM)

    # ---------------- call 1: six fused GNN layers ---------------------------
    vmem1 = int(min(usable, max(need1 + 4 * _MiB, 16 * _MiB)))
    flops1 = sum(2 * n_pad * d_pad[i] * d_pad[i + 1]
                 + 2 * n_pad * n_pad * d_pad[i + 1] for i in range(6))
    trans1 = sum(n_pad * d_pad[i + 1] for i in range(6))
    bytes1 = ((x_p.size + adj_p.size + sum(w.size for w in wcs)) * esz
              + bytes_zi + bytes_zh)

    kernel1 = functools.partial(_igae_layers_kernel, mm_dtype=mm_dtype,
                                act_dtype=act_dtype, precision=precision)
    zi_p, zh_p = pl.pallas_call(
        kernel1,
        out_shape=(jax.ShapeDtypeStruct((n_pad, d_pad[3]), jnp.float32),
                   jax.ShapeDtypeStruct((n_pad, d_pad[6]), jnp.float32)),
        in_specs=[vmem_spec,                          # x
                  pl.BlockSpec(memory_space=pl.ANY)]  # adj (manual DMA)
                 + [vmem_spec] * 6,                   # folded weights
        out_specs=(vmem_spec, vmem_spec),
        scratch_shapes=[pltpu.VMEM((n_pad, n_pad), mm_dtype),
                        pltpu.SemaphoreType.DMA((1,))],
        compiler_params=pltpu.CompilerParams(vmem_limit_bytes=vmem1),
        cost_estimate=pl.CostEstimate(flops=int(flops1),
                                      transcendentals=int(trans1),
                                      bytes_accessed=int(bytes1)),
    )(x_p, adj_p, *wcs)

    # ---------------- call 2: adj_hat, row-tiled ------------------------------
    vmem2 = int(min(usable, max(need2 + 4 * _MiB, 16 * _MiB)))
    flops2 = 2 * n_pad * n_pad * (d_pad[3] + d_pad[6])
    trans2 = 2 * n_pad * n_pad
    bytes2 = bytes_zi + bytes_zh + n_pad * n_pad * 4

    kernel2 = functools.partial(_adj_hat_kernel, tile=tile, mm_dtype=mm_dtype,
                                act_dtype=act_dtype, precision=precision)
    ah_p = pl.pallas_call(
        kernel2,
        out_shape=jax.ShapeDtypeStruct((n_pad, n_pad), jnp.float32),
        grid=(n_pad // tile,),
        in_specs=[pl.BlockSpec((n_pad, d_pad[3]), lambda i: (0, 0)),
                  pl.BlockSpec((n_pad, d_pad[6]), lambda i: (0, 0))],
        out_specs=pl.BlockSpec((tile, n_pad), lambda i: (i, 0)),
        compiler_params=pltpu.CompilerParams(
            dimension_semantics=("parallel",), vmem_limit_bytes=vmem2),
        cost_estimate=pl.CostEstimate(flops=int(flops2),
                                      transcendentals=int(trans2),
                                      bytes_accessed=int(bytes2)),
    )(zi_p, zh_p)

    # TODO(synk): optionally emit adj_hat / z outputs in bf16 when the caller's
    # loss tolerates it (halves the largest writeback + VMEM slabs).
    z_igae = zi_p[:n, :enc3]
    z_hat = zh_p[:n, :n_input]
    adj_hat = ah_p[:n, :n]
    return z_igae, z_hat, adj_hat


# ----------------------------------------------------------------------------
# Parameter init (xavier_uniform, deterministic)
# ----------------------------------------------------------------------------

def xavier_uniform(key, fan_in, fan_out):
    bound = math.sqrt(6.0 / (fan_in + fan_out))
    return jax.random.uniform(key, (fan_in, fan_out), jnp.float32, -bound, bound)


def init_gnn_layer(key, in_f, out_f):
    k_w, k_w1 = jax.random.split(key)
    return {"weight": xavier_uniform(k_w, in_f, out_f),
            "weight1": xavier_uniform(k_w1, in_f, in_f)}


def init_igae(key, enc1, enc2, enc3, dec1, dec2, dec3, n_input):
    assert dec1 == enc3, "decoder input width must match encoder output width"
    dims = [(n_input, enc1), (enc1, enc2), (enc2, enc3),   # encoder gnn_1..3
            (dec1, dec2), (dec2, dec3), (dec3, n_input)]   # decoder gnn_4..6
    keys = jax.random.split(key, len(dims))
    return [init_gnn_layer(k, i, o) for k, (i, o) in zip(keys, dims)]


# ----------------------------------------------------------------------------
# Pure-JAX reference (unfolded, mirrors the PyTorch module exactly)
# ----------------------------------------------------------------------------

def igae_reference(params, x, adj):
    prec = lax.Precision.HIGHEST

    def layer(f, p):
        x1 = 0.9 * f + 0.1 * jnp.dot(f, p["weight1"], precision=prec)
        return jnp.dot(adj, jnp.tanh(jnp.dot(x1, p["weight"], precision=prec)),
                       precision=prec)

    z = layer(x, params[0]); z = layer(z, params[1]); z_igae = layer(z, params[2])
    z = layer(z_igae, params[3]); z = layer(z, params[4]); z_hat = layer(z, params[5])
    adj_hat = (jax.nn.sigmoid(jnp.dot(z_igae, z_igae.T, precision=prec))
               + jax.nn.sigmoid(jnp.dot(z_hat, z_hat.T, precision=prec)))
    return z_igae, z_hat, adj_hat


if __name__ == "__main__":
    # Small, deterministic problem
    N = 16            # number of graph nodes
    n_input = 32
    enc1, enc2, enc3 = 16, 16, 8
    dec1, dec2, dec3 = 8, 16, 16   # dec1 must equal enc3

    key = jax.random.PRNGKey(0)
    k_params, k_x, k_adj = jax.random.split(key, 3)

    params = init_igae(k_params, enc1, enc2, enc3, dec1, dec2, dec3, n_input)
    x = jax.random.normal(k_x, (N, n_input), jnp.float32)
    # Symmetric row-normalized-ish adjacency (dense)
    a = jax.random.uniform(k_adj, (N, N), jnp.float32)
    a = (a + a.T) * 0.5 + jnp.eye(N, dtype=jnp.float32)
    adj = a / jnp.sum(a, axis=1, keepdims=True)

    r_igae, r_hat, r_adj = igae_reference(params, x, adj)

    # --- f32 path (exact semantics; fold is algebraically exact) ------------
    z_igae, z_hat, adj_hat = igae_forward(params, x, adj, use_bf16=False)
    jax.block_until_ready((z_igae, z_hat, adj_hat))
    assert z_igae.shape == (N, enc3)
    assert z_hat.shape == (N, n_input)
    assert adj_hat.shape == (N, N)
    assert jnp.allclose(z_igae, r_igae, atol=1e-5, rtol=1e-5)
    assert jnp.allclose(z_hat, r_hat, atol=1e-5, rtol=1e-5)
    assert jnp.allclose(adj_hat, r_adj, atol=1e-5, rtol=1e-5)

    # --- bf16-MXU fast path, f32 accumulation --------------------------------
    # Loose tolerance: bf16 operands through 6 stacked layers.
    zb_igae, zb_hat, ab_hat = igae_forward(params, x, adj, use_bf16=True)
    jax.block_until_ready((zb_igae, zb_hat, ab_hat))
    assert jnp.allclose(zb_igae, r_igae, atol=0.15, rtol=0.15)
    assert jnp.allclose(zb_hat, r_hat, atol=0.15, rtol=0.15)
    assert jnp.allclose(ab_hat, r_adj, atol=0.15, rtol=0.15)

    print("KERNEL_OK")
</pallas_src>

<mosaic_0001>
module attributes {stable_mosaic.version = 11 : i64} {
  func.func @_igae_layers_kernel(%arg0: memref<16x128xf32, #tpu.memory_space<vmem>>, %arg1: memref<16x16xf32, #tpu.memory_space<any>>, %arg2: memref<128x128xf32, #tpu.memory_space<vmem>>, %arg3: memref<128x128xf32, #tpu.memory_space<vmem>>, %arg4: memref<128x128xf32, #tpu.memory_space<vmem>>, %arg5: memref<128x128xf32, #tpu.memory_space<vmem>>, %arg6: memref<128x128xf32, #tpu.memory_space<vmem>>, %arg7: memref<128x128xf32, #tpu.memory_space<vmem>>, %arg8: memref<16x128xf32, #tpu.memory_space<vmem>>, %arg9: memref<16x128xf32, #tpu.memory_space<vmem>>, %arg10: memref<16x16xf32, #tpu.memory_space<vmem>>, %arg11: memref<1x!tpu.dma_semaphore, #tpu.memory_space<semaphore_mem>>) attributes {dimension_semantics = [], scalar_prefetch = 0 : i64, scratch_operands = 2 : i64, tpu.core_type = #tpu.core_type<tc>} {
    %c0_i32 = arith.constant 0 : i32
    %0 = tpu.memref_slice %arg11[%c0_i32] : memref<1x!tpu.dma_semaphore, #tpu.memory_space<semaphore_mem>> -> memref<1x!tpu.dma_semaphore, #tpu.memory_space<semaphore_mem>>
    %1 = tpu.memref_squeeze %0 : memref<1x!tpu.dma_semaphore, #tpu.memory_space<semaphore_mem>> -> memref<!tpu.dma_semaphore, #tpu.memory_space<semaphore_mem>>
    tpu.enqueue_dma source(%arg1 : memref<16x16xf32, #tpu.memory_space<any>>) target(%arg10 : memref<16x16xf32, #tpu.memory_space<vmem>>) target_semaphore(%1 : memref<!tpu.dma_semaphore, #tpu.memory_space<semaphore_mem>>)
    %c0 = arith.constant 0 : index
    %c0_0 = arith.constant 0 : index
    %2 = vector.load %arg0[%c0, %c0_0] : memref<16x128xf32, #tpu.memory_space<vmem>>, vector<16x128xf32>
    %c0_1 = arith.constant 0 : index
    %c0_2 = arith.constant 0 : index
    %3 = vector.load %arg2[%c0_1, %c0_2] : memref<128x128xf32, #tpu.memory_space<vmem>>, vector<128x128xf32>
    %cst = arith.constant dense<0.000000e+00> : vector<16x128xf32>
    %4 = tpu.matmul %2, %3, %cst {dimension_numbers = #tpu.dot_dimension_numbers<[1], [0], [0], [1], [0, 0, 1, 1], [], []>, precision = #tpu.contract_precision<fp32>} : vector<16x128xf32>, vector<128x128xf32>, vector<16x128xf32> -> vector<16x128xf32>
    %5 = math.tanh %4 : vector<16x128xf32>
    %c0_i32_3 = arith.constant 0 : i32
    %6 = tpu.memref_slice %arg11[%c0_i32_3] : memref<1x!tpu.dma_semaphore, #tpu.memory_space<semaphore_mem>> -> memref<1x!tpu.dma_semaphore, #tpu.memory_space<semaphore_mem>>
    %7 = tpu.memref_squeeze %6 : memref<1x!tpu.dma_semaphore, #tpu.memory_space<semaphore_mem>> -> memref<!tpu.dma_semaphore, #tpu.memory_space<semaphore_mem>>
    tpu.wait_dma2 semaphore(%7 : memref<!tpu.dma_semaphore, #tpu.memory_space<semaphore_mem>>) src(%arg1 : memref<16x16xf32, #tpu.memory_space<any>>) dst(%arg10 : memref<16x16xf32, #tpu.memory_space<vmem>>)
    %c0_4 = arith.constant 0 : index
    %c0_5 = arith.constant 0 : index
    %8 = vector.load %arg10[%c0_4, %c0_5] : memref<16x16xf32, #tpu.memory_space<vmem>>, vector<16x16xf32>
    %cst_6 = arith.constant dense<0.000000e+00> : vector<16x128xf32>
    %9 = tpu.matmul %8, %5, %cst_6 {dimension_numbers = #tpu.dot_dimension_numbers<[1], [0], [0], [1], [0, 0, 1, 1], [], []>, precision = #tpu.contract_precision<fp32>} : vector<16x16xf32>, vector<16x128xf32>, vector<16x128xf32> -> vector<16x128xf32>
    %c0_7 = arith.constant 0 : index
    %c0_8 = arith.constant 0 : index
    %10 = vector.load %arg3[%c0_7, %c0_8] : memref<128x128xf32, #tpu.memory_space<vmem>>, vector<128x128xf32>
    %cst_9 = arith.constant dense<0.000000e+00> : vector<16x128xf32>
    %11 = tpu.matmul %9, %10, %cst_9 {dimension_numbers = #tpu.dot_dimension_numbers<[1], [0], [0], [1], [0, 0, 1, 1], [], []>, precision = #tpu.contract_precision<fp32>} : vector<16x128xf32>, vector<128x128xf32>, vector<16x128xf32> -> vector<16x128xf32>
    %12 = math.tanh %11 : vector<16x128xf32>
    %cst_10 = arith.constant dense<0.000000e+00> : vector<16x128xf32>
    %13 = tpu.matmul %8, %12, %cst_10 {dimension_numbers = #tpu.dot_dimension_numbers<[1], [0], [0], [1], [0, 0, 1, 1], [], []>, precision = #tpu.contract_precision<fp32>} : vector<16x16xf32>, vector<16x128xf32>, vector<16x128xf32> -> vector<16x128xf32>
    %c0_11 = arith.constant 0 : index
    %c0_12 = arith.constant 0 : index
    %14 = vector.load %arg4[%c0_11, %c0_12] : memref<128x128xf32, #tpu.memory_space<vmem>>, vector<128x128xf32>
    %cst_13 = arith.constant dense<0.000000e+00> : vector<16x128xf32>
    %15 = tpu.matmul %13, %14, %cst_13 {dimension_numbers = #tpu.dot_dimension_numbers<[1], [0], [0], [1], [0, 0, 1, 1], [], []>, precision = #tpu.contract_precision<fp32>} : vector<16x128xf32>, vector<128x128xf32>, vector<16x128xf32> -> vector<16x128xf32>
    %16 = math.tanh %15 : vector<16x128xf32>
    %cst_14 = arith.constant dense<0.000000e+00> : vector<16x128xf32>
    %17 = tpu.matmul %8, %16, %cst_14 {dimension_numbers = #tpu.dot_dimension_numbers<[1], [0], [0], [1], [0, 0, 1, 1], [], []>, precision = #tpu.contract_precision<fp32>} : vector<16x16xf32>, vector<16x128xf32>, vector<16x128xf32> -> vector<16x128xf32>
    %c0_15 = arith.constant 0 : index
    %c0_16 = arith.constant 0 : index
    %18 = vector.load %arg5[%c0_15, %c0_16] : memref<128x128xf32, #tpu.memory_space<vmem>>, vector<128x128xf32>
    %cst_17 = arith.constant dense<0.000000e+00> : vector<16x128xf32>
    %19 = tpu.matmul %17, %18, %cst_17 {dimension_numbers = #tpu.dot_dimension_numbers<[1], [0], [0], [1], [0, 0, 1, 1], [], []>, precision = #tpu.contract_precision<fp32>} : vector<16x128xf32>, vector<128x128xf32>, vector<16x128xf32> -> vector<16x128xf32>
    %20 = math.tanh %19 : vector<16x128xf32>
    %cst_18 = arith.constant dense<0.000000e+00> : vector<16x128xf32>
    %21 = tpu.matmul %8, %20, %cst_18 {dimension_numbers = #tpu.dot_dimension_numbers<[1], [0], [0], [1], [0, 0, 1, 1], [], []>, precision = #tpu.contract_precision<fp32>} : vector<16x16xf32>, vector<16x128xf32>, vector<16x128xf32> -> vector<16x128xf32>
    %c0_19 = arith.constant 0 : index
    %c0_20 = arith.constant 0 : index
    %22 = vector.load %arg6[%c0_19, %c0_20] : memref<128x128xf32, #tpu.memory_space<vmem>>, vector<128x128xf32>
    %cst_21 = arith.constant dense<0.000000e+00> : vector<16x128xf32>
    %23 = tpu.matmul %21, %22, %cst_21 {dimension_numbers = #tpu.dot_dimension_numbers<[1], [0], [0], [1], [0, 0, 1, 1], [], []>, precision = #tpu.contract_precision<fp32>} : vector<16x128xf32>, vector<128x128xf32>, vector<16x128xf32> -> vector<16x128xf32>
    %24 = math.tanh %23 : vector<16x128xf32>
    %cst_22 = arith.constant dense<0.000000e+00> : vector<16x128xf32>
    %25 = tpu.matmul %8, %24, %cst_22 {dimension_numbers = #tpu.dot_dimension_numbers<[1], [0], [0], [1], [0, 0, 1, 1], [], []>, precision = #tpu.contract_precision<fp32>} : vector<16x16xf32>, vector<16x128xf32>, vector<16x128xf32> -> vector<16x128xf32>
    %c0_23 = arith.constant 0 : index
    %c0_24 = arith.constant 0 : index
    %26 = vector.load %arg7[%c0_23, %c0_24] : memref<128x128xf32, #tpu.memory_space<vmem>>, vector<128x128xf32>
    %cst_25 = arith.constant dense<0.000000e+00> : vector<16x128xf32>
    %27 = tpu.matmul %25, %26, %cst_25 {dimension_numbers = #tpu.dot_dimension_numbers<[1], [0], [0], [1], [0, 0, 1, 1], [], []>, precision = #tpu.contract_precision<fp32>} : vector<16x128xf32>, vector<128x128xf32>, vector<16x128xf32> -> vector<16x128xf32>
    %28 = math.tanh %27 : vector<16x128xf32>
    %cst_26 = arith.constant dense<0.000000e+00> : vector<16x128xf32>
    %29 = tpu.matmul %8, %28, %cst_26 {dimension_numbers = #tpu.dot_dimension_numbers<[1], [0], [0], [1], [0, 0, 1, 1], [], []>, precision = #tpu.contract_precision<fp32>} : vector<16x16xf32>, vector<16x128xf32>, vector<16x128xf32> -> vector<16x128xf32>
    %c0_27 = arith.constant 0 : index
    %c0_28 = arith.constant 0 : index
    %30 = vector.load %arg8[%c0_27, %c0_28] : memref<16x128xf32, #tpu.memory_space<vmem>>, vector<16x128xf32>
    tpu.vector_store %arg8[%c0_27, %c0_28], %17 {strides = array<i32>} : memref<16x128xf32, #tpu.memory_space<vmem>>, vector<16x128xf32>,
    %c0_29 = arith.constant 0 : index
    %c0_30 = arith.constant 0 : index
    %31 = vector.load %arg9[%c0_29, %c0_30] : memref<16x128xf32, #tpu.memory_space<vmem>>, vector<16x128xf32>
    tpu.vector_store %arg9[%c0_29, %c0_30], %29 {strides = array<i32>} : memref<16x128xf32, #tpu.memory_space<vmem>>, vector<16x128xf32>,
    return
  }
}

module attributes {stable_mosaic.version = 11 : i64} {
  func.func @_adj_hat_kernel(%arg0: i32, %arg1: memref<16x128xf32, #tpu.memory_space<vmem>>, %arg2: memref<16x128xf32, #tpu.memory_space<vmem>>, %arg3: memref<16x16xf32, #tpu.memory_space<vmem>>) attributes {dimension_semantics = [#tpu.dimension_semantics<parallel>], iteration_bounds = array<i64: 1>, scalar_prefetch = 0 : i64, scratch_operands = 0 : i64, tpu.core_type = #tpu.core_type<tc>, window_params = [{pipeline_mode = #tpu.pipeline_mode<synchronous>, transform_indices = @transform_0, window_bounds = array<i64: 16, 128>}, {pipeline_mode = #tpu.pipeline_mode<synchronous>, transform_indices = @transform_1, window_bounds = array<i64: 16, 128>}, {transform_indices = @transform_2, window_bounds = array<i64: 16, 16>}]} {
    %c16_i32 = arith.constant 16 : i32
    %0 = arith.muli %arg0, %c16_i32 : i32
    %1 = tpu.assume_multiple %0, 16 : i32
    %2 = arith.index_cast %1 : i32 to index
    %c0 = arith.constant 0 : index
    %3 = vector.load %arg1[%2, %c0] : memref<16x128xf32, #tpu.memory_space<vmem>>, vector<16x128xf32>
    %c0_0 = arith.constant 0 : index
    %c0_1 = arith.constant 0 : index
    %4 = vector.load %arg1[%c0_0, %c0_1] : memref<16x128xf32, #tpu.memory_space<vmem>>, vector<16x128xf32>
    %cst = arith.constant dense<0.000000e+00> : vector<16x16xf32>
    %5 = tpu.matmul %3, %4, %cst {dimension_numbers = #tpu.dot_dimension_numbers<[1], [1], [0], [0], [0, 0, 1, 0], [], []>, precision = #tpu.contract_precision<fp32>} : vector<16x128xf32>, vector<16x128xf32>, vector<16x16xf32> -> vector<16x16xf32>
    %6 = arith.negf %5 : vector<16x16xf32>
    %7 = math.exp %6 : vector<16x16xf32>
    %cst_2 = arith.constant 1.000000e+00 : f32
    %8 = vector.broadcast %cst_2 : f32 to vector<16x16xf32>
    %9 = arith.addf %8, %7 : vector<16x16xf32>
    %10 = arith.divf %8, %9 : vector<16x16xf32>
    %c0_3 = arith.constant 0 : index
    %c0_4 = arith.constant 0 : index
    %11 = vector.load %arg3[%c0_3, %c0_4] : memref<16x16xf32, #tpu.memory_space<vmem>>, vector<16x16xf32>
    tpu.vector_store %arg3[%c0_3, %c0_4], %10 {strides = array<i32>} : memref<16x16xf32, #tpu.memory_space<vmem>>, vector<16x16xf32>,
    %c0_5 = arith.constant 0 : index
    %c0_6 = arith.constant 0 : index
    %12 = vector.load %arg3[%c0_5, %c0_6] : memref<16x16xf32, #tpu.memory_space<vmem>>, vector<16x16xf32>
    %13 = arith.index_cast %1 : i32 to index
    %c0_7 = arith.constant 0 : index
    %14 = vector.load %arg2[%13, %c0_7] : memref<16x128xf32, #tpu.memory_space<vmem>>, vector<16x128xf32>
    %c0_8 = arith.constant 0 : index
    %c0_9 = arith.constant 0 : index
    %15 = vector.load %arg2[%c0_8, %c0_9] : memref<16x128xf32, #tpu.memory_space<vmem>>, vector<16x128xf32>
    %cst_10 = arith.constant dense<0.000000e+00> : vector<16x16xf32>
    %16 = tpu.matmul %14, %15, %cst_10 {dimension_numbers = #tpu.dot_dimension_numbers<[1], [1], [0], [0], [0, 0, 1, 0], [], []>, precision = #tpu.contract_precision<fp32>} : vector<16x128xf32>, vector<16x128xf32>, vector<16x16xf32> -> vector<16x16xf32>
    %17 = arith.negf %16 : vector<16x16xf32>
    %18 = math.exp %17 : vector<16x16xf32>
    %cst_11 = arith.constant 1.000000e+00 : f32
    %19 = vector.broadcast %cst_11 : f32 to vector<16x16xf32>
    %20 = arith.addf %19, %18 : vector<16x16xf32>
    %21 = arith.divf %19, %20 : vector<16x16xf32>
    %22 = arith.addf %12, %21 : vector<16x16xf32>
    %c0_12 = arith.constant 0 : index
    %c0_13 = arith.constant 0 : index
    %23 = vector.load %arg3[%c0_12, %c0_13] : memref<16x16xf32, #tpu.memory_space<vmem>>, vector<16x16xf32>
    tpu.vector_store %arg3[%c0_12, %c0_13], %22 {strides = array<i32>} : memref<16x16xf32, #tpu.memory_space<vmem>>, vector<16x16xf32>,
    return
  }
  func.func @transform_0(%arg0: i32) -> (i32, i32) {
    %c0_i32 = arith.constant 0 : i32
    %c0_i32_0 = arith.constant 0 : i32
    %c0_i32_1 = arith.constant 0 : i32
    return %c0_i32, %c0_i32_0 : i32, i32
  }
  func.func @transform_1(%arg0: i32) -> (i32, i32) {
    %c0_i32 = arith.constant 0 : i32
    %c0_i32_0 = arith.constant 0 : i32
    %c0_i32_1 = arith.constant 0 : i32
    return %c0_i32, %c0_i32_0 : i32, i32
  }
  func.func @transform_2(%arg0: i32) -> (i32, i32) {
    %c0_i32 = arith.constant 0 : i32
    %c0_i32_0 = arith.constant 0 : i32
    return %arg0, %c0_i32 : i32, i32
  }
}

</mosaic_0001>

<llo_original>
// kernel: igae_forward.3
$region0: #{igae_forward.3}
  #allocation0 [shape = 'u32[]', space=smem, size = 0x4, offset = 0x4, fixed_abs, tag = 'smem constant byte address 0x4 - core index']
  #allocation1 [shape = 'u32[144,128]{1,0:T(1,128)}', space=vmem, size = 0x12000, scoped, tag = 'internal scratch']
  %s0 = inlined_call_operand.vmem [shape: f32[16,128], index: 0, kind: input, shape index: {}]
  %s1 = inlined_call_operand.vmem [shape: f32[16,128], index: 1, kind: input, shape index: {}]
  %s2 = inlined_call_operand.hbm [shape: f32[16,16], index: 2, kind: output, shape index: {}]
  %s3 = sld [smem:[#allocation0]]
  $region18: #{igae_forward.3} parent=0
    _
  %s5 = ssub.s32 1, %s3
  %s6 = scalar_select 0, %s5, %s3
  $region1: #{igae_forward.3} parent=0
    #allocation2 [shape = 'u8[8192]{0}', space=vmem, size = 0x2000, scoped, tag = 'output window, operand 0, single buffered']
    #allocation3 [shape = 's32[1]{0}', space=sflag, size = 0x4, scoped, tag = 'scoped memory for igae_forward.3']
    %7 = vsyncpa [#allocation3], 0
    // Predicated region
    $region2: #{igae_forward.3} parent=1 // pred_check
      _
    $region3: #{igae_forward.3} parent=1 // pred_check_branch
      %9 = sbr.rel (0) target = $region5
    $region4: #{igae_forward.3} parent=1 // pred_region
      _
    $region5: #{igae_forward.3} parent=1 // pred_fallthru
      _
    // Predicated region
    $region6: #{igae_forward.3} parent=1 // pred_check
      _
    $region7: #{igae_forward.3} parent=1 // pred_check_branch
      %11 = sbr.rel (0) target = $region9
    $region8: #{igae_forward.3} parent=1 // pred_region
      _
    $region9: #{igae_forward.3} parent=1 // pred_fallthru
      _
    %s12 = smul.u32 0, 16
    %s13 = scalar_lea.vmem %s0, %s12
    %v14 = vld [vmem:[%s13] sm:$0xff]
    %v15 = vld [vmem:[%s13 + $0x8] sm:$0xff]
    %v16 = vld [vmem:[%s0] sm:$0xff]
    %v17 = vld [vmem:[%s0 + $0x8] sm:$0xff]
    %18 = vmatprep.subr.mxu0 0.0
    %19 = vmatpush1.xpose.msra.mxu0 0.0
    %20 = vmatprep.subr.mxu0 0.0
    %21 = vmatpush1.xpose.msra.mxu0 0.0
    %22 = vmatprep.subr.mxu0 0.0
    %23 = vmatpush1.xpose.msra.mxu0 0.0
    %24 = vmatprep.subr.mxu0 0.0
    %25 = vmatpush1.xpose.msra.mxu0 0.0
    %26 = vmatprep.subr.mxu0 0.0
    %27 = vmatpush1.xpose.msra.mxu0 0.0
    %28 = vmatprep.subr.mxu0 0.0
    %29 = vmatpush1.xpose.msra.mxu0 0.0
    %30 = vmatprep.subr.mxu0 0.0
    %31 = vmatpush1.xpose.msra.mxu0 0.0
    %32 = vmatprep.subr.mxu0 0.0
    %33 = vmatpush1.xpose.msra.mxu0 0.0
    %34 = vmatprep.subr.mxu0 0.0
    %35 = vmatpush1.xpose.msra.mxu0 0.0
    %36 = vmatprep.subr.mxu0 0.0
    %37 = vmatpush1.xpose.msra.mxu0 0.0
    %38 = vmatprep.subr.mxu0 0.0
    %39 = vmatpush1.xpose.msra.mxu0 0.0
    %40 = vmatprep.subr.mxu0 0.0
    %41 = vmatpush1.xpose.msra.mxu0 0.0
    %42 = vmatprep.subr.mxu0 0.0
    %43 = vmatpush1.xpose.msra.mxu0 0.0
    %44 = vmatprep.subr.mxu0 0.0
    %45 = vmatpush1.xpose.msra.mxu0 0.0
    %46 = vmatprep.subr.mxu0 0.0
    %v47 = vand.u32 %v17, 4294901760
    %48 = vmatpush1.xpose.msra.mxu0 %v47
    %49 = vmatprep.subr.mxu0 0.0
    %v50 = vand.u32 %v16, 4294901760
    %51 = vmatpush1.xpose.msra.mxu0 %v50
    %52 = vmatprep.subr.mxu0 0.0
    %53 = vmatpush2.xpose.msra.mxu0 0.0
    %54 = vmatprep.subr.mxu0 0.0
    %55 = vmatpush2.xpose.msra.mxu0 0.0
    %56 = vmatprep.subr.mxu0 0.0
    %57 = vmatpush2.xpose.msra.mxu0 0.0
    %58 = vmatprep.subr.mxu0 0.0
    %59 = vmatpush2.xpose.msra.mxu0 0.0
    %60 = vmatprep.subr.mxu0 0.0
    %61 = vmatpush2.xpose.msra.mxu0 0.0
    %62 = vmatprep.subr.mxu0 0.0
    %63 = vmatpush2.xpose.msra.mxu0 0.0
    %64 = vmatprep.subr.mxu0 0.0
    %65 = vmatpush2.xpose.msra.mxu0 0.0
    %66 = vmatprep.subr.mxu0 0.0
    %67 = vmatpush2.xpose.msra.mxu0 0.0
    %68 = vmatprep.subr.mxu0 0.0
    %69 = vmatpush2.xpose.msra.mxu0 0.0
    %70 = vmatprep.subr.mxu0 0.0
    %71 = vmatpush2.xpose.msra.mxu0 0.0
    %72 = vmatprep.subr.mxu0 0.0
    %73 = vmatpush2.xpose.msra.mxu0 0.0
    %74 = vmatprep.subr.mxu0 0.0
    %75 = vmatpush2.xpose.msra.mxu0 0.0
    %76 = vmatprep.subr.mxu0 0.0
    %77 = vmatpush2.xpose.msra.mxu0 0.0
    %78 = vmatprep.subr.mxu0 0.0
    %79 = vmatpush2.xpose.msra.mxu0 0.0
    %80 = vmatprep.subr.mxu0 0.0
    %81 = vmatpush2.xpose.msra.mxu0 0.0
    %82 = vmatprep.subr.mxu0 0.0
    %83 = vmatpush2.xpose.msra.mxu0 0.0
    %84 = vmatprep.mubr.f32.mxu0 0.0
    %v85 = vand.u32 %v14, 4294901760
    %v86 = vsub.f32 %v14, %v85
    %v87 = vand.u32 %v86, 4294901760
    %v88 = vsub.f32 %v86, %v87
    %v89 = vand.u32 %v88, 4294901760
    %90 = vmatmul.mubr.f32.gmra.mxu0 %v89
    %v91 = vpop.f32.mrf.mxu0
    %v92 = vadd.f32 0.0, %v91
    %v93 = vpop.f32.mrf.mxu0
    %94 = vmatprep.mubr.f32.mxu0 0.0
    %v95 = vand.u32 %v15, 4294901760
    %v96 = vsub.f32 %v15, %v95
    %v97 = vand.u32 %v96, 4294901760
    %v98 = vsub.f32 %v96, %v97
    %v99 = vand.u32 %v98, 4294901760
    %100 = vmatmul.mubr.f32.gmra.mxu0 %v99
    %v101 = vpop.f32.mrf.mxu0
    %v102 = vadd.f32 0.0, %v101
    %v103 = vpop.f32.mrf.mxu0
    %104 = vdwg.mxu0
    %105 = vmatprep.subr.mxu0 0.0
    %106 = vmatpush1.xpose.msra.mxu0 0.0
    %107 = vmatprep.subr.mxu0 0.0
    %108 = vmatpush1.xpose.msra.mxu0 0.0
    %109 = vmatprep.subr.mxu0 0.0
    %110 = vmatpush1.xpose.msra.mxu0 0.0
    %111 = vmatprep.subr.mxu0 0.0
    %112 = vmatpush1.xpose.msra.mxu0 0.0
    %113 = vmatprep.subr.mxu0 0.0
    %114 = vmatpush1.xpose.msra.mxu0 0.0
    %115 = vmatprep.subr.mxu0 0.0
    %116 = vmatpush1.xpose.msra.mxu0 0.0
    %117 = vmatprep.subr.mxu0 0.0
    %118 = vmatpush1.xpose.msra.mxu0 0.0
    %119 = vmatprep.subr.mxu0 0.0
    %120 = vmatpush1.xpose.msra.mxu0 0.0
    %121 = vmatprep.subr.mxu0 0.0
    %122 = vmatpush1.xpose.msra.mxu0 0.0
    %123 = vmatprep.subr.mxu0 0.0
    %124 = vmatpush1.xpose.msra.mxu0 0.0
    %125 = vmatprep.subr.mxu0 0.0
    %126 = vmatpush1.xpose.msra.mxu0 0.0
    %127 = vmatprep.subr.mxu0 0.0
    %128 = vmatpush1.xpose.msra.mxu0 0.0
    %129 = vmatprep.subr.mxu0 0.0
    %130 = vmatpush1.xpose.msra.mxu0 0.0
    %131 = vmatprep.subr.mxu0 0.0
    %132 = vmatpush1.xpose.msra.mxu0 0.0
    %133 = vmatprep.subr.mxu0 0.0
    %v134 = vand.u32 %v17, 4294901760
    %v135 = vsub.f32 %v17, %v134
    %v136 = vand.u32 %v135, 4294901760
    %v137 = vsub.f32 %v135, %v136
    %v138 = vand.u32 %v137, 4294901760
    %139 = vmatpush1.xpose.msra.mxu0 %v138
    %140 = vmatprep.subr.mxu0 0.0
    %v141 = vand.u32 %v16, 4294901760
    %v142 = vsub.f32 %v16, %v141
    %v143 = vand.u32 %v142, 4294901760
    %v144 = vsub.f32 %v142, %v143
    %v145 = vand.u32 %v144, 4294901760
    %146 = vmatpush1.xpose.msra.mxu0 %v145
    %147 = vmatprep.subr.mxu0 0.0
    %148 = vmatpush2.xpose.msra.mxu0 0.0
    %149 = vmatprep.subr.mxu0 0.0
    %150 = vmatpush2.xpose.msra.mxu0 0.0
    %151 = vmatprep.subr.mxu0 0.0
    %152 = vmatpush2.xpose.msra.mxu0 0.0
    %153 = vmatprep.subr.mxu0 0.0
    %154 = vmatpush2.xpose.msra.mxu0 0.0
    %155 = vmatprep.subr.mxu0 0.0
    %156 = vmatpush2.xpose.msra.mxu0 0.0
    %157 = vmatprep.subr.mxu0 0.0
    %158 = vmatpush2.xpose.msra.mxu0 0.0
    %159 = vmatprep.subr.mxu0 0.0
    %160 = vmatpush2.xpose.msra.mxu0 0.0
    %161 = vmatprep.subr.mxu0 0.0
    %162 = vmatpush2.xpose.msra.mxu0 0.0
    %163 = vmatprep.subr.mxu0 0.0
    %164 = vmatpush2.xpose.msra.mxu0 0.0
    %165 = vmatprep.subr.mxu0 0.0
    %166 = vmatpush2.xpose.msra.mxu0 0.0
    %167 = vmatprep.subr.mxu0 0.0
    %168 = vmatpush2.xpose.msra.mxu0 0.0
    %169 = vmatprep.subr.mxu0 0.0
    %170 = vmatpush2.xpose.msra.mxu0 0.0
    %171 = vmatprep.subr.mxu0 0.0
    %172 = vmatpush2.xpose.msra.mxu0 0.0
    %173 = vmatprep.subr.mxu0 0.0
    %174 = vmatpush2.xpose.msra.mxu0 0.0
    %175 = vmatprep.subr.mxu0 0.0
    %176 = vmatpush2.xpose.msra.mxu0 0.0
    %177 = vmatprep.subr.mxu0 0.0
    %178 = vmatpush2.xpose.msra.mxu0 0.0
    %179 = vmatprep.mubr.f32.mxu0 0.0
    %v180 = vand.u32 %v14, 4294901760
    %181 = vmatmul.mubr.f32.gmra.mxu0 %v180
    %v182 = vpop.f32.mrf.mxu0
    %v183 = vadd.f32 %v92, %v182
    %v184 = vpop.f32.mrf.mxu0
    %185 = vmatprep.mubr.f32.mxu0 0.0
    %v186 = vand.u32 %v15, 4294901760
    %187 = vmatmul.mubr.f32.gmra.mxu0 %v186
    %v188 = vpop.f32.mrf.mxu0
    %v189 = vadd.f32 %v102, %v188
    %v190 = vpop.f32.mrf.mxu0
    %191 = vdwg.mxu0
    %192 = vmatprep.subr.mxu0 0.0
    %193 = vmatpush1.xpose.msra.mxu0 0.0
    %194 = vmatprep.subr.mxu0 0.0
    %195 = vmatpush1.xpose.msra.mxu0 0.0
    %196 = vmatprep.subr.mxu0 0.0
    %197 = vmatpush1.xpose.msra.mxu0 0.0
    %198 = vmatprep.subr.mxu0 0.0
    %199 = vmatpush1.xpose.msra.mxu0 0.0
    %200 = vmatprep.subr.mxu0 0.0
    %201 = vmatpush1.xpose.msra.mxu0 0.0
    %202 = vmatprep.subr.mxu0 0.0
    %203 = vmatpush1.xpose.msra.mxu0 0.0
    %204 = vmatprep.subr.mxu0 0.0
    %205 = vmatpush1.xpose.msra.mxu0 0.0
    %206 = vmatprep.subr.mxu0 0.0
    %207 = vmatpush1.xpose.msra.mxu0 0.0
    %208 = vmatprep.subr.mxu0 0.0
    %209 = vmatpush1.xpose.msra.mxu0 0.0
    %210 = vmatprep.subr.mxu0 0.0
    %211 = vmatpush1.xpose.msra.mxu0 0.0
    %212 = vmatprep.subr.mxu0 0.0
    %213 = vmatpush1.xpose.msra.mxu0 0.0
    %214 = vmatprep.subr.mxu0 0.0
    %215 = vmatpush1.xpose.msra.mxu0 0.0
    %216 = vmatprep.subr.mxu0 0.0
    %217 = vmatpush1.xpose.msra.mxu0 0.0
    %218 = vmatprep.subr.mxu0 0.0
    %219 = vmatpush1.xpose.msra.mxu0 0.0
    %220 = vmatprep.subr.mxu0 0.0
    %v221 = vand.u32 %v17, 4294901760
    %v222 = vsub.f32 %v17, %v221
    %223 = vmatpush1.xpose.msra.mxu0 %v222
    %224 = vmatprep.subr.mxu0 0.0
    %v225 = vand.u32 %v16, 4294901760
    %v226 = vsub.f32 %v16, %v225
    %227 = vmatpush1.xpose.msra.mxu0 %v226
    %228 = vmatprep.subr.mxu0 0.0
    %229 = vmatpush2.xpose.msra.mxu0 0.0
    %230 = vmatprep.subr.mxu0 0.0
    %231 = vmatpush2.xpose.msra.mxu0 0.0
    %232 = vmatprep.subr.mxu0 0.0
    %233 = vmatpush2.xpose.msra.mxu0 0.0
    %234 = vmatprep.subr.mxu0 0.0
    %235 = vmatpush2.xpose.msra.mxu0 0.0
    %236 = vmatprep.subr.mxu0 0.0
    %237 = vmatpush2.xpose.msra.mxu0 0.0
    %238 = vmatprep.subr.mxu0 0.0
    %239 = vmatpush2.xpose.msra.mxu0 0.0
    %240 = vmatprep.subr.mxu0 0.0
    %241 = vmatpush2.xpose.msra.mxu0 0.0
    %242 = vmatprep.subr.mxu0 0.0
    %243 = vmatpush2.xpose.msra.mxu0 0.0
    %244 = vmatprep.subr.mxu0 0.0
    %245 = vmatpush2.xpose.msra.mxu0 0.0
    %246 = vmatprep.subr.mxu0 0.0
    %247 = vmatpush2.xpose.msra.mxu0 0.0
    %248 = vmatprep.subr.mxu0 0.0
    %249 = vmatpush2.xpose.msra.mxu0 0.0
    %250 = vmatprep.subr.mxu0 0.0
    %251 = vmatpush2.xpose.msra.mxu0 0.0
    %252 = vmatprep.subr.mxu0 0.0
    %253 = vmatpush2.xpose.msra.mxu0 0.0
    %254 = vmatprep.subr.mxu0 0.0
    %255 = vmatpush2.xpose.msra.mxu0 0.0
    %256 = vmatprep.subr.mxu0 0.0
    %257 = vmatpush2.xpose.msra.mxu0 0.0
    %258 = vmatprep.subr.mxu0 0.0
    %259 = vmatpush2.xpose.msra.mxu0 0.0
    %260 = vmatprep.mubr.f32.mxu0 0.0
    %v261 = vand.u32 %v14, 4294901760
    %v262 = vsub.f32 %v14, %v261
    %263 = vmatmul.mubr.f32.gmra.mxu0 %v262
    %v264 = vpop.f32.mrf.mxu0
    %v265 = vadd.f32 %v183, %v264
    %v266 = vpop.f32.mrf.mxu0
    %267 = vmatprep.mubr.f32.mxu0 0.0
    %v268 = vand.u32 %v15, 4294901760
    %v269 = vsub.f32 %v15, %v268
    %270 = vmatmul.mubr.f32.gmra.mxu0 %v269
    %v271 = vpop.f32.mrf.mxu0
    %v272 = vadd.f32 %v189, %v271
    %v273 = vpop.f32.mrf.mxu0
    %274 = vdwg.mxu0
    %275 = vmatprep.subr.mxu0 0.0
    %276 = vmatpush1.xpose.msra.mxu0 0.0
    %277 = vmatprep.subr.mxu0 0.0
    %278 = vmatpush1.xpose.msra.mxu0 0.0
    %279 = vmatprep.subr.mxu0 0.0
    %280 = vmatpush1.xpose.msra.mxu0 0.0
    %281 = vmatprep.subr.mxu0 0.0
    %282 = vmatpush1.xpose.msra.mxu0 0.0
    %283 = vmatprep.subr.mxu0 0.0
    %284 = vmatpush1.xpose.msra.mxu0 0.0
    %285 = vmatprep.subr.mxu0 0.0
    %286 = vmatpush1.xpose.msra.mxu0 0.0
    %287 = vmatprep.subr.mxu0 0.0
    %288 = vmatpush1.xpose.msra.mxu0 0.0
    %289 = vmatprep.subr.mxu0 0.0
    %290 = vmatpush1.xpose.msra.mxu0 0.0
    %291 = vmatprep.subr.mxu0 0.0
    %292 = vmatpush1.xpose.msra.mxu0 0.0
    %293 = vmatprep.subr.mxu0 0.0
    %294 = vmatpush1.xpose.msra.mxu0 0.0
    %295 = vmatprep.subr.mxu0 0.0
    %296 = vmatpush1.xpose.msra.mxu0 0.0
    %297 = vmatprep.subr.mxu0 0.0
    %298 = vmatpush1.xpose.msra.mxu0 0.0
    %299 = vmatprep.subr.mxu0 0.0
    %300 = vmatpush1.xpose.msra.mxu0 0.0
    %301 = vmatprep.subr.mxu0 0.0
    %302 = vmatpush1.xpose.msra.mxu0 0.0
    %303 = vmatprep.subr.mxu0 0.0
    %v304 = vand.u32 %v17, 4294901760
    %305 = vmatpush1.xpose.msra.mxu0 %v304
    %306 = vmatprep.subr.mxu0 0.0
    %v307 = vand.u32 %v16, 4294901760
    %308 = vmatpush1.xpose.msra.mxu0 %v307
    %309 = vmatprep.subr.mxu0 0.0
    %310 = vmatpush2.xpose.msra.mxu0 0.0
    %311 = vmatprep.subr.mxu0 0.0
    %312 = vmatpush2.xpose.msra.mxu0 0.0
    %313 = vmatprep.subr.mxu0 0.0
    %314 = vmatpush2.xpose.msra.mxu0 0.0
    %315 = vmatprep.subr.mxu0 0.0
    %316 = vmatpush2.xpose.msra.mxu0 0.0
    %317 = vmatprep.subr.mxu0 0.0
    %318 = vmatpush2.xpose.msra.mxu0 0.0
    %319 = vmatprep.subr.mxu0 0.0
    %320 = vmatpush2.xpose.msra.mxu0 0.0
    %321 = vmatprep.subr.mxu0 0.0
    %322 = vmatpush2.xpose.msra.mxu0 0.0
    %323 = vmatprep.subr.mxu0 0.0
    %324 = vmatpush2.xpose.msra.mxu0 0.0
    %325 = vmatprep.subr.mxu0 0.0
    %326 = vmatpush2.xpose.msra.mxu0 0.0
    %327 = vmatprep.subr.mxu0 0.0
    %328 = vmatpush2.xpose.msra.mxu0 0.0
    %329 = vmatprep.subr.mxu0 0.0
    %330 = vmatpush2.xpose.msra.mxu0 0.0
    %331 = vmatprep.subr.mxu0 0.0
    %332 = vmatpush2.xpose.msra.mxu0 0.0
    %333 = vmatprep.subr.mxu0 0.0
    %334 = vmatpush2.xpose.msra.mxu0 0.0
    %335 = vmatprep.subr.mxu0 0.0
    %336 = vmatpush2.xpose.msra.mxu0 0.0
    %337 = vmatprep.subr.mxu0 0.0
    %338 = vmatpush2.xpose.msra.mxu0 0.0
    %339 = vmatprep.subr.mxu0 0.0
    %340 = vmatpush2.xpose.msra.mxu0 0.0
    %341 = vmatprep.mubr.f32.mxu0 0.0
    %v342 = vand.u32 %v14, 4294901760
    %v343 = vsub.f32 %v14, %v342
    %v344 = vand.u32 %v343, 4294901760
    %345 = vmatmul.mubr.f32.gmra.mxu0 %v344
    %v346 = vpop.f32.mrf.mxu0
    %v347 = vadd.f32 %v265, %v346
    %v348 = vpop.f32.mrf.mxu0
    %349 = vmatprep.mubr.f32.mxu0 0.0
    %v350 = vand.u32 %v15, 4294901760
    %v351 = vsub.f32 %v15, %v350
    %v352 = vand.u32 %v351, 4294901760
    %353 = vmatmul.mubr.f32.gmra.mxu0 %v352
    %v354 = vpop.f32.mrf.mxu0
    %v355 = vadd.f32 %v272, %v354
    %v356 = vpop.f32.mrf.mxu0
    %357 = vdwg.mxu0
    %358 = vmatprep.subr.mxu0 0.0
    %359 = vmatpush1.xpose.msra.mxu0 0.0
    %360 = vmatprep.subr.mxu0 0.0
    %361 = vmatpush1.xpose.msra.mxu0 0.0
    %362 = vmatprep.subr.mxu0 0.0
    %363 = vmatpush1.xpose.msra.mxu0 0.0
    %364 = vmatprep.subr.mxu0 0.0
    %365 = vmatpush1.xpose.msra.mxu0 0.0
    %366 = vmatprep.subr.mxu0 0.0
    %367 = vmatpush1.xpose.msra.mxu0 0.0
    %368 = vmatprep.subr.mxu0 0.0
    %369 = vmatpush1.xpose.msra.mxu0 0.0
    %370 = vmatprep.subr.mxu0 0.0
    %371 = vmatpush1.xpose.msra.mxu0 0.0
    %372 = vmatprep.subr.mxu0 0.0
    %373 = vmatpush1.xpose.msra.mxu0 0.0
    %374 = vmatprep.subr.mxu0 0.0
    %375 = vmatpush1.xpose.msra.mxu0 0.0
    %376 = vmatprep.subr.mxu0 0.0
    %377 = vmatpush1.xpose.msra.mxu0 0.0
    %378 = vmatprep.subr.mxu0 0.0
    %379 = vmatpush1.xpose.msra.mxu0 0.0
    %380 = vmatprep.subr.mxu0 0.0
    %381 = vmatpush1.xpose.msra.mxu0 0.0
    %382 = vmatprep.subr.mxu0 0.0
    %383 = vmatpush1.xpose.msra.mxu0 0.0
    %384 = vmatprep.subr.mxu0 0.0
    %385 = vmatpush1.xpose.msra.mxu0 0.0
    %386 = vmatprep.subr.mxu0 0.0
    %v387 = vand.u32 %v17, 4294901760
    %v388 = vsub.f32 %v17, %v387
    %v389 = vand.u32 %v388, 4294901760
    %390 = vmatpush1.xpose.msra.mxu0 %v389
    %391 = vmatprep.subr.mxu0 0.0
    %v392 = vand.u32 %v16, 4294901760
    %v393 = vsub.f32 %v16, %v392
    %v394 = vand.u32 %v393, 4294901760
    %395 = vmatpush1.xpose.msra.mxu0 %v394
    %396 = vmatprep.subr.mxu0 0.0
    %397 = vmatpush2.xpose.msra.mxu0 0.0
    %398 = vmatprep.subr.mxu0 0.0
    %399 = vmatpush2.xpose.msra.mxu0 0.0
    %400 = vmatprep.subr.mxu0 0.0
    %401 = vmatpush2.xpose.msra.mxu0 0.0
    %402 = vmatprep.subr.mxu0 0.0
    %403 = vmatpush2.xpose.msra.mxu0 0.0
    %404 = vmatprep.subr.mxu0 0.0
    %405 = vmatpush2.xpose.msra.mxu0 0.0
    %406 = vmatprep.subr.mxu0 0.0
    %407 = vmatpush2.xpose.msra.mxu0 0.0
    %408 = vmatprep.subr.mxu0 0.0
    %409 = vmatpush2.xpose.msra.mxu0 0.0
    %410 = vmatprep.subr.mxu0 0.0
    %411 = vmatpush2.xpose.msra.mxu0 0.0
    %412 = vmatprep.subr.mxu0 0.0
    %413 = vmatpush2.xpose.msra.mxu0 0.0
    %414 = vmatprep.subr.mxu0 0.0
    %415 = vmatpush2.xpose.msra.mxu0 0.0
    %416 = vmatprep.subr.mxu0 0.0
    %417 = vmatpush2.xpose.msra.mxu0 0.0
    %418 = vmatprep.subr.mxu0 0.0
    %419 = vmatpush2.xpose.msra.mxu0 0.0
    %420 = vmatprep.subr.mxu0 0.0
    %421 = vmatpush2.xpose.msra.mxu0 0.0
    %422 = vmatprep.subr.mxu0 0.0
    %423 = vmatpush2.xpose.msra.mxu0 0.0
    %424 = vmatprep.subr.mxu0 0.0
    %425 = vmatpush2.xpose.msra.mxu0 0.0
    %426 = vmatprep.subr.mxu0 0.0
    %427 = vmatpush2.xpose.msra.mxu0 0.0
    %428 = vmatprep.mubr.f32.mxu0 0.0
    %v429 = vand.u32 %v14, 4294901760
    %430 = vmatmul.mubr.f32.gmra.mxu0 %v429
    %v431 = vpop.f32.mrf.mxu0
    %v432 = vadd.f32 %v347, %v431
    %v433 = vpop.f32.mrf.mxu0
    %434 = vmatprep.mubr.f32.mxu0 0.0
    %v435 = vand.u32 %v15, 4294901760
    %436 = vmatmul.mubr.f32.gmra.mxu0 %v435
    %v437 = vpop.f32.mrf.mxu0
    %v438 = vadd.f32 %v355, %v437
    %v439 = vpop.f32.mrf.mxu0
    %440 = vdwg.mxu0
    %441 = vmatprep.subr.mxu0 0.0
    %442 = vmatpush1.xpose.msra.mxu0 0.0
    %443 = vmatprep.subr.mxu0 0.0
    %444 = vmatpush1.xpose.msra.mxu0 0.0
    %445 = vmatprep.subr.mxu0 0.0
    %446 = vmatpush1.xpose.msra.mxu0 0.0
    %447 = vmatprep.subr.mxu0 0.0
    %448 = vmatpush1.xpose.msra.mxu0 0.0
    %449 = vmatprep.subr.mxu0 0.0
    %450 = vmatpush1.xpose.msra.mxu0 0.0
    %451 = vmatprep.subr.mxu0 0.0
    %452 = vmatpush1.xpose.msra.mxu0 0.0
    %453 = vmatprep.subr.mxu0 0.0
    %454 = vmatpush1.xpose.msra.mxu0 0.0
    %455 = vmatprep.subr.mxu0 0.0
    %456 = vmatpush1.xpose.msra.mxu0 0.0
    %457 = vmatprep.subr.mxu0 0.0
    %458 = vmatpush1.xpose.msra.mxu0 0.0
    %459 = vmatprep.subr.mxu0 0.0
    %460 = vmatpush1.xpose.msra.mxu0 0.0
    %461 = vmatprep.subr.mxu0 0.0
    %462 = vmatpush1.xpose.msra.mxu0 0.0
    %463 = vmatprep.subr.mxu0 0.0
    %464 = vmatpush1.xpose.msra.mxu0 0.0
    %465 = vmatprep.subr.mxu0 0.0
    %466 = vmatpush1.xpose.msra.mxu0 0.0
    %467 = vmatprep.subr.mxu0 0.0
    %468 = vmatpush1.xpose.msra.mxu0 0.0
    %469 = vmatprep.subr.mxu0 0.0
    %v470 = vand.u32 %v17, 4294901760
    %471 = vmatpush1.xpose.msra.mxu0 %v470
    %472 = vmatprep.subr.mxu0 0.0
    %v473 = vand.u32 %v16, 4294901760
    %474 = vmatpush1.xpose.msra.mxu0 %v473
    %475 = vmatprep.subr.mxu0 0.0
    %476 = vmatpush2.xpose.msra.mxu0 0.0
    %477 = vmatprep.subr.mxu0 0.0
    %478 = vmatpush2.xpose.msra.mxu0 0.0
    %479 = vmatprep.subr.mxu0 0.0
    %480 = vmatpush2.xpose.msra.mxu0 0.0
    %481 = vmatprep.subr.mxu0 0.0
    %482 = vmatpush2.xpose.msra.mxu0 0.0
    %483 = vmatprep.subr.mxu0 0.0
    %484 = vmatpush2.xpose.msra.mxu0 0.0
    %485 = vmatprep.subr.mxu0 0.0
    %486 = vmatpush2.xpose.msra.mxu0 0.0
    %487 = vmatprep.subr.mxu0 0.0
    %488 = vmatpush2.xpose.msra.mxu0 0.0
    %489 = vmatprep.subr.mxu0 0.0
    %490 = vmatpush2.xpose.msra.mxu0 0.0
    %491 = vmatprep.subr.mxu0 0.0
    %492 = vmatpush2.xpose.msra.mxu0 0.0
    %493 = vmatprep.subr.mxu0 0.0
    %494 = vmatpush2.xpose.msra.mxu0 0.0
    %495 = vmatprep.subr.mxu0 0.0
    %496 = vmatpush2.xpose.msra.mxu0 0.0
    %497 = vmatprep.subr.mxu0 0.0
    %498 = vmatpush2.xpose.msra.mxu0 0.0
    %499 = vmatprep.subr.mxu0 0.0
    %500 = vmatpush2.xpose.msra.mxu0 0.0
    %501 = vmatprep.subr.mxu0 0.0
    %502 = vmatpush2.xpose.msra.mxu0 0.0
    %503 = vmatprep.subr.mxu0 0.0
    %504 = vmatpush2.xpose.msra.mxu0 0.0
    %505 = vmatprep.subr.mxu0 0.0
    %506 = vmatpush2.xpose.msra.mxu0 0.0
    %507 = vmatprep.mubr.f32.mxu0 0.0
    %v508 = vand.u32 %v14, 4294901760
    %509 = vmatmul.mubr.f32.gmra.mxu0 %v508
    %v510 = vpop.f32.mrf.mxu0
    %v511 = vadd.f32 %v432, %v510
    %v512 = vpop.f32.mrf.mxu0
    %513 = vmatprep.mubr.f32.mxu0 0.0
    %v514 = vand.u32 %v15, 4294901760
    %515 = vmatmul.mubr.f32.gmra.mxu0 %v514
    %v516 = vpop.f32.mrf.mxu0
    %v517 = vadd.f32 %v438, %v516
    %v518 = vpop.f32.mrf.mxu0
    %519 = vdwg.mxu0
    %v520 = vxor.u32 %v511, 2147483648
    %v521 = vxor.u32 %v517, 2147483648
    %v522 = vmul.f32 %v520, 1.442695
    %v523 = vpow.pop %v522
    %v524 = vmul.f32 %v521, 1.442695
    %v525 = vpow.pop %v524
    %v526 = vadd.f32 %v523, 1.0
    %v527 = vadd.f32 %v525, 1.0
    %v528 = vrcp.pop %v526
    %v529 = vmul.f32 1.0, %v528
    %v530 = vrcp.pop %v527
    %v531 = vmul.f32 1.0, %v530
    %vm532 = vcmask 130048
    %533 = vst.msk [vmem:[#allocation2] sm:$0xff] %vm532, %v529
    %534 = vst.msk [vmem:[#allocation2 + $0x8] sm:$0xff] %vm532, %v531
    %v535 = vld [vmem:[#allocation2] sm:$0xff]
    %v536 = vld [vmem:[#allocation2 + $0x8] sm:$0xff]
    %s537 = scalar_lea.vmem %s1, %s12
    %v538 = vld [vmem:[%s537] sm:$0xff]
    %v539 = vld [vmem:[%s537 + $0x8] sm:$0xff]
    %v540 = vld [vmem:[%s1] sm:$0xff]
    %v541 = vld [vmem:[%s1 + $0x8] sm:$0xff]
    %542 = vmatprep.subr.mxu0 0.0
    %543 = vmatpush1.xpose.msra.mxu0 0.0
    %544 = vmatprep.subr.mxu0 0.0
    %545 = vmatpush1.xpose.msra.mxu0 0.0
    %546 = vmatprep.subr.mxu0 0.0
    %547 = vmatpush1.xpose.msra.mxu0 0.0
    %548 = vmatprep.subr.mxu0 0.0
    %549 = vmatpush1.xpose.msra.mxu0 0.0
    %550 = vmatprep.subr.mxu0 0.0
    %551 = vmatpush1.xpose.msra.mxu0 0.0
    %552 = vmatprep.subr.mxu0 0.0
    %553 = vmatpush1.xpose.msra.mxu0 0.0
    %554 = vmatprep.subr.mxu0 0.0
    %555 = vmatpush1.xpose.msra.mxu0 0.0
    %556 = vmatprep.subr.mxu0 0.0
    %557 = vmatpush1.xpose.msra.mxu0 0.0
    %558 = vmatprep.subr.mxu0 0.0
    %559 = vmatpush1.xpose.msra.mxu0 0.0
    %560 = vmatprep.subr.mxu0 0.0
    %561 = vmatpush1.xpose.msra.mxu0 0.0
    %562 = vmatprep.subr.mxu0 0.0
    %563 = vmatpush1.xpose.msra.mxu0 0.0
    %564 = vmatprep.subr.mxu0 0.0
    %565 = vmatpush1.xpose.msra.mxu0 0.0
    %566 = vmatprep.subr.mxu0 0.0
    %567 = vmatpush1.xpose.msra.mxu0 0.0
    %568 = vmatprep.subr.mxu0 0.0
    %569 = vmatpush1.xpose.msra.mxu0 0.0
    %570 = vmatprep.subr.mxu0 0.0
    %v571 = vand.u32 %v541, 4294901760
    %572 = vmatpush1.xpose.msra.mxu0 %v571
    %573 = vmatprep.subr.mxu0 0.0
    %v574 = vand.u32 %v540, 4294901760
    %575 = vmatpush1.xpose.msra.mxu0 %v574
    %576 = vmatprep.subr.mxu0 0.0
    %577 = vmatpush2.xpose.msra.mxu0 0.0
    %578 = vmatprep.subr.mxu0 0.0
    %579 = vmatpush2.xpose.msra.mxu0 0.0
    %580 = vmatprep.subr.mxu0 0.0
    %581 = vmatpush2.xpose.msra.mxu0 0.0
    %582 = vmatprep.subr.mxu0 0.0
    %583 = vmatpush2.xpose.msra.mxu0 0.0
    %584 = vmatprep.subr.mxu0 0.0
    %585 = vmatpush2.xpose.msra.mxu0 0.0
    %586 = vmatprep.subr.mxu0 0.0
    %587 = vmatpush2.xpose.msra.mxu0 0.0
    %588 = vmatprep.subr.mxu0 0.0
    %589 = vmatpush2.xpose.msra.mxu0 0.0
    %590 = vmatprep.subr.mxu0 0.0
    %591 = vmatpush2.xpose.msra.mxu0 0.0
    %592 = vmatprep.subr.mxu0 0.0
    %593 = vmatpush2.xpose.msra.mxu0 0.0
    %594 = vmatprep.subr.mxu0 0.0
    %595 = vmatpush2.xpose.msra.mxu0 0.0
    %596 = vmatprep.subr.mxu0 0.0
    %597 = vmatpush2.xpose.msra.mxu0 0.0
    %598 = vmatprep.subr.mxu0 0.0
    %599 = vmatpush2.xpose.msra.mxu0 0.0
    %600 = vmatprep.subr.mxu0 0.0
    %601 = vmatpush2.xpose.msra.mxu0 0.0
    %602 = vmatprep.subr.mxu0 0.0
    %603 = vmatpush2.xpose.msra.mxu0 0.0
    %604 = vmatprep.subr.mxu0 0.0
    %605 = vmatpush2.xpose.msra.mxu0 0.0
    %606 = vmatprep.subr.mxu0 0.0
    %607 = vmatpush2.xpose.msra.mxu0 0.0
    %608 = vmatprep.mubr.f32.mxu0 0.0
    %v609 = vand.u32 %v538, 4294901760
    %v610 = vsub.f32 %v538, %v609
    %v611 = vand.u32 %v610, 4294901760
    %v612 = vsub.f32 %v610, %v611
    %v613 = vand.u32 %v612, 4294901760
    %614 = vmatmul.mubr.f32.gmra.mxu0 %v613
    %v615 = vpop.f32.mrf.mxu0
    %v616 = vadd.f32 0.0, %v615
    %v617 = vpop.f32.mrf.mxu0
    %618 = vmatprep.mubr.f32.mxu0 0.0
    %v619 = vand.u32 %v539, 4294901760
    %v620 = vsub.f32 %v539, %v619
    %v621 = vand.u32 %v620, 4294901760
    %v622 = vsub.f32 %v620, %v621
    %v623 = vand.u32 %v622, 4294901760
    %624 = vmatmul.mubr.f32.gmra.mxu0 %v623
    %v625 = vpop.f32.mrf.mxu0
    %v626 = vadd.f32 0.0, %v625
    %v627 = vpop.f32.mrf.mxu0
    %628 = vdwg.mxu0
    %629 = vmatprep.subr.mxu0 0.0
    %630 = vmatpush1.xpose.msra.mxu0 0.0
    %631 = vmatprep.subr.mxu0 0.0
    %632 = vmatpush1.xpose.msra.mxu0 0.0
    %633 = vmatprep.subr.mxu0 0.0
    %634 = vmatpush1.xpose.msra.mxu0 0.0
    %635 = vmatprep.subr.mxu0 0.0
    %636 = vmatpush1.xpose.msra.mxu0 0.0
    %637 = vmatprep.subr.mxu0 0.0
    %638 = vmatpush1.xpose.msra.mxu0 0.0
    %639 = vmatprep.subr.mxu0 0.0
    %640 = vmatpush1.xpose.msra.mxu0 0.0
    %641 = vmatprep.subr.mxu0 0.0
    %642 = vmatpush1.xpose.msra.mxu0 0.0
    %643 = vmatprep.subr.mxu0 0.0
    %644 = vmatpush1.xpose.msra.mxu0 0.0
    %645 = vmatprep.subr.mxu0 0.0
    %646 = vmatpush1.xpose.msra.mxu0 0.0
    %647 = vmatprep.subr.mxu0 0.0
    %648 = vmatpush1.xpose.msra.mxu0 0.0
    %649 = vmatprep.subr.mxu0 0.0
    %650 = vmatpush1.xpose.msra.mxu0 0.0
    %651 = vmatprep.subr.mxu0 0.0
    %652 = vmatpush1.xpose.msra.mxu0 0.0
    %653 = vmatprep.subr.mxu0 0.0
    %654 = vmatpush1.xpose.msra.mxu0 0.0
    %655 = vmatprep.subr.mxu0 0.0
    %656 = vmatpush1.xpose.msra.mxu0 0.0
    %657 = vmatprep.subr.mxu0 0.0
    %v658 = vand.u32 %v541, 4294901760
    %v659 = vsub.f32 %v541, %v658
    %v660 = vand.u32 %v659, 4294901760
    %v661 = vsub.f32 %v659, %v660
    %v662 = vand.u32 %v661, 4294901760
    %663 = vmatpush1.xpose.msra.mxu0 %v662
    %664 = vmatprep.subr.mxu0 0.0
    %v665 = vand.u32 %v540, 4294901760
    %v666 = vsub.f32 %v540, %v665
    %v667 = vand.u32 %v666, 4294901760
    %v668 = vsub.f32 %v666, %v667
    %v669 = vand.u32 %v668, 4294901760
    %670 = vmatpush1.xpose.msra.mxu0 %v669
    %671 = vmatprep.subr.mxu0 0.0
    %672 = vmatpush2.xpose.msra.mxu0 0.0
    %673 = vmatprep.subr.mxu0 0.0
    %674 = vmatpush2.xpose.msra.mxu0 0.0
    %675 = vmatprep.subr.mxu0 0.0
    %676 = vmatpush2.xpose.msra.mxu0 0.0
    %677 = vmatprep.subr.mxu0 0.0
    %678 = vmatpush2.xpose.msra.mxu0 0.0
    %679 = vmatprep.subr.mxu0 0.0
    %680 = vmatpush2.xpose.msra.mxu0 0.0
    %681 = vmatprep.subr.mxu0 0.0
    %682 = vmatpush2.xpose.msra.mxu0 0.0
    %683 = vmatprep.subr.mxu0 0.0
    %684 = vmatpush2.xpose.msra.mxu0 0.0
    %685 = vmatprep.subr.mxu0 0.0
    %686 = vmatpush2.xpose.msra.mxu0 0.0
    %687 = vmatprep.subr.mxu0 0.0
    %688 = vmatpush2.xpose.msra.mxu0 0.0
    %689 = vmatprep.subr.mxu0 0.0
    %690 = vmatpush2.xpose.msra.mxu0 0.0
    %691 = vmatprep.subr.mxu0 0.0
    %692 = vmatpush2.xpose.msra.mxu0 0.0
    %693 = vmatprep.subr.mxu0 0.0
    %694 = vmatpush2.xpose.msra.mxu0 0.0
    %695 = vmatprep.subr.mxu0 0.0
    %696 = vmatpush2.xpose.msra.mxu0 0.0
    %697 = vmatprep.subr.mxu0 0.0
    %698 = vmatpush2.xpose.msra.mxu0 0.0
    %699 = vmatprep.subr.mxu0 0.0
    %700 = vmatpush2.xpose.msra.mxu0 0.0
    %701 = vmatprep.subr.mxu0 0.0
    %702 = vmatpush2.xpose.msra.mxu0 0.0
    %703 = vmatprep.mubr.f32.mxu0 0.0
    %v704 = vand.u32 %v538, 4294901760
    %705 = vmatmul.mubr.f32.gmra.mxu0 %v704
    %v706 = vpop.f32.mrf.mxu0
    %v707 = vadd.f32 %v616, %v706
    %v708 = vpop.f32.mrf.mxu0
    %709 = vmatprep.mubr.f32.mxu0 0.0
    %v710 = vand.u32 %v539, 4294901760
    %711 = vmatmul.mubr.f32.gmra.mxu0 %v710
    %v712 = vpop.f32.mrf.mxu0
    %v713 = vadd.f32 %v626, %v712
    %v714 = vpop.f32.mrf.mxu0
    %715 = vdwg.mxu0
    %716 = vmatprep.subr.mxu0 0.0
    %717 = vmatpush1.xpose.msra.mxu0 0.0
    %718 = vmatprep.subr.mxu0 0.0
    %719 = vmatpush1.xpose.msra.mxu0 0.0
    %720 = vmatprep.subr.mxu0 0.0
    %721 = vmatpush1.xpose.msra.mxu0 0.0
    %722 = vmatprep.subr.mxu0 0.0
    %723 = vmatpush1.xpose.msra.mxu0 0.0
    %724 = vmatprep.subr.mxu0 0.0
    %725 = vmatpush1.xpose.msra.mxu0 0.0
    %726 = vmatprep.subr.mxu0 0.0
    %727 = vmatpush1.xpose.msra.mxu0 0.0
    %728 = vmatprep.subr.mxu0 0.0
    %729 = vmatpush1.xpose.msra.mxu0 0.0
    %730 = vmatprep.subr.mxu0 0.0
    %731 = vmatpush1.xpose.msra.mxu0 0.0
    %732 = vmatprep.subr.mxu0 0.0
    %733 = vmatpush1.xpose.msra.mxu0 0.0
    %734 = vmatprep.subr.mxu0 0.0
    %735 = vmatpush1.xpose.msra.mxu0 0.0
    %736 = vmatprep.subr.mxu0 0.0
    %737 = vmatpush1.xpose.msra.mxu0 0.0
    %738 = vmatprep.subr.mxu0 0.0
    %739 = vmatpush1.xpose.msra.mxu0 0.0
    %740 = vmatprep.subr.mxu0 0.0
    %741 = vmatpush1.xpose.msra.mxu0 0.0
    %742 = vmatprep.subr.mxu0 0.0
    %743 = vmatpush1.xpose.msra.mxu0 0.0
    %744 = vmatprep.subr.mxu0 0.0
    %v745 = vand.u32 %v541, 4294901760
    %v746 = vsub.f32 %v541, %v745
    %747 = vmatpush1.xpose.msra.mxu0 %v746
    %748 = vmatprep.subr.mxu0 0.0
    %v749 = vand.u32 %v540, 4294901760
    %v750 = vsub.f32 %v540, %v749
    %751 = vmatpush1.xpose.msra.mxu0 %v750
    %752 = vmatprep.subr.mxu0 0.0
    %753 = vmatpush2.xpose.msra.mxu0 0.0
    %754 = vmatprep.subr.mxu0 0.0
    %755 = vmatpush2.xpose.msra.mxu0 0.0
    %756 = vmatprep.subr.mxu0 0.0
    %757 = vmatpush2.xpose.msra.mxu0 0.0
    %758 = vmatprep.subr.mxu0 0.0
    %759 = vmatpush2.xpose.msra.mxu0 0.0
    %760 = vmatprep.subr.mxu0 0.0
    %761 = vmatpush2.xpose.msra.mxu0 0.0
    %762 = vmatprep.subr.mxu0 0.0
    %763 = vmatpush2.xpose.msra.mxu0 0.0
    %764 = vmatprep.subr.mxu0 0.0
    %765 = vmatpush2.xpose.msra.mxu0 0.0
    %766 = vmatprep.subr.mxu0 0.0
    %767 = vmatpush2.xpose.msra.mxu0 0.0
    %768 = vmatprep.subr.mxu0 0.0
    %769 = vmatpush2.xpose.msra.mxu0 0.0
    %770 = vmatprep.subr.mxu0 0.0
    %771 = vmatpush2.xpose.msra.mxu0 0.0
    %772 = vmatprep.subr.mxu0 0.0
    %773 = vmatpush2.xpose.msra.mxu0 0.0
    %774 = vmatprep.subr.mxu0 0.0
    %775 = vmatpush2.xpose.msra.mxu0 0.0
    %776 = vmatprep.subr.mxu0 0.0
    %777 = vmatpush2.xpose.msra.mxu0 0.0
    %778 = vmatprep.subr.mxu0 0.0
    %779 = vmatpush2.xpose.msra.mxu0 0.0
    %780 = vmatprep.subr.mxu0 0.0
    %781 = vmatpush2.xpose.msra.mxu0 0.0
    %782 = vmatprep.subr.mxu0 0.0
    %783 = vmatpush2.xpose.msra.mxu0 0.0
    %784 = vmatprep.mubr.f32.mxu0 0.0
    %v785 = vand.u32 %v538, 4294901760
    %v786 = vsub.f32 %v538, %v785
    %787 = vmatmul.mubr.f32.gmra.mxu0 %v786
    %v788 = vpop.f32.mrf.mxu0
    %v789 = vadd.f32 %v707, %v788
    %v790 = vpop.f32.mrf.mxu0
    %791 = vmatprep.mubr.f32.mxu0 0.0
    %v792 = vand.u32 %v539, 4294901760
    %v793 = vsub.f32 %v539, %v792
    %794 = vmatmul.mubr.f32.gmra.mxu0 %v793
    %v795 = vpop.f32.mrf.mxu0
    %v796 = vadd.f32 %v713, %v795
    %v797 = vpop.f32.mrf.mxu0
    %798 = vdwg.mxu0
    %799 = vmatprep.subr.mxu0 0.0
    %800 = vmatpush1.xpose.msra.mxu0 0.0
    %801 = vmatprep.subr.mxu0 0.0
    %802 = vmatpush1.xpose.msra.mxu0 0.0
    %803 = vmatprep.subr.mxu0 0.0
    %804 = vmatpush1.xpose.msra.mxu0 0.0
    %805 = vmatprep.subr.mxu0 0.0
    %806 = vmatpush1.xpose.msra.mxu0 0.0
    %807 = vmatprep.subr.mxu0 0.0
    %808 = vmatpush1.xpose.msra.mxu0 0.0
    %809 = vmatprep.subr.mxu0 0.0
    %810 = vmatpush1.xpose.msra.mxu0 0.0
    %811 = vmatprep.subr.mxu0 0.0
    %812 = vmatpush1.xpose.msra.mxu0 0.0
    %813 = vmatprep.subr.mxu0 0.0
    %814 = vmatpush1.xpose.msra.mxu0 0.0
    %815 = vmatprep.subr.mxu0 0.0
    %816 = vmatpush1.xpose.msra.mxu0 0.0
    %817 = vmatprep.subr.mxu0 0.0
    %818 = vmatpush1.xpose.msra.mxu0 0.0
    %819 = vmatprep.subr.mxu0 0.0
    %820 = vmatpush1.xpose.msra.mxu0 0.0
    %821 = vmatprep.subr.mxu0 0.0
    %822 = vmatpush1.xpose.msra.mxu0 0.0
    %823 = vmatprep.subr.mxu0 0.0
    %824 = vmatpush1.xpose.msra.mxu0 0.0
    %825 = vmatprep.subr.mxu0 0.0
    %826 = vmatpush1.xpose.msra.mxu0 0.0
    %827 = vmatprep.subr.mxu0 0.0
    %v828 = vand.u32 %v541, 4294901760
    %829 = vmatpush1.xpose.msra.mxu0 %v828
    %830 = vmatprep.subr.mxu0 0.0
    %v831 = vand.u32 %v540, 4294901760
    %832 = vmatpush1.xpose.msra.mxu0 %v831
    %833 = vmatprep.subr.mxu0 0.0
    %834 = vmatpush2.xpose.msra.mxu0 0.0
    %835 = vmatprep.subr.mxu0 0.0
    %836 = vmatpush2.xpose.msra.mxu0 0.0
    %837 = vmatprep.subr.mxu0 0.0
    %838 = vmatpush2.xpose.msra.mxu0 0.0
    %839 = vmatprep.subr.mxu0 0.0
    %840 = vmatpush2.xpose.msra.mxu0 0.0
    %841 = vmatprep.subr.mxu0 0.0
    %842 = vmatpush2.xpose.msra.mxu0 0.0
    %843 = vmatprep.subr.mxu0 0.0
    %844 = vmatpush2.xpose.msra.mxu0 0.0
    %845 = vmatprep.subr.mxu0 0.0
    %846 = vmatpush2.xpose.msra.mxu0 0.0
    %847 = vmatprep.subr.mxu0 0.0
    %848 = vmatpush2.xpose.msra.mxu0 0.0
    %849 = vmatprep.subr.mxu0 0.0
    %850 = vmatpush2.xpose.msra.mxu0 0.0
    %851 = vmatprep.subr.mxu0 0.0
    %852 = vmatpush2.xpose.msra.mxu0 0.0
    %853 = vmatprep.subr.mxu0 0.0
    %854 = vmatpush2.xpose.msra.mxu0 0.0
    %855 = vmatprep.subr.mxu0 0.0
    %856 = vmatpush2.xpose.msra.mxu0 0.0
    %857 = vmatprep.subr.mxu0 0.0
    %858 = vmatpush2.xpose.msra.mxu0 0.0
    %859 = vmatprep.subr.mxu0 0.0
    %860 = vmatpush2.xpose.msra.mxu0 0.0
    %861 = vmatprep.subr.mxu0 0.0
    %862 = vmatpush2.xpose.msra.mxu0 0.0
    %863 = vmatprep.subr.mxu0 0.0
    %864 = vmatpush2.xpose.msra.mxu0 0.0
    %865 = vmatprep.mubr.f32.mxu0 0.0
    %v866 = vand.u32 %v538, 4294901760
    %v867 = vsub.f32 %v538, %v866
    %v868 = vand.u32 %v867, 4294901760
    %869 = vmatmul.mubr.f32.gmra.mxu0 %v868
    %v870 = vpop.f32.mrf.mxu0
    %v871 = vadd.f32 %v789, %v870
    %v872 = vpop.f32.mrf.mxu0
    %873 = vmatprep.mubr.f32.mxu0 0.0
    %v874 = vand.u32 %v539, 4294901760
    %v875 = vsub.f32 %v539, %v874
    %v876 = vand.u32 %v875, 4294901760
    %877 = vmatmul.mubr.f32.gmra.mxu0 %v876
    %v878 = vpop.f32.mrf.mxu0
    %v879 = vadd.f32 %v796, %v878
    %v880 = vpop.f32.mrf.mxu0
    %881 = vdwg.mxu0
    %882 = vmatprep.subr.mxu0 0.0
    %883 = vmatpush1.xpose.msra.mxu0 0.0
    %884 = vmatprep.subr.mxu0 0.0
    %885 = vmatpush1.xpose.msra.mxu0 0.0
    %886 = vmatprep.subr.mxu0 0.0
    %887 = vmatpush1.xpose.msra.mxu0 0.0
    %888 = vmatprep.subr.mxu0 0.0
    %889 = vmatpush1.xpose.msra.mxu0 0.0
    %890 = vmatprep.subr.mxu0 0.0
    %891 = vmatpush1.xpose.msra.mxu0 0.0
    %892 = vmatprep.subr.mxu0 0.0
    %893 = vmatpush1.xpose.msra.mxu0 0.0
    %894 = vmatprep.subr.mxu0 0.0
    %895 = vmatpush1.xpose.msra.mxu0 0.0
    %896 = vmatprep.subr.mxu0 0.0
    %897 = vmatpush1.xpose.msra.mxu0 0.0
    %898 = vmatprep.subr.mxu0 0.0
    %899 = vmatpush1.xpose.msra.mxu0 0.0
    %900 = vmatprep.subr.mxu0 0.0
    %901 = vmatpush1.xpose.msra.mxu0 0.0
    %902 = vmatprep.subr.mxu0 0.0
    %903 = vmatpush1.xpose.msra.mxu0 0.0
    %904 = vmatprep.subr.mxu0 0.0
    %905 = vmatpush1.xpose.msra.mxu0 0.0
    %906 = vmatprep.subr.mxu0 0.0
    %907 = vmatpush1.xpose.msra.mxu0 0.0
    %908 = vmatprep.subr.mxu0 0.0
    %909 = vmatpush1.xpose.msra.mxu0 0.0
    %910 = vmatprep.subr.mxu0 0.0
    %v911 = vand.u32 %v541, 4294901760
    %v912 = vsub.f32 %v541, %v911
    %v913 = vand.u32 %v912, 4294901760
    %914 = vmatpush1.xpose.msra.mxu0 %v913
    %915 = vmatprep.subr.mxu0 0.0
    %v916 = vand.u32 %v540, 4294901760
    %v917 = vsub.f32 %v540, %v916
    %v918 = vand.u32 %v917, 4294901760
    %919 = vmatpush1.xpose.msra.mxu0 %v918
    %920 = vmatprep.subr.mxu0 0.0
    %921 = vmatpush2.xpose.msra.mxu0 0.0
    %922 = vmatprep.subr.mxu0 0.0
    %923 = vmatpush2.xpose.msra.mxu0 0.0
    %924 = vmatprep.subr.mxu0 0.0
    %925 = vmatpush2.xpose.msra.mxu0 0.0
    %926 = vmatprep.subr.mxu0 0.0
    %927 = vmatpush2.xpose.msra.mxu0 0.0
    %928 = vmatprep.subr.mxu0 0.0
    %929 = vmatpush2.xpose.msra.mxu0 0.0
    %930 = vmatprep.subr.mxu0 0.0
    %931 = vmatpush2.xpose.msra.mxu0 0.0
    %932 = vmatprep.subr.mxu0 0.0
    %933 = vmatpush2.xpose.msra.mxu0 0.0
    %934 = vmatprep.subr.mxu0 0.0
    %935 = vmatpush2.xpose.msra.mxu0 0.0
    %936 = vmatprep.subr.mxu0 0.0
    %937 = vmatpush2.xpose.msra.mxu0 0.0
    %938 = vmatprep.subr.mxu0 0.0
    %939 = vmatpush2.xpose.msra.mxu0 0.0
    %940 = vmatprep.subr.mxu0 0.0
    %941 = vmatpush2.xpose.msra.mxu0 0.0
    %942 = vmatprep.subr.mxu0 0.0
    %943 = vmatpush2.xpose.msra.mxu0 0.0
    %944 = vmatprep.subr.mxu0 0.0
    %945 = vmatpush2.xpose.msra.mxu0 0.0
    %946 = vmatprep.subr.mxu0 0.0
    %947 = vmatpush2.xpose.msra.mxu0 0.0
    %948 = vmatprep.subr.mxu0 0.0
    %949 = vmatpush2.xpose.msra.mxu0 0.0
    %950 = vmatprep.subr.mxu0 0.0
    %951 = vmatpush2.xpose.msra.mxu0 0.0
    %952 = vmatprep.mubr.f32.mxu0 0.0
    %v953 = vand.u32 %v538, 4294901760
    %954 = vmatmul.mubr.f32.gmra.mxu0 %v953
    %v955 = vpop.f32.mrf.mxu0
    %v956 = vadd.f32 %v871, %v955
    %v957 = vpop.f32.mrf.mxu0
    %958 = vmatprep.mubr.f32.mxu0 0.0
    %v959 = vand.u32 %v539, 4294901760
    %960 = vmatmul.mubr.f32.gmra.mxu0 %v959
    %v961 = vpop.f32.mrf.mxu0
    %v962 = vadd.f32 %v879, %v961
    %v963 = vpop.f32.mrf.mxu0
    %964 = vdwg.mxu0
    %965 = vmatprep.subr.mxu0 0.0
    %966 = vmatpush1.xpose.msra.mxu0 0.0
    %967 = vmatprep.subr.mxu0 0.0
    %968 = vmatpush1.xpose.msra.mxu0 0.0
    %969 = vmatprep.subr.mxu0 0.0
    %970 = vmatpush1.xpose.msra.mxu0 0.0
    %971 = vmatprep.subr.mxu0 0.0
    %972 = vmatpush1.xpose.msra.mxu0 0.0
    %973 = vmatprep.subr.mxu0 0.0
    %974 = vmatpush1.xpose.msra.mxu0 0.0
    %975 = vmatprep.subr.mxu0 0.0
    %976 = vmatpush1.xpose.msra.mxu0 0.0
    %977 = vmatprep.subr.mxu0 0.0
    %978 = vmatpush1.xpose.msra.mxu0 0.0
    %979 = vmatprep.subr.mxu0 0.0
    %980 = vmatpush1.xpose.msra.mxu0 0.0
    %981 = vmatprep.subr.mxu0 0.0
    %982 = vmatpush1.xpose.msra.mxu0 0.0
    %983 = vmatprep.subr.mxu0 0.0
    %984 = vmatpush1.xpose.msra.mxu0 0.0
    %985 = vmatprep.subr.mxu0 0.0
    %986 = vmatpush1.xpose.msra.mxu0 0.0
    %987 = vmatprep.subr.mxu0 0.0
    %988 = vmatpush1.xpose.msra.mxu0 0.0
    %989 = vmatprep.subr.mxu0 0.0
    %990 = vmatpush1.xpose.msra.mxu0 0.0
    %991 = vmatprep.subr.mxu0 0.0
    %992 = vmatpush1.xpose.msra.mxu0 0.0
    %993 = vmatprep.subr.mxu0 0.0
    %v994 = vand.u32 %v541, 4294901760
    %995 = vmatpush1.xpose.msra.mxu0 %v994
    %996 = vmatprep.subr.mxu0 0.0
    %v997 = vand.u32 %v540, 4294901760
    %998 = vmatpush1.xpose.msra.mxu0 %v997
    %999 = vmatprep.subr.mxu0 0.0
    %1000 = vmatpush2.xpose.msra.mxu0 0.0
    %1001 = vmatprep.subr.mxu0 0.0
    %1002 = vmatpush2.xpose.msra.mxu0 0.0
    %1003 = vmatprep.subr.mxu0 0.0
    %1004 = vmatpush2.xpose.msra.mxu0 0.0
    %1005 = vmatprep.subr.mxu0 0.0
    %1006 = vmatpush2.xpose.msra.mxu0 0.0
    %1007 = vmatprep.subr.mxu0 0.0
    %1008 = vmatpush2.xpose.msra.mxu0 0.0
    %1009 = vmatprep.subr.mxu0 0.0
    %1010 = vmatpush2.xpose.msra.mxu0 0.0
    %1011 = vmatprep.subr.mxu0 0.0
    %1012 = vmatpush2.xpose.msra.mxu0 0.0
    %1013 = vmatprep.subr.mxu0 0.0
    %1014 = vmatpush2.xpose.msra.mxu0 0.0
    %1015 = vmatprep.subr.mxu0 0.0
    %1016 = vmatpush2.xpose.msra.mxu0 0.0
    %1017 = vmatprep.subr.mxu0 0.0
    %1018 = vmatpush2.xpose.msra.mxu0 0.0
    %1019 = vmatprep.subr.mxu0 0.0
    %1020 = vmatpush2.xpose.msra.mxu0 0.0
    %1021 = vmatprep.subr.mxu0 0.0
    %1022 = vmatpush2.xpose.msra.mxu0 0.0
    %1023 = vmatprep.subr.mxu0 0.0
    %1024 = vmatpush2.xpose.msra.mxu0 0.0
    %1025 = vmatprep.subr.mxu0 0.0
    %1026 = vmatpush2.xpose.msra.mxu0 0.0
    %1027 = vmatprep.subr.mxu0 0.0
    %1028 = vmatpush2.xpose.msra.mxu0 0.0
    %1029 = vmatprep.subr.mxu0 0.0
    %1030 = vmatpush2.xpose.msra.mxu0 0.0
    %1031 = vmatprep.mubr.f32.mxu0 0.0
    %v1032 = vand.u32 %v538, 4294901760
    %1033 = vmatmul.mubr.f32.gmra.mxu0 %v1032
    %v1034 = vpop.f32.mrf.mxu0
    %v1035 = vadd.f32 %v956, %v1034
    %v1036 = vpop.f32.mrf.mxu0
    %1037 = vmatprep.mubr.f32.mxu0 0.0
    %v1038 = vand.u32 %v539, 4294901760
    %1039 = vmatmul.mubr.f32.gmra.mxu0 %v1038
    %v1040 = vpop.f32.mrf.mxu0
    %v1041 = vadd.f32 %v962, %v1040
    %v1042 = vpop.f32.mrf.mxu0
    %1043 = vdwg.mxu0
    %v1044 = vxor.u32 %v1035, 2147483648
    %v1045 = vxor.u32 %v1041, 2147483648
    %v1046 = vmul.f32 %v1044, 1.442695
    %v1047 = vpow.pop %v1046
    %v1048 = vmul.f32 %v1045, 1.442695
    %v1049 = vpow.pop %v1048
    %v1050 = vadd.f32 %v1047, 1.0
    %v1051 = vadd.f32 %v1049, 1.0
    %v1052 = vrcp.pop %v1050
    %v1053 = vmul.f32 1.0, %v1052
    %v1054 = vrcp.pop %v1051
    %v1055 = vmul.f32 1.0, %v1054
    %v1056 = vadd.f32 %v535, %v1053
    %v1057 = vadd.f32 %v536, %v1055
    %1058 = vst.msk [vmem:[#allocation2] sm:$0xff] %vm532, %v1056
    %1059 = vst.msk [vmem:[#allocation2 + $0x8] sm:$0xff] %vm532, %v1057
    // Predicated region
    $region10: #{igae_forward.3} parent=1 // pred_check
      _
    $region11: #{igae_forward.3} parent=1 // pred_check_branch
      %1061 = sbr.rel (0) target = $region13
    $region12: #{igae_forward.3} parent=1 // pred_region
      %s1063 = ssub.s32 256, 256
      %1064 = vsyncadd [#allocation3], %s1063
      %s1065 = sshll.u32 [#allocation2], 4
      %s1066 = int_to_ptr.vmem [resolvable:$true] %s1065
      %1071 = dma.vmem_to_hbm [thread:$0]  %s1066, 256, %s2, [#allocation3], 128, 128, 8
    $region13: #{igae_forward.3} parent=1 // pred_fallthru
      _
    // Predicated region
    $region14: #{igae_forward.3} parent=1 // pred_check
      _
    $region15: #{igae_forward.3} parent=1 // pred_check_branch
      %1073 = sbr.rel (0) target = $region17
    $region16: #{igae_forward.3} parent=1 // pred_region
      %1074 = dma.done [#allocation3], 256
    $region17: #{igae_forward.3} parent=1 // pred_fallthru
      _
    %1075 = vsyncpa [#allocation3], 1

// kernel: igae_forward.2
$region0: #{igae_forward.2}
  #allocation0 [shape = 'u32[]', space=smem, size = 0x4, offset = 0x4, fixed_abs, tag = 'smem constant byte address 0x4 - core index']
  #allocation1 [shape = 'u32[144,128]{1,0:T(1,128)}', space=vmem, size = 0x12000, scoped, tag = 'internal scratch']
  #allocation2 [shape = 'f32[16,16]{1,0:T(8,128)}', space=vmem, size = 0x2000, scoped, tag = 'scratch operand']
  #allocation3 [shape = 's32[1]{0}', space=sflag, size = 0x4, scoped, tag = 'scratch operand']
  #allocation4 [shape = 's32[]', space=sflag, size = 0x4, offset = 0, fixed_abs, tag = 'sflag constant byte address 0x0 - dummy sync flag']
  %s0 = inlined_call_operand.vmem [shape: f32[16,128], index: 0, kind: input, shape index: {}]
  %s1 = inlined_call_operand.vmem [shape: f32[16,16], index: 1, kind: input, shape index: {}]
  %s2 = inlined_call_operand.vmem [shape: f32[128,128], index: 2, kind: input, shape index: {}]
  %s3 = inlined_call_operand.vmem [shape: f32[128,128], index: 3, kind: input, shape index: {}]
  %s4 = inlined_call_operand.vmem [shape: f32[128,128], index: 4, kind: input, shape index: {}]
  %s5 = inlined_call_operand.vmem [shape: f32[128,128], index: 5, kind: input, shape index: {}]
  %s6 = inlined_call_operand.vmem [shape: f32[128,128], index: 6, kind: input, shape index: {}]
  %s7 = inlined_call_operand.vmem [shape: f32[128,128], index: 7, kind: input, shape index: {}]
  %s8 = inlined_call_operand.vmem [shape: f32[16,128], index: 8, kind: output, shape index: {0}]
  %s9 = inlined_call_operand.vmem [shape: f32[16,128], index: 9, kind: output, shape index: {1}]
  %10 = xla_tuple %s8, %s9
  %s11 = sld [smem:[#allocation0]]
  $region80: #{igae_forward.2} parent=0
    _
  %s13 = ssub.s32 1, %s11
  %s14 = scalar_select 0, %s13, %s11
  // Predicated region
  $region2: #{igae_forward.2} parent=0 // pred_check
    _
  $region3: #{igae_forward.2} parent=0 // pred_check_branch
    %16 = sbr.rel (0) target = $region5
  $region4: #{igae_forward.2} parent=0 // pred_region
    _
  $region5: #{igae_forward.2} parent=0 // pred_fallthru
    _
  // Predicated region
  $region6: #{igae_forward.2} parent=0 // pred_check
    _
  $region7: #{igae_forward.2} parent=0 // pred_check_branch
    %18 = sbr.rel (0) target = $region9
  $region8: #{igae_forward.2} parent=0 // pred_region
    _
  $region9: #{igae_forward.2} parent=0 // pred_fallthru
    _
  // Predicated region
  $region10: #{igae_forward.2} parent=0 // pred_check
    _
  $region11: #{igae_forward.2} parent=0 // pred_check_branch
    %20 = sbr.rel (0) target = $region13
  $region12: #{igae_forward.2} parent=0 // pred_region
    _
  $region13: #{igae_forward.2} parent=0 // pred_fallthru
    _
  // Predicated region
  $region14: #{igae_forward.2} parent=0 // pred_check
    _
  $region15: #{igae_forward.2} parent=0 // pred_check_branch
    %22 = sbr.rel (0) target = $region17
  $region16: #{igae_forward.2} parent=0 // pred_region
    _
  $region17: #{igae_forward.2} parent=0 // pred_fallthru
    _
  // Predicated region
  $region18: #{igae_forward.2} parent=0 // pred_check
    _
  $region19: #{igae_forward.2} parent=0 // pred_check_branch
    %24 = sbr.rel (0) target = $region21
  $region20: #{igae_forward.2} parent=0 // pred_region
    _
  $region21: #{igae_forward.2} parent=0 // pred_fallthru
    _
  // Predicated region
  $region22: #{igae_forward.2} parent=0 // pred_check
    _
  $region23: #{igae_forward.2} parent=0 // pred_check_branch
    %26 = sbr.rel (0) target = $region25
  $region24: #{igae_forward.2} parent=0 // pred_region
    _
  $region25: #{igae_forward.2} parent=0 // pred_fallthru
    _
  // Predicated region
  $region26: #{igae_forward.2} parent=0 // pred_check
    _
  $region27: #{igae_forward.2} parent=0 // pred_check_branch
    %28 = sbr.rel (0) target = $region29
  $region28: #{igae_forward.2} parent=0 // pred_region
    _
  $region29: #{igae_forward.2} parent=0 // pred_fallthru
    _
  %p30 = scmp.lt.u32.totalorder 16, 8
  %p31 = pneg %p30
  // Predicated region
  $region30: #{igae_forward.2} parent=0 // pred_check
    _
  $region31: #{igae_forward.2} parent=0 // pred_check_branch
    %33 = sbr.rel (%p30) target = $region33
  $region32: #{igae_forward.2} parent=0 // pred_region
    %s49 = sand.u32 16, 7
    %p50 = scmp.eq.s32.totalorder %s49, 0
    // Predicated region
    $region45: #{igae_forward.2} parent=32 // pred_check
      %p51 = pneg %p50
    $region46: #{igae_forward.2} parent=32 // pred_check_branch
      %53 = sbr.rel (%p51) target = $region48
    $region47: #{igae_forward.2} parent=32 // pred_region
      loop: start=0, step=1, limit=1
      $region49: #{igae_forward.2} parent=47 // loop_pre_header
        _
      $region50: #{igae_forward.2} parent=47 // loop_header
        %s55 = sphi 0, %s59
        %p56 = scmp.ge.s32.totalorder %s55, 1
        %s60 = sphi %s1, %s1
        %s61 = sphi [#allocation2], [#allocation2]
      $region51: #{igae_forward.2} parent=47 // loop_header_branch
        %58 = sbr.rel (%p56) target = $region55
      $region52: #{igae_forward.2} parent=47 // loop_body
        %v62 = vld [vmem:[%s60] sm:$0xff]
        %63 = vst [vmem:[%s61] sm:$0xff] %v62
        %v64 = vld [vmem:[%s60 + $0x8] sm:$0xff]
        %65 = vst [vmem:[%s61 + $0x8] sm:$0xff] %v64
      $region53: #{igae_forward.2} parent=47 // loop_footer
        %s59 = sadd.s32 1, %s55
      $region54: #{igae_forward.2} parent=47 // loop_footer_branch
        %54 = sbr.rel target = $region50
      $region55: #{igae_forward.2} parent=47 // loop_exit
        _
    $region48: #{igae_forward.2} parent=32 // pred_fallthru
      _
    %p66 = pneg %p50
    // Predicated region
    $region56: #{igae_forward.2} parent=32 // pred_check
      _
    $region57: #{igae_forward.2} parent=32 // pred_check_branch
      %68 = sbr.rel (%p50) target = $region59
    $region58: #{igae_forward.2} parent=32 // pred_region
      %s69 = sand.u32 16, 7
    $region59: #{igae_forward.2} parent=32 // pred_fallthru
      _
  $region33: #{igae_forward.2} parent=0 // pred_fallthru
    _
  // Predicated region
  $region34: #{igae_forward.2} parent=0 // pred_check
    %p34 = pneg %p30
  $region35: #{igae_forward.2} parent=0 // pred_check_branch
    %36 = sbr.rel (%p34) target = $region37
  $region36: #{igae_forward.2} parent=0 // pred_region
    %s37 = sshll.u32 1, 16
    %s38 = ssub.s32 %s37, 1
    loop: start=0, step=1, limit=1
    $region38: #{igae_forward.2} parent=36 // loop_pre_header
      _
    $region39: #{igae_forward.2} parent=36 // loop_header
      %s40 = sphi 0, %s44
      %p41 = scmp.ge.s32.totalorder %s40, 1
      %s45 = sphi %s1, %s1
      %s46 = sphi [#allocation2], [#allocation2]
    $region40: #{igae_forward.2} parent=36 // loop_header_branch
      %43 = sbr.rel (%p41) target = $region44
    $region41: #{igae_forward.2} parent=36 // loop_body
      %v47 = vld [vmem:[%s45] sm:%s38]
      %48 = vst [vmem:[%s46] sm:%s38] %v47
    $region42: #{igae_forward.2} parent=36 // loop_footer
      %s44 = sadd.s32 1, %s40
    $region43: #{igae_forward.2} parent=36 // loop_footer_branch
      %39 = sbr.rel target = $region39
    $region44: #{igae_forward.2} parent=36 // loop_exit
      _
  $region37: #{igae_forward.2} parent=0 // pred_fallthru
    _
  // Predicated region
  $region60: #{igae_forward.2} parent=0 // pred_check
    _
  $region61: #{igae_forward.2} parent=0 // pred_check_branch
    %72 = sbr.rel (0) target = $region63
  $region62: #{igae_forward.2} parent=0 // pred_region
    %73 = vsyncadd [#allocation3], 256
  $region63: #{igae_forward.2} parent=0 // pred_fallthru
    _
  %v74 = vld [vmem:[%s0] sm:$0xff]
  %v75 = vld [vmem:[%s0 + $0x8] sm:$0xff]
  %v76 = vld [vmem:[%s2] sm:$0xff]
  %v77 = vld [vmem:[%s2 + $0x8] sm:$0xff]
  %v78 = vld [vmem:[%s2 + $0x10] sm:$0xff]
  %v79 = vld [vmem:[%s2 + $0x18] sm:$0xff]
  %v80 = vld [vmem:[%s2 + $0x20] sm:$0xff]
  %v81 = vld [vmem:[%s2 + $0x28] sm:$0xff]
  %v82 = vld [vmem:[%s2 + $0x30] sm:$0xff]
  %v83 = vld [vmem:[%s2 + $0x38] sm:$0xff]
  %v84 = vld [vmem:[%s2 + $0x40] sm:$0xff]
  %v85 = vld [vmem:[%s2 + $0x48] sm:$0xff]
  %v86 = vld [vmem:[%s2 + $0x50] sm:$0xff]
  %v87 = vld [vmem:[%s2 + $0x58] sm:$0xff]
  %v88 = vld [vmem:[%s2 + $0x60] sm:$0xff]
  %v89 = vld [vmem:[%s2 + $0x68] sm:$0xff]
  %v90 = vld [vmem:[%s2 + $0x70] sm:$0xff]
  %v91 = vld [vmem:[%s2 + $0x78] sm:$0xff]
  %92 = vmatprep.subr.mxu0 0.0
  %v93 = vand.u32 %v91, 4294901760
  %94 = vmatpush1.msra.mxu0 %v93
  %95 = vmatprep.subr.mxu0 0.0
  %v96 = vand.u32 %v90, 4294901760
  %97 = vmatpush1.msra.mxu0 %v96
  %98 = vmatprep.subr.mxu0 0.0
  %v99 = vand.u32 %v89, 4294901760
  %100 = vmatpush1.msra.mxu0 %v99
  %101 = vmatprep.subr.mxu0 0.0
  %v102 = vand.u32 %v88, 4294901760
  %103 = vmatpush1.msra.mxu0 %v102
  %104 = vmatprep.subr.mxu0 0.0
  %v105 = vand.u32 %v87, 4294901760
  %106 = vmatpush1.msra.mxu0 %v105
  %107 = vmatprep.subr.mxu0 0.0
  %v108 = vand.u32 %v86, 4294901760
  %109 = vmatpush1.msra.mxu0 %v108
  %110 = vmatprep.subr.mxu0 0.0
  %v111 = vand.u32 %v85, 4294901760
  %112 = vmatpush1.msra.mxu0 %v111
  %113 = vmatprep.subr.mxu0 0.0
  %v114 = vand.u32 %v84, 4294901760
  %115 = vmatpush1.msra.mxu0 %v114
  %116 = vmatprep.subr.mxu0 0.0
  %v117 = vand.u32 %v83, 4294901760
  %118 = vmatpush1.msra.mxu0 %v117
  %119 = vmatprep.subr.mxu0 0.0
  %v120 = vand.u32 %v82, 4294901760
  %121 = vmatpush1.msra.mxu0 %v120
  %122 = vmatprep.subr.mxu0 0.0
  %v123 = vand.u32 %v81, 4294901760
  %124 = vmatpush1.msra.mxu0 %v123
  %125 = vmatprep.subr.mxu0 0.0
  %v126 = vand.u32 %v80, 4294901760
  %127 = vmatpush1.msra.mxu0 %v126
  %128 = vmatprep.subr.mxu0 0.0
  %v129 = vand.u32 %v79, 4294901760
  %130 = vmatpush1.msra.mxu0 %v129
  %131 = vmatprep.subr.mxu0 0.0
  %v132 = vand.u32 %v78, 4294901760
  %133 = vmatpush1.msra.mxu0 %v132
  %134 = vmatprep.subr.mxu0 0.0
  %v135 = vand.u32 %v77, 4294901760
  %136 = vmatpush1.msra.mxu0 %v135
  %137 = vmatprep.subr.mxu0 0.0
  %v138 = vand.u32 %v76, 4294901760
  %139 = vmatpush1.msra.mxu0 %v138
  %140 = vmatprep.subr.mxu0 0.0
  %141 = vmatpush2.msra.mxu0 0.0
  %142 = vmatprep.subr.mxu0 0.0
  %143 = vmatpush2.msra.mxu0 0.0
  %144 = vmatprep.subr.mxu0 0.0
  %145 = vmatpush2.msra.mxu0 0.0
  %146 = vmatprep.subr.mxu0 0.0
  %147 = vmatpush2.msra.mxu0 0.0
  %148 = vmatprep.subr.mxu0 0.0
  %149 = vmatpush2.msra.mxu0 0.0
  %150 = vmatprep.subr.mxu0 0.0
  %151 = vmatpush2.msra.mxu0 0.0
  %152 = vmatprep.subr.mxu0 0.0
  %153 = vmatpush2.msra.mxu0 0.0
  %154 = vmatprep.subr.mxu0 0.0
  %155 = vmatpush2.msra.mxu0 0.0
  %156 = vmatprep.subr.mxu0 0.0
  %157 = vmatpush2.msra.mxu0 0.0
  %158 = vmatprep.subr.mxu0 0.0
  %159 = vmatpush2.msra.mxu0 0.0
  %160 = vmatprep.subr.mxu0 0.0
  %161 = vmatpush2.msra.mxu0 0.0
  %162 = vmatprep.subr.mxu0 0.0
  %163 = vmatpush2.msra.mxu0 0.0
  %164 = vmatprep.subr.mxu0 0.0
  %165 = vmatpush2.msra.mxu0 0.0
  %166 = vmatprep.subr.mxu0 0.0
  %167 = vmatpush2.msra.mxu0 0.0
  %168 = vmatprep.subr.mxu0 0.0
  %169 = vmatpush2.msra.mxu0 0.0
  %170 = vmatprep.subr.mxu0 0.0
  %171 = vmatpush2.msra.mxu0 0.0
  %172 = vmatprep.mubr.f32.mxu0 0.0
  %v173 = vand.u32 %v74, 4294901760
  %v174 = vsub.f32 %v74, %v173
  %v175 = vand.u32 %v174, 4294901760
  %v176 = vsub.f32 %v174, %v175
  %v177 = vand.u32 %v176, 4294901760
  %178 = vmatmul.mubr.f32.gmra.mxu0 %v177
  %v179 = vpop.f32.mrf.mxu0
  %v180 = vadd.f32 0.0, %v179
  %v181 = vpop.f32.mrf.mxu0
  %182 = vmatprep.mubr.f32.mxu0 0.0
  %v183 = vand.u32 %v75, 4294901760
  %v184 = vsub.f32 %v75, %v183
  %v185 = vand.u32 %v184, 4294901760
  %v186 = vsub.f32 %v184, %v185
  %v187 = vand.u32 %v186, 4294901760
  %188 = vmatmul.mubr.f32.gmra.mxu0 %v187
  %v189 = vpop.f32.mrf.mxu0
  %v190 = vadd.f32 0.0, %v189
  %v191 = vpop.f32.mrf.mxu0
  %192 = vdwg.mxu0
  %193 = vmatprep.subr.mxu0 0.0
  %v194 = vand.u32 %v91, 4294901760
  %v195 = vsub.f32 %v91, %v194
  %v196 = vand.u32 %v195, 4294901760
  %v197 = vsub.f32 %v195, %v196
  %v198 = vand.u32 %v197, 4294901760
  %199 = vmatpush1.msra.mxu0 %v198
  %200 = vmatprep.subr.mxu0 0.0
  %v201 = vand.u32 %v90, 4294901760
  %v202 = vsub.f32 %v90, %v201
  %v203 = vand.u32 %v202, 4294901760
  %v204 = vsub.f32 %v202, %v203
  %v205 = vand.u32 %v204, 4294901760
  %206 = vmatpush1.msra.mxu0 %v205
  %207 = vmatprep.subr.mxu0 0.0
  %v208 = vand.u32 %v89, 4294901760
  %v209 = vsub.f32 %v89, %v208
  %v210 = vand.u32 %v209, 4294901760
  %v211 = vsub.f32 %v209, %v210
  %v212 = vand.u32 %v211, 4294901760
  %213 = vmatpush1.msra.mxu0 %v212
  %214 = vmatprep.subr.mxu0 0.0
  %v215 = vand.u32 %v88, 4294901760
  %v216 = vsub.f32 %v88, %v215
  %v217 = vand.u32 %v216, 4294901760
  %v218 = vsub.f32 %v216, %v217
  %v219 = vand.u32 %v218, 4294901760
  %220 = vmatpush1.msra.mxu0 %v219
  %221 = vmatprep.subr.mxu0 0.0
  %v222 = vand.u32 %v87, 4294901760
  %v223 = vsub.f32 %v87, %v222
  %v224 = vand.u32 %v223, 4294901760
  %v225 = vsub.f32 %v223, %v224
  %v226 = vand.u32 %v225, 4294901760
  %227 = vmatpush1.msra.mxu0 %v226
  %228 = vmatprep.subr.mxu0 0.0
  %v229 = vand.u32 %v86, 4294901760
  %v230 = vsub.f32 %v86, %v229
  %v231 = vand.u32 %v230, 4294901760
  %v232 = vsub.f32 %v230, %v231
  %v233 = vand.u32 %v232, 4294901760
  %234 = vmatpush1.msra.mxu0 %v233
  %235 = vmatprep.subr.mxu0 0.0
  %v236 = vand.u32 %v85, 4294901760
  %v237 = vsub.f32 %v85, %v236
  %v238 = vand.u32 %v237, 4294901760
  %v239 = vsub.f32 %v237, %v238
  %v240 = vand.u32 %v239, 4294901760
  %241 = vmatpush1.msra.mxu0 %v240
  %242 = vmatprep.subr.mxu0 0.0
  %v243 = vand.u32 %v84, 4294901760
  %v244 = vsub.f32 %v84, %v243
  %v245 = vand.u32 %v244, 4294901760
  %v246 = vsub.f32 %v244, %v245
  %v247 = vand.u32 %v246, 4294901760
  %248 = vmatpush1.msra.mxu0 %v247
  %249 = vmatprep.subr.mxu0 0.0
  %v250 = vand.u32 %v83, 4294901760
  %v251 = vsub.f32 %v83, %v250
  %v252 = vand.u32 %v251, 4294901760
  %v253 = vsub.f32 %v251, %v252
  %v254 = vand.u32 %v253, 4294901760
  %255 = vmatpush1.msra.mxu0 %v254
  %256 = vmatprep.subr.mxu0 0.0
  %v257 = vand.u32 %v82, 4294901760
  %v258 = vsub.f32 %v82, %v257
  %v259 = vand.u32 %v258, 4294901760
  %v260 = vsub.f32 %v258, %v259
  %v261 = vand.u32 %v260, 4294901760
  %262 = vmatpush1.msra.mxu0 %v261
  %263 = vmatprep.subr.mxu0 0.0
  %v264 = vand.u32 %v81, 4294901760
  %v265 = vsub.f32 %v81, %v264
  %v266 = vand.u32 %v265, 4294901760
  %v267 = vsub.f32 %v265, %v266
  %v268 = vand.u32 %v267, 4294901760
  %269 = vmatpush1.msra.mxu0 %v268
  %270 = vmatprep.subr.mxu0 0.0
  %v271 = vand.u32 %v80, 4294901760
  %v272 = vsub.f32 %v80, %v271
  %v273 = vand.u32 %v272, 4294901760
  %v274 = vsub.f32 %v272, %v273
  %v275 = vand.u32 %v274, 4294901760
  %276 = vmatpush1.msra.mxu0 %v275
  %277 = vmatprep.subr.mxu0 0.0
  %v278 = vand.u32 %v79, 4294901760
  %v279 = vsub.f32 %v79, %v278
  %v280 = vand.u32 %v279, 4294901760
  %v281 = vsub.f32 %v279, %v280
  %v282 = vand.u32 %v281, 4294901760
  %283 = vmatpush1.msra.mxu0 %v282
  %284 = vmatprep.subr.mxu0 0.0
  %v285 = vand.u32 %v78, 4294901760
  %v286 = vsub.f32 %v78, %v285
  %v287 = vand.u32 %v286, 4294901760
  %v288 = vsub.f32 %v286, %v287
  %v289 = vand.u32 %v288, 4294901760
  %290 = vmatpush1.msra.mxu0 %v289
  %291 = vmatprep.subr.mxu0 0.0
  %v292 = vand.u32 %v77, 4294901760
  %v293 = vsub.f32 %v77, %v292
  %v294 = vand.u32 %v293, 4294901760
  %v295 = vsub.f32 %v293, %v294
  %v296 = vand.u32 %v295, 4294901760
  %297 = vmatpush1.msra.mxu0 %v296
  %298 = vmatprep.subr.mxu0 0.0
  %v299 = vand.u32 %v76, 4294901760
  %v300 = vsub.f32 %v76, %v299
  %v301 = vand.u32 %v300, 4294901760
  %v302 = vsub.f32 %v300, %v301
  %v303 = vand.u32 %v302, 4294901760
  %304 = vmatpush1.msra.mxu0 %v303
  %305 = vmatprep.subr.mxu0 0.0
  %306 = vmatpush2.msra.mxu0 0.0
  %307 = vmatprep.subr.mxu0 0.0
  %308 = vmatpush2.msra.mxu0 0.0
  %309 = vmatprep.subr.mxu0 0.0
  %310 = vmatpush2.msra.mxu0 0.0
  %311 = vmatprep.subr.mxu0 0.0
  %312 = vmatpush2.msra.mxu0 0.0
  %313 = vmatprep.subr.mxu0 0.0
  %314 = vmatpush2.msra.mxu0 0.0
  %315 = vmatprep.subr.mxu0 0.0
  %316 = vmatpush2.msra.mxu0 0.0
  %317 = vmatprep.subr.mxu0 0.0
  %318 = vmatpush2.msra.mxu0 0.0
  %319 = vmatprep.subr.mxu0 0.0
  %320 = vmatpush2.msra.mxu0 0.0
  %321 = vmatprep.subr.mxu0 0.0
  %322 = vmatpush2.msra.mxu0 0.0
  %323 = vmatprep.subr.mxu0 0.0
  %324 = vmatpush2.msra.mxu0 0.0
  %325 = vmatprep.subr.mxu0 0.0
  %326 = vmatpush2.msra.mxu0 0.0
  %327 = vmatprep.subr.mxu0 0.0
  %328 = vmatpush2.msra.mxu0 0.0
  %329 = vmatprep.subr.mxu0 0.0
  %330 = vmatpush2.msra.mxu0 0.0
  %331 = vmatprep.subr.mxu0 0.0
  %332 = vmatpush2.msra.mxu0 0.0
  %333 = vmatprep.subr.mxu0 0.0
  %334 = vmatpush2.msra.mxu0 0.0
  %335 = vmatprep.subr.mxu0 0.0
  %336 = vmatpush2.msra.mxu0 0.0
  %337 = vmatprep.mubr.f32.mxu0 0.0
  %v338 = vand.u32 %v74, 4294901760
  %339 = vmatmul.mubr.f32.gmra.mxu0 %v338
  %v340 = vpop.f32.mrf.mxu0
  %v341 = vadd.f32 %v180, %v340
  %v342 = vpop.f32.mrf.mxu0
  %343 = vmatprep.mubr.f32.mxu0 0.0
  %v344 = vand.u32 %v75, 4294901760
  %345 = vmatmul.mubr.f32.gmra.mxu0 %v344
  %v346 = vpop.f32.mrf.mxu0
  %v347 = vadd.f32 %v190, %v346
  %v348 = vpop.f32.mrf.mxu0
  %349 = vdwg.mxu0
  %350 = vmatprep.subr.mxu0 0.0
  %v351 = vand.u32 %v91, 4294901760
  %v352 = vsub.f32 %v91, %v351
  %353 = vmatpush1.msra.mxu0 %v352
  %354 = vmatprep.subr.mxu0 0.0
  %v355 = vand.u32 %v90, 4294901760
  %v356 = vsub.f32 %v90, %v355
  %357 = vmatpush1.msra.mxu0 %v356
  %358 = vmatprep.subr.mxu0 0.0
  %v359 = vand.u32 %v89, 4294901760
  %v360 = vsub.f32 %v89, %v359
  %361 = vmatpush1.msra.mxu0 %v360
  %362 = vmatprep.subr.mxu0 0.0
  %v363 = vand.u32 %v88, 4294901760
  %v364 = vsub.f32 %v88, %v363
  %365 = vmatpush1.msra.mxu0 %v364
  %366 = vmatprep.subr.mxu0 0.0
  %v367 = vand.u32 %v87, 4294901760
  %v368 = vsub.f32 %v87, %v367
  %369 = vmatpush1.msra.mxu0 %v368
  %370 = vmatprep.subr.mxu0 0.0
  %v371 = vand.u32 %v86, 4294901760
  %v372 = vsub.f32 %v86, %v371
  %373 = vmatpush1.msra.mxu0 %v372
  %374 = vmatprep.subr.mxu0 0.0
  %v375 = vand.u32 %v85, 4294901760
  %v376 = vsub.f32 %v85, %v375
  %377 = vmatpush1.msra.mxu0 %v376
  %378 = vmatprep.subr.mxu0 0.0
  %v379 = vand.u32 %v84, 4294901760
  %v380 = vsub.f32 %v84, %v379
  %381 = vmatpush1.msra.mxu0 %v380
  %382 = vmatprep.subr.mxu0 0.0
  %v383 = vand.u32 %v83, 4294901760
  %v384 = vsub.f32 %v83, %v383
  %385 = vmatpush1.msra.mxu0 %v384
  %386 = vmatprep.subr.mxu0 0.0
  %v387 = vand.u32 %v82, 4294901760
  %v388 = vsub.f32 %v82, %v387
  %389 = vmatpush1.msra.mxu0 %v388
  %390 = vmatprep.subr.mxu0 0.0
  %v391 = vand.u32 %v81, 4294901760
  %v392 = vsub.f32 %v81, %v391
  %393 = vmatpush1.msra.mxu0 %v392
  %394 = vmatprep.subr.mxu0 0.0
  %v395 = vand.u32 %v80, 4294901760
  %v396 = vsub.f32 %v80, %v395
  %397 = vmatpush1.msra.mxu0 %v396
  %398 = vmatprep.subr.mxu0 0.0
  %v399 = vand.u32 %v79, 4294901760
  %v400 = vsub.f32 %v79, %v399
  %401 = vmatpush1.msra.mxu0 %v400
  %402 = vmatprep.subr.mxu0 0.0
  %v403 = vand.u32 %v78, 4294901760
  %v404 = vsub.f32 %v78, %v403
  %405 = vmatpush1.msra.mxu0 %v404
  %406 = vmatprep.subr.mxu0 0.0
  %v407 = vand.u32 %v77, 4294901760
  %v408 = vsub.f32 %v77, %v407
  %409 = vmatpush1.msra.mxu0 %v408
  %410 = vmatprep.subr.mxu0 0.0
  %v411 = vand.u32 %v76, 4294901760
  %v412 = vsub.f32 %v76, %v411
  %413 = vmatpush1.msra.mxu0 %v412
  %414 = vmatprep.subr.mxu0 0.0
  %415 = vmatpush2.msra.mxu0 0.0
  %416 = vmatprep.subr.mxu0 0.0
  %417 = vmatpush2.msra.mxu0 0.0
  %418 = vmatprep.subr.mxu0 0.0
  %419 = vmatpush2.msra.mxu0 0.0
  %420 = vmatprep.subr.mxu0 0.0
  %421 = vmatpush2.msra.mxu0 0.0
  %422 = vmatprep.subr.mxu0 0.0
  %423 = vmatpush2.msra.mxu0 0.0
  %424 = vmatprep.subr.mxu0 0.0
  %425 = vmatpush2.msra.mxu0 0.0
  %426 = vmatprep.subr.mxu0 0.0
  %427 = vmatpush2.msra.mxu0 0.0
  %428 = vmatprep.subr.mxu0 0.0
  %429 = vmatpush2.msra.mxu0 0.0
  %430 = vmatprep.subr.mxu0 0.0
  %431 = vmatpush2.msra.mxu0 0.0
  %432 = vmatprep.subr.mxu0 0.0
  %433 = vmatpush2.msra.mxu0 0.0
  %434 = vmatprep.subr.mxu0 0.0
  %435 = vmatpush2.msra.mxu0 0.0
  %436 = vmatprep.subr.mxu0 0.0
  %437 = vmatpush2.msra.mxu0 0.0
  %438 = vmatprep.subr.mxu0 0.0
  %439 = vmatpush2.msra.mxu0 0.0
  %440 = vmatprep.subr.mxu0 0.0
  %441 = vmatpush2.msra.mxu0 0.0
  %442 = vmatprep.subr.mxu0 0.0
  %443 = vmatpush2.msra.mxu0 0.0
  %444 = vmatprep.subr.mxu0 0.0
  %445 = vmatpush2.msra.mxu0 0.0
  %446 = vmatprep.mubr.f32.mxu0 0.0
  %v447 = vand.u32 %v74, 4294901760
  %v448 = vsub.f32 %v74, %v447
  %449 = vmatmul.mubr.f32.gmra.mxu0 %v448
  %v450 = vpop.f32.mrf.mxu0
  %v451 = vadd.f32 %v341, %v450
  %v452 = vpop.f32.mrf.mxu0
  %453 = vmatprep.mubr.f32.mxu0 0.0
  %v454 = vand.u32 %v75, 4294901760
  %v455 = vsub.f32 %v75, %v454
  %456 = vmatmul.mubr.f32.gmra.mxu0 %v455
  %v457 = vpop.f32.mrf.mxu0
  %v458 = vadd.f32 %v347, %v457
  %v459 = vpop.f32.mrf.mxu0
  %460 = vdwg.mxu0
  %461 = vmatprep.subr.mxu0 0.0
  %v462 = vand.u32 %v91, 4294901760
  %463 = vmatpush1.msra.mxu0 %v462
  %464 = vmatprep.subr.mxu0 0.0
  %v465 = vand.u32 %v90, 4294901760
  %466 = vmatpush1.msra.mxu0 %v465
  %467 = vmatprep.subr.mxu0 0.0
  %v468 = vand.u32 %v89, 4294901760
  %469 = vmatpush1.msra.mxu0 %v468
  %470 = vmatprep.subr.mxu0 0.0
  %v471 = vand.u32 %v88, 4294901760
  %472 = vmatpush1.msra.mxu0 %v471
  %473 = vmatprep.subr.mxu0 0.0
  %v474 = vand.u32 %v87, 4294901760
  %475 = vmatpush1.msra.mxu0 %v474
  %476 = vmatprep.subr.mxu0 0.0
  %v477 = vand.u32 %v86, 4294901760
  %478 = vmatpush1.msra.mxu0 %v477
  %479 = vmatprep.subr.mxu0 0.0
  %v480 = vand.u32 %v85, 4294901760
  %481 = vmatpush1.msra.mxu0 %v480
  %482 = vmatprep.subr.mxu0 0.0
  %v483 = vand.u32 %v84, 4294901760
  %484 = vmatpush1.msra.mxu0 %v483
  %485 = vmatprep.subr.mxu0 0.0
  %v486 = vand.u32 %v83, 4294901760
  %487 = vmatpush1.msra.mxu0 %v486
  %488 = vmatprep.subr.mxu0 0.0
  %v489 = vand.u32 %v82, 4294901760
  %490 = vmatpush1.msra.mxu0 %v489
  %491 = vmatprep.subr.mxu0 0.0
  %v492 = vand.u32 %v81, 4294901760
  %493 = vmatpush1.msra.mxu0 %v492
  %494 = vmatprep.subr.mxu0 0.0
  %v495 = vand.u32 %v80, 4294901760
  %496 = vmatpush1.msra.mxu0 %v495
  %497 = vmatprep.subr.mxu0 0.0
  %v498 = vand.u32 %v79, 4294901760
  %499 = vmatpush1.msra.mxu0 %v498
  %500 = vmatprep.subr.mxu0 0.0
  %v501 = vand.u32 %v78, 4294901760
  %502 = vmatpush1.msra.mxu0 %v501
  %503 = vmatprep.subr.mxu0 0.0
  %v504 = vand.u32 %v77, 4294901760
  %505 = vmatpush1.msra.mxu0 %v504
  %506 = vmatprep.subr.mxu0 0.0
  %v507 = vand.u32 %v76, 4294901760
  %508 = vmatpush1.msra.mxu0 %v507
  %509 = vmatprep.subr.mxu0 0.0
  %510 = vmatpush2.msra.mxu0 0.0
  %511 = vmatprep.subr.mxu0 0.0
  %512 = vmatpush2.msra.mxu0 0.0
  %513 = vmatprep.subr.mxu0 0.0
  %514 = vmatpush2.msra.mxu0 0.0
  %515 = vmatprep.subr.mxu0 0.0
  %516 = vmatpush2.msra.mxu0 0.0
  %517 = vmatprep.subr.mxu0 0.0
  %518 = vmatpush2.msra.mxu0 0.0
  %519 = vmatprep.subr.mxu0 0.0
  %520 = vmatpush2.msra.mxu0 0.0
  %521 = vmatprep.subr.mxu0 0.0
  %522 = vmatpush2.msra.mxu0 0.0
  %523 = vmatprep.subr.mxu0 0.0
  %524 = vmatpush2.msra.mxu0 0.0
  %525 = vmatprep.subr.mxu0 0.0
  %526 = vmatpush2.msra.mxu0 0.0
  %527 = vmatprep.subr.mxu0 0.0
  %528 = vmatpush2.msra.mxu0 0.0
  %529 = vmatprep.subr.mxu0 0.0
  %530 = vmatpush2.msra.mxu0 0.0
  %531 = vmatprep.subr.mxu0 0.0
  %532 = vmatpush2.msra.mxu0 0.0
  %533 = vmatprep.subr.mxu0 0.0
  %534 = vmatpush2.msra.mxu0 0.0
  %535 = vmatprep.subr.mxu0 0.0
  %536 = vmatpush2.msra.mxu0 0.0
  %537 = vmatprep.subr.mxu0 0.0
  %538 = vmatpush2.msra.mxu0 0.0
  %539 = vmatprep.subr.mxu0 0.0
  %540 = vmatpush2.msra.mxu0 0.0
  %541 = vmatprep.mubr.f32.mxu0 0.0
  %v542 = vand.u32 %v74, 4294901760
  %v543 = vsub.f32 %v74, %v542
  %v544 = vand.u32 %v543, 4294901760
  %545 = vmatmul.mubr.f32.gmra.mxu0 %v544
  %v546 = vpop.f32.mrf.mxu0
  %v547 = vadd.f32 %v451, %v546
  %v548 = vpop.f32.mrf.mxu0
  %549 = vmatprep.mubr.f32.mxu0 0.0
  %v550 = vand.u32 %v75, 4294901760
  %v551 = vsub.f32 %v75, %v550
  %v552 = vand.u32 %v551, 4294901760
  %553 = vmatmul.mubr.f32.gmra.mxu0 %v552
  %v554 = vpop.f32.mrf.mxu0
  %v555 = vadd.f32 %v458, %v554
  %v556 = vpop.f32.mrf.mxu0
  %557 = vdwg.mxu0
  %558 = vmatprep.subr.mxu0 0.0
  %v559 = vand.u32 %v91, 4294901760
  %v560 = vsub.f32 %v91, %v559
  %v561 = vand.u32 %v560, 4294901760
  %562 = vmatpush1.msra.mxu0 %v561
  %563 = vmatprep.subr.mxu0 0.0
  %v564 = vand.u32 %v90, 4294901760
  %v565 = vsub.f32 %v90, %v564
  %v566 = vand.u32 %v565, 4294901760
  %567 = vmatpush1.msra.mxu0 %v566
  %568 = vmatprep.subr.mxu0 0.0
  %v569 = vand.u32 %v89, 4294901760
  %v570 = vsub.f32 %v89, %v569
  %v571 = vand.u32 %v570, 4294901760
  %572 = vmatpush1.msra.mxu0 %v571
  %573 = vmatprep.subr.mxu0 0.0
  %v574 = vand.u32 %v88, 4294901760
  %v575 = vsub.f32 %v88, %v574
  %v576 = vand.u32 %v575, 4294901760
  %577 = vmatpush1.msra.mxu0 %v576
  %578 = vmatprep.subr.mxu0 0.0
  %v579 = vand.u32 %v87, 4294901760
  %v580 = vsub.f32 %v87, %v579
  %v581 = vand.u32 %v580, 4294901760
  %582 = vmatpush1.msra.mxu0 %v581
  %583 = vmatprep.subr.mxu0 0.0
  %v584 = vand.u32 %v86, 4294901760
  %v585 = vsub.f32 %v86, %v584
  %v586 = vand.u32 %v585, 4294901760
  %587 = vmatpush1.msra.mxu0 %v586
  %588 = vmatprep.subr.mxu0 0.0
  %v589 = vand.u32 %v85, 4294901760
  %v590 = vsub.f32 %v85, %v589
  %v591 = vand.u32 %v590, 4294901760
  %592 = vmatpush1.msra.mxu0 %v591
  %593 = vmatprep.subr.mxu0 0.0
  %v594 = vand.u32 %v84, 4294901760
  %v595 = vsub.f32 %v84, %v594
  %v596 = vand.u32 %v595, 4294901760
  %597 = vmatpush1.msra.mxu0 %v596
  %598 = vmatprep.subr.mxu0 0.0
  %v599 = vand.u32 %v83, 4294901760
  %v600 = vsub.f32 %v83, %v599
  %v601 = vand.u32 %v600, 4294901760
  %602 = vmatpush1.msra.mxu0 %v601
  %603 = vmatprep.subr.mxu0 0.0
  %v604 = vand.u32 %v82, 4294901760
  %v605 = vsub.f32 %v82, %v604
  %v606 = vand.u32 %v605, 4294901760
  %607 = vmatpush1.msra.mxu0 %v606
  %608 = vmatprep.subr.mxu0 0.0
  %v609 = vand.u32 %v81, 4294901760
  %v610 = vsub.f32 %v81, %v609
  %v611 = vand.u32 %v610, 4294901760
  %612 = vmatpush1.msra.mxu0 %v611
  %613 = vmatprep.subr.mxu0 0.0
  %v614 = vand.u32 %v80, 4294901760
  %v615 = vsub.f32 %v80, %v614
  %v616 = vand.u32 %v615, 4294901760
  %617 = vmatpush1.msra.mxu0 %v616
  %618 = vmatprep.subr.mxu0 0.0
  %v619 = vand.u32 %v79, 4294901760
  %v620 = vsub.f32 %v79, %v619
  %v621 = vand.u32 %v620, 4294901760
  %622 = vmatpush1.msra.mxu0 %v621
  %623 = vmatprep.subr.mxu0 0.0
  %v624 = vand.u32 %v78, 4294901760
  %v625 = vsub.f32 %v78, %v624
  %v626 = vand.u32 %v625, 4294901760
  %627 = vmatpush1.msra.mxu0 %v626
  %628 = vmatprep.subr.mxu0 0.0
  %v629 = vand.u32 %v77, 4294901760
  %v630 = vsub.f32 %v77, %v629
  %v631 = vand.u32 %v630, 4294901760
  %632 = vmatpush1.msra.mxu0 %v631
  %633 = vmatprep.subr.mxu0 0.0
  %v634 = vand.u32 %v76, 4294901760
  %v635 = vsub.f32 %v76, %v634
  %v636 = vand.u32 %v635, 4294901760
  %637 = vmatpush1.msra.mxu0 %v636
  %638 = vmatprep.subr.mxu0 0.0
  %639 = vmatpush2.msra.mxu0 0.0
  %640 = vmatprep.subr.mxu0 0.0
  %641 = vmatpush2.msra.mxu0 0.0
  %642 = vmatprep.subr.mxu0 0.0
  %643 = vmatpush2.msra.mxu0 0.0
  %644 = vmatprep.subr.mxu0 0.0
  %645 = vmatpush2.msra.mxu0 0.0
  %646 = vmatprep.subr.mxu0 0.0
  %647 = vmatpush2.msra.mxu0 0.0
  %648 = vmatprep.subr.mxu0 0.0
  %649 = vmatpush2.msra.mxu0 0.0
  %650 = vmatprep.subr.mxu0 0.0
  %651 = vmatpush2.msra.mxu0 0.0
  %652 = vmatprep.subr.mxu0 0.0
  %653 = vmatpush2.msra.mxu0 0.0
  %654 = vmatprep.subr.mxu0 0.0
  %655 = vmatpush2.msra.mxu0 0.0
  %656 = vmatprep.subr.mxu0 0.0
  %657 = vmatpush2.msra.mxu0 0.0
  %658 = vmatprep.subr.mxu0 0.0
  %659 = vmatpush2.msra.mxu0 0.0
  %660 = vmatprep.subr.mxu0 0.0
  %661 = vmatpush2.msra.mxu0 0.0
  %662 = vmatprep.subr.mxu0 0.0
  %663 = vmatpush2.msra.mxu0 0.0
  %664 = vmatprep.subr.mxu0 0.0
  %665 = vmatpush2.msra.mxu0 0.0
  %666 = vmatprep.subr.mxu0 0.0
  %667 = vmatpush2.msra.mxu0 0.0
  %668 = vmatprep.subr.mxu0 0.0
  %669 = vmatpush2.msra.mxu0 0.0
  %670 = vmatprep.mubr.f32.mxu0 0.0
  %v671 = vand.u32 %v74, 4294901760
  %672 = vmatmul.mubr.f32.gmra.mxu0 %v671
  %v673 = vpop.f32.mrf.mxu0
  %v674 = vadd.f32 %v547, %v673
  %v675 = vpop.f32.mrf.mxu0
  %676 = vmatprep.mubr.f32.mxu0 0.0
  %v677 = vand.u32 %v75, 4294901760
  %678 = vmatmul.mubr.f32.gmra.mxu0 %v677
  %v679 = vpop.f32.mrf.mxu0
  %v680 = vadd.f32 %v555, %v679
  %v681 = vpop.f32.mrf.mxu0
  %682 = vdwg.mxu0
  %683 = vmatprep.subr.mxu0 0.0
  %v684 = vand.u32 %v91, 4294901760
  %685 = vmatpush1.msra.mxu0 %v684
  %686 = vmatprep.subr.mxu0 0.0
  %v687 = vand.u32 %v90, 4294901760
  %688 = vmatpush1.msra.mxu0 %v687
  %689 = vmatprep.subr.mxu0 0.0
  %v690 = vand.u32 %v89, 4294901760
  %691 = vmatpush1.msra.mxu0 %v690
  %692 = vmatprep.subr.mxu0 0.0
  %v693 = vand.u32 %v88, 4294901760
  %694 = vmatpush1.msra.mxu0 %v693
  %695 = vmatprep.subr.mxu0 0.0
  %v696 = vand.u32 %v87, 4294901760
  %697 = vmatpush1.msra.mxu0 %v696
  %698 = vmatprep.subr.mxu0 0.0
  %v699 = vand.u32 %v86, 4294901760
  %700 = vmatpush1.msra.mxu0 %v699
  %701 = vmatprep.subr.mxu0 0.0
  %v702 = vand.u32 %v85, 4294901760
  %703 = vmatpush1.msra.mxu0 %v702
  %704 = vmatprep.subr.mxu0 0.0
  %v705 = vand.u32 %v84, 4294901760
  %706 = vmatpush1.msra.mxu0 %v705
  %707 = vmatprep.subr.mxu0 0.0
  %v708 = vand.u32 %v83, 4294901760
  %709 = vmatpush1.msra.mxu0 %v708
  %710 = vmatprep.subr.mxu0 0.0
  %v711 = vand.u32 %v82, 4294901760
  %712 = vmatpush1.msra.mxu0 %v711
  %713 = vmatprep.subr.mxu0 0.0
  %v714 = vand.u32 %v81, 4294901760
  %715 = vmatpush1.msra.mxu0 %v714
  %716 = vmatprep.subr.mxu0 0.0
  %v717 = vand.u32 %v80, 4294901760
  %718 = vmatpush1.msra.mxu0 %v717
  %719 = vmatprep.subr.mxu0 0.0
  %v720 = vand.u32 %v79, 4294901760
  %721 = vmatpush1.msra.mxu0 %v720
  %722 = vmatprep.subr.mxu0 0.0
  %v723 = vand.u32 %v78, 4294901760
  %724 = vmatpush1.msra.mxu0 %v723
  %725 = vmatprep.subr.mxu0 0.0
  %v726 = vand.u32 %v77, 4294901760
  %727 = vmatpush1.msra.mxu0 %v726
  %728 = vmatprep.subr.mxu0 0.0
  %v729 = vand.u32 %v76, 4294901760
  %730 = vmatpush1.msra.mxu0 %v729
  %731 = vmatprep.subr.mxu0 0.0
  %732 = vmatpush2.msra.mxu0 0.0
  %733 = vmatprep.subr.mxu0 0.0
  %734 = vmatpush2.msra.mxu0 0.0
  %735 = vmatprep.subr.mxu0 0.0
  %736 = vmatpush2.msra.mxu0 0.0
  %737 = vmatprep.subr.mxu0 0.0
  %738 = vmatpush2.msra.mxu0 0.0
  %739 = vmatprep.subr.mxu0 0.0
  %740 = vmatpush2.msra.mxu0 0.0
  %741 = vmatprep.subr.mxu0 0.0
  %742 = vmatpush2.msra.mxu0 0.0
  %743 = vmatprep.subr.mxu0 0.0
  %744 = vmatpush2.msra.mxu0 0.0
  %745 = vmatprep.subr.mxu0 0.0
  %746 = vmatpush2.msra.mxu0 0.0
  %747 = vmatprep.subr.mxu0 0.0
  %748 = vmatpush2.msra.mxu0 0.0
  %749 = vmatprep.subr.mxu0 0.0
  %750 = vmatpush2.msra.mxu0 0.0
  %751 = vmatprep.subr.mxu0 0.0
  %752 = vmatpush2.msra.mxu0 0.0
  %753 = vmatprep.subr.mxu0 0.0
  %754 = vmatpush2.msra.mxu0 0.0
  %755 = vmatprep.subr.mxu0 0.0
  %756 = vmatpush2.msra.mxu0 0.0
  %757 = vmatprep.subr.mxu0 0.0
  %758 = vmatpush2.msra.mxu0 0.0
  %759 = vmatprep.subr.mxu0 0.0
  %760 = vmatpush2.msra.mxu0 0.0
  %761 = vmatprep.subr.mxu0 0.0
  %762 = vmatpush2.msra.mxu0 0.0
  %763 = vmatprep.mubr.f32.mxu0 0.0
  %v764 = vand.u32 %v74, 4294901760
  %765 = vmatmul.mubr.f32.gmra.mxu0 %v764
  %v766 = vpop.f32.mrf.mxu0
  %v767 = vadd.f32 %v674, %v766
  %v768 = vpop.f32.mrf.mxu0
  %769 = vmatprep.mubr.f32.mxu0 0.0
  %v770 = vand.u32 %v75, 4294901760
  %771 = vmatmul.mubr.f32.gmra.mxu0 %v770
  %v772 = vpop.f32.mrf.mxu0
  %v773 = vadd.f32 %v680, %v772
  %v774 = vpop.f32.mrf.mxu0
  %775 = vdwg.mxu0
  %v776 = vtanh.pop %v767
  %v777 = vtanh.pop %v773
  %s778 = smul.u32 16, 1
  %s779 = sshll.u32 %s778, 4
  %780 = dma.done [#allocation3], %s779
  %v781 = vld [vmem:[#allocation2] sm:$0xff]
  %v782 = vld [vmem:[#allocation2 + $0x8] sm:$0xff]
  %vm783 = vcmask 130048
  %v785 = vsel %vm783, %v781, 0
  %v788 = vsel %vm783, %v782, 0
  %790 = vmatprep.subr.mxu0 0.0
  %791 = vmatpush1.msra.mxu0 0.0
  %792 = vmatprep.subr.mxu0 0.0
  %793 = vmatpush1.msra.mxu0 0.0
  %794 = vmatprep.subr.mxu0 0.0
  %795 = vmatpush1.msra.mxu0 0.0
  %796 = vmatprep.subr.mxu0 0.0
  %797 = vmatpush1.msra.mxu0 0.0
  %798 = vmatprep.subr.mxu0 0.0
  %799 = vmatpush1.msra.mxu0 0.0
  %800 = vmatprep.subr.mxu0 0.0
  %801 = vmatpush1.msra.mxu0 0.0
  %802 = vmatprep.subr.mxu0 0.0
  %803 = vmatpush1.msra.mxu0 0.0
  %804 = vmatprep.subr.mxu0 0.0
  %805 = vmatpush1.msra.mxu0 0.0
  %806 = vmatprep.subr.mxu0 0.0
  %807 = vmatpush1.msra.mxu0 0.0
  %808 = vmatprep.subr.mxu0 0.0
  %809 = vmatpush1.msra.mxu0 0.0
  %810 = vmatprep.subr.mxu0 0.0
  %811 = vmatpush1.msra.mxu0 0.0
  %812 = vmatprep.subr.mxu0 0.0
  %813 = vmatpush1.msra.mxu0 0.0
  %814 = vmatprep.subr.mxu0 0.0
  %815 = vmatpush1.msra.mxu0 0.0
  %816 = vmatprep.subr.mxu0 0.0
  %817 = vmatpush1.msra.mxu0 0.0
  %818 = vmatprep.subr.mxu0 0.0
  %v819 = vand.u32 %v777, 4294901760
  %820 = vmatpush1.msra.mxu0 %v819
  %821 = vmatprep.subr.mxu0 0.0
  %v822 = vand.u32 %v776, 4294901760
  %823 = vmatpush1.msra.mxu0 %v822
  %824 = vmatprep.subr.mxu0 0.0
  %825 = vmatpush2.msra.mxu0 0.0
  %826 = vmatprep.subr.mxu0 0.0
  %827 = vmatpush2.msra.mxu0 0.0
  %828 = vmatprep.subr.mxu0 0.0
  %829 = vmatpush2.msra.mxu0 0.0
  %830 = vmatprep.subr.mxu0 0.0
  %831 = vmatpush2.msra.mxu0 0.0
  %832 = vmatprep.subr.mxu0 0.0
  %833 = vmatpush2.msra.mxu0 0.0
  %834 = vmatprep.subr.mxu0 0.0
  %835 = vmatpush2.msra.mxu0 0.0
  %836 = vmatprep.subr.mxu0 0.0
  %837 = vmatpush2.msra.mxu0 0.0
  %838 = vmatprep.subr.mxu0 0.0
  %839 = vmatpush2.msra.mxu0 0.0
  %840 = vmatprep.subr.mxu0 0.0
  %841 = vmatpush2.msra.mxu0 0.0
  %842 = vmatprep.subr.mxu0 0.0
  %843 = vmatpush2.msra.mxu0 0.0
  %844 = vmatprep.subr.mxu0 0.0
  %845 = vmatpush2.msra.mxu0 0.0
  %846 = vmatprep.subr.mxu0 0.0
  %847 = vmatpush2.msra.mxu0 0.0
  %848 = vmatprep.subr.mxu0 0.0
  %849 = vmatpush2.msra.mxu0 0.0
  %850 = vmatprep.subr.mxu0 0.0
  %851 = vmatpush2.msra.mxu0 0.0
  %852 = vmatprep.subr.mxu0 0.0
  %853 = vmatpush2.msra.mxu0 0.0
  %854 = vmatprep.subr.mxu0 0.0
  %855 = vmatpush2.msra.mxu0 0.0
  %856 = vmatprep.mubr.f32.mxu0 0.0
  %v857 = vand.u32 %v785, 4294901760
  %v858 = vsub.f32 %v785, %v857
  %v859 = vand.u32 %v858, 4294901760
  %v860 = vsub.f32 %v858, %v859
  %v861 = vand.u32 %v860, 4294901760
  %862 = vmatmul.mubr.f32.gmra.mxu0 %v861
  %v863 = vpop.f32.mrf.mxu0
  %v864 = vadd.f32 0.0, %v863
  %v865 = vpop.f32.mrf.mxu0
  %866 = vmatprep.mubr.f32.mxu0 0.0
  %v867 = vand.u32 %v788, 4294901760
  %v868 = vsub.f32 %v788, %v867
  %v869 = vand.u32 %v868, 4294901760
  %v870 = vsub.f32 %v868, %v869
  %v871 = vand.u32 %v870, 4294901760
  %872 = vmatmul.mubr.f32.gmra.mxu0 %v871
  %v873 = vpop.f32.mrf.mxu0
  %v874 = vadd.f32 0.0, %v873
  %v875 = vpop.f32.mrf.mxu0
  %876 = vdwg.mxu0
  %877 = vmatprep.subr.mxu0 0.0
  %878 = vmatpush1.msra.mxu0 0.0
  %879 = vmatprep.subr.mxu0 0.0
  %880 = vmatpush1.msra.mxu0 0.0
  %881 = vmatprep.subr.mxu0 0.0
  %882 = vmatpush1.msra.mxu0 0.0
  %883 = vmatprep.subr.mxu0 0.0
  %884 = vmatpush1.msra.mxu0 0.0
  %885 = vmatprep.subr.mxu0 0.0
  %886 = vmatpush1.msra.mxu0 0.0
  %887 = vmatprep.subr.mxu0 0.0
  %888 = vmatpush1.msra.mxu0 0.0
  %889 = vmatprep.subr.mxu0 0.0
  %890 = vmatpush1.msra.mxu0 0.0
  %891 = vmatprep.subr.mxu0 0.0
  %892 = vmatpush1.msra.mxu0 0.0
  %893 = vmatprep.subr.mxu0 0.0
  %894 = vmatpush1.msra.mxu0 0.0
  %895 = vmatprep.subr.mxu0 0.0
  %896 = vmatpush1.msra.mxu0 0.0
  %897 = vmatprep.subr.mxu0 0.0
  %898 = vmatpush1.msra.mxu0 0.0
  %899 = vmatprep.subr.mxu0 0.0
  %900 = vmatpush1.msra.mxu0 0.0
  %901 = vmatprep.subr.mxu0 0.0
  %902 = vmatpush1.msra.mxu0 0.0
  %903 = vmatprep.subr.mxu0 0.0
  %904 = vmatpush1.msra.mxu0 0.0
  %905 = vmatprep.subr.mxu0 0.0
  %v906 = vand.u32 %v777, 4294901760
  %v907 = vsub.f32 %v777, %v906
  %v908 = vand.u32 %v907, 4294901760
  %v909 = vsub.f32 %v907, %v908
  %v910 = vand.u32 %v909, 4294901760
  %911 = vmatpush1.msra.mxu0 %v910
  %912 = vmatprep.subr.mxu0 0.0
  %v913 = vand.u32 %v776, 4294901760
  %v914 = vsub.f32 %v776, %v913
  %v915 = vand.u32 %v914, 4294901760
  %v916 = vsub.f32 %v914, %v915
  %v917 = vand.u32 %v916, 4294901760
  %918 = vmatpush1.msra.mxu0 %v917
  %919 = vmatprep.subr.mxu0 0.0
  %920 = vmatpush2.msra.mxu0 0.0
  %921 = vmatprep.subr.mxu0 0.0
  %922 = vmatpush2.msra.mxu0 0.0
  %923 = vmatprep.subr.mxu0 0.0
  %924 = vmatpush2.msra.mxu0 0.0
  %925 = vmatprep.subr.mxu0 0.0
  %926 = vmatpush2.msra.mxu0 0.0
  %927 = vmatprep.subr.mxu0 0.0
  %928 = vmatpush2.msra.mxu0 0.0
  %929 = vmatprep.subr.mxu0 0.0
  %930 = vmatpush2.msra.mxu0 0.0
  %931 = vmatprep.subr.mxu0 0.0
  %932 = vmatpush2.msra.mxu0 0.0
  %933 = vmatprep.subr.mxu0 0.0
  %934 = vmatpush2.msra.mxu0 0.0
  %935 = vmatprep.subr.mxu0 0.0
  %936 = vmatpush2.msra.mxu0 0.0
  %937 = vmatprep.subr.mxu0 0.0
  %938 = vmatpush2.msra.mxu0 0.0
  %939 = vmatprep.subr.mxu0 0.0
  %940 = vmatpush2.msra.mxu0 0.0
  %941 = vmatprep.subr.mxu0 0.0
  %942 = vmatpush2.msra.mxu0 0.0
  %943 = vmatprep.subr.mxu0 0.0
  %944 = vmatpush2.msra.mxu0 0.0
  %945 = vmatprep.subr.mxu0 0.0
  %946 = vmatpush2.msra.mxu0 0.0
  %947 = vmatprep.subr.mxu0 0.0
  %948 = vmatpush2.msra.mxu0 0.0
  %949 = vmatprep.subr.mxu0 0.0
  %950 = vmatpush2.msra.mxu0 0.0
  %951 = vmatprep.mubr.f32.mxu0 0.0
  %v952 = vand.u32 %v785, 4294901760
  %953 = vmatmul.mubr.f32.gmra.mxu0 %v952
  %v954 = vpop.f32.mrf.mxu0
  %v955 = vadd.f32 %v864, %v954
  %v956 = vpop.f32.mrf.mxu0
  %957 = vmatprep.mubr.f32.mxu0 0.0
  %v958 = vand.u32 %v788, 4294901760
  %959 = vmatmul.mubr.f32.gmra.mxu0 %v958
  %v960 = vpop.f32.mrf.mxu0
  %v961 = vadd.f32 %v874, %v960
  %v962 = vpop.f32.mrf.mxu0
  %963 = vdwg.mxu0
  %964 = vmatprep.subr.mxu0 0.0
  %965 = vmatpush1.msra.mxu0 0.0
  %966 = vmatprep.subr.mxu0 0.0
  %967 = vmatpush1.msra.mxu0 0.0
  %968 = vmatprep.subr.mxu0 0.0
  %969 = vmatpush1.msra.mxu0 0.0
  %970 = vmatprep.subr.mxu0 0.0
  %971 = vmatpush1.msra.mxu0 0.0
  %972 = vmatprep.subr.mxu0 0.0
  %973 = vmatpush1.msra.mxu0 0.0
  %974 = vmatprep.subr.mxu0 0.0
  %975 = vmatpush1.msra.mxu0 0.0
  %976 = vmatprep.subr.mxu0 0.0
  %977 = vmatpush1.msra.mxu0 0.0
  %978 = vmatprep.subr.mxu0 0.0
  %979 = vmatpush1.msra.mxu0 0.0
  %980 = vmatprep.subr.mxu0 0.0
  %981 = vmatpush1.msra.mxu0 0.0
  %982 = vmatprep.subr.mxu0 0.0
  %983 = vmatpush1.msra.mxu0 0.0
  %984 = vmatprep.subr.mxu0 0.0
  %985 = vmatpush1.msra.mxu0 0.0
  %986 = vmatprep.subr.mxu0 0.0
  %987 = vmatpush1.msra.mxu0 0.0
  %988 = vmatprep.subr.mxu0 0.0
  %989 = vmatpush1.msra.mxu0 0.0
  %990 = vmatprep.subr.mxu0 0.0
  %991 = vmatpush1.msra.mxu0 0.0
  %992 = vmatprep.subr.mxu0 0.0
  %v993 = vand.u32 %v777, 4294901760
  %v994 = vsub.f32 %v777, %v993
  %995 = vmatpush1.msra.mxu0 %v994
  %996 = vmatprep.subr.mxu0 0.0
  %v997 = vand.u32 %v776, 4294901760
  %v998 = vsub.f32 %v776, %v997
  %999 = vmatpush1.msra.mxu0 %v998
  %1000 = vmatprep.subr.mxu0 0.0
  %1001 = vmatpush2.msra.mxu0 0.0
  %1002 = vmatprep.subr.mxu0 0.0
  %1003 = vmatpush2.msra.mxu0 0.0
  %1004 = vmatprep.subr.mxu0 0.0
  %1005 = vmatpush2.msra.mxu0 0.0
  %1006 = vmatprep.subr.mxu0 0.0
  %1007 = vmatpush2.msra.mxu0 0.0
  %1008 = vmatprep.subr.mxu0 0.0
  %1009 = vmatpush2.msra.mxu0 0.0
  %1010 = vmatprep.subr.mxu0 0.0
  %1011 = vmatpush2.msra.mxu0 0.0
  %1012 = vmatprep.subr.mxu0 0.0
  %1013 = vmatpush2.msra.mxu0 0.0
  %1014 = vmatprep.subr.mxu0 0.0
  %1015 = vmatpush2.msra.mxu0 0.0
  %1016 = vmatprep.subr.mxu0 0.0
  %1017 = vmatpush2.msra.mxu0 0.0
  %1018 = vmatprep.subr.mxu0 0.0
  %1019 = vmatpush2.msra.mxu0 0.0
  %1020 = vmatprep.subr.mxu0 0.0
  %1021 = vmatpush2.msra.mxu0 0.0
  %1022 = vmatprep.subr.mxu0 0.0
  %1023 = vmatpush2.msra.mxu0 0.0
  %1024 = vmatprep.subr.mxu0 0.0
  %1025 = vmatpush2.msra.mxu0 0.0
  %1026 = vmatprep.subr.mxu0 0.0
  %1027 = vmatpush2.msra.mxu0 0.0
  %1028 = vmatprep.subr.mxu0 0.0
  %1029 = vmatpush2.msra.mxu0 0.0
  %1030 = vmatprep.subr.mxu0 0.0
  %1031 = vmatpush2.msra.mxu0 0.0
  %1032 = vmatprep.mubr.f32.mxu0 0.0
  %v1033 = vand.u32 %v785, 4294901760
  %v1034 = vsub.f32 %v785, %v1033
  %1035 = vmatmul.mubr.f32.gmra.mxu0 %v1034
  %v1036 = vpop.f32.mrf.mxu0
  %v1037 = vadd.f32 %v955, %v1036
  %v1038 = vpop.f32.mrf.mxu0
  %1039 = vmatprep.mubr.f32.mxu0 0.0
  %v1040 = vand.u32 %v788, 4294901760
  %v1041 = vsub.f32 %v788, %v1040
  %1042 = vmatmul.mubr.f32.gmra.mxu0 %v1041
  %v1043 = vpop.f32.mrf.mxu0
  %v1044 = vadd.f32 %v961, %v1043
  %v1045 = vpop.f32.mrf.mxu0
  %1046 = vdwg.mxu0
  %1047 = vmatprep.subr.mxu0 0.0
  %1048 = vmatpush1.msra.mxu0 0.0
  %1049 = vmatprep.subr.mxu0 0.0
  %1050 = vmatpush1.msra.mxu0 0.0
  %1051 = vmatprep.subr.mxu0 0.0
  %1052 = vmatpush1.msra.mxu0 0.0
  %1053 = vmatprep.subr.mxu0 0.0
  %1054 = vmatpush1.msra.mxu0 0.0
  %1055 = vmatprep.subr.mxu0 0.0
  %1056 = vmatpush1.msra.mxu0 0.0
  %1057 = vmatprep.subr.mxu0 0.0
  %1058 = vmatpush1.msra.mxu0 0.0
  %1059 = vmatprep.subr.mxu0 0.0
  %1060 = vmatpush1.msra.mxu0 0.0
  %1061 = vmatprep.subr.mxu0 0.0
  %1062 = vmatpush1.msra.mxu0 0.0
  %1063 = vmatprep.subr.mxu0 0.0
  %1064 = vmatpush1.msra.mxu0 0.0
  %1065 = vmatprep.subr.mxu0 0.0
  %1066 = vmatpush1.msra.mxu0 0.0
  %1067 = vmatprep.subr.mxu0 0.0
  %1068 = vmatpush1.msra.mxu0 0.0
  %1069 = vmatprep.subr.mxu0 0.0
  %1070 = vmatpush1.msra.mxu0 0.0
  %1071 = vmatprep.subr.mxu0 0.0
  %1072 = vmatpush1.msra.mxu0 0.0
  %1073 = vmatprep.subr.mxu0 0.0
  %1074 = vmatpush1.msra.mxu0 0.0
  %1075 = vmatprep.subr.mxu0 0.0
  %v1076 = vand.u32 %v777, 4294901760
  %1077 = vmatpush1.msra.mxu0 %v1076
  %1078 = vmatprep.subr.mxu0 0.0
  %v1079 = vand.u32 %v776, 4294901760
  %1080 = vmatpush1.msra.mxu0 %v1079
  %1081 = vmatprep.subr.mxu0 0.0
  %1082 = vmatpush2.msra.mxu0 0.0
  %1083 = vmatprep.subr.mxu0 0.0
  %1084 = vmatpush2.msra.mxu0 0.0
  %1085 = vmatprep.subr.mxu0 0.0
  %1086 = vmatpush2.msra.mxu0 0.0
  %1087 = vmatprep.subr.mxu0 0.0
  %1088 = vmatpush2.msra.mxu0 0.0
  %1089 = vmatprep.subr.mxu0 0.0
  %1090 = vmatpush2.msra.mxu0 0.0
  %1091 = vmatprep.subr.mxu0 0.0
  %1092 = vmatpush2.msra.mxu0 0.0
  %1093 = vmatprep.subr.mxu0 0.0
  %1094 = vmatpush2.msra.mxu0 0.0
  %1095 = vmatprep.subr.mxu0 0.0
  %1096 = vmatpush2.msra.mxu0 0.0
  %1097 = vmatprep.subr.mxu0 0.0
  %1098 = vmatpush2.msra.mxu0 0.0
  %1099 = vmatprep.subr.mxu0 0.0
  %1100 = vmatpush2.msra.mxu0 0.0
  %1101 = vmatprep.subr.mxu0 0.0
  %1102 = vmatpush2.msra.mxu0 0.0
  %1103 = vmatprep.subr.mxu0 0.0
  %1104 = vmatpush2.msra.mxu0 0.0
  %1105 = vmatprep.subr.mxu0 0.0
  %1106 = vmatpush2.msra.mxu0 0.0
  %1107 = vmatprep.subr.mxu0 0.0
  %1108 = vmatpush2.msra.mxu0 0.0
  %1109 = vmatprep.subr.mxu0 0.0
  %1110 = vmatpush2.msra.mxu0 0.0
  %1111 = vmatprep.subr.mxu0 0.0
  %1112 = vmatpush2.msra.mxu0 0.0
  %1113 = vmatprep.mubr.f32.mxu0 0.0
  %v1114 = vand.u32 %v785, 4294901760
  %v1115 = vsub.f32 %v785, %v1114
  %v1116 = vand.u32 %v1115, 4294901760
  %1117 = vmatmul.mubr.f32.gmra.mxu0 %v1116
  %v1118 = vpop.f32.mrf.mxu0
  %v1119 = vadd.f32 %v1037, %v1118
  %v1120 = vpop.f32.mrf.mxu0
  %1121 = vmatprep.mubr.f32.mxu0 0.0
  %v1122 = vand.u32 %v788, 4294901760
  %v1123 = vsub.f32 %v788, %v1122
  %v1124 = vand.u32 %v1123, 4294901760
  %1125 = vmatmul.mubr.f32.gmra.mxu0 %v1124
  %v1126 = vpop.f32.mrf.mxu0
  %v1127 = vadd.f32 %v1044, %v1126
  %v1128 = vpop.f32.mrf.mxu0
  %1129 = vdwg.mxu0
  %1130 = vmatprep.subr.mxu0 0.0
  %1131 = vmatpush1.msra.mxu0 0.0
  %1132 = vmatprep.subr.mxu0 0.0
  %1133 = vmatpush1.msra.mxu0 0.0
  %1134 = vmatprep.subr.mxu0 0.0
  %1135 = vmatpush1.msra.mxu0 0.0
  %1136 = vmatprep.subr.mxu0 0.0
  %1137 = vmatpush1.msra.mxu0 0.0
  %1138 = vmatprep.subr.mxu0 0.0
  %1139 = vmatpush1.msra.mxu0 0.0
  %1140 = vmatprep.subr.mxu0 0.0
  %1141 = vmatpush1.msra.mxu0 0.0
  %1142 = vmatprep.subr.mxu0 0.0
  %1143 = vmatpush1.msra.mxu0 0.0
  %1144 = vmatprep.subr.mxu0 0.0
  %1145 = vmatpush1.msra.mxu0 0.0
  %1146 = vmatprep.subr.mxu0 0.0
  %1147 = vmatpush1.msra.mxu0 0.0
  %1148 = vmatprep.subr.mxu0 0.0
  %1149 = vmatpush1.msra.mxu0 0.0
  %1150 = vmatprep.subr.mxu0 0.0
  %1151 = vmatpush1.msra.mxu0 0.0
  %1152 = vmatprep.subr.mxu0 0.0
  %1153 = vmatpush1.msra.mxu0 0.0
  %1154 = vmatprep.subr.mxu0 0.0
  %1155 = vmatpush1.msra.mxu0 0.0
  %1156 = vmatprep.subr.mxu0 0.0
  %1157 = vmatpush1.msra.mxu0 0.0
  %1158 = vmatprep.subr.mxu0 0.0
  %v1159 = vand.u32 %v777, 4294901760
  %v1160 = vsub.f32 %v777, %v1159
  %v1161 = vand.u32 %v1160, 4294901760
  %1162 = vmatpush1.msra.mxu0 %v1161
  %1163 = vmatprep.subr.mxu0 0.0
  %v1164 = vand.u32 %v776, 4294901760
  %v1165 = vsub.f32 %v776, %v1164
  %v1166 = vand.u32 %v1165, 4294901760
  %1167 = vmatpush1.msra.mxu0 %v1166
  %1168 = vmatprep.subr.mxu0 0.0
  %1169 = vmatpush2.msra.mxu0 0.0
  %1170 = vmatprep.subr.mxu0 0.0
  %1171 = vmatpush2.msra.mxu0 0.0
  %1172 = vmatprep.subr.mxu0 0.0
  %1173 = vmatpush2.msra.mxu0 0.0
  %1174 = vmatprep.subr.mxu0 0.0
  %1175 = vmatpush2.msra.mxu0 0.0
  %1176 = vmatprep.subr.mxu0 0.0
  %1177 = vmatpush2.msra.mxu0 0.0
  %1178 = vmatprep.subr.mxu0 0.0
  %1179 = vmatpush2.msra.mxu0 0.0
  %1180 = vmatprep.subr.mxu0 0.0
  %1181 = vmatpush2.msra.mxu0 0.0
  %1182 = vmatprep.subr.mxu0 0.0
  %1183 = vmatpush2.msra.mxu0 0.0
  %1184 = vmatprep.subr.mxu0 0.0
  %1185 = vmatpush2.msra.mxu0 0.0
  %1186 = vmatprep.subr.mxu0 0.0
  %1187 = vmatpush2.msra.mxu0 0.0
  %1188 = vmatprep.subr.mxu0 0.0
  %1189 = vmatpush2.msra.mxu0 0.0
  %1190 = vmatprep.subr.mxu0 0.0
  %1191 = vmatpush2.msra.mxu0 0.0
  %1192 = vmatprep.subr.mxu0 0.0
  %1193 = vmatpush2.msra.mxu0 0.0
  %1194 = vmatprep.subr.mxu0 0.0
  %1195 = vmatpush2.msra.mxu0 0.0
  %1196 = vmatprep.subr.mxu0 0.0
  %1197 = vmatpush2.msra.mxu0 0.0
  %1198 = vmatprep.subr.mxu0 0.0
  %1199 = vmatpush2.msra.mxu0 0.0
  %1200 = vmatprep.mubr.f32.mxu0 0.0
  %v1201 = vand.u32 %v785, 4294901760
  %1202 = vmatmul.mubr.f32.gmra.mxu0 %v1201
  %v1203 = vpop.f32.mrf.mxu0
  %v1204 = vadd.f32 %v1119, %v1203
  %v1205 = vpop.f32.mrf.mxu0
  %1206 = vmatprep.mubr.f32.mxu0 0.0
  %v1207 = vand.u32 %v788, 4294901760
  %1208 = vmatmul.mubr.f32.gmra.mxu0 %v1207
  %v1209 = vpop.f32.mrf.mxu0
  %v1210 = vadd.f32 %v1127, %v1209
  %v1211 = vpop.f32.mrf.mxu0
  %1212 = vdwg.mxu0
  %1213 = vmatprep.subr.mxu0 0.0
  %1214 = vmatpush1.msra.mxu0 0.0
  %1215 = vmatprep.subr.mxu0 0.0
  %1216 = vmatpush1.msra.mxu0 0.0
  %1217 = vmatprep.subr.mxu0 0.0
  %1218 = vmatpush1.msra.mxu0 0.0
  %1219 = vmatprep.subr.mxu0 0.0
  %1220 = vmatpush1.msra.mxu0 0.0
  %1221 = vmatprep.subr.mxu0 0.0
  %1222 = vmatpush1.msra.mxu0 0.0
  %1223 = vmatprep.subr.mxu0 0.0
  %1224 = vmatpush1.msra.mxu0 0.0
  %1225 = vmatprep.subr.mxu0 0.0
  %1226 = vmatpush1.msra.mxu0 0.0
  %1227 = vmatprep.subr.mxu0 0.0
  %1228 = vmatpush1.msra.mxu0 0.0
  %1229 = vmatprep.subr.mxu0 0.0
  %1230 = vmatpush1.msra.mxu0 0.0
  %1231 = vmatprep.subr.mxu0 0.0
  %1232 = vmatpush1.msra.mxu0 0.0
  %1233 = vmatprep.subr.mxu0 0.0
  %1234 = vmatpush1.msra.mxu0 0.0
  %1235 = vmatprep.subr.mxu0 0.0
  %1236 = vmatpush1.msra.mxu0 0.0
  %1237 = vmatprep.subr.mxu0 0.0
  %1238 = vmatpush1.msra.mxu0 0.0
  %1239 = vmatprep.subr.mxu0 0.0
  %1240 = vmatpush1.msra.mxu0 0.0
  %1241 = vmatprep.subr.mxu0 0.0
  %v1242 = vand.u32 %v777, 4294901760
  %1243 = vmatpush1.msra.mxu0 %v1242
  %1244 = vmatprep.subr.mxu0 0.0
  %v1245 = vand.u32 %v776, 4294901760
  %1246 = vmatpush1.msra.mxu0 %v1245
  %1247 = vmatprep.subr.mxu0 0.0
  %1248 = vmatpush2.msra.mxu0 0.0
  %1249 = vmatprep.subr.mxu0 0.0
  %1250 = vmatpush2.msra.mxu0 0.0
  %1251 = vmatprep.subr.mxu0 0.0
  %1252 = vmatpush2.msra.mxu0 0.0
  %1253 = vmatprep.subr.mxu0 0.0
  %1254 = vmatpush2.msra.mxu0 0.0
  %1255 = vmatprep.subr.mxu0 0.0
  %1256 = vmatpush2.msra.mxu0 0.0
  %1257 = vmatprep.subr.mxu0 0.0
  %1258 = vmatpush2.msra.mxu0 0.0
  %1259 = vmatprep.subr.mxu0 0.0
  %1260 = vmatpush2.msra.mxu0 0.0
  %1261 = vmatprep.subr.mxu0 0.0
  %1262 = vmatpush2.msra.mxu0 0.0
  %1263 = vmatprep.subr.mxu0 0.0
  %1264 = vmatpush2.msra.mxu0 0.0
  %1265 = vmatprep.subr.mxu0 0.0
  %1266 = vmatpush2.msra.mxu0 0.0
  %1267 = vmatprep.subr.mxu0 0.0
  %1268 = vmatpush2.msra.mxu0 0.0
  %1269 = vmatprep.subr.mxu0 0.0
  %1270 = vmatpush2.msra.mxu0 0.0
  %1271 = vmatprep.subr.mxu0 0.0
  %1272 = vmatpush2.msra.mxu0 0.0
  %1273 = vmatprep.subr.mxu0 0.0
  %1274 = vmatpush2.msra.mxu0 0.0
  %1275 = vmatprep.subr.mxu0 0.0
  %1276 = vmatpush2.msra.mxu0 0.0
  %1277 = vmatprep.subr.mxu0 0.0
  %1278 = vmatpush2.msra.mxu0 0.0
  %1279 = vmatprep.mubr.f32.mxu0 0.0
  %v1280 = vand.u32 %v785, 4294901760
  %1281 = vmatmul.mubr.f32.gmra.mxu0 %v1280
  %v1282 = vpop.f32.mrf.mxu0
  %v1283 = vadd.f32 %v1204, %v1282
  %v1284 = vpop.f32.mrf.mxu0
  %1285 = vmatprep.mubr.f32.mxu0 0.0
  %v1286 = vand.u32 %v788, 4294901760
  %1287 = vmatmul.mubr.f32.gmra.mxu0 %v1286
  %v1288 = vpop.f32.mrf.mxu0
  %v1289 = vadd.f32 %v1210, %v1288
  %v1290 = vpop.f32.mrf.mxu0
  %1291 = vdwg.mxu0
  %v1292 = vld [vmem:[%s3] sm:$0xff]
  %v1293 = vld [vmem:[%s3 + $0x8] sm:$0xff]
  %v1294 = vld [vmem:[%s3 + $0x10] sm:$0xff]
  %v1295 = vld [vmem:[%s3 + $0x18] sm:$0xff]
  %v1296 = vld [vmem:[%s3 + $0x20] sm:$0xff]
  %v1297 = vld [vmem:[%s3 + $0x28] sm:$0xff]
  %v1298 = vld [vmem:[%s3 + $0x30] sm:$0xff]
  %v1299 = vld [vmem:[%s3 + $0x38] sm:$0xff]
  %v1300 = vld [vmem:[%s3 + $0x40] sm:$0xff]
  %v1301 = vld [vmem:[%s3 + $0x48] sm:$0xff]
  %v1302 = vld [vmem:[%s3 + $0x50] sm:$0xff]
  %v1303 = vld [vmem:[%s3 + $0x58] sm:$0xff]
  %v1304 = vld [vmem:[%s3 + $0x60] sm:$0xff]
  %v1305 = vld [vmem:[%s3 + $0x68] sm:$0xff]
  %v1306 = vld [vmem:[%s3 + $0x70] sm:$0xff]
  %v1307 = vld [vmem:[%s3 + $0x78] sm:$0xff]
  %1308 = vmatprep.subr.mxu0 0.0
  %v1309 = vand.u32 %v1307, 4294901760
  %1310 = vmatpush1.msra.mxu0 %v1309
  %1311 = vmatprep.subr.mxu0 0.0
  %v1312 = vand.u32 %v1306, 4294901760
  %1313 = vmatpush1.msra.mxu0 %v1312
  %1314 = vmatprep.subr.mxu0 0.0
  %v1315 = vand.u32 %v1305, 4294901760
  %1316 = vmatpush1.msra.mxu0 %v1315
  %1317 = vmatprep.subr.mxu0 0.0
  %v1318 = vand.u32 %v1304, 4294901760
  %1319 = vmatpush1.msra.mxu0 %v1318
  %1320 = vmatprep.subr.mxu0 0.0
  %v1321 = vand.u32 %v1303, 4294901760
  %1322 = vmatpush1.msra.mxu0 %v1321
  %1323 = vmatprep.subr.mxu0 0.0
  %v1324 = vand.u32 %v1302, 4294901760
  %1325 = vmatpush1.msra.mxu0 %v1324
  %1326 = vmatprep.subr.mxu0 0.0
  %v1327 = vand.u32 %v1301, 4294901760
  %1328 = vmatpush1.msra.mxu0 %v1327
  %1329 = vmatprep.subr.mxu0 0.0
  %v1330 = vand.u32 %v1300, 4294901760
  %1331 = vmatpush1.msra.mxu0 %v1330
  %1332 = vmatprep.subr.mxu0 0.0
  %v1333 = vand.u32 %v1299, 4294901760
  %1334 = vmatpush1.msra.mxu0 %v1333
  %1335 = vmatprep.subr.mxu0 0.0
  %v1336 = vand.u32 %v1298, 4294901760
  %1337 = vmatpush1.msra.mxu0 %v1336
  %1338 = vmatprep.subr.mxu0 0.0
  %v1339 = vand.u32 %v1297, 4294901760
  %1340 = vmatpush1.msra.mxu0 %v1339
  %1341 = vmatprep.subr.mxu0 0.0
  %v1342 = vand.u32 %v1296, 4294901760
  %1343 = vmatpush1.msra.mxu0 %v1342
  %1344 = vmatprep.subr.mxu0 0.0
  %v1345 = vand.u32 %v1295, 4294901760
  %1346 = vmatpush1.msra.mxu0 %v1345
  %1347 = vmatprep.subr.mxu0 0.0
  %v1348 = vand.u32 %v1294, 4294901760
  %1349 = vmatpush1.msra.mxu0 %v1348
  %1350 = vmatprep.subr.mxu0 0.0
  %v1351 = vand.u32 %v1293, 4294901760
  %1352 = vmatpush1.msra.mxu0 %v1351
  %1353 = vmatprep.subr.mxu0 0.0
  %v1354 = vand.u32 %v1292, 4294901760
  %1355 = vmatpush1.msra.mxu0 %v1354
  %1356 = vmatprep.subr.mxu0 0.0
  %1357 = vmatpush2.msra.mxu0 0.0
  %1358 = vmatprep.subr.mxu0 0.0
  %1359 = vmatpush2.msra.mxu0 0.0
  %1360 = vmatprep.subr.mxu0 0.0
  %1361 = vmatpush2.msra.mxu0 0.0
  %1362 = vmatprep.subr.mxu0 0.0
  %1363 = vmatpush2.msra.mxu0 0.0
  %1364 = vmatprep.subr.mxu0 0.0
  %1365 = vmatpush2.msra.mxu0 0.0
  %1366 = vmatprep.subr.mxu0 0.0
  %1367 = vmatpush2.msra.mxu0 0.0
  %1368 = vmatprep.subr.mxu0 0.0
  %1369 = vmatpush2.msra.mxu0 0.0
  %1370 = vmatprep.subr.mxu0 0.0
  %1371 = vmatpush2.msra.mxu0 0.0
  %1372 = vmatprep.subr.mxu0 0.0
  %1373 = vmatpush2.msra.mxu0 0.0
  %1374 = vmatprep.subr.mxu0 0.0
  %1375 = vmatpush2.msra.mxu0 0.0
  %1376 = vmatprep.subr.mxu0 0.0
  %1377 = vmatpush2.msra.mxu0 0.0
  %1378 = vmatprep.subr.mxu0 0.0
  %1379 = vmatpush2.msra.mxu0 0.0
  %1380 = vmatprep.subr.mxu0 0.0
  %1381 = vmatpush2.msra.mxu0 0.0
  %1382 = vmatprep.subr.mxu0 0.0
  %1383 = vmatpush2.msra.mxu0 0.0
  %1384 = vmatprep.subr.mxu0 0.0
  %1385 = vmatpush2.msra.mxu0 0.0
  %1386 = vmatprep.subr.mxu0 0.0
  %1387 = vmatpush2.msra.mxu0 0.0
  %1388 = vmatprep.mubr.f32.mxu0 0.0
  %v1389 = vand.u32 %v1283, 4294901760
  %v1390 = vsub.f32 %v1283, %v1389
  %v1391 = vand.u32 %v1390, 4294901760
  %v1392 = vsub.f32 %v1390, %v1391
  %v1393 = vand.u32 %v1392, 4294901760
  %1394 = vmatmul.mubr.f32.gmra.mxu0 %v1393
  %v1395 = vpop.f32.mrf.mxu0
  %v1396 = vadd.f32 0.0, %v1395
  %v1397 = vpop.f32.mrf.mxu0
  %1398 = vmatprep.mubr.f32.mxu0 0.0
  %v1399 = vand.u32 %v1289, 4294901760
  %v1400 = vsub.f32 %v1289, %v1399
  %v1401 = vand.u32 %v1400, 4294901760
  %v1402 = vsub.f32 %v1400, %v1401
  %v1403 = vand.u32 %v1402, 4294901760
  %1404 = vmatmul.mubr.f32.gmra.mxu0 %v1403
  %v1405 = vpop.f32.mrf.mxu0
  %v1406 = vadd.f32 0.0, %v1405
  %v1407 = vpop.f32.mrf.mxu0
  %1408 = vdwg.mxu0
  %1409 = vmatprep.subr.mxu0 0.0
  %v1410 = vand.u32 %v1307, 4294901760
  %v1411 = vsub.f32 %v1307, %v1410
  %v1412 = vand.u32 %v1411, 4294901760
  %v1413 = vsub.f32 %v1411, %v1412
  %v1414 = vand.u32 %v1413, 4294901760
  %1415 = vmatpush1.msra.mxu0 %v1414
  %1416 = vmatprep.subr.mxu0 0.0
  %v1417 = vand.u32 %v1306, 4294901760
  %v1418 = vsub.f32 %v1306, %v1417
  %v1419 = vand.u32 %v1418, 4294901760
  %v1420 = vsub.f32 %v1418, %v1419
  %v1421 = vand.u32 %v1420, 4294901760
  %1422 = vmatpush1.msra.mxu0 %v1421
  %1423 = vmatprep.subr.mxu0 0.0
  %v1424 = vand.u32 %v1305, 4294901760
  %v1425 = vsub.f32 %v1305, %v1424
  %v1426 = vand.u32 %v1425, 4294901760
  %v1427 = vsub.f32 %v1425, %v1426
  %v1428 = vand.u32 %v1427, 4294901760
  %1429 = vmatpush1.msra.mxu0 %v1428
  %1430 = vmatprep.subr.mxu0 0.0
  %v1431 = vand.u32 %v1304, 4294901760
  %v1432 = vsub.f32 %v1304, %v1431
  %v1433 = vand.u32 %v1432, 4294901760
  %v1434 = vsub.f32 %v1432, %v1433
  %v1435 = vand.u32 %v1434, 4294901760
  %1436 = vmatpush1.msra.mxu0 %v1435
  %1437 = vmatprep.subr.mxu0 0.0
  %v1438 = vand.u32 %v1303, 4294901760
  %v1439 = vsub.f32 %v1303, %v1438
  %v1440 = vand.u32 %v1439, 4294901760
  %v1441 = vsub.f32 %v1439, %v1440
  %v1442 = vand.u32 %v1441, 4294901760
  %1443 = vmatpush1.msra.mxu0 %v1442
  %1444 = vmatprep.subr.mxu0 0.0
  %v1445 = vand.u32 %v1302, 4294901760
  %v1446 = vsub.f32 %v1302, %v1445
  %v1447 = vand.u32 %v1446, 4294901760
  %v1448 = vsub.f32 %v1446, %v1447
  %v1449 = vand.u32 %v1448, 4294901760
  %1450 = vmatpush1.msra.mxu0 %v1449
  %1451 = vmatprep.subr.mxu0 0.0
  %v1452 = vand.u32 %v1301, 4294901760
  %v1453 = vsub.f32 %v1301, %v1452
  %v1454 = vand.u32 %v1453, 4294901760
  %v1455 = vsub.f32 %v1453, %v1454
  %v1456 = vand.u32 %v1455, 4294901760
  %1457 = vmatpush1.msra.mxu0 %v1456
  %1458 = vmatprep.subr.mxu0 0.0
  %v1459 = vand.u32 %v1300, 4294901760
  %v1460 = vsub.f32 %v1300, %v1459
  %v1461 = vand.u32 %v1460, 4294901760
  %v1462 = vsub.f32 %v1460, %v1461
  %v1463 = vand.u32 %v1462, 4294901760
  %1464 = vmatpush1.msra.mxu0 %v1463
  %1465 = vmatprep.subr.mxu0 0.0
  %v1466 = vand.u32 %v1299, 4294901760
  %v1467 = vsub.f32 %v1299, %v1466
  %v1468 = vand.u32 %v1467, 4294901760
  %v1469 = vsub.f32 %v1467, %v1468
  %v1470 = vand.u32 %v1469, 4294901760
  %1471 = vmatpush1.msra.mxu0 %v1470
  %1472 = vmatprep.subr.mxu0 0.0
  %v1473 = vand.u32 %v1298, 4294901760
  %v1474 = vsub.f32 %v1298, %v1473
  %v1475 = vand.u32 %v1474, 4294901760
  %v1476 = vsub.f32 %v1474, %v1475
  %v1477 = vand.u32 %v1476, 4294901760
  %1478 = vmatpush1.msra.mxu0 %v1477
  %1479 = vmatprep.subr.mxu0 0.0
  %v1480 = vand.u32 %v1297, 4294901760
  %v1481 = vsub.f32 %v1297, %v1480
  %v1482 = vand.u32 %v1481, 4294901760
  %v1483 = vsub.f32 %v1481, %v1482
  %v1484 = vand.u32 %v1483, 4294901760
  %1485 = vmatpush1.msra.mxu0 %v1484
  %1486 = vmatprep.subr.mxu0 0.0
  %v1487 = vand.u32 %v1296, 4294901760
  %v1488 = vsub.f32 %v1296, %v1487
  %v1489 = vand.u32 %v1488, 4294901760
  %v1490 = vsub.f32 %v1488, %v1489
  %v1491 = vand.u32 %v1490, 4294901760
  %1492 = vmatpush1.msra.mxu0 %v1491
  %1493 = vmatprep.subr.mxu0 0.0
  %v1494 = vand.u32 %v1295, 4294901760
  %v1495 = vsub.f32 %v1295, %v1494
  %v1496 = vand.u32 %v1495, 4294901760
  %v1497 = vsub.f32 %v1495, %v1496
  %v1498 = vand.u32 %v1497, 4294901760
  %1499 = vmatpush1.msra.mxu0 %v1498
  %1500 = vmatprep.subr.mxu0 0.0
  %v1501 = vand.u32 %v1294, 4294901760
  %v1502 = vsub.f32 %v1294, %v1501
  %v1503 = vand.u32 %v1502, 4294901760
  %v1504 = vsub.f32 %v1502, %v1503
  %v1505 = vand.u32 %v1504, 4294901760
  %1506 = vmatpush1.msra.mxu0 %v1505
  %1507 = vmatprep.subr.mxu0 0.0
  %v1508 = vand.u32 %v1293, 4294901760
  %v1509 = vsub.f32 %v1293, %v1508
  %v1510 = vand.u32 %v1509, 4294901760
  %v1511 = vsub.f32 %v1509, %v1510
  %v1512 = vand.u32 %v1511, 4294901760
  %1513 = vmatpush1.msra.mxu0 %v1512
  %1514 = vmatprep.subr.mxu0 0.0
  %v1515 = vand.u32 %v1292, 4294901760
  %v1516 = vsub.f32 %v1292, %v1515
  %v1517 = vand.u32 %v1516, 4294901760
  %v1518 = vsub.f32 %v1516, %v1517
  %v1519 = vand.u32 %v1518, 4294901760
  %1520 = vmatpush1.msra.mxu0 %v1519
  %1521 = vmatprep.subr.mxu0 0.0
  %1522 = vmatpush2.msra.mxu0 0.0
  %1523 = vmatprep.subr.mxu0 0.0
  %1524 = vmatpush2.msra.mxu0 0.0
  %1525 = vmatprep.subr.mxu0 0.0
  %1526 = vmatpush2.msra.mxu0 0.0
  %1527 = vmatprep.subr.mxu0 0.0
  %1528 = vmatpush2.msra.mxu0 0.0
  %1529 = vmatprep.subr.mxu0 0.0
  %1530 = vmatpush2.msra.mxu0 0.0
  %1531 = vmatprep.subr.mxu0 0.0
  %1532 = vmatpush2.msra.mxu0 0.0
  %1533 = vmatprep.subr.mxu0 0.0
  %1534 = vmatpush2.msra.mxu0 0.0
  %1535 = vmatprep.subr.mxu0 0.0
  %1536 = vmatpush2.msra.mxu0 0.0
  %1537 = vmatprep.subr.mxu0 0.0
  %1538 = vmatpush2.msra.mxu0 0.0
  %1539 = vmatprep.subr.mxu0 0.0
  %1540 = vmatpush2.msra.mxu0 0.0
  %1541 = vmatprep.subr.mxu0 0.0
  %1542 = vmatpush2.msra.mxu0 0.0
  %1543 = vmatprep.subr.mxu0 0.0
  %1544 = vmatpush2.msra.mxu0 0.0
  %1545 = vmatprep.subr.mxu0 0.0
  %1546 = vmatpush2.msra.mxu0 0.0
  %1547 = vmatprep.subr.mxu0 0.0
  %1548 = vmatpush2.msra.mxu0 0.0
  %1549 = vmatprep.subr.mxu0 0.0
  %1550 = vmatpush2.msra.mxu0 0.0
  %1551 = vmatprep.subr.mxu0 0.0
  %1552 = vmatpush2.msra.mxu0 0.0
  %1553 = vmatprep.mubr.f32.mxu0 0.0
  %v1554 = vand.u32 %v1283, 4294901760
  %1555 = vmatmul.mubr.f32.gmra.mxu0 %v1554
  %v1556 = vpop.f32.mrf.mxu0
  %v1557 = vadd.f32 %v1396, %v1556
  %v1558 = vpop.f32.mrf.mxu0
  %1559 = vmatprep.mubr.f32.mxu0 0.0
  %v1560 = vand.u32 %v1289, 4294901760
  %1561 = vmatmul.mubr.f32.gmra.mxu0 %v1560
  %v1562 = vpop.f32.mrf.mxu0
  %v1563 = vadd.f32 %v1406, %v1562
  %v1564 = vpop.f32.mrf.mxu0
  %1565 = vdwg.mxu0
  %1566 = vmatprep.subr.mxu0 0.0
  %v1567 = vand.u32 %v1307, 4294901760
  %v1568 = vsub.f32 %v1307, %v1567
  %1569 = vmatpush1.msra.mxu0 %v1568
  %1570 = vmatprep.subr.mxu0 0.0
  %v1571 = vand.u32 %v1306, 4294901760
  %v1572 = vsub.f32 %v1306, %v1571
  %1573 = vmatpush1.msra.mxu0 %v1572
  %1574 = vmatprep.subr.mxu0 0.0
  %v1575 = vand.u32 %v1305, 4294901760
  %v1576 = vsub.f32 %v1305, %v1575
  %1577 = vmatpush1.msra.mxu0 %v1576
  %1578 = vmatprep.subr.mxu0 0.0
  %v1579 = vand.u32 %v1304, 4294901760
  %v1580 = vsub.f32 %v1304, %v1579
  %1581 = vmatpush1.msra.mxu0 %v1580
  %1582 = vmatprep.subr.mxu0 0.0
  %v1583 = vand.u32 %v1303, 4294901760
  %v1584 = vsub.f32 %v1303, %v1583
  %1585 = vmatpush1.msra.mxu0 %v1584
  %1586 = vmatprep.subr.mxu0 0.0
  %v1587 = vand.u32 %v1302, 4294901760
  %v1588 = vsub.f32 %v1302, %v1587
  %1589 = vmatpush1.msra.mxu0 %v1588
  %1590 = vmatprep.subr.mxu0 0.0
  %v1591 = vand.u32 %v1301, 4294901760
  %v1592 = vsub.f32 %v1301, %v1591
  %1593 = vmatpush1.msra.mxu0 %v1592
  %1594 = vmatprep.subr.mxu0 0.0
  %v1595 = vand.u32 %v1300, 4294901760
  %v1596 = vsub.f32 %v1300, %v1595
  %1597 = vmatpush1.msra.mxu0 %v1596
  %1598 = vmatprep.subr.mxu0 0.0
  %v1599 = vand.u32 %v1299, 4294901760
  %v1600 = vsub.f32 %v1299, %v1599
  %1601 = vmatpush1.msra.mxu0 %v1600
  %1602 = vmatprep.subr.mxu0 0.0
  %v1603 = vand.u32 %v1298, 4294901760
  %v1604 = vsub.f32 %v1298, %v1603
  %1605 = vmatpush1.msra.mxu0 %v1604
  %1606 = vmatprep.subr.mxu0 0.0
  %v1607 = vand.u32 %v1297, 4294901760
  %v1608 = vsub.f32 %v1297, %v1607
  %1609 = vmatpush1.msra.mxu0 %v1608
  %1610 = vmatprep.subr.mxu0 0.0
  %v1611 = vand.u32 %v1296, 4294901760
  %v1612 = vsub.f32 %v1296, %v1611
  %1613 = vmatpush1.msra.mxu0 %v1612
  %1614 = vmatprep.subr.mxu0 0.0
  %v1615 = vand.u32 %v1295, 4294901760
  %v1616 = vsub.f32 %v1295, %v1615
  %1617 = vmatpush1.msra.mxu0 %v1616
  %1618 = vmatprep.subr.mxu0 0.0
  %v1619 = vand.u32 %v1294, 4294901760
  %v1620 = vsub.f32 %v1294, %v1619
  %1621 = vmatpush1.msra.mxu0 %v1620
  %1622 = vmatprep.subr.mxu0 0.0
  %v1623 = vand.u32 %v1293, 4294901760
  %v1624 = vsub.f32 %v1293, %v1623
  %1625 = vmatpush1.msra.mxu0 %v1624
  %1626 = vmatprep.subr.mxu0 0.0
  %v1627 = vand.u32 %v1292, 4294901760
  %v1628 = vsub.f32 %v1292, %v1627
  %1629 = vmatpush1.msra.mxu0 %v1628
  %1630 = vmatprep.subr.mxu0 0.0
  %1631 = vmatpush2.msra.mxu0 0.0
  %1632 = vmatprep.subr.mxu0 0.0
  %1633 = vmatpush2.msra.mxu0 0.0
  %1634 = vmatprep.subr.mxu0 0.0
  %1635 = vmatpush2.msra.mxu0 0.0
  %1636 = vmatprep.subr.mxu0 0.0
  %1637 = vmatpush2.msra.mxu0 0.0
  %1638 = vmatprep.subr.mxu0 0.0
  %1639 = vmatpush2.msra.mxu0 0.0
  %1640 = vmatprep.subr.mxu0 0.0
  %1641 = vmatpush2.msra.mxu0 0.0
  %1642 = vmatprep.subr.mxu0 0.0
  %1643 = vmatpush2.msra.mxu0 0.0
  %1644 = vmatprep.subr.mxu0 0.0
  %1645 = vmatpush2.msra.mxu0 0.0
  %1646 = vmatprep.subr.mxu0 0.0
  %1647 = vmatpush2.msra.mxu0 0.0
  %1648 = vmatprep.subr.mxu0 0.0
  %1649 = vmatpush2.msra.mxu0 0.0
  %1650 = vmatprep.subr.mxu0 0.0
  %1651 = vmatpush2.msra.mxu0 0.0
  %1652 = vmatprep.subr.mxu0 0.0
  %1653 = vmatpush2.msra.mxu0 0.0
  %1654 = vmatprep.subr.mxu0 0.0
  %1655 = vmatpush2.msra.mxu0 0.0
  %1656 = vmatprep.subr.mxu0 0.0
  %1657 = vmatpush2.msra.mxu0 0.0
  %1658 = vmatprep.subr.mxu0 0.0
  %1659 = vmatpush2.msra.mxu0 0.0
  %1660 = vmatprep.subr.mxu0 0.0
  %1661 = vmatpush2.msra.mxu0 0.0
  %1662 = vmatprep.mubr.f32.mxu0 0.0
  %v1663 = vand.u32 %v1283, 4294901760
  %v1664 = vsub.f32 %v1283, %v1663
  %1665 = vmatmul.mubr.f32.gmra.mxu0 %v1664
  %v1666 = vpop.f32.mrf.mxu0
  %v1667 = vadd.f32 %v1557, %v1666
  %v1668 = vpop.f32.mrf.mxu0
  %1669 = vmatprep.mubr.f32.mxu0 0.0
  %v1670 = vand.u32 %v1289, 4294901760
  %v1671 = vsub.f32 %v1289, %v1670
  %1672 = vmatmul.mubr.f32.gmra.mxu0 %v1671
  %v1673 = vpop.f32.mrf.mxu0
  %v1674 = vadd.f32 %v1563, %v1673
  %v1675 = vpop.f32.mrf.mxu0
  %1676 = vdwg.mxu0
  %1677 = vmatprep.subr.mxu0 0.0
  %v1678 = vand.u32 %v1307, 4294901760
  %1679 = vmatpush1.msra.mxu0 %v1678
  %1680 = vmatprep.subr.mxu0 0.0
  %v1681 = vand.u32 %v1306, 4294901760
  %1682 = vmatpush1.msra.mxu0 %v1681
  %1683 = vmatprep.subr.mxu0 0.0
  %v1684 = vand.u32 %v1305, 4294901760
  %1685 = vmatpush1.msra.mxu0 %v1684
  %1686 = vmatprep.subr.mxu0 0.0
  %v1687 = vand.u32 %v1304, 4294901760
  %1688 = vmatpush1.msra.mxu0 %v1687
  %1689 = vmatprep.subr.mxu0 0.0
  %v1690 = vand.u32 %v1303, 4294901760
  %1691 = vmatpush1.msra.mxu0 %v1690
  %1692 = vmatprep.subr.mxu0 0.0
  %v1693 = vand.u32 %v1302, 4294901760
  %1694 = vmatpush1.msra.mxu0 %v1693
  %1695 = vmatprep.subr.mxu0 0.0
  %v1696 = vand.u32 %v1301, 4294901760
  %1697 = vmatpush1.msra.mxu0 %v1696
  %1698 = vmatprep.subr.mxu0 0.0
  %v1699 = vand.u32 %v1300, 4294901760
  %1700 = vmatpush1.msra.mxu0 %v1699
  %1701 = vmatprep.subr.mxu0 0.0
  %v1702 = vand.u32 %v1299, 4294901760
  %1703 = vmatpush1.msra.mxu0 %v1702
  %1704 = vmatprep.subr.mxu0 0.0
  %v1705 = vand.u32 %v1298, 4294901760
  %1706 = vmatpush1.msra.mxu0 %v1705
  %1707 = vmatprep.subr.mxu0 0.0
  %v1708 = vand.u32 %v1297, 4294901760
  %1709 = vmatpush1.msra.mxu0 %v1708
  %1710 = vmatprep.subr.mxu0 0.0
  %v1711 = vand.u32 %v1296, 4294901760
  %1712 = vmatpush1.msra.mxu0 %v1711
  %1713 = vmatprep.subr.mxu0 0.0
  %v1714 = vand.u32 %v1295, 4294901760
  %1715 = vmatpush1.msra.mxu0 %v1714
  %1716 = vmatprep.subr.mxu0 0.0
  %v1717 = vand.u32 %v1294, 4294901760
  %1718 = vmatpush1.msra.mxu0 %v1717
  %1719 = vmatprep.subr.mxu0 0.0
  %v1720 = vand.u32 %v1293, 4294901760
  %1721 = vmatpush1.msra.mxu0 %v1720
  %1722 = vmatprep.subr.mxu0 0.0
  %v1723 = vand.u32 %v1292, 4294901760
  %1724 = vmatpush1.msra.mxu0 %v1723
  %1725 = vmatprep.subr.mxu0 0.0
  %1726 = vmatpush2.msra.mxu0 0.0
  %1727 = vmatprep.subr.mxu0 0.0
  %1728 = vmatpush2.msra.mxu0 0.0
  %1729 = vmatprep.subr.mxu0 0.0
  %1730 = vmatpush2.msra.mxu0 0.0
  %1731 = vmatprep.subr.mxu0 0.0
  %1732 = vmatpush2.msra.mxu0 0.0
  %1733 = vmatprep.subr.mxu0 0.0
  %1734 = vmatpush2.msra.mxu0 0.0
  %1735 = vmatprep.subr.mxu0 0.0
  %1736 = vmatpush2.msra.mxu0 0.0
  %1737 = vmatprep.subr.mxu0 0.0
  %1738 = vmatpush2.msra.mxu0 0.0
  %1739 = vmatprep.subr.mxu0 0.0
  %1740 = vmatpush2.msra.mxu0 0.0
  %1741 = vmatprep.subr.mxu0 0.0
  %1742 = vmatpush2.msra.mxu0 0.0
  %1743 = vmatprep.subr.mxu0 0.0
  %1744 = vmatpush2.msra.mxu0 0.0
  %1745 = vmatprep.subr.mxu0 0.0
  %1746 = vmatpush2.msra.mxu0 0.0
  %1747 = vmatprep.subr.mxu0 0.0
  %1748 = vmatpush2.msra.mxu0 0.0
  %1749 = vmatprep.subr.mxu0 0.0
  %1750 = vmatpush2.msra.mxu0 0.0
  %1751 = vmatprep.subr.mxu0 0.0
  %1752 = vmatpush2.msra.mxu0 0.0
  %1753 = vmatprep.subr.mxu0 0.0
  %1754 = vmatpush2.msra.mxu0 0.0
  %1755 = vmatprep.subr.mxu0 0.0
  %1756 = vmatpush2.msra.mxu0 0.0
  %1757 = vmatprep.mubr.f32.mxu0 0.0
  %v1758 = vand.u32 %v1283, 4294901760
  %v1759 = vsub.f32 %v1283, %v1758
  %v1760 = vand.u32 %v1759, 4294901760
  %1761 = vmatmul.mubr.f32.gmra.mxu0 %v1760
  %v1762 = vpop.f32.mrf.mxu0
  %v1763 = vadd.f32 %v1667, %v1762
  %v1764 = vpop.f32.mrf.mxu0
  %1765 = vmatprep.mubr.f32.mxu0 0.0
  %v1766 = vand.u32 %v1289, 4294901760
  %v1767 = vsub.f32 %v1289, %v1766
  %v1768 = vand.u32 %v1767, 4294901760
  %1769 = vmatmul.mubr.f32.gmra.mxu0 %v1768
  %v1770 = vpop.f32.mrf.mxu0
  %v1771 = vadd.f32 %v1674, %v1770
  %v1772 = vpop.f32.mrf.mxu0
  %1773 = vdwg.mxu0
  %1774 = vmatprep.subr.mxu0 0.0
  %v1775 = vand.u32 %v1307, 4294901760
  %v1776 = vsub.f32 %v1307, %v1775
  %v1777 = vand.u32 %v1776, 4294901760
  %1778 = vmatpush1.msra.mxu0 %v1777
  %1779 = vmatprep.subr.mxu0 0.0
  %v1780 = vand.u32 %v1306, 4294901760
  %v1781 = vsub.f32 %v1306, %v1780
  %v1782 = vand.u32 %v1781, 4294901760
  %1783 = vmatpush1.msra.mxu0 %v1782
  %1784 = vmatprep.subr.mxu0 0.0
  %v1785 = vand.u32 %v1305, 4294901760
  %v1786 = vsub.f32 %v1305, %v1785
  %v1787 = vand.u32 %v1786, 4294901760
  %1788 = vmatpush1.msra.mxu0 %v1787
  %1789 = vmatprep.subr.mxu0 0.0
  %v1790 = vand.u32 %v1304, 4294901760
  %v1791 = vsub.f32 %v1304, %v1790
  %v1792 = vand.u32 %v1791, 4294901760
  %1793 = vmatpush1.msra.mxu0 %v1792
  %1794 = vmatprep.subr.mxu0 0.0
  %v1795 = vand.u32 %v1303, 4294901760
  %v1796 = vsub.f32 %v1303, %v1795
  %v1797 = vand.u32 %v1796, 4294901760
  %1798 = vmatpush1.msra.mxu0 %v1797
  %1799 = vmatprep.subr.mxu0 0.0
  %v1800 = vand.u32 %v1302, 4294901760
  %v1801 = vsub.f32 %v1302, %v1800
  %v1802 = vand.u32 %v1801, 4294901760
  %1803 = vmatpush1.msra.mxu0 %v1802
  %1804 = vmatprep.subr.mxu0 0.0
  %v1805 = vand.u32 %v1301, 4294901760
  %v1806 = vsub.f32 %v1301, %v1805
  %v1807 = vand.u32 %v1806, 4294901760
  %1808 = vmatpush1.msra.mxu0 %v1807
  %1809 = vmatprep.subr.mxu0 0.0
  %v1810 = vand.u32 %v1300, 4294901760
  %v1811 = vsub.f32 %v1300, %v1810
  %v1812 = vand.u32 %v1811, 4294901760
  %1813 = vmatpush1.msra.mxu0 %v1812
  %1814 = vmatprep.subr.mxu0 0.0
  %v1815 = vand.u32 %v1299, 4294901760
  %v1816 = vsub.f32 %v1299, %v1815
  %v1817 = vand.u32 %v1816, 4294901760
  %1818 = vmatpush1.msra.mxu0 %v1817
  %1819 = vmatprep.subr.mxu0 0.0
  %v1820 = vand.u32 %v1298, 4294901760
  %v1821 = vsub.f32 %v1298, %v1820
  %v1822 = vand.u32 %v1821, 4294901760
  %1823 = vmatpush1.msra.mxu0 %v1822
  %1824 = vmatprep.subr.mxu0 0.0
  %v1825 = vand.u32 %v1297, 4294901760
  %v1826 = vsub.f32 %v1297, %v1825
  %v1827 = vand.u32 %v1826, 4294901760
  %1828 = vmatpush1.msra.mxu0 %v1827
  %1829 = vmatprep.subr.mxu0 0.0
  %v1830 = vand.u32 %v1296, 4294901760
  %v1831 = vsub.f32 %v1296, %v1830
  %v1832 = vand.u32 %v1831, 4294901760
  %1833 = vmatpush1.msra.mxu0 %v1832
  %1834 = vmatprep.subr.mxu0 0.0
  %v1835 = vand.u32 %v1295, 4294901760
  %v1836 = vsub.f32 %v1295, %v1835
  %v1837 = vand.u32 %v1836, 4294901760
  %1838 = vmatpush1.msra.mxu0 %v1837
  %1839 = vmatprep.subr.mxu0 0.0
  %v1840 = vand.u32 %v1294, 4294901760
  %v1841 = vsub.f32 %v1294, %v1840
  %v1842 = vand.u32 %v1841, 4294901760
  %1843 = vmatpush1.msra.mxu0 %v1842
  %1844 = vmatprep.subr.mxu0 0.0
  %v1845 = vand.u32 %v1293, 4294901760
  %v1846 = vsub.f32 %v1293, %v1845
  %v1847 = vand.u32 %v1846, 4294901760
  %1848 = vmatpush1.msra.mxu0 %v1847
  %1849 = vmatprep.subr.mxu0 0.0
  %v1850 = vand.u32 %v1292, 4294901760
  %v1851 = vsub.f32 %v1292, %v1850
  %v1852 = vand.u32 %v1851, 4294901760
  %1853 = vmatpush1.msra.mxu0 %v1852
  %1854 = vmatprep.subr.mxu0 0.0
  %1855 = vmatpush2.msra.mxu0 0.0
  %1856 = vmatprep.subr.mxu0 0.0
  %1857 = vmatpush2.msra.mxu0 0.0
  %1858 = vmatprep.subr.mxu0 0.0
  %1859 = vmatpush2.msra.mxu0 0.0
  %1860 = vmatprep.subr.mxu0 0.0
  %1861 = vmatpush2.msra.mxu0 0.0
  %1862 = vmatprep.subr.mxu0 0.0
  %1863 = vmatpush2.msra.mxu0 0.0
  %1864 = vmatprep.subr.mxu0 0.0
  %1865 = vmatpush2.msra.mxu0 0.0
  %1866 = vmatprep.subr.mxu0 0.0
  %1867 = vmatpush2.msra.mxu0 0.0
  %1868 = vmatprep.subr.mxu0 0.0
  %1869 = vmatpush2.msra.mxu0 0.0
  %1870 = vmatprep.subr.mxu0 0.0
  %1871 = vmatpush2.msra.mxu0 0.0
  %1872 = vmatprep.subr.mxu0 0.0
  %1873 = vmatpush2.msra.mxu0 0.0
  %1874 = vmatprep.subr.mxu0 0.0
  %1875 = vmatpush2.msra.mxu0 0.0
  %1876 = vmatprep.subr.mxu0 0.0
  %1877 = vmatpush2.msra.mxu0 0.0
  %1878 = vmatprep.subr.mxu0 0.0
  %1879 = vmatpush2.msra.mxu0 0.0
  %1880 = vmatprep.subr.mxu0 0.0
  %1881 = vmatpush2.msra.mxu0 0.0
  %1882 = vmatprep.subr.mxu0 0.0
  %1883 = vmatpush2.msra.mxu0 0.0
  %1884 = vmatprep.subr.mxu0 0.0
  %1885 = vmatpush2.msra.mxu0 0.0
  %1886 = vmatprep.mubr.f32.mxu0 0.0
  %v1887 = vand.u32 %v1283, 4294901760
  %1888 = vmatmul.mubr.f32.gmra.mxu0 %v1887
  %v1889 = vpop.f32.mrf.mxu0
  %v1890 = vadd.f32 %v1763, %v1889
  %v1891 = vpop.f32.mrf.mxu0
  %1892 = vmatprep.mubr.f32.mxu0 0.0
  %v1893 = vand.u32 %v1289, 4294901760
  %1894 = vmatmul.mubr.f32.gmra.mxu0 %v1893
  %v1895 = vpop.f32.mrf.mxu0
  %v1896 = vadd.f32 %v1771, %v1895
  %v1897 = vpop.f32.mrf.mxu0
  %1898 = vdwg.mxu0
  %1899 = vmatprep.subr.mxu0 0.0
  %v1900 = vand.u32 %v1307, 4294901760
  %1901 = vmatpush1.msra.mxu0 %v1900
  %1902 = vmatprep.subr.mxu0 0.0
  %v1903 = vand.u32 %v1306, 4294901760
  %1904 = vmatpush1.msra.mxu0 %v1903
  %1905 = vmatprep.subr.mxu0 0.0
  %v1906 = vand.u32 %v1305, 4294901760
  %1907 = vmatpush1.msra.mxu0 %v1906
  %1908 = vmatprep.subr.mxu0 0.0
  %v1909 = vand.u32 %v1304, 4294901760
  %1910 = vmatpush1.msra.mxu0 %v1909
  %1911 = vmatprep.subr.mxu0 0.0
  %v1912 = vand.u32 %v1303, 4294901760
  %1913 = vmatpush1.msra.mxu0 %v1912
  %1914 = vmatprep.subr.mxu0 0.0
  %v1915 = vand.u32 %v1302, 4294901760
  %1916 = vmatpush1.msra.mxu0 %v1915
  %1917 = vmatprep.subr.mxu0 0.0
  %v1918 = vand.u32 %v1301, 4294901760
  %1919 = vmatpush1.msra.mxu0 %v1918
  %1920 = vmatprep.subr.mxu0 0.0
  %v1921 = vand.u32 %v1300, 4294901760
  %1922 = vmatpush1.msra.mxu0 %v1921
  %1923 = vmatprep.subr.mxu0 0.0
  %v1924 = vand.u32 %v1299, 4294901760
  %1925 = vmatpush1.msra.mxu0 %v1924
  %1926 = vmatprep.subr.mxu0 0.0
  %v1927 = vand.u32 %v1298, 4294901760
  %1928 = vmatpush1.msra.mxu0 %v1927
  %1929 = vmatprep.subr.mxu0 0.0
  %v1930 = vand.u32 %v1297, 4294901760
  %1931 = vmatpush1.msra.mxu0 %v1930
  %1932 = vmatprep.subr.mxu0 0.0
  %v1933 = vand.u32 %v1296, 4294901760
  %1934 = vmatpush1.msra.mxu0 %v1933
  %1935 = vmatprep.subr.mxu0 0.0
  %v1936 = vand.u32 %v1295, 4294901760
  %1937 = vmatpush1.msra.mxu0 %v1936
  %1938 = vmatprep.subr.mxu0 0.0
  %v1939 = vand.u32 %v1294, 4294901760
  %1940 = vmatpush1.msra.mxu0 %v1939
  %1941 = vmatprep.subr.mxu0 0.0
  %v1942 = vand.u32 %v1293, 4294901760
  %1943 = vmatpush1.msra.mxu0 %v1942
  %1944 = vmatprep.subr.mxu0 0.0
  %v1945 = vand.u32 %v1292, 4294901760
  %1946 = vmatpush1.msra.mxu0 %v1945
  %1947 = vmatprep.subr.mxu0 0.0
  %1948 = vmatpush2.msra.mxu0 0.0
  %1949 = vmatprep.subr.mxu0 0.0
  %1950 = vmatpush2.msra.mxu0 0.0
  %1951 = vmatprep.subr.mxu0 0.0
  %1952 = vmatpush2.msra.mxu0 0.0
  %1953 = vmatprep.subr.mxu0 0.0
  %1954 = vmatpush2.msra.mxu0 0.0
  %1955 = vmatprep.subr.mxu0 0.0
  %1956 = vmatpush2.msra.mxu0 0.0
  %1957 = vmatprep.subr.mxu0 0.0
  %1958 = vmatpush2.msra.mxu0 0.0
  %1959 = vmatprep.subr.mxu0 0.0
  %1960 = vmatpush2.msra.mxu0 0.0
  %1961 = vmatprep.subr.mxu0 0.0
  %1962 = vmatpush2.msra.mxu0 0.0
  %1963 = vmatprep.subr.mxu0 0.0
  %1964 = vmatpush2.msra.mxu0 0.0
  %1965 = vmatprep.subr.mxu0 0.0
  %1966 = vmatpush2.msra.mxu0 0.0
  %1967 = vmatprep.subr.mxu0 0.0
  %1968 = vmatpush2.msra.mxu0 0.0
  %1969 = vmatprep.subr.mxu0 0.0
  %1970 = vmatpush2.msra.mxu0 0.0
  %1971 = vmatprep.subr.mxu0 0.0
  %1972 = vmatpush2.msra.mxu0 0.0
  %1973 = vmatprep.subr.mxu0 0.0
  %1974 = vmatpush2.msra.mxu0 0.0
  %1975 = vmatprep.subr.mxu0 0.0
  %1976 = vmatpush2.msra.mxu0 0.0
  %1977 = vmatprep.subr.mxu0 0.0
  %1978 = vmatpush2.msra.mxu0 0.0
  %1979 = vmatprep.mubr.f32.mxu0 0.0
  %v1980 = vand.u32 %v1283, 4294901760
  %1981 = vmatmul.mubr.f32.gmra.mxu0 %v1980
  %v1982 = vpop.f32.mrf.mxu0
  %v1983 = vadd.f32 %v1890, %v1982
  %v1984 = vpop.f32.mrf.mxu0
  %1985 = vmatprep.mubr.f32.mxu0 0.0
  %v1986 = vand.u32 %v1289, 4294901760
  %1987 = vmatmul.mubr.f32.gmra.mxu0 %v1986
  %v1988 = vpop.f32.mrf.mxu0
  %v1989 = vadd.f32 %v1896, %v1988
  %v1990 = vpop.f32.mrf.mxu0
  %1991 = vdwg.mxu0
  %v1992 = vtanh.pop %v1983
  %v1993 = vtanh.pop %v1989
  %1994 = vmatprep.subr.mxu0 0.0
  %1995 = vmatpush1.msra.mxu0 0.0
  %1996 = vmatprep.subr.mxu0 0.0
  %1997 = vmatpush1.msra.mxu0 0.0
  %1998 = vmatprep.subr.mxu0 0.0
  %1999 = vmatpush1.msra.mxu0 0.0
  %2000 = vmatprep.subr.mxu0 0.0
  %2001 = vmatpush1.msra.mxu0 0.0
  %2002 = vmatprep.subr.mxu0 0.0
  %2003 = vmatpush1.msra.mxu0 0.0
  %2004 = vmatprep.subr.mxu0 0.0
  %2005 = vmatpush1.msra.mxu0 0.0
  %2006 = vmatprep.subr.mxu0 0.0
  %2007 = vmatpush1.msra.mxu0 0.0
  %2008 = vmatprep.subr.mxu0 0.0
  %2009 = vmatpush1.msra.mxu0 0.0
  %2010 = vmatprep.subr.mxu0 0.0
  %2011 = vmatpush1.msra.mxu0 0.0
  %2012 = vmatprep.subr.mxu0 0.0
  %2013 = vmatpush1.msra.mxu0 0.0
  %2014 = vmatprep.subr.mxu0 0.0
  %2015 = vmatpush1.msra.mxu0 0.0
  %2016 = vmatprep.subr.mxu0 0.0
  %2017 = vmatpush1.msra.mxu0 0.0
  %2018 = vmatprep.subr.mxu0 0.0
  %2019 = vmatpush1.msra.mxu0 0.0
  %2020 = vmatprep.subr.mxu0 0.0
  %2021 = vmatpush1.msra.mxu0 0.0
  %2022 = vmatprep.subr.mxu0 0.0
  %v2023 = vand.u32 %v1993, 4294901760
  %2024 = vmatpush1.msra.mxu0 %v2023
  %2025 = vmatprep.subr.mxu0 0.0
  %v2026 = vand.u32 %v1992, 4294901760
  %2027 = vmatpush1.msra.mxu0 %v2026
  %2028 = vmatprep.subr.mxu0 0.0
  %2029 = vmatpush2.msra.mxu0 0.0
  %2030 = vmatprep.subr.mxu0 0.0
  %2031 = vmatpush2.msra.mxu0 0.0
  %2032 = vmatprep.subr.mxu0 0.0
  %2033 = vmatpush2.msra.mxu0 0.0
  %2034 = vmatprep.subr.mxu0 0.0
  %2035 = vmatpush2.msra.mxu0 0.0
  %2036 = vmatprep.subr.mxu0 0.0
  %2037 = vmatpush2.msra.mxu0 0.0
  %2038 = vmatprep.subr.mxu0 0.0
  %2039 = vmatpush2.msra.mxu0 0.0
  %2040 = vmatprep.subr.mxu0 0.0
  %2041 = vmatpush2.msra.mxu0 0.0
  %2042 = vmatprep.subr.mxu0 0.0
  %2043 = vmatpush2.msra.mxu0 0.0
  %2044 = vmatprep.subr.mxu0 0.0
  %2045 = vmatpush2.msra.mxu0 0.0
  %2046 = vmatprep.subr.mxu0 0.0
  %2047 = vmatpush2.msra.mxu0 0.0
  %2048 = vmatprep.subr.mxu0 0.0
  %2049 = vmatpush2.msra.mxu0 0.0
  %2050 = vmatprep.subr.mxu0 0.0
  %2051 = vmatpush2.msra.mxu0 0.0
  %2052 = vmatprep.subr.mxu0 0.0
  %2053 = vmatpush2.msra.mxu0 0.0
  %2054 = vmatprep.subr.mxu0 0.0
  %2055 = vmatpush2.msra.mxu0 0.0
  %2056 = vmatprep.subr.mxu0 0.0
  %2057 = vmatpush2.msra.mxu0 0.0
  %2058 = vmatprep.subr.mxu0 0.0
  %2059 = vmatpush2.msra.mxu0 0.0
  %2060 = vmatprep.mubr.f32.mxu0 0.0
  %v2061 = vand.u32 %v785, 4294901760
  %v2062 = vsub.f32 %v785, %v2061
  %v2063 = vand.u32 %v2062, 4294901760
  %v2064 = vsub.f32 %v2062, %v2063
  %v2065 = vand.u32 %v2064, 4294901760
  %2066 = vmatmul.mubr.f32.gmra.mxu0 %v2065
  %v2067 = vpop.f32.mrf.mxu0
  %v2068 = vadd.f32 0.0, %v2067
  %v2069 = vpop.f32.mrf.mxu0
  %2070 = vmatprep.mubr.f32.mxu0 0.0
  %v2071 = vand.u32 %v788, 4294901760
  %v2072 = vsub.f32 %v788, %v2071
  %v2073 = vand.u32 %v2072, 4294901760
  %v2074 = vsub.f32 %v2072, %v2073
  %v2075 = vand.u32 %v2074, 4294901760
  %2076 = vmatmul.mubr.f32.gmra.mxu0 %v2075
  %v2077 = vpop.f32.mrf.mxu0
  %v2078 = vadd.f32 0.0, %v2077
  %v2079 = vpop.f32.mrf.mxu0
  %2080 = vdwg.mxu0
  %2081 = vmatprep.subr.mxu0 0.0
  %2082 = vmatpush1.msra.mxu0 0.0
  %2083 = vmatprep.subr.mxu0 0.0
  %2084 = vmatpush1.msra.mxu0 0.0
  %2085 = vmatprep.subr.mxu0 0.0
  %2086 = vmatpush1.msra.mxu0 0.0
  %2087 = vmatprep.subr.mxu0 0.0
  %2088 = vmatpush1.msra.mxu0 0.0
  %2089 = vmatprep.subr.mxu0 0.0
  %2090 = vmatpush1.msra.mxu0 0.0
  %2091 = vmatprep.subr.mxu0 0.0
  %2092 = vmatpush1.msra.mxu0 0.0
  %2093 = vmatprep.subr.mxu0 0.0
  %2094 = vmatpush1.msra.mxu0 0.0
  %2095 = vmatprep.subr.mxu0 0.0
  %2096 = vmatpush1.msra.mxu0 0.0
  %2097 = vmatprep.subr.mxu0 0.0
  %2098 = vmatpush1.msra.mxu0 0.0
  %2099 = vmatprep.subr.mxu0 0.0
  %2100 = vmatpush1.msra.mxu0 0.0
  %2101 = vmatprep.subr.mxu0 0.0
  %2102 = vmatpush1.msra.mxu0 0.0
  %2103 = vmatprep.subr.mxu0 0.0
  %2104 = vmatpush1.msra.mxu0 0.0
  %2105 = vmatprep.subr.mxu0 0.0
  %2106 = vmatpush1.msra.mxu0 0.0
  %2107 = vmatprep.subr.mxu0 0.0
  %2108 = vmatpush1.msra.mxu0 0.0
  %2109 = vmatprep.subr.mxu0 0.0
  %v2110 = vand.u32 %v1993, 4294901760
  %v2111 = vsub.f32 %v1993, %v2110
  %v2112 = vand.u32 %v2111, 4294901760
  %v2113 = vsub.f32 %v2111, %v2112
  %v2114 = vand.u32 %v2113, 4294901760
  %2115 = vmatpush1.msra.mxu0 %v2114
  %2116 = vmatprep.subr.mxu0 0.0
  %v2117 = vand.u32 %v1992, 4294901760
  %v2118 = vsub.f32 %v1992, %v2117
  %v2119 = vand.u32 %v2118, 4294901760
  %v2120 = vsub.f32 %v2118, %v2119
  %v2121 = vand.u32 %v2120, 4294901760
  %2122 = vmatpush1.msra.mxu0 %v2121
  %2123 = vmatprep.subr.mxu0 0.0
  %2124 = vmatpush2.msra.mxu0 0.0
  %2125 = vmatprep.subr.mxu0 0.0
  %2126 = vmatpush2.msra.mxu0 0.0
  %2127 = vmatprep.subr.mxu0 0.0
  %2128 = vmatpush2.msra.mxu0 0.0
  %2129 = vmatprep.subr.mxu0 0.0
  %2130 = vmatpush2.msra.mxu0 0.0
  %2131 = vmatprep.subr.mxu0 0.0
  %2132 = vmatpush2.msra.mxu0 0.0
  %2133 = vmatprep.subr.mxu0 0.0
  %2134 = vmatpush2.msra.mxu0 0.0
  %2135 = vmatprep.subr.mxu0 0.0
  %2136 = vmatpush2.msra.mxu0 0.0
  %2137 = vmatprep.subr.mxu0 0.0
  %2138 = vmatpush2.msra.mxu0 0.0
  %2139 = vmatprep.subr.mxu0 0.0
  %2140 = vmatpush2.msra.mxu0 0.0
  %2141 = vmatprep.subr.mxu0 0.0
  %2142 = vmatpush2.msra.mxu0 0.0
  %2143 = vmatprep.subr.mxu0 0.0
  %2144 = vmatpush2.msra.mxu0 0.0
  %2145 = vmatprep.subr.mxu0 0.0
  %2146 = vmatpush2.msra.mxu0 0.0
  %2147 = vmatprep.subr.mxu0 0.0
  %2148 = vmatpush2.msra.mxu0 0.0
  %2149 = vmatprep.subr.mxu0 0.0
  %2150 = vmatpush2.msra.mxu0 0.0
  %2151 = vmatprep.subr.mxu0 0.0
  %2152 = vmatpush2.msra.mxu0 0.0
  %2153 = vmatprep.subr.mxu0 0.0
  %2154 = vmatpush2.msra.mxu0 0.0
  %2155 = vmatprep.mubr.f32.mxu0 0.0
  %v2156 = vand.u32 %v785, 4294901760
  %2157 = vmatmul.mubr.f32.gmra.mxu0 %v2156
  %v2158 = vpop.f32.mrf.mxu0
  %v2159 = vadd.f32 %v2068, %v2158
  %v2160 = vpop.f32.mrf.mxu0
  %2161 = vmatprep.mubr.f32.mxu0 0.0
  %v2162 = vand.u32 %v788, 4294901760
  %2163 = vmatmul.mubr.f32.gmra.mxu0 %v2162
  %v2164 = vpop.f32.mrf.mxu0
  %v2165 = vadd.f32 %v2078, %v2164
  %v2166 = vpop.f32.mrf.mxu0
  %2167 = vdwg.mxu0
  %2168 = vmatprep.subr.mxu0 0.0
  %2169 = vmatpush1.msra.mxu0 0.0
  %2170 = vmatprep.subr.mxu0 0.0
  %2171 = vmatpush1.msra.mxu0 0.0
  %2172 = vmatprep.subr.mxu0 0.0
  %2173 = vmatpush1.msra.mxu0 0.0
  %2174 = vmatprep.subr.mxu0 0.0
  %2175 = vmatpush1.msra.mxu0 0.0
  %2176 = vmatprep.subr.mxu0 0.0
  %2177 = vmatpush1.msra.mxu0 0.0
  %2178 = vmatprep.subr.mxu0 0.0
  %2179 = vmatpush1.msra.mxu0 0.0
  %2180 = vmatprep.subr.mxu0 0.0
  %2181 = vmatpush1.msra.mxu0 0.0
  %2182 = vmatprep.subr.mxu0 0.0
  %2183 = vmatpush1.msra.mxu0 0.0
  %2184 = vmatprep.subr.mxu0 0.0
  %2185 = vmatpush1.msra.mxu0 0.0
  %2186 = vmatprep.subr.mxu0 0.0
  %2187 = vmatpush1.msra.mxu0 0.0
  %2188 = vmatprep.subr.mxu0 0.0
  %2189 = vmatpush1.msra.mxu0 0.0
  %2190 = vmatprep.subr.mxu0 0.0
  %2191 = vmatpush1.msra.mxu0 0.0
  %2192 = vmatprep.subr.mxu0 0.0
  %2193 = vmatpush1.msra.mxu0 0.0
  %2194 = vmatprep.subr.mxu0 0.0
  %2195 = vmatpush1.msra.mxu0 0.0
  %2196 = vmatprep.subr.mxu0 0.0
  %v2197 = vand.u32 %v1993, 4294901760
  %v2198 = vsub.f32 %v1993, %v2197
  %2199 = vmatpush1.msra.mxu0 %v2198
  %2200 = vmatprep.subr.mxu0 0.0
  %v2201 = vand.u32 %v1992, 4294901760
  %v2202 = vsub.f32 %v1992, %v2201
  %2203 = vmatpush1.msra.mxu0 %v2202
  %2204 = vmatprep.subr.mxu0 0.0
  %2205 = vmatpush2.msra.mxu0 0.0
  %2206 = vmatprep.subr.mxu0 0.0
  %2207 = vmatpush2.msra.mxu0 0.0
  %2208 = vmatprep.subr.mxu0 0.0
  %2209 = vmatpush2.msra.mxu0 0.0
  %2210 = vmatprep.subr.mxu0 0.0
  %2211 = vmatpush2.msra.mxu0 0.0
  %2212 = vmatprep.subr.mxu0 0.0
  %2213 = vmatpush2.msra.mxu0 0.0
  %2214 = vmatprep.subr.mxu0 0.0
  %2215 = vmatpush2.msra.mxu0 0.0
  %2216 = vmatprep.subr.mxu0 0.0
  %2217 = vmatpush2.msra.mxu0 0.0
  %2218 = vmatprep.subr.mxu0 0.0
  %2219 = vmatpush2.msra.mxu0 0.0
  %2220 = vmatprep.subr.mxu0 0.0
  %2221 = vmatpush2.msra.mxu0 0.0
  %2222 = vmatprep.subr.mxu0 0.0
  %2223 = vmatpush2.msra.mxu0 0.0
  %2224 = vmatprep.subr.mxu0 0.0
  %2225 = vmatpush2.msra.mxu0 0.0
  %2226 = vmatprep.subr.mxu0 0.0
  %2227 = vmatpush2.msra.mxu0 0.0
  %2228 = vmatprep.subr.mxu0 0.0
  %2229 = vmatpush2.msra.mxu0 0.0
  %2230 = vmatprep.subr.mxu0 0.0
  %2231 = vmatpush2.msra.mxu0 0.0
  %2232 = vmatprep.subr.mxu0 0.0
  %2233 = vmatpush2.msra.mxu0 0.0
  %2234 = vmatprep.subr.mxu0 0.0
  %2235 = vmatpush2.msra.mxu0 0.0
  %2236 = vmatprep.mubr.f32.mxu0 0.0
  %v2237 = vand.u32 %v785, 4294901760
  %v2238 = vsub.f32 %v785, %v2237
  %2239 = vmatmul.mubr.f32.gmra.mxu0 %v2238
  %v2240 = vpop.f32.mrf.mxu0
  %v2241 = vadd.f32 %v2159, %v2240
  %v2242 = vpop.f32.mrf.mxu0
  %2243 = vmatprep.mubr.f32.mxu0 0.0
  %v2244 = vand.u32 %v788, 4294901760
  %v2245 = vsub.f32 %v788, %v2244
  %2246 = vmatmul.mubr.f32.gmra.mxu0 %v2245
  %v2247 = vpop.f32.mrf.mxu0
  %v2248 = vadd.f32 %v2165, %v2247
  %v2249 = vpop.f32.mrf.mxu0
  %2250 = vdwg.mxu0
  %2251 = vmatprep.subr.mxu0 0.0
  %2252 = vmatpush1.msra.mxu0 0.0
  %2253 = vmatprep.subr.mxu0 0.0
  %2254 = vmatpush1.msra.mxu0 0.0
  %2255 = vmatprep.subr.mxu0 0.0
  %2256 = vmatpush1.msra.mxu0 0.0
  %2257 = vmatprep.subr.mxu0 0.0
  %2258 = vmatpush1.msra.mxu0 0.0
  %2259 = vmatprep.subr.mxu0 0.0
  %2260 = vmatpush1.msra.mxu0 0.0
  %2261 = vmatprep.subr.mxu0 0.0
  %2262 = vmatpush1.msra.mxu0 0.0
  %2263 = vmatprep.subr.mxu0 0.0
  %2264 = vmatpush1.msra.mxu0 0.0
  %2265 = vmatprep.subr.mxu0 0.0
  %2266 = vmatpush1.msra.mxu0 0.0
  %2267 = vmatprep.subr.mxu0 0.0
  %2268 = vmatpush1.msra.mxu0 0.0
  %2269 = vmatprep.subr.mxu0 0.0
  %2270 = vmatpush1.msra.mxu0 0.0
  %2271 = vmatprep.subr.mxu0 0.0
  %2272 = vmatpush1.msra.mxu0 0.0
  %2273 = vmatprep.subr.mxu0 0.0
  %2274 = vmatpush1.msra.mxu0 0.0
  %2275 = vmatprep.subr.mxu0 0.0
  %2276 = vmatpush1.msra.mxu0 0.0
  %2277 = vmatprep.subr.mxu0 0.0
  %2278 = vmatpush1.msra.mxu0 0.0
  %2279 = vmatprep.subr.mxu0 0.0
  %v2280 = vand.u32 %v1993, 4294901760
  %2281 = vmatpush1.msra.mxu0 %v2280
  %2282 = vmatprep.subr.mxu0 0.0
  %v2283 = vand.u32 %v1992, 4294901760
  %2284 = vmatpush1.msra.mxu0 %v2283
  %2285 = vmatprep.subr.mxu0 0.0
  %2286 = vmatpush2.msra.mxu0 0.0
  %2287 = vmatprep.subr.mxu0 0.0
  %2288 = vmatpush2.msra.mxu0 0.0
  %2289 = vmatprep.subr.mxu0 0.0
  %2290 = vmatpush2.msra.mxu0 0.0
  %2291 = vmatprep.subr.mxu0 0.0
  %2292 = vmatpush2.msra.mxu0 0.0
  %2293 = vmatprep.subr.mxu0 0.0
  %2294 = vmatpush2.msra.mxu0 0.0
  %2295 = vmatprep.subr.mxu0 0.0
  %2296 = vmatpush2.msra.mxu0 0.0
  %2297 = vmatprep.subr.mxu0 0.0
  %2298 = vmatpush2.msra.mxu0 0.0
  %2299 = vmatprep.subr.mxu0 0.0
  %2300 = vmatpush2.msra.mxu0 0.0
  %2301 = vmatprep.subr.mxu0 0.0
  %2302 = vmatpush2.msra.mxu0 0.0
  %2303 = vmatprep.subr.mxu0 0.0
  %2304 = vmatpush2.msra.mxu0 0.0
  %2305 = vmatprep.subr.mxu0 0.0
  %2306 = vmatpush2.msra.mxu0 0.0
  %2307 = vmatprep.subr.mxu0 0.0
  %2308 = vmatpush2.msra.mxu0 0.0
  %2309 = vmatprep.subr.mxu0 0.0
  %2310 = vmatpush2.msra.mxu0 0.0
  %2311 = vmatprep.subr.mxu0 0.0
  %2312 = vmatpush2.msra.mxu0 0.0
  %2313 = vmatprep.subr.mxu0 0.0
  %2314 = vmatpush2.msra.mxu0 0.0
  %2315 = vmatprep.subr.mxu0 0.0
  %2316 = vmatpush2.msra.mxu0 0.0
  %2317 = vmatprep.mubr.f32.mxu0 0.0
  %v2318 = vand.u32 %v785, 4294901760
  %v2319 = vsub.f32 %v785, %v2318
  %v2320 = vand.u32 %v2319, 4294901760
  %2321 = vmatmul.mubr.f32.gmra.mxu0 %v2320
  %v2322 = vpop.f32.mrf.mxu0
  %v2323 = vadd.f32 %v2241, %v2322
  %v2324 = vpop.f32.mrf.mxu0
  %2325 = vmatprep.mubr.f32.mxu0 0.0
  %v2326 = vand.u32 %v788, 4294901760
  %v2327 = vsub.f32 %v788, %v2326
  %v2328 = vand.u32 %v2327, 4294901760
  %2329 = vmatmul.mubr.f32.gmra.mxu0 %v2328
  %v2330 = vpop.f32.mrf.mxu0
  %v2331 = vadd.f32 %v2248, %v2330
  %v2332 = vpop.f32.mrf.mxu0
  %2333 = vdwg.mxu0
  %2334 = vmatprep.subr.mxu0 0.0
  %2335 = vmatpush1.msra.mxu0 0.0
  %2336 = vmatprep.subr.mxu0 0.0
  %2337 = vmatpush1.msra.mxu0 0.0
  %2338 = vmatprep.subr.mxu0 0.0
  %2339 = vmatpush1.msra.mxu0 0.0
  %2340 = vmatprep.subr.mxu0 0.0
  %2341 = vmatpush1.msra.mxu0 0.0
  %2342 = vmatprep.subr.mxu0 0.0
  %2343 = vmatpush1.msra.mxu0 0.0
  %2344 = vmatprep.subr.mxu0 0.0
  %2345 = vmatpush1.msra.mxu0 0.0
  %2346 = vmatprep.subr.mxu0 0.0
  %2347 = vmatpush1.msra.mxu0 0.0
  %2348 = vmatprep.subr.mxu0 0.0
  %2349 = vmatpush1.msra.mxu0 0.0
  %2350 = vmatprep.subr.mxu0 0.0
  %2351 = vmatpush1.msra.mxu0 0.0
  %2352 = vmatprep.subr.mxu0 0.0
  %2353 = vmatpush1.msra.mxu0 0.0
  %2354 = vmatprep.subr.mxu0 0.0
  %2355 = vmatpush1.msra.mxu0 0.0
  %2356 = vmatprep.subr.mxu0 0.0
  %2357 = vmatpush1.msra.mxu0 0.0
  %2358 = vmatprep.subr.mxu0 0.0
  %2359 = vmatpush1.msra.mxu0 0.0
  %2360 = vmatprep.subr.mxu0 0.0
  %2361 = vmatpush1.msra.mxu0 0.0
  %2362 = vmatprep.subr.mxu0 0.0
  %v2363 = vand.u32 %v1993, 4294901760
  %v2364 = vsub.f32 %v1993, %v2363
  %v2365 = vand.u32 %v2364, 4294901760
  %2366 = vmatpush1.msra.mxu0 %v2365
  %2367 = vmatprep.subr.mxu0 0.0
  %v2368 = vand.u32 %v1992, 4294901760
  %v2369 = vsub.f32 %v1992, %v2368
  %v2370 = vand.u32 %v2369, 4294901760
  %2371 = vmatpush1.msra.mxu0 %v2370
  %2372 = vmatprep.subr.mxu0 0.0
  %2373 = vmatpush2.msra.mxu0 0.0
  %2374 = vmatprep.subr.mxu0 0.0
  %2375 = vmatpush2.msra.mxu0 0.0
  %2376 = vmatprep.subr.mxu0 0.0
  %2377 = vmatpush2.msra.mxu0 0.0
  %2378 = vmatprep.subr.mxu0 0.0
  %2379 = vmatpush2.msra.mxu0 0.0
  %2380 = vmatprep.subr.mxu0 0.0
  %2381 = vmatpush2.msra.mxu0 0.0
  %2382 = vmatprep.subr.mxu0 0.0
  %2383 = vmatpush2.msra.mxu0 0.0
  %2384 = vmatprep.subr.mxu0 0.0
  %2385 = vmatpush2.msra.mxu0 0.0
  %2386 = vmatprep.subr.mxu0 0.0
  %2387 = vmatpush2.msra.mxu0 0.0
  %2388 = vmatprep.subr.mxu0 0.0
  %2389 = vmatpush2.msra.mxu0 0.0
  %2390 = vmatprep.subr.mxu0 0.0
  %2391 = vmatpush2.msra.mxu0 0.0
  %2392 = vmatprep.subr.mxu0 0.0
  %2393 = vmatpush2.msra.mxu0 0.0
  %2394 = vmatprep.subr.mxu0 0.0
  %2395 = vmatpush2.msra.mxu0 0.0
  %2396 = vmatprep.subr.mxu0 0.0
  %2397 = vmatpush2.msra.mxu0 0.0
  %2398 = vmatprep.subr.mxu0 0.0
  %2399 = vmatpush2.msra.mxu0 0.0
  %2400 = vmatprep.subr.mxu0 0.0
  %2401 = vmatpush2.msra.mxu0 0.0
  %2402 = vmatprep.subr.mxu0 0.0
  %2403 = vmatpush2.msra.mxu0 0.0
  %2404 = vmatprep.mubr.f32.mxu0 0.0
  %v2405 = vand.u32 %v785, 4294901760
  %2406 = vmatmul.mubr.f32.gmra.mxu0 %v2405
  %v2407 = vpop.f32.mrf.mxu0
  %v2408 = vadd.f32 %v2323, %v2407
  %v2409 = vpop.f32.mrf.mxu0
  %2410 = vmatprep.mubr.f32.mxu0 0.0
  %v2411 = vand.u32 %v788, 4294901760
  %2412 = vmatmul.mubr.f32.gmra.mxu0 %v2411
  %v2413 = vpop.f32.mrf.mxu0
  %v2414 = vadd.f32 %v2331, %v2413
  %v2415 = vpop.f32.mrf.mxu0
  %2416 = vdwg.mxu0
  %2417 = vmatprep.subr.mxu0 0.0
  %2418 = vmatpush1.msra.mxu0 0.0
  %2419 = vmatprep.subr.mxu0 0.0
  %2420 = vmatpush1.msra.mxu0 0.0
  %2421 = vmatprep.subr.mxu0 0.0
  %2422 = vmatpush1.msra.mxu0 0.0
  %2423 = vmatprep.subr.mxu0 0.0
  %2424 = vmatpush1.msra.mxu0 0.0
  %2425 = vmatprep.subr.mxu0 0.0
  %2426 = vmatpush1.msra.mxu0 0.0
  %2427 = vmatprep.subr.mxu0 0.0
  %2428 = vmatpush1.msra.mxu0 0.0
  %2429 = vmatprep.subr.mxu0 0.0
  %2430 = vmatpush1.msra.mxu0 0.0
  %2431 = vmatprep.subr.mxu0 0.0
  %2432 = vmatpush1.msra.mxu0 0.0
  %2433 = vmatprep.subr.mxu0 0.0
  %2434 = vmatpush1.msra.mxu0 0.0
  %2435 = vmatprep.subr.mxu0 0.0
  %2436 = vmatpush1.msra.mxu0 0.0
  %2437 = vmatprep.subr.mxu0 0.0
  %2438 = vmatpush1.msra.mxu0 0.0
  %2439 = vmatprep.subr.mxu0 0.0
  %2440 = vmatpush1.msra.mxu0 0.0
  %2441 = vmatprep.subr.mxu0 0.0
  %2442 = vmatpush1.msra.mxu0 0.0
  %2443 = vmatprep.subr.mxu0 0.0
  %2444 = vmatpush1.msra.mxu0 0.0
  %2445 = vmatprep.subr.mxu0 0.0
  %v2446 = vand.u32 %v1993, 4294901760
  %2447 = vmatpush1.msra.mxu0 %v2446
  %2448 = vmatprep.subr.mxu0 0.0
  %v2449 = vand.u32 %v1992, 4294901760
  %2450 = vmatpush1.msra.mxu0 %v2449
  %2451 = vmatprep.subr.mxu0 0.0
  %2452 = vmatpush2.msra.mxu0 0.0
  %2453 = vmatprep.subr.mxu0 0.0
  %2454 = vmatpush2.msra.mxu0 0.0
  %2455 = vmatprep.subr.mxu0 0.0
  %2456 = vmatpush2.msra.mxu0 0.0
  %2457 = vmatprep.subr.mxu0 0.0
  %2458 = vmatpush2.msra.mxu0 0.0
  %2459 = vmatprep.subr.mxu0 0.0
  %2460 = vmatpush2.msra.mxu0 0.0
  %2461 = vmatprep.subr.mxu0 0.0
  %2462 = vmatpush2.msra.mxu0 0.0
  %2463 = vmatprep.subr.mxu0 0.0
  %2464 = vmatpush2.msra.mxu0 0.0
  %2465 = vmatprep.subr.mxu0 0.0
  %2466 = vmatpush2.msra.mxu0 0.0
  %2467 = vmatprep.subr.mxu0 0.0
  %2468 = vmatpush2.msra.mxu0 0.0
  %2469 = vmatprep.subr.mxu0 0.0
  %2470 = vmatpush2.msra.mxu0 0.0
  %2471 = vmatprep.subr.mxu0 0.0
  %2472 = vmatpush2.msra.mxu0 0.0
  %2473 = vmatprep.subr.mxu0 0.0
  %2474 = vmatpush2.msra.mxu0 0.0
  %2475 = vmatprep.subr.mxu0 0.0
  %2476 = vmatpush2.msra.mxu0 0.0
  %2477 = vmatprep.subr.mxu0 0.0
  %2478 = vmatpush2.msra.mxu0 0.0
  %2479 = vmatprep.subr.mxu0 0.0
  %2480 = vmatpush2.msra.mxu0 0.0
  %2481 = vmatprep.subr.mxu0 0.0
  %2482 = vmatpush2.msra.mxu0 0.0
  %2483 = vmatprep.mubr.f32.mxu0 0.0
  %v2484 = vand.u32 %v785, 4294901760
  %2485 = vmatmul.mubr.f32.gmra.mxu0 %v2484
  %v2486 = vpop.f32.mrf.mxu0
  %v2487 = vadd.f32 %v2408, %v2486
  %v2488 = vpop.f32.mrf.mxu0
  %2489 = vmatprep.mubr.f32.mxu0 0.0
  %v2490 = vand.u32 %v788, 4294901760
  %2491 = vmatmul.mubr.f32.gmra.mxu0 %v2490
  %v2492 = vpop.f32.mrf.mxu0
  %v2493 = vadd.f32 %v2414, %v2492
  %v2494 = vpop.f32.mrf.mxu0
  %2495 = vdwg.mxu0
  %v2496 = vld [vmem:[%s4] sm:$0xff]
  %v2497 = vld [vmem:[%s4 + $0x8] sm:$0xff]
  %v2498 = vld [vmem:[%s4 + $0x10] sm:$0xff]
  %v2499 = vld [vmem:[%s4 + $0x18] sm:$0xff]
  %v2500 = vld [vmem:[%s4 + $0x20] sm:$0xff]
  %v2501 = vld [vmem:[%s4 + $0x28] sm:$0xff]
  %v2502 = vld [vmem:[%s4 + $0x30] sm:$0xff]
  %v2503 = vld [vmem:[%s4 + $0x38] sm:$0xff]
  %v2504 = vld [vmem:[%s4 + $0x40] sm:$0xff]
  %v2505 = vld [vmem:[%s4 + $0x48] sm:$0xff]
  %v2506 = vld [vmem:[%s4 + $0x50] sm:$0xff]
  %v2507 = vld [vmem:[%s4 + $0x58] sm:$0xff]
  %v2508 = vld [vmem:[%s4 + $0x60] sm:$0xff]
  %v2509 = vld [vmem:[%s4 + $0x68] sm:$0xff]
  %v2510 = vld [vmem:[%s4 + $0x70] sm:$0xff]
  %v2511 = vld [vmem:[%s4 + $0x78] sm:$0xff]
  %2512 = vmatprep.subr.mxu0 0.0
  %v2513 = vand.u32 %v2511, 4294901760
  %2514 = vmatpush1.msra.mxu0 %v2513
  %2515 = vmatprep.subr.mxu0 0.0
  %v2516 = vand.u32 %v2510, 4294901760
  %2517 = vmatpush1.msra.mxu0 %v2516
  %2518 = vmatprep.subr.mxu0 0.0
  %v2519 = vand.u32 %v2509, 4294901760
  %2520 = vmatpush1.msra.mxu0 %v2519
  %2521 = vmatprep.subr.mxu0 0.0
  %v2522 = vand.u32 %v2508, 4294901760
  %2523 = vmatpush1.msra.mxu0 %v2522
  %2524 = vmatprep.subr.mxu0 0.0
  %v2525 = vand.u32 %v2507, 4294901760
  %2526 = vmatpush1.msra.mxu0 %v2525
  %2527 = vmatprep.subr.mxu0 0.0
  %v2528 = vand.u32 %v2506, 4294901760
  %2529 = vmatpush1.msra.mxu0 %v2528
  %2530 = vmatprep.subr.mxu0 0.0
  %v2531 = vand.u32 %v2505, 4294901760
  %2532 = vmatpush1.msra.mxu0 %v2531
  %2533 = vmatprep.subr.mxu0 0.0
  %v2534 = vand.u32 %v2504, 4294901760
  %2535 = vmatpush1.msra.mxu0 %v2534
  %2536 = vmatprep.subr.mxu0 0.0
  %v2537 = vand.u32 %v2503, 4294901760
  %2538 = vmatpush1.msra.mxu0 %v2537
  %2539 = vmatprep.subr.mxu0 0.0
  %v2540 = vand.u32 %v2502, 4294901760
  %2541 = vmatpush1.msra.mxu0 %v2540
  %2542 = vmatprep.subr.mxu0 0.0
  %v2543 = vand.u32 %v2501, 4294901760
  %2544 = vmatpush1.msra.mxu0 %v2543
  %2545 = vmatprep.subr.mxu0 0.0
  %v2546 = vand.u32 %v2500, 4294901760
  %2547 = vmatpush1.msra.mxu0 %v2546
  %2548 = vmatprep.subr.mxu0 0.0
  %v2549 = vand.u32 %v2499, 4294901760
  %2550 = vmatpush1.msra.mxu0 %v2549
  %2551 = vmatprep.subr.mxu0 0.0
  %v2552 = vand.u32 %v2498, 4294901760
  %2553 = vmatpush1.msra.mxu0 %v2552
  %2554 = vmatprep.subr.mxu0 0.0
  %v2555 = vand.u32 %v2497, 4294901760
  %2556 = vmatpush1.msra.mxu0 %v2555
  %2557 = vmatprep.subr.mxu0 0.0
  %v2558 = vand.u32 %v2496, 4294901760
  %2559 = vmatpush1.msra.mxu0 %v2558
  %2560 = vmatprep.subr.mxu0 0.0
  %2561 = vmatpush2.msra.mxu0 0.0
  %2562 = vmatprep.subr.mxu0 0.0
  %2563 = vmatpush2.msra.mxu0 0.0
  %2564 = vmatprep.subr.mxu0 0.0
  %2565 = vmatpush2.msra.mxu0 0.0
  %2566 = vmatprep.subr.mxu0 0.0
  %2567 = vmatpush2.msra.mxu0 0.0
  %2568 = vmatprep.subr.mxu0 0.0
  %2569 = vmatpush2.msra.mxu0 0.0
  %2570 = vmatprep.subr.mxu0 0.0
  %2571 = vmatpush2.msra.mxu0 0.0
  %2572 = vmatprep.subr.mxu0 0.0
  %2573 = vmatpush2.msra.mxu0 0.0
  %2574 = vmatprep.subr.mxu0 0.0
  %2575 = vmatpush2.msra.mxu0 0.0
  %2576 = vmatprep.subr.mxu0 0.0
  %2577 = vmatpush2.msra.mxu0 0.0
  %2578 = vmatprep.subr.mxu0 0.0
  %2579 = vmatpush2.msra.mxu0 0.0
  %2580 = vmatprep.subr.mxu0 0.0
  %2581 = vmatpush2.msra.mxu0 0.0
  %2582 = vmatprep.subr.mxu0 0.0
  %2583 = vmatpush2.msra.mxu0 0.0
  %2584 = vmatprep.subr.mxu0 0.0
  %2585 = vmatpush2.msra.mxu0 0.0
  %2586 = vmatprep.subr.mxu0 0.0
  %2587 = vmatpush2.msra.mxu0 0.0
  %2588 = vmatprep.subr.mxu0 0.0
  %2589 = vmatpush2.msra.mxu0 0.0
  %2590 = vmatprep.subr.mxu0 0.0
  %2591 = vmatpush2.msra.mxu0 0.0
  %2592 = vmatprep.mubr.f32.mxu0 0.0
  %v2593 = vand.u32 %v2487, 4294901760
  %v2594 = vsub.f32 %v2487, %v2593
  %v2595 = vand.u32 %v2594, 4294901760
  %v2596 = vsub.f32 %v2594, %v2595
  %v2597 = vand.u32 %v2596, 4294901760
  %2598 = vmatmul.mubr.f32.gmra.mxu0 %v2597
  %v2599 = vpop.f32.mrf.mxu0
  %v2600 = vadd.f32 0.0, %v2599
  %v2601 = vpop.f32.mrf.mxu0
  %2602 = vmatprep.mubr.f32.mxu0 0.0
  %v2603 = vand.u32 %v2493, 4294901760
  %v2604 = vsub.f32 %v2493, %v2603
  %v2605 = vand.u32 %v2604, 4294901760
  %v2606 = vsub.f32 %v2604, %v2605
  %v2607 = vand.u32 %v2606, 4294901760
  %2608 = vmatmul.mubr.f32.gmra.mxu0 %v2607
  %v2609 = vpop.f32.mrf.mxu0
  %v2610 = vadd.f32 0.0, %v2609
  %v2611 = vpop.f32.mrf.mxu0
  %2612 = vdwg.mxu0
  %2613 = vmatprep.subr.mxu0 0.0
  %v2614 = vand.u32 %v2511, 4294901760
  %v2615 = vsub.f32 %v2511, %v2614
  %v2616 = vand.u32 %v2615, 4294901760
  %v2617 = vsub.f32 %v2615, %v2616
  %v2618 = vand.u32 %v2617, 4294901760
  %2619 = vmatpush1.msra.mxu0 %v2618
  %2620 = vmatprep.subr.mxu0 0.0
  %v2621 = vand.u32 %v2510, 4294901760
  %v2622 = vsub.f32 %v2510, %v2621
  %v2623 = vand.u32 %v2622, 4294901760
  %v2624 = vsub.f32 %v2622, %v2623
  %v2625 = vand.u32 %v2624, 4294901760
  %2626 = vmatpush1.msra.mxu0 %v2625
  %2627 = vmatprep.subr.mxu0 0.0
  %v2628 = vand.u32 %v2509, 4294901760
  %v2629 = vsub.f32 %v2509, %v2628
  %v2630 = vand.u32 %v2629, 4294901760
  %v2631 = vsub.f32 %v2629, %v2630
  %v2632 = vand.u32 %v2631, 4294901760
  %2633 = vmatpush1.msra.mxu0 %v2632
  %2634 = vmatprep.subr.mxu0 0.0
  %v2635 = vand.u32 %v2508, 4294901760
  %v2636 = vsub.f32 %v2508, %v2635
  %v2637 = vand.u32 %v2636, 4294901760
  %v2638 = vsub.f32 %v2636, %v2637
  %v2639 = vand.u32 %v2638, 4294901760
  %2640 = vmatpush1.msra.mxu0 %v2639
  %2641 = vmatprep.subr.mxu0 0.0
  %v2642 = vand.u32 %v2507, 4294901760
  %v2643 = vsub.f32 %v2507, %v2642
  %v2644 = vand.u32 %v2643, 4294901760
  %v2645 = vsub.f32 %v2643, %v2644
  %v2646 = vand.u32 %v2645, 4294901760
  %2647 = vmatpush1.msra.mxu0 %v2646
  %2648 = vmatprep.subr.mxu0 0.0
  %v2649 = vand.u32 %v2506, 4294901760
  %v2650 = vsub.f32 %v2506, %v2649
  %v2651 = vand.u32 %v2650, 4294901760
  %v2652 = vsub.f32 %v2650, %v2651
  %v2653 = vand.u32 %v2652, 4294901760
  %2654 = vmatpush1.msra.mxu0 %v2653
  %2655 = vmatprep.subr.mxu0 0.0
  %v2656 = vand.u32 %v2505, 4294901760
  %v2657 = vsub.f32 %v2505, %v2656
  %v2658 = vand.u32 %v2657, 4294901760
  %v2659 = vsub.f32 %v2657, %v2658
  %v2660 = vand.u32 %v2659, 4294901760
  %2661 = vmatpush1.msra.mxu0 %v2660
  %2662 = vmatprep.subr.mxu0 0.0
  %v2663 = vand.u32 %v2504, 4294901760
  %v2664 = vsub.f32 %v2504, %v2663
  %v2665 = vand.u32 %v2664, 4294901760
  %v2666 = vsub.f32 %v2664, %v2665
  %v2667 = vand.u32 %v2666, 4294901760
  %2668 = vmatpush1.msra.mxu0 %v2667
  %2669 = vmatprep.subr.mxu0 0.0
  %v2670 = vand.u32 %v2503, 4294901760
  %v2671 = vsub.f32 %v2503, %v2670
  %v2672 = vand.u32 %v2671, 4294901760
  %v2673 = vsub.f32 %v2671, %v2672
  %v2674 = vand.u32 %v2673, 4294901760
  %2675 = vmatpush1.msra.mxu0 %v2674
  %2676 = vmatprep.subr.mxu0 0.0
  %v2677 = vand.u32 %v2502, 4294901760
  %v2678 = vsub.f32 %v2502, %v2677
  %v2679 = vand.u32 %v2678, 4294901760
  %v2680 = vsub.f32 %v2678, %v2679
  %v2681 = vand.u32 %v2680, 4294901760
  %2682 = vmatpush1.msra.mxu0 %v2681
  %2683 = vmatprep.subr.mxu0 0.0
  %v2684 = vand.u32 %v2501, 4294901760
  %v2685 = vsub.f32 %v2501, %v2684
  %v2686 = vand.u32 %v2685, 4294901760
  %v2687 = vsub.f32 %v2685, %v2686
  %v2688 = vand.u32 %v2687, 4294901760
  %2689 = vmatpush1.msra.mxu0 %v2688
  %2690 = vmatprep.subr.mxu0 0.0
  %v2691 = vand.u32 %v2500, 4294901760
  %v2692 = vsub.f32 %v2500, %v2691
  %v2693 = vand.u32 %v2692, 4294901760
  %v2694 = vsub.f32 %v2692, %v2693
  %v2695 = vand.u32 %v2694, 4294901760
  %2696 = vmatpush1.msra.mxu0 %v2695
  %2697 = vmatprep.subr.mxu0 0.0
  %v2698 = vand.u32 %v2499, 4294901760
  %v2699 = vsub.f32 %v2499, %v2698
  %v2700 = vand.u32 %v2699, 4294901760
  %v2701 = vsub.f32 %v2699, %v2700
  %v2702 = vand.u32 %v2701, 4294901760
  %2703 = vmatpush1.msra.mxu0 %v2702
  %2704 = vmatprep.subr.mxu0 0.0
  %v2705 = vand.u32 %v2498, 4294901760
  %v2706 = vsub.f32 %v2498, %v2705
  %v2707 = vand.u32 %v2706, 4294901760
  %v2708 = vsub.f32 %v2706, %v2707
  %v2709 = vand.u32 %v2708, 4294901760
  %2710 = vmatpush1.msra.mxu0 %v2709
  %2711 = vmatprep.subr.mxu0 0.0
  %v2712 = vand.u32 %v2497, 4294901760
  %v2713 = vsub.f32 %v2497, %v2712
  %v2714 = vand.u32 %v2713, 4294901760
  %v2715 = vsub.f32 %v2713, %v2714
  %v2716 = vand.u32 %v2715, 4294901760
  %2717 = vmatpush1.msra.mxu0 %v2716
  %2718 = vmatprep.subr.mxu0 0.0
  %v2719 = vand.u32 %v2496, 4294901760
  %v2720 = vsub.f32 %v2496, %v2719
  %v2721 = vand.u32 %v2720, 4294901760
  %v2722 = vsub.f32 %v2720, %v2721
  %v2723 = vand.u32 %v2722, 4294901760
  %2724 = vmatpush1.msra.mxu0 %v2723
  %2725 = vmatprep.subr.mxu0 0.0
  %2726 = vmatpush2.msra.mxu0 0.0
  %2727 = vmatprep.subr.mxu0 0.0
  %2728 = vmatpush2.msra.mxu0 0.0
  %2729 = vmatprep.subr.mxu0 0.0
  %2730 = vmatpush2.msra.mxu0 0.0
  %2731 = vmatprep.subr.mxu0 0.0
  %2732 = vmatpush2.msra.mxu0 0.0
  %2733 = vmatprep.subr.mxu0 0.0
  %2734 = vmatpush2.msra.mxu0 0.0
  %2735 = vmatprep.subr.mxu0 0.0
  %2736 = vmatpush2.msra.mxu0 0.0
  %2737 = vmatprep.subr.mxu0 0.0
  %2738 = vmatpush2.msra.mxu0 0.0
  %2739 = vmatprep.subr.mxu0 0.0
  %2740 = vmatpush2.msra.mxu0 0.0
  %2741 = vmatprep.subr.mxu0 0.0
  %2742 = vmatpush2.msra.mxu0 0.0
  %2743 = vmatprep.subr.mxu0 0.0
  %2744 = vmatpush2.msra.mxu0 0.0
  %2745 = vmatprep.subr.mxu0 0.0
  %2746 = vmatpush2.msra.mxu0 0.0
  %2747 = vmatprep.subr.mxu0 0.0
  %2748 = vmatpush2.msra.mxu0 0.0
  %2749 = vmatprep.subr.mxu0 0.0
  %2750 = vmatpush2.msra.mxu0 0.0
  %2751 = vmatprep.subr.mxu0 0.0
  %2752 = vmatpush2.msra.mxu0 0.0
  %2753 = vmatprep.subr.mxu0 0.0
  %2754 = vmatpush2.msra.mxu0 0.0
  %2755 = vmatprep.subr.mxu0 0.0
  %2756 = vmatpush2.msra.mxu0 0.0
  %2757 = vmatprep.mubr.f32.mxu0 0.0
  %v2758 = vand.u32 %v2487, 4294901760
  %2759 = vmatmul.mubr.f32.gmra.mxu0 %v2758
  %v2760 = vpop.f32.mrf.mxu0
  %v2761 = vadd.f32 %v2600, %v2760
  %v2762 = vpop.f32.mrf.mxu0
  %2763 = vmatprep.mubr.f32.mxu0 0.0
  %v2764 = vand.u32 %v2493, 4294901760
  %2765 = vmatmul.mubr.f32.gmra.mxu0 %v2764
  %v2766 = vpop.f32.mrf.mxu0
  %v2767 = vadd.f32 %v2610, %v2766
  %v2768 = vpop.f32.mrf.mxu0
  %2769 = vdwg.mxu0
  %2770 = vmatprep.subr.mxu0 0.0
  %v2771 = vand.u32 %v2511, 4294901760
  %v2772 = vsub.f32 %v2511, %v2771
  %2773 = vmatpush1.msra.mxu0 %v2772
  %2774 = vmatprep.subr.mxu0 0.0
  %v2775 = vand.u32 %v2510, 4294901760
  %v2776 = vsub.f32 %v2510, %v2775
  %2777 = vmatpush1.msra.mxu0 %v2776
  %2778 = vmatprep.subr.mxu0 0.0
  %v2779 = vand.u32 %v2509, 4294901760
  %v2780 = vsub.f32 %v2509, %v2779
  %2781 = vmatpush1.msra.mxu0 %v2780
  %2782 = vmatprep.subr.mxu0 0.0
  %v2783 = vand.u32 %v2508, 4294901760
  %v2784 = vsub.f32 %v2508, %v2783
  %2785 = vmatpush1.msra.mxu0 %v2784
  %2786 = vmatprep.subr.mxu0 0.0
  %v2787 = vand.u32 %v2507, 4294901760
  %v2788 = vsub.f32 %v2507, %v2787
  %2789 = vmatpush1.msra.mxu0 %v2788
  %2790 = vmatprep.subr.mxu0 0.0
  %v2791 = vand.u32 %v2506, 4294901760
  %v2792 = vsub.f32 %v2506, %v2791
  %2793 = vmatpush1.msra.mxu0 %v2792
  %2794 = vmatprep.subr.mxu0 0.0
  %v2795 = vand.u32 %v2505, 4294901760
  %v2796 = vsub.f32 %v2505, %v2795
  %2797 = vmatpush1.msra.mxu0 %v2796
  %2798 = vmatprep.subr.mxu0 0.0
  %v2799 = vand.u32 %v2504, 4294901760
  %v2800 = vsub.f32 %v2504, %v2799
  %2801 = vmatpush1.msra.mxu0 %v2800
  %2802 = vmatprep.subr.mxu0 0.0
  %v2803 = vand.u32 %v2503, 4294901760
  %v2804 = vsub.f32 %v2503, %v2803
  %2805 = vmatpush1.msra.mxu0 %v2804
  %2806 = vmatprep.subr.mxu0 0.0
  %v2807 = vand.u32 %v2502, 4294901760
  %v2808 = vsub.f32 %v2502, %v2807
  %2809 = vmatpush1.msra.mxu0 %v2808
  %2810 = vmatprep.subr.mxu0 0.0
  %v2811 = vand.u32 %v2501, 4294901760
  %v2812 = vsub.f32 %v2501, %v2811
  %2813 = vmatpush1.msra.mxu0 %v2812
  %2814 = vmatprep.subr.mxu0 0.0
  %v2815 = vand.u32 %v2500, 4294901760
  %v2816 = vsub.f32 %v2500, %v2815
  %2817 = vmatpush1.msra.mxu0 %v2816
  %2818 = vmatprep.subr.mxu0 0.0
  %v2819 = vand.u32 %v2499, 4294901760
  %v2820 = vsub.f32 %v2499, %v2819
  %2821 = vmatpush1.msra.mxu0 %v2820
  %2822 = vmatprep.subr.mxu0 0.0
  %v2823 = vand.u32 %v2498, 4294901760
  %v2824 = vsub.f32 %v2498, %v2823
  %2825 = vmatpush1.msra.mxu0 %v2824
  %2826 = vmatprep.subr.mxu0 0.0
  %v2827 = vand.u32 %v2497, 4294901760
  %v2828 = vsub.f32 %v2497, %v2827
  %2829 = vmatpush1.msra.mxu0 %v2828
  %2830 = vmatprep.subr.mxu0 0.0
  %v2831 = vand.u32 %v2496, 4294901760
  %v2832 = vsub.f32 %v2496, %v2831
  %2833 = vmatpush1.msra.mxu0 %v2832
  %2834 = vmatprep.subr.mxu0 0.0
  %2835 = vmatpush2.msra.mxu0 0.0
  %2836 = vmatprep.subr.mxu0 0.0
  %2837 = vmatpush2.msra.mxu0 0.0
  %2838 = vmatprep.subr.mxu0 0.0
  %2839 = vmatpush2.msra.mxu0 0.0
  %2840 = vmatprep.subr.mxu0 0.0
  %2841 = vmatpush2.msra.mxu0 0.0
  %2842 = vmatprep.subr.mxu0 0.0
  %2843 = vmatpush2.msra.mxu0 0.0
  %2844 = vmatprep.subr.mxu0 0.0
  %2845 = vmatpush2.msra.mxu0 0.0
  %2846 = vmatprep.subr.mxu0 0.0
  %2847 = vmatpush2.msra.mxu0 0.0
  %2848 = vmatprep.subr.mxu0 0.0
  %2849 = vmatpush2.msra.mxu0 0.0
  %2850 = vmatprep.subr.mxu0 0.0
  %2851 = vmatpush2.msra.mxu0 0.0
  %2852 = vmatprep.subr.mxu0 0.0
  %2853 = vmatpush2.msra.mxu0 0.0
  %2854 = vmatprep.subr.mxu0 0.0
  %2855 = vmatpush2.msra.mxu0 0.0
  %2856 = vmatprep.subr.mxu0 0.0
  %2857 = vmatpush2.msra.mxu0 0.0
  %2858 = vmatprep.subr.mxu0 0.0
  %2859 = vmatpush2.msra.mxu0 0.0
  %2860 = vmatprep.subr.mxu0 0.0
  %2861 = vmatpush2.msra.mxu0 0.0
  %2862 = vmatprep.subr.mxu0 0.0
  %2863 = vmatpush2.msra.mxu0 0.0
  %2864 = vmatprep.subr.mxu0 0.0
  %2865 = vmatpush2.msra.mxu0 0.0
  %2866 = vmatprep.mubr.f32.mxu0 0.0
  %v2867 = vand.u32 %v2487, 4294901760
  %v2868 = vsub.f32 %v2487, %v2867
  %2869 = vmatmul.mubr.f32.gmra.mxu0 %v2868
  %v2870 = vpop.f32.mrf.mxu0
  %v2871 = vadd.f32 %v2761, %v2870
  %v2872 = vpop.f32.mrf.mxu0
  %2873 = vmatprep.mubr.f32.mxu0 0.0
  %v2874 = vand.u32 %v2493, 4294901760
  %v2875 = vsub.f32 %v2493, %v2874
  %2876 = vmatmul.mubr.f32.gmra.mxu0 %v2875
  %v2877 = vpop.f32.mrf.mxu0
  %v2878 = vadd.f32 %v2767, %v2877
  %v2879 = vpop.f32.mrf.mxu0
  %2880 = vdwg.mxu0
  %2881 = vmatprep.subr.mxu0 0.0
  %v2882 = vand.u32 %v2511, 4294901760
  %2883 = vmatpush1.msra.mxu0 %v2882
  %2884 = vmatprep.subr.mxu0 0.0
  %v2885 = vand.u32 %v2510, 4294901760
  %2886 = vmatpush1.msra.mxu0 %v2885
  %2887 = vmatprep.subr.mxu0 0.0
  %v2888 = vand.u32 %v2509, 4294901760
  %2889 = vmatpush1.msra.mxu0 %v2888
  %2890 = vmatprep.subr.mxu0 0.0
  %v2891 = vand.u32 %v2508, 4294901760
  %2892 = vmatpush1.msra.mxu0 %v2891
  %2893 = vmatprep.subr.mxu0 0.0
  %v2894 = vand.u32 %v2507, 4294901760
  %2895 = vmatpush1.msra.mxu0 %v2894
  %2896 = vmatprep.subr.mxu0 0.0
  %v2897 = vand.u32 %v2506, 4294901760
  %2898 = vmatpush1.msra.mxu0 %v2897
  %2899 = vmatprep.subr.mxu0 0.0
  %v2900 = vand.u32 %v2505, 4294901760
  %2901 = vmatpush1.msra.mxu0 %v2900
  %2902 = vmatprep.subr.mxu0 0.0
  %v2903 = vand.u32 %v2504, 4294901760
  %2904 = vmatpush1.msra.mxu0 %v2903
  %2905 = vmatprep.subr.mxu0 0.0
  %v2906 = vand.u32 %v2503, 4294901760
  %2907 = vmatpush1.msra.mxu0 %v2906
  %2908 = vmatprep.subr.mxu0 0.0
  %v2909 = vand.u32 %v2502, 4294901760
  %2910 = vmatpush1.msra.mxu0 %v2909
  %2911 = vmatprep.subr.mxu0 0.0
  %v2912 = vand.u32 %v2501, 4294901760
  %2913 = vmatpush1.msra.mxu0 %v2912
  %2914 = vmatprep.subr.mxu0 0.0
  %v2915 = vand.u32 %v2500, 4294901760
  %2916 = vmatpush1.msra.mxu0 %v2915
  %2917 = vmatprep.subr.mxu0 0.0
  %v2918 = vand.u32 %v2499, 4294901760
  %2919 = vmatpush1.msra.mxu0 %v2918
  %2920 = vmatprep.subr.mxu0 0.0
  %v2921 = vand.u32 %v2498, 4294901760
  %2922 = vmatpush1.msra.mxu0 %v2921
  %2923 = vmatprep.subr.mxu0 0.0
  %v2924 = vand.u32 %v2497, 4294901760
  %2925 = vmatpush1.msra.mxu0 %v2924
  %2926 = vmatprep.subr.mxu0 0.0
  %v2927 = vand.u32 %v2496, 4294901760
  %2928 = vmatpush1.msra.mxu0 %v2927
  %2929 = vmatprep.subr.mxu0 0.0
  %2930 = vmatpush2.msra.mxu0 0.0
  %2931 = vmatprep.subr.mxu0 0.0
  %2932 = vmatpush2.msra.mxu0 0.0
  %2933 = vmatprep.subr.mxu0 0.0
  %2934 = vmatpush2.msra.mxu0 0.0
  %2935 = vmatprep.subr.mxu0 0.0
  %2936 = vmatpush2.msra.mxu0 0.0
  %2937 = vmatprep.subr.mxu0 0.0
  %2938 = vmatpush2.msra.mxu0 0.0
  %2939 = vmatprep.subr.mxu0 0.0
  %2940 = vmatpush2.msra.mxu0 0.0
  %2941 = vmatprep.subr.mxu0 0.0
  %2942 = vmatpush2.msra.mxu0 0.0
  %2943 = vmatprep.subr.mxu0 0.0
  %2944 = vmatpush2.msra.mxu0 0.0
  %2945 = vmatprep.subr.mxu0 0.0
  %2946 = vmatpush2.msra.mxu0 0.0
  %2947 = vmatprep.subr.mxu0 0.0
  %2948 = vmatpush2.msra.mxu0 0.0
  %2949 = vmatprep.subr.mxu0 0.0
  %2950 = vmatpush2.msra.mxu0 0.0
  %2951 = vmatprep.subr.mxu0 0.0
  %2952 = vmatpush2.msra.mxu0 0.0
  %2953 = vmatprep.subr.mxu0 0.0
  %2954 = vmatpush2.msra.mxu0 0.0
  %2955 = vmatprep.subr.mxu0 0.0
  %2956 = vmatpush2.msra.mxu0 0.0
  %2957 = vmatprep.subr.mxu0 0.0
  %2958 = vmatpush2.msra.mxu0 0.0
  %2959 = vmatprep.subr.mxu0 0.0
  %2960 = vmatpush2.msra.mxu0 0.0
  %2961 = vmatprep.mubr.f32.mxu0 0.0
  %v2962 = vand.u32 %v2487, 4294901760
  %v2963 = vsub.f32 %v2487, %v2962
  %v2964 = vand.u32 %v2963, 4294901760
  %2965 = vmatmul.mubr.f32.gmra.mxu0 %v2964
  %v2966 = vpop.f32.mrf.mxu0
  %v2967 = vadd.f32 %v2871, %v2966
  %v2968 = vpop.f32.mrf.mxu0
  %2969 = vmatprep.mubr.f32.mxu0 0.0
  %v2970 = vand.u32 %v2493, 4294901760
  %v2971 = vsub.f32 %v2493, %v2970
  %v2972 = vand.u32 %v2971, 4294901760
  %2973 = vmatmul.mubr.f32.gmra.mxu0 %v2972
  %v2974 = vpop.f32.mrf.mxu0
  %v2975 = vadd.f32 %v2878, %v2974
  %v2976 = vpop.f32.mrf.mxu0
  %2977 = vdwg.mxu0
  %2978 = vmatprep.subr.mxu0 0.0
  %v2979 = vand.u32 %v2511, 4294901760
  %v2980 = vsub.f32 %v2511, %v2979
  %v2981 = vand.u32 %v2980, 4294901760
  %2982 = vmatpush1.msra.mxu0 %v2981
  %2983 = vmatprep.subr.mxu0 0.0
  %v2984 = vand.u32 %v2510, 4294901760
  %v2985 = vsub.f32 %v2510, %v2984
  %v2986 = vand.u32 %v2985, 4294901760
  %2987 = vmatpush1.msra.mxu0 %v2986
  %2988 = vmatprep.subr.mxu0 0.0
  %v2989 = vand.u32 %v2509, 4294901760
  %v2990 = vsub.f32 %v2509, %v2989
  %v2991 = vand.u32 %v2990, 4294901760
  %2992 = vmatpush1.msra.mxu0 %v2991
  %2993 = vmatprep.subr.mxu0 0.0
  %v2994 = vand.u32 %v2508, 4294901760
  %v2995 = vsub.f32 %v2508, %v2994
  %v2996 = vand.u32 %v2995, 4294901760
  %2997 = vmatpush1.msra.mxu0 %v2996
  %2998 = vmatprep.subr.mxu0 0.0
  %v2999 = vand.u32 %v2507, 4294901760
  %v3000 = vsub.f32 %v2507, %v2999
  %v3001 = vand.u32 %v3000, 4294901760
  %3002 = vmatpush1.msra.mxu0 %v3001
  %3003 = vmatprep.subr.mxu0 0.0
  %v3004 = vand.u32 %v2506, 4294901760
  %v3005 = vsub.f32 %v2506, %v3004
  %v3006 = vand.u32 %v3005, 4294901760
  %3007 = vmatpush1.msra.mxu0 %v3006
  %3008 = vmatprep.subr.mxu0 0.0
  %v3009 = vand.u32 %v2505, 4294901760
  %v3010 = vsub.f32 %v2505, %v3009
  %v3011 = vand.u32 %v3010, 4294901760
  %3012 = vmatpush1.msra.mxu0 %v3011
  %3013 = vmatprep.subr.mxu0 0.0
  %v3014 = vand.u32 %v2504, 4294901760
  %v3015 = vsub.f32 %v2504, %v3014
  %v3016 = vand.u32 %v3015, 4294901760
  %3017 = vmatpush1.msra.mxu0 %v3016
  %3018 = vmatprep.subr.mxu0 0.0
  %v3019 = vand.u32 %v2503, 4294901760
  %v3020 = vsub.f32 %v2503, %v3019
  %v3021 = vand.u32 %v3020, 4294901760
  %3022 = vmatpush1.msra.mxu0 %v3021
  %3023 = vmatprep.subr.mxu0 0.0
  %v3024 = vand.u32 %v2502, 4294901760
  %v3025 = vsub.f32 %v2502, %v3024
  %v3026 = vand.u32 %v3025, 4294901760
  %3027 = vmatpush1.msra.mxu0 %v3026
  %3028 = vmatprep.subr.mxu0 0.0
  %v3029 = vand.u32 %v2501, 4294901760
  %v3030 = vsub.f32 %v2501, %v3029
  %v3031 = vand.u32 %v3030, 4294901760
  %3032 = vmatpush1.msra.mxu0 %v3031
  %3033 = vmatprep.subr.mxu0 0.0
  %v3034 = vand.u32 %v2500, 4294901760
  %v3035 = vsub.f32 %v2500, %v3034
  %v3036 = vand.u32 %v3035, 4294901760
  %3037 = vmatpush1.msra.mxu0 %v3036
  %3038 = vmatprep.subr.mxu0 0.0
  %v3039 = vand.u32 %v2499, 4294901760
  %v3040 = vsub.f32 %v2499, %v3039
  %v3041 = vand.u32 %v3040, 4294901760
  %3042 = vmatpush1.msra.mxu0 %v3041
  %3043 = vmatprep.subr.mxu0 0.0
  %v3044 = vand.u32 %v2498, 4294901760
  %v3045 = vsub.f32 %v2498, %v3044
  %v3046 = vand.u32 %v3045, 4294901760
  %3047 = vmatpush1.msra.mxu0 %v3046
  %3048 = vmatprep.subr.mxu0 0.0
  %v3049 = vand.u32 %v2497, 4294901760
  %v3050 = vsub.f32 %v2497, %v3049
  %v3051 = vand.u32 %v3050, 4294901760
  %3052 = vmatpush1.msra.mxu0 %v3051
  %3053 = vmatprep.subr.mxu0 0.0
  %v3054 = vand.u32 %v2496, 4294901760
  %v3055 = vsub.f32 %v2496, %v3054
  %v3056 = vand.u32 %v3055, 4294901760
  %3057 = vmatpush1.msra.mxu0 %v3056
  %3058 = vmatprep.subr.mxu0 0.0
  %3059 = vmatpush2.msra.mxu0 0.0
  %3060 = vmatprep.subr.mxu0 0.0
  %3061 = vmatpush2.msra.mxu0 0.0
  %3062 = vmatprep.subr.mxu0 0.0
  %3063 = vmatpush2.msra.mxu0 0.0
  %3064 = vmatprep.subr.mxu0 0.0
  %3065 = vmatpush2.msra.mxu0 0.0
  %3066 = vmatprep.subr.mxu0 0.0
  %3067 = vmatpush2.msra.mxu0 0.0
  %3068 = vmatprep.subr.mxu0 0.0
  %3069 = vmatpush2.msra.mxu0 0.0
  %3070 = vmatprep.subr.mxu0 0.0
  %3071 = vmatpush2.msra.mxu0 0.0
  %3072 = vmatprep.subr.mxu0 0.0
  %3073 = vmatpush2.msra.mxu0 0.0
  %3074 = vmatprep.subr.mxu0 0.0
  %3075 = vmatpush2.msra.mxu0 0.0
  %3076 = vmatprep.subr.mxu0 0.0
  %3077 = vmatpush2.msra.mxu0 0.0
  %3078 = vmatprep.subr.mxu0 0.0
  %3079 = vmatpush2.msra.mxu0 0.0
  %3080 = vmatprep.subr.mxu0 0.0
  %3081 = vmatpush2.msra.mxu0 0.0
  %3082 = vmatprep.subr.mxu0 0.0
  %3083 = vmatpush2.msra.mxu0 0.0
  %3084 = vmatprep.subr.mxu0 0.0
  %3085 = vmatpush2.msra.mxu0 0.0
  %3086 = vmatprep.subr.mxu0 0.0
  %3087 = vmatpush2.msra.mxu0 0.0
  %3088 = vmatprep.subr.mxu0 0.0
  %3089 = vmatpush2.msra.mxu0 0.0
  %3090 = vmatprep.mubr.f32.mxu0 0.0
  %v3091 = vand.u32 %v2487, 4294901760
  %3092 = vmatmul.mubr.f32.gmra.mxu0 %v3091
  %v3093 = vpop.f32.mrf.mxu0
  %v3094 = vadd.f32 %v2967, %v3093
  %v3095 = vpop.f32.mrf.mxu0
  %3096 = vmatprep.mubr.f32.mxu0 0.0
  %v3097 = vand.u32 %v2493, 4294901760
  %3098 = vmatmul.mubr.f32.gmra.mxu0 %v3097
  %v3099 = vpop.f32.mrf.mxu0
  %v3100 = vadd.f32 %v2975, %v3099
  %v3101 = vpop.f32.mrf.mxu0
  %3102 = vdwg.mxu0
  %3103 = vmatprep.subr.mxu0 0.0
  %v3104 = vand.u32 %v2511, 4294901760
  %3105 = vmatpush1.msra.mxu0 %v3104
  %3106 = vmatprep.subr.mxu0 0.0
  %v3107 = vand.u32 %v2510, 4294901760
  %3108 = vmatpush1.msra.mxu0 %v3107
  %3109 = vmatprep.subr.mxu0 0.0
  %v3110 = vand.u32 %v2509, 4294901760
  %3111 = vmatpush1.msra.mxu0 %v3110
  %3112 = vmatprep.subr.mxu0 0.0
  %v3113 = vand.u32 %v2508, 4294901760
  %3114 = vmatpush1.msra.mxu0 %v3113
  %3115 = vmatprep.subr.mxu0 0.0
  %v3116 = vand.u32 %v2507, 4294901760
  %3117 = vmatpush1.msra.mxu0 %v3116
  %3118 = vmatprep.subr.mxu0 0.0
  %v3119 = vand.u32 %v2506, 4294901760
  %3120 = vmatpush1.msra.mxu0 %v3119
  %3121 = vmatprep.subr.mxu0 0.0
  %v3122 = vand.u32 %v2505, 4294901760
  %3123 = vmatpush1.msra.mxu0 %v3122
  %3124 = vmatprep.subr.mxu0 0.0
  %v3125 = vand.u32 %v2504, 4294901760
  %3126 = vmatpush1.msra.mxu0 %v3125
  %3127 = vmatprep.subr.mxu0 0.0
  %v3128 = vand.u32 %v2503, 4294901760
  %3129 = vmatpush1.msra.mxu0 %v3128
  %3130 = vmatprep.subr.mxu0 0.0
  %v3131 = vand.u32 %v2502, 4294901760
  %3132 = vmatpush1.msra.mxu0 %v3131
  %3133 = vmatprep.subr.mxu0 0.0
  %v3134 = vand.u32 %v2501, 4294901760
  %3135 = vmatpush1.msra.mxu0 %v3134
  %3136 = vmatprep.subr.mxu0 0.0
  %v3137 = vand.u32 %v2500, 4294901760
  %3138 = vmatpush1.msra.mxu0 %v3137
  %3139 = vmatprep.subr.mxu0 0.0
  %v3140 = vand.u32 %v2499, 4294901760
  %3141 = vmatpush1.msra.mxu0 %v3140
  %3142 = vmatprep.subr.mxu0 0.0
  %v3143 = vand.u32 %v2498, 4294901760
  %3144 = vmatpush1.msra.mxu0 %v3143
  %3145 = vmatprep.subr.mxu0 0.0
  %v3146 = vand.u32 %v2497, 4294901760
  %3147 = vmatpush1.msra.mxu0 %v3146
  %3148 = vmatprep.subr.mxu0 0.0
  %v3149 = vand.u32 %v2496, 4294901760
  %3150 = vmatpush1.msra.mxu0 %v3149
  %3151 = vmatprep.subr.mxu0 0.0
  %3152 = vmatpush2.msra.mxu0 0.0
  %3153 = vmatprep.subr.mxu0 0.0
  %3154 = vmatpush2.msra.mxu0 0.0
  %3155 = vmatprep.subr.mxu0 0.0
  %3156 = vmatpush2.msra.mxu0 0.0
  %3157 = vmatprep.subr.mxu0 0.0
  %3158 = vmatpush2.msra.mxu0 0.0
  %3159 = vmatprep.subr.mxu0 0.0
  %3160 = vmatpush2.msra.mxu0 0.0
  %3161 = vmatprep.subr.mxu0 0.0
  %3162 = vmatpush2.msra.mxu0 0.0
  %3163 = vmatprep.subr.mxu0 0.0
  %3164 = vmatpush2.msra.mxu0 0.0
  %3165 = vmatprep.subr.mxu0 0.0
  %3166 = vmatpush2.msra.mxu0 0.0
  %3167 = vmatprep.subr.mxu0 0.0
  %3168 = vmatpush2.msra.mxu0 0.0
  %3169 = vmatprep.subr.mxu0 0.0
  %3170 = vmatpush2.msra.mxu0 0.0
  %3171 = vmatprep.subr.mxu0 0.0
  %3172 = vmatpush2.msra.mxu0 0.0
  %3173 = vmatprep.subr.mxu0 0.0
  %3174 = vmatpush2.msra.mxu0 0.0
  %3175 = vmatprep.subr.mxu0 0.0
  %3176 = vmatpush2.msra.mxu0 0.0
  %3177 = vmatprep.subr.mxu0 0.0
  %3178 = vmatpush2.msra.mxu0 0.0
  %3179 = vmatprep.subr.mxu0 0.0
  %3180 = vmatpush2.msra.mxu0 0.0
  %3181 = vmatprep.subr.mxu0 0.0
  %3182 = vmatpush2.msra.mxu0 0.0
  %3183 = vmatprep.mubr.f32.mxu0 0.0
  %v3184 = vand.u32 %v2487, 4294901760
  %3185 = vmatmul.mubr.f32.gmra.mxu0 %v3184
  %v3186 = vpop.f32.mrf.mxu0
  %v3187 = vadd.f32 %v3094, %v3186
  %v3188 = vpop.f32.mrf.mxu0
  %3189 = vmatprep.mubr.f32.mxu0 0.0
  %v3190 = vand.u32 %v2493, 4294901760
  %3191 = vmatmul.mubr.f32.gmra.mxu0 %v3190
  %v3192 = vpop.f32.mrf.mxu0
  %v3193 = vadd.f32 %v3100, %v3192
  %v3194 = vpop.f32.mrf.mxu0
  %3195 = vdwg.mxu0
  %v3196 = vtanh.pop %v3187
  %v3197 = vtanh.pop %v3193
  %3198 = vmatprep.subr.mxu0 0.0
  %3199 = vmatpush1.msra.mxu0 0.0
  %3200 = vmatprep.subr.mxu0 0.0
  %3201 = vmatpush1.msra.mxu0 0.0
  %3202 = vmatprep.subr.mxu0 0.0
  %3203 = vmatpush1.msra.mxu0 0.0
  %3204 = vmatprep.subr.mxu0 0.0
  %3205 = vmatpush1.msra.mxu0 0.0
  %3206 = vmatprep.subr.mxu0 0.0
  %3207 = vmatpush1.msra.mxu0 0.0
  %3208 = vmatprep.subr.mxu0 0.0
  %3209 = vmatpush1.msra.mxu0 0.0
  %3210 = vmatprep.subr.mxu0 0.0
  %3211 = vmatpush1.msra.mxu0 0.0
  %3212 = vmatprep.subr.mxu0 0.0
  %3213 = vmatpush1.msra.mxu0 0.0
  %3214 = vmatprep.subr.mxu0 0.0
  %3215 = vmatpush1.msra.mxu0 0.0
  %3216 = vmatprep.subr.mxu0 0.0
  %3217 = vmatpush1.msra.mxu0 0.0
  %3218 = vmatprep.subr.mxu0 0.0
  %3219 = vmatpush1.msra.mxu0 0.0
  %3220 = vmatprep.subr.mxu0 0.0
  %3221 = vmatpush1.msra.mxu0 0.0
  %3222 = vmatprep.subr.mxu0 0.0
  %3223 = vmatpush1.msra.mxu0 0.0
  %3224 = vmatprep.subr.mxu0 0.0
  %3225 = vmatpush1.msra.mxu0 0.0
  %3226 = vmatprep.subr.mxu0 0.0
  %v3227 = vand.u32 %v3197, 4294901760
  %3228 = vmatpush1.msra.mxu0 %v3227
  %3229 = vmatprep.subr.mxu0 0.0
  %v3230 = vand.u32 %v3196, 4294901760
  %3231 = vmatpush1.msra.mxu0 %v3230
  %3232 = vmatprep.subr.mxu0 0.0
  %3233 = vmatpush2.msra.mxu0 0.0
  %3234 = vmatprep.subr.mxu0 0.0
  %3235 = vmatpush2.msra.mxu0 0.0
  %3236 = vmatprep.subr.mxu0 0.0
  %3237 = vmatpush2.msra.mxu0 0.0
  %3238 = vmatprep.subr.mxu0 0.0
  %3239 = vmatpush2.msra.mxu0 0.0
  %3240 = vmatprep.subr.mxu0 0.0
  %3241 = vmatpush2.msra.mxu0 0.0
  %3242 = vmatprep.subr.mxu0 0.0
  %3243 = vmatpush2.msra.mxu0 0.0
  %3244 = vmatprep.subr.mxu0 0.0
  %3245 = vmatpush2.msra.mxu0 0.0
  %3246 = vmatprep.subr.mxu0 0.0
  %3247 = vmatpush2.msra.mxu0 0.0
  %3248 = vmatprep.subr.mxu0 0.0
  %3249 = vmatpush2.msra.mxu0 0.0
  %3250 = vmatprep.subr.mxu0 0.0
  %3251 = vmatpush2.msra.mxu0 0.0
  %3252 = vmatprep.subr.mxu0 0.0
  %3253 = vmatpush2.msra.mxu0 0.0
  %3254 = vmatprep.subr.mxu0 0.0
  %3255 = vmatpush2.msra.mxu0 0.0
  %3256 = vmatprep.subr.mxu0 0.0
  %3257 = vmatpush2.msra.mxu0 0.0
  %3258 = vmatprep.subr.mxu0 0.0
  %3259 = vmatpush2.msra.mxu0 0.0
  %3260 = vmatprep.subr.mxu0 0.0
  %3261 = vmatpush2.msra.mxu0 0.0
  %3262 = vmatprep.subr.mxu0 0.0
  %3263 = vmatpush2.msra.mxu0 0.0
  %3264 = vmatprep.mubr.f32.mxu0 0.0
  %v3265 = vand.u32 %v785, 4294901760
  %v3266 = vsub.f32 %v785, %v3265
  %v3267 = vand.u32 %v3266, 4294901760
  %v3268 = vsub.f32 %v3266, %v3267
  %v3269 = vand.u32 %v3268, 4294901760
  %3270 = vmatmul.mubr.f32.gmra.mxu0 %v3269
  %v3271 = vpop.f32.mrf.mxu0
  %v3272 = vadd.f32 0.0, %v3271
  %v3273 = vpop.f32.mrf.mxu0
  %3274 = vmatprep.mubr.f32.mxu0 0.0
  %v3275 = vand.u32 %v788, 4294901760
  %v3276 = vsub.f32 %v788, %v3275
  %v3277 = vand.u32 %v3276, 4294901760
  %v3278 = vsub.f32 %v3276, %v3277
  %v3279 = vand.u32 %v3278, 4294901760
  %3280 = vmatmul.mubr.f32.gmra.mxu0 %v3279
  %v3281 = vpop.f32.mrf.mxu0
  %v3282 = vadd.f32 0.0, %v3281
  %v3283 = vpop.f32.mrf.mxu0
  %3284 = vdwg.mxu0
  %3285 = vmatprep.subr.mxu0 0.0
  %3286 = vmatpush1.msra.mxu0 0.0
  %3287 = vmatprep.subr.mxu0 0.0
  %3288 = vmatpush1.msra.mxu0 0.0
  %3289 = vmatprep.subr.mxu0 0.0
  %3290 = vmatpush1.msra.mxu0 0.0
  %3291 = vmatprep.subr.mxu0 0.0
  %3292 = vmatpush1.msra.mxu0 0.0
  %3293 = vmatprep.subr.mxu0 0.0
  %3294 = vmatpush1.msra.mxu0 0.0
  %3295 = vmatprep.subr.mxu0 0.0
  %3296 = vmatpush1.msra.mxu0 0.0
  %3297 = vmatprep.subr.mxu0 0.0
  %3298 = vmatpush1.msra.mxu0 0.0
  %3299 = vmatprep.subr.mxu0 0.0
  %3300 = vmatpush1.msra.mxu0 0.0
  %3301 = vmatprep.subr.mxu0 0.0
  %3302 = vmatpush1.msra.mxu0 0.0
  %3303 = vmatprep.subr.mxu0 0.0
  %3304 = vmatpush1.msra.mxu0 0.0
  %3305 = vmatprep.subr.mxu0 0.0
  %3306 = vmatpush1.msra.mxu0 0.0
  %3307 = vmatprep.subr.mxu0 0.0
  %3308 = vmatpush1.msra.mxu0 0.0
  %3309 = vmatprep.subr.mxu0 0.0
  %3310 = vmatpush1.msra.mxu0 0.0
  %3311 = vmatprep.subr.mxu0 0.0
  %3312 = vmatpush1.msra.mxu0 0.0
  %3313 = vmatprep.subr.mxu0 0.0
  %v3314 = vand.u32 %v3197, 4294901760
  %v3315 = vsub.f32 %v3197, %v3314
  %v3316 = vand.u32 %v3315, 4294901760
  %v3317 = vsub.f32 %v3315, %v3316
  %v3318 = vand.u32 %v3317, 4294901760
  %3319 = vmatpush1.msra.mxu0 %v3318
  %3320 = vmatprep.subr.mxu0 0.0
  %v3321 = vand.u32 %v3196, 4294901760
  %v3322 = vsub.f32 %v3196, %v3321
  %v3323 = vand.u32 %v3322, 4294901760
  %v3324 = vsub.f32 %v3322, %v3323
  %v3325 = vand.u32 %v3324, 4294901760
  %3326 = vmatpush1.msra.mxu0 %v3325
  %3327 = vmatprep.subr.mxu0 0.0
  %3328 = vmatpush2.msra.mxu0 0.0
  %3329 = vmatprep.subr.mxu0 0.0
  %3330 = vmatpush2.msra.mxu0 0.0
  %3331 = vmatprep.subr.mxu0 0.0
  %3332 = vmatpush2.msra.mxu0 0.0
  %3333 = vmatprep.subr.mxu0 0.0
  %3334 = vmatpush2.msra.mxu0 0.0
  %3335 = vmatprep.subr.mxu0 0.0
  %3336 = vmatpush2.msra.mxu0 0.0
  %3337 = vmatprep.subr.mxu0 0.0
  %3338 = vmatpush2.msra.mxu0 0.0
  %3339 = vmatprep.subr.mxu0 0.0
  %3340 = vmatpush2.msra.mxu0 0.0
  %3341 = vmatprep.subr.mxu0 0.0
  %3342 = vmatpush2.msra.mxu0 0.0
  %3343 = vmatprep.subr.mxu0 0.0
  %3344 = vmatpush2.msra.mxu0 0.0
  %3345 = vmatprep.subr.mxu0 0.0
  %3346 = vmatpush2.msra.mxu0 0.0
  %3347 = vmatprep.subr.mxu0 0.0
  %3348 = vmatpush2.msra.mxu0 0.0
  %3349 = vmatprep.subr.mxu0 0.0
  %3350 = vmatpush2.msra.mxu0 0.0
  %3351 = vmatprep.subr.mxu0 0.0
  %3352 = vmatpush2.msra.mxu0 0.0
  %3353 = vmatprep.subr.mxu0 0.0
  %3354 = vmatpush2.msra.mxu0 0.0
  %3355 = vmatprep.subr.mxu0 0.0
  %3356 = vmatpush2.msra.mxu0 0.0
  %3357 = vmatprep.subr.mxu0 0.0
  %3358 = vmatpush2.msra.mxu0 0.0
  %3359 = vmatprep.mubr.f32.mxu0 0.0
  %v3360 = vand.u32 %v785, 4294901760
  %3361 = vmatmul.mubr.f32.gmra.mxu0 %v3360
  %v3362 = vpop.f32.mrf.mxu0
  %v3363 = vadd.f32 %v3272, %v3362
  %v3364 = vpop.f32.mrf.mxu0
  %3365 = vmatprep.mubr.f32.mxu0 0.0
  %v3366 = vand.u32 %v788, 4294901760
  %3367 = vmatmul.mubr.f32.gmra.mxu0 %v3366
  %v3368 = vpop.f32.mrf.mxu0
  %v3369 = vadd.f32 %v3282, %v3368
  %v3370 = vpop.f32.mrf.mxu0
  %3371 = vdwg.mxu0
  %3372 = vmatprep.subr.mxu0 0.0
  %3373 = vmatpush1.msra.mxu0 0.0
  %3374 = vmatprep.subr.mxu0 0.0
  %3375 = vmatpush1.msra.mxu0 0.0
  %3376 = vmatprep.subr.mxu0 0.0
  %3377 = vmatpush1.msra.mxu0 0.0
  %3378 = vmatprep.subr.mxu0 0.0
  %3379 = vmatpush1.msra.mxu0 0.0
  %3380 = vmatprep.subr.mxu0 0.0
  %3381 = vmatpush1.msra.mxu0 0.0
  %3382 = vmatprep.subr.mxu0 0.0
  %3383 = vmatpush1.msra.mxu0 0.0
  %3384 = vmatprep.subr.mxu0 0.0
  %3385 = vmatpush1.msra.mxu0 0.0
  %3386 = vmatprep.subr.mxu0 0.0
  %3387 = vmatpush1.msra.mxu0 0.0
  %3388 = vmatprep.subr.mxu0 0.0
  %3389 = vmatpush1.msra.mxu0 0.0
  %3390 = vmatprep.subr.mxu0 0.0
  %3391 = vmatpush1.msra.mxu0 0.0
  %3392 = vmatprep.subr.mxu0 0.0
  %3393 = vmatpush1.msra.mxu0 0.0
  %3394 = vmatprep.subr.mxu0 0.0
  %3395 = vmatpush1.msra.mxu0 0.0
  %3396 = vmatprep.subr.mxu0 0.0
  %3397 = vmatpush1.msra.mxu0 0.0
  %3398 = vmatprep.subr.mxu0 0.0
  %3399 = vmatpush1.msra.mxu0 0.0
  %3400 = vmatprep.subr.mxu0 0.0
  %v3401 = vand.u32 %v3197, 4294901760
  %v3402 = vsub.f32 %v3197, %v3401
  %3403 = vmatpush1.msra.mxu0 %v3402
  %3404 = vmatprep.subr.mxu0 0.0
  %v3405 = vand.u32 %v3196, 4294901760
  %v3406 = vsub.f32 %v3196, %v3405
  %3407 = vmatpush1.msra.mxu0 %v3406
  %3408 = vmatprep.subr.mxu0 0.0
  %3409 = vmatpush2.msra.mxu0 0.0
  %3410 = vmatprep.subr.mxu0 0.0
  %3411 = vmatpush2.msra.mxu0 0.0
  %3412 = vmatprep.subr.mxu0 0.0
  %3413 = vmatpush2.msra.mxu0 0.0
  %3414 = vmatprep.subr.mxu0 0.0
  %3415 = vmatpush2.msra.mxu0 0.0
  %3416 = vmatprep.subr.mxu0 0.0
  %3417 = vmatpush2.msra.mxu0 0.0
  %3418 = vmatprep.subr.mxu0 0.0
  %3419 = vmatpush2.msra.mxu0 0.0
  %3420 = vmatprep.subr.mxu0 0.0
  %3421 = vmatpush2.msra.mxu0 0.0
  %3422 = vmatprep.subr.mxu0 0.0
  %3423 = vmatpush2.msra.mxu0 0.0
  %3424 = vmatprep.subr.mxu0 0.0
  %3425 = vmatpush2.msra.mxu0 0.0
  %3426 = vmatprep.subr.mxu0 0.0
  %3427 = vmatpush2.msra.mxu0 0.0
  %3428 = vmatprep.subr.mxu0 0.0
  %3429 = vmatpush2.msra.mxu0 0.0
  %3430 = vmatprep.subr.mxu0 0.0
  %3431 = vmatpush2.msra.mxu0 0.0
  %3432 = vmatprep.subr.mxu0 0.0
  %3433 = vmatpush2.msra.mxu0 0.0
  %3434 = vmatprep.subr.mxu0 0.0
  %3435 = vmatpush2.msra.mxu0 0.0
  %3436 = vmatprep.subr.mxu0 0.0
  %3437 = vmatpush2.msra.mxu0 0.0
  %3438 = vmatprep.subr.mxu0 0.0
  %3439 = vmatpush2.msra.mxu0 0.0
  %3440 = vmatprep.mubr.f32.mxu0 0.0
  %v3441 = vand.u32 %v785, 4294901760
  %v3442 = vsub.f32 %v785, %v3441
  %3443 = vmatmul.mubr.f32.gmra.mxu0 %v3442
  %v3444 = vpop.f32.mrf.mxu0
  %v3445 = vadd.f32 %v3363, %v3444
  %v3446 = vpop.f32.mrf.mxu0
  %3447 = vmatprep.mubr.f32.mxu0 0.0
  %v3448 = vand.u32 %v788, 4294901760
  %v3449 = vsub.f32 %v788, %v3448
  %3450 = vmatmul.mubr.f32.gmra.mxu0 %v3449
  %v3451 = vpop.f32.mrf.mxu0
  %v3452 = vadd.f32 %v3369, %v3451
  %v3453 = vpop.f32.mrf.mxu0
  %3454 = vdwg.mxu0
  %3455 = vmatprep.subr.mxu0 0.0
  %3456 = vmatpush1.msra.mxu0 0.0
  %3457 = vmatprep.subr.mxu0 0.0
  %3458 = vmatpush1.msra.mxu0 0.0
  %3459 = vmatprep.subr.mxu0 0.0
  %3460 = vmatpush1.msra.mxu0 0.0
  %3461 = vmatprep.subr.mxu0 0.0
  %3462 = vmatpush1.msra.mxu0 0.0
  %3463 = vmatprep.subr.mxu0 0.0
  %3464 = vmatpush1.msra.mxu0 0.0
  %3465 = vmatprep.subr.mxu0 0.0
  %3466 = vmatpush1.msra.mxu0 0.0
  %3467 = vmatprep.subr.mxu0 0.0
  %3468 = vmatpush1.msra.mxu0 0.0
  %3469 = vmatprep.subr.mxu0 0.0
  %3470 = vmatpush1.msra.mxu0 0.0
  %3471 = vmatprep.subr.mxu0 0.0
  %3472 = vmatpush1.msra.mxu0 0.0
  %3473 = vmatprep.subr.mxu0 0.0
  %3474 = vmatpush1.msra.mxu0 0.0
  %3475 = vmatprep.subr.mxu0 0.0
  %3476 = vmatpush1.msra.mxu0 0.0
  %3477 = vmatprep.subr.mxu0 0.0
  %3478 = vmatpush1.msra.mxu0 0.0
  %3479 = vmatprep.subr.mxu0 0.0
  %3480 = vmatpush1.msra.mxu0 0.0
  %3481 = vmatprep.subr.mxu0 0.0
  %3482 = vmatpush1.msra.mxu0 0.0
  %3483 = vmatprep.subr.mxu0 0.0
  %v3484 = vand.u32 %v3197, 4294901760
  %3485 = vmatpush1.msra.mxu0 %v3484
  %3486 = vmatprep.subr.mxu0 0.0
  %v3487 = vand.u32 %v3196, 4294901760
  %3488 = vmatpush1.msra.mxu0 %v3487
  %3489 = vmatprep.subr.mxu0 0.0
  %3490 = vmatpush2.msra.mxu0 0.0
  %3491 = vmatprep.subr.mxu0 0.0
  %3492 = vmatpush2.msra.mxu0 0.0
  %3493 = vmatprep.subr.mxu0 0.0
  %3494 = vmatpush2.msra.mxu0 0.0
  %3495 = vmatprep.subr.mxu0 0.0
  %3496 = vmatpush2.msra.mxu0 0.0
  %3497 = vmatprep.subr.mxu0 0.0
  %3498 = vmatpush2.msra.mxu0 0.0
  %3499 = vmatprep.subr.mxu0 0.0
  %3500 = vmatpush2.msra.mxu0 0.0
  %3501 = vmatprep.subr.mxu0 0.0
  %3502 = vmatpush2.msra.mxu0 0.0
  %3503 = vmatprep.subr.mxu0 0.0
  %3504 = vmatpush2.msra.mxu0 0.0
  %3505 = vmatprep.subr.mxu0 0.0
  %3506 = vmatpush2.msra.mxu0 0.0
  %3507 = vmatprep.subr.mxu0 0.0
  %3508 = vmatpush2.msra.mxu0 0.0
  %3509 = vmatprep.subr.mxu0 0.0
  %3510 = vmatpush2.msra.mxu0 0.0
  %3511 = vmatprep.subr.mxu0 0.0
  %3512 = vmatpush2.msra.mxu0 0.0
  %3513 = vmatprep.subr.mxu0 0.0
  %3514 = vmatpush2.msra.mxu0 0.0
  %3515 = vmatprep.subr.mxu0 0.0
  %3516 = vmatpush2.msra.mxu0 0.0
  %3517 = vmatprep.subr.mxu0 0.0
  %3518 = vmatpush2.msra.mxu0 0.0
  %3519 = vmatprep.subr.mxu0 0.0
  %3520 = vmatpush2.msra.mxu0 0.0
  %3521 = vmatprep.mubr.f32.mxu0 0.0
  %v3522 = vand.u32 %v785, 4294901760
  %v3523 = vsub.f32 %v785, %v3522
  %v3524 = vand.u32 %v3523, 4294901760
  %3525 = vmatmul.mubr.f32.gmra.mxu0 %v3524
  %v3526 = vpop.f32.mrf.mxu0
  %v3527 = vadd.f32 %v3445, %v3526
  %v3528 = vpop.f32.mrf.mxu0
  %3529 = vmatprep.mubr.f32.mxu0 0.0
  %v3530 = vand.u32 %v788, 4294901760
  %v3531 = vsub.f32 %v788, %v3530
  %v3532 = vand.u32 %v3531, 4294901760
  %3533 = vmatmul.mubr.f32.gmra.mxu0 %v3532
  %v3534 = vpop.f32.mrf.mxu0
  %v3535 = vadd.f32 %v3452, %v3534
  %v3536 = vpop.f32.mrf.mxu0
  %3537 = vdwg.mxu0
  %3538 = vmatprep.subr.mxu0 0.0
  %3539 = vmatpush1.msra.mxu0 0.0
  %3540 = vmatprep.subr.mxu0 0.0
  %3541 = vmatpush1.msra.mxu0 0.0
  %3542 = vmatprep.subr.mxu0 0.0
  %3543 = vmatpush1.msra.mxu0 0.0
  %3544 = vmatprep.subr.mxu0 0.0
  %3545 = vmatpush1.msra.mxu0 0.0
  %3546 = vmatprep.subr.mxu0 0.0
  %3547 = vmatpush1.msra.mxu0 0.0
  %3548 = vmatprep.subr.mxu0 0.0
  %3549 = vmatpush1.msra.mxu0 0.0
  %3550 = vmatprep.subr.mxu0 0.0
  %3551 = vmatpush1.msra.mxu0 0.0
  %3552 = vmatprep.subr.mxu0 0.0
  %3553 = vmatpush1.msra.mxu0 0.0
  %3554 = vmatprep.subr.mxu0 0.0
  %3555 = vmatpush1.msra.mxu0 0.0
  %3556 = vmatprep.subr.mxu0 0.0
  %3557 = vmatpush1.msra.mxu0 0.0
  %3558 = vmatprep.subr.mxu0 0.0
  %3559 = vmatpush1.msra.mxu0 0.0
  %3560 = vmatprep.subr.mxu0 0.0
  %3561 = vmatpush1.msra.mxu0 0.0
  %3562 = vmatprep.subr.mxu0 0.0
  %3563 = vmatpush1.msra.mxu0 0.0
  %3564 = vmatprep.subr.mxu0 0.0
  %3565 = vmatpush1.msra.mxu0 0.0
  %3566 = vmatprep.subr.mxu0 0.0
  %v3567 = vand.u32 %v3197, 4294901760
  %v3568 = vsub.f32 %v3197, %v3567
  %v3569 = vand.u32 %v3568, 4294901760
  %3570 = vmatpush1.msra.mxu0 %v3569
  %3571 = vmatprep.subr.mxu0 0.0
  %v3572 = vand.u32 %v3196, 4294901760
  %v3573 = vsub.f32 %v3196, %v3572
  %v3574 = vand.u32 %v3573, 4294901760
  %3575 = vmatpush1.msra.mxu0 %v3574
  %3576 = vmatprep.subr.mxu0 0.0
  %3577 = vmatpush2.msra.mxu0 0.0
  %3578 = vmatprep.subr.mxu0 0.0
  %3579 = vmatpush2.msra.mxu0 0.0
  %3580 = vmatprep.subr.mxu0 0.0
  %3581 = vmatpush2.msra.mxu0 0.0
  %3582 = vmatprep.subr.mxu0 0.0
  %3583 = vmatpush2.msra.mxu0 0.0
  %3584 = vmatprep.subr.mxu0 0.0
  %3585 = vmatpush2.msra.mxu0 0.0
  %3586 = vmatprep.subr.mxu0 0.0
  %3587 = vmatpush2.msra.mxu0 0.0
  %3588 = vmatprep.subr.mxu0 0.0
  %3589 = vmatpush2.msra.mxu0 0.0
  %3590 = vmatprep.subr.mxu0 0.0
  %3591 = vmatpush2.msra.mxu0 0.0
  %3592 = vmatprep.subr.mxu0 0.0
  %3593 = vmatpush2.msra.mxu0 0.0
  %3594 = vmatprep.subr.mxu0 0.0
  %3595 = vmatpush2.msra.mxu0 0.0
  %3596 = vmatprep.subr.mxu0 0.0
  %3597 = vmatpush2.msra.mxu0 0.0
  %3598 = vmatprep.subr.mxu0 0.0
  %3599 = vmatpush2.msra.mxu0 0.0
  %3600 = vmatprep.subr.mxu0 0.0
  %3601 = vmatpush2.msra.mxu0 0.0
  %3602 = vmatprep.subr.mxu0 0.0
  %3603 = vmatpush2.msra.mxu0 0.0
  %3604 = vmatprep.subr.mxu0 0.0
  %3605 = vmatpush2.msra.mxu0 0.0
  %3606 = vmatprep.subr.mxu0 0.0
  %3607 = vmatpush2.msra.mxu0 0.0
  %3608 = vmatprep.mubr.f32.mxu0 0.0
  %v3609 = vand.u32 %v785, 4294901760
  %3610 = vmatmul.mubr.f32.gmra.mxu0 %v3609
  %v3611 = vpop.f32.mrf.mxu0
  %v3612 = vadd.f32 %v3527, %v3611
  %v3613 = vpop.f32.mrf.mxu0
  %3614 = vmatprep.mubr.f32.mxu0 0.0
  %v3615 = vand.u32 %v788, 4294901760
  %3616 = vmatmul.mubr.f32.gmra.mxu0 %v3615
  %v3617 = vpop.f32.mrf.mxu0
  %v3618 = vadd.f32 %v3535, %v3617
  %v3619 = vpop.f32.mrf.mxu0
  %3620 = vdwg.mxu0
  %3621 = vmatprep.subr.mxu0 0.0
  %3622 = vmatpush1.msra.mxu0 0.0
  %3623 = vmatprep.subr.mxu0 0.0
  %3624 = vmatpush1.msra.mxu0 0.0
  %3625 = vmatprep.subr.mxu0 0.0
  %3626 = vmatpush1.msra.mxu0 0.0
  %3627 = vmatprep.subr.mxu0 0.0
  %3628 = vmatpush1.msra.mxu0 0.0
  %3629 = vmatprep.subr.mxu0 0.0
  %3630 = vmatpush1.msra.mxu0 0.0
  %3631 = vmatprep.subr.mxu0 0.0
  %3632 = vmatpush1.msra.mxu0 0.0
  %3633 = vmatprep.subr.mxu0 0.0
  %3634 = vmatpush1.msra.mxu0 0.0
  %3635 = vmatprep.subr.mxu0 0.0
  %3636 = vmatpush1.msra.mxu0 0.0
  %3637 = vmatprep.subr.mxu0 0.0
  %3638 = vmatpush1.msra.mxu0 0.0
  %3639 = vmatprep.subr.mxu0 0.0
  %3640 = vmatpush1.msra.mxu0 0.0
  %3641 = vmatprep.subr.mxu0 0.0
  %3642 = vmatpush1.msra.mxu0 0.0
  %3643 = vmatprep.subr.mxu0 0.0
  %3644 = vmatpush1.msra.mxu0 0.0
  %3645 = vmatprep.subr.mxu0 0.0
  %3646 = vmatpush1.msra.mxu0 0.0
  %3647 = vmatprep.subr.mxu0 0.0
  %3648 = vmatpush1.msra.mxu0 0.0
  %3649 = vmatprep.subr.mxu0 0.0
  %v3650 = vand.u32 %v3197, 4294901760
  %3651 = vmatpush1.msra.mxu0 %v3650
  %3652 = vmatprep.subr.mxu0 0.0
  %v3653 = vand.u32 %v3196, 4294901760
  %3654 = vmatpush1.msra.mxu0 %v3653
  %3655 = vmatprep.subr.mxu0 0.0
  %3656 = vmatpush2.msra.mxu0 0.0
  %3657 = vmatprep.subr.mxu0 0.0
  %3658 = vmatpush2.msra.mxu0 0.0
  %3659 = vmatprep.subr.mxu0 0.0
  %3660 = vmatpush2.msra.mxu0 0.0
  %3661 = vmatprep.subr.mxu0 0.0
  %3662 = vmatpush2.msra.mxu0 0.0
  %3663 = vmatprep.subr.mxu0 0.0
  %3664 = vmatpush2.msra.mxu0 0.0
  %3665 = vmatprep.subr.mxu0 0.0
  %3666 = vmatpush2.msra.mxu0 0.0
  %3667 = vmatprep.subr.mxu0 0.0
  %3668 = vmatpush2.msra.mxu0 0.0
  %3669 = vmatprep.subr.mxu0 0.0
  %3670 = vmatpush2.msra.mxu0 0.0
  %3671 = vmatprep.subr.mxu0 0.0
  %3672 = vmatpush2.msra.mxu0 0.0
  %3673 = vmatprep.subr.mxu0 0.0
  %3674 = vmatpush2.msra.mxu0 0.0
  %3675 = vmatprep.subr.mxu0 0.0
  %3676 = vmatpush2.msra.mxu0 0.0
  %3677 = vmatprep.subr.mxu0 0.0
  %3678 = vmatpush2.msra.mxu0 0.0
  %3679 = vmatprep.subr.mxu0 0.0
  %3680 = vmatpush2.msra.mxu0 0.0
  %3681 = vmatprep.subr.mxu0 0.0
  %3682 = vmatpush2.msra.mxu0 0.0
  %3683 = vmatprep.subr.mxu0 0.0
  %3684 = vmatpush2.msra.mxu0 0.0
  %3685 = vmatprep.subr.mxu0 0.0
  %3686 = vmatpush2.msra.mxu0 0.0
  %3687 = vmatprep.mubr.f32.mxu0 0.0
  %v3688 = vand.u32 %v785, 4294901760
  %3689 = vmatmul.mubr.f32.gmra.mxu0 %v3688
  %v3690 = vpop.f32.mrf.mxu0
  %v3691 = vadd.f32 %v3612, %v3690
  %v3692 = vpop.f32.mrf.mxu0
  %3693 = vmatprep.mubr.f32.mxu0 0.0
  %v3694 = vand.u32 %v788, 4294901760
  %3695 = vmatmul.mubr.f32.gmra.mxu0 %v3694
  %v3696 = vpop.f32.mrf.mxu0
  %v3697 = vadd.f32 %v3618, %v3696
  %v3698 = vpop.f32.mrf.mxu0
  %3699 = vdwg.mxu0
  %v3700 = vld [vmem:[%s5] sm:$0xff]
  %v3701 = vld [vmem:[%s5 + $0x8] sm:$0xff]
  %v3702 = vld [vmem:[%s5 + $0x10] sm:$0xff]
  %v3703 = vld [vmem:[%s5 + $0x18] sm:$0xff]
  %v3704 = vld [vmem:[%s5 + $0x20] sm:$0xff]
  %v3705 = vld [vmem:[%s5 + $0x28] sm:$0xff]
  %v3706 = vld [vmem:[%s5 + $0x30] sm:$0xff]
  %v3707 = vld [vmem:[%s5 + $0x38] sm:$0xff]
  %v3708 = vld [vmem:[%s5 + $0x40] sm:$0xff]
  %v3709 = vld [vmem:[%s5 + $0x48] sm:$0xff]
  %v3710 = vld [vmem:[%s5 + $0x50] sm:$0xff]
  %v3711 = vld [vmem:[%s5 + $0x58] sm:$0xff]
  %v3712 = vld [vmem:[%s5 + $0x60] sm:$0xff]
  %v3713 = vld [vmem:[%s5 + $0x68] sm:$0xff]
  %v3714 = vld [vmem:[%s5 + $0x70] sm:$0xff]
  %v3715 = vld [vmem:[%s5 + $0x78] sm:$0xff]
  %3716 = vmatprep.subr.mxu0 0.0
  %v3717 = vand.u32 %v3715, 4294901760
  %3718 = vmatpush1.msra.mxu0 %v3717
  %3719 = vmatprep.subr.mxu0 0.0
  %v3720 = vand.u32 %v3714, 4294901760
  %3721 = vmatpush1.msra.mxu0 %v3720
  %3722 = vmatprep.subr.mxu0 0.0
  %v3723 = vand.u32 %v3713, 4294901760
  %3724 = vmatpush1.msra.mxu0 %v3723
  %3725 = vmatprep.subr.mxu0 0.0
  %v3726 = vand.u32 %v3712, 4294901760
  %3727 = vmatpush1.msra.mxu0 %v3726
  %3728 = vmatprep.subr.mxu0 0.0
  %v3729 = vand.u32 %v3711, 4294901760
  %3730 = vmatpush1.msra.mxu0 %v3729
  %3731 = vmatprep.subr.mxu0 0.0
  %v3732 = vand.u32 %v3710, 4294901760
  %3733 = vmatpush1.msra.mxu0 %v3732
  %3734 = vmatprep.subr.mxu0 0.0
  %v3735 = vand.u32 %v3709, 4294901760
  %3736 = vmatpush1.msra.mxu0 %v3735
  %3737 = vmatprep.subr.mxu0 0.0
  %v3738 = vand.u32 %v3708, 4294901760
  %3739 = vmatpush1.msra.mxu0 %v3738
  %3740 = vmatprep.subr.mxu0 0.0
  %v3741 = vand.u32 %v3707, 4294901760
  %3742 = vmatpush1.msra.mxu0 %v3741
  %3743 = vmatprep.subr.mxu0 0.0
  %v3744 = vand.u32 %v3706, 4294901760
  %3745 = vmatpush1.msra.mxu0 %v3744
  %3746 = vmatprep.subr.mxu0 0.0
  %v3747 = vand.u32 %v3705, 4294901760
  %3748 = vmatpush1.msra.mxu0 %v3747
  %3749 = vmatprep.subr.mxu0 0.0
  %v3750 = vand.u32 %v3704, 4294901760
  %3751 = vmatpush1.msra.mxu0 %v3750
  %3752 = vmatprep.subr.mxu0 0.0
  %v3753 = vand.u32 %v3703, 4294901760
  %3754 = vmatpush1.msra.mxu0 %v3753
  %3755 = vmatprep.subr.mxu0 0.0
  %v3756 = vand.u32 %v3702, 4294901760
  %3757 = vmatpush1.msra.mxu0 %v3756
  %3758 = vmatprep.subr.mxu0 0.0
  %v3759 = vand.u32 %v3701, 4294901760
  %3760 = vmatpush1.msra.mxu0 %v3759
  %3761 = vmatprep.subr.mxu0 0.0
  %v3762 = vand.u32 %v3700, 4294901760
  %3763 = vmatpush1.msra.mxu0 %v3762
  %3764 = vmatprep.subr.mxu0 0.0
  %3765 = vmatpush2.msra.mxu0 0.0
  %3766 = vmatprep.subr.mxu0 0.0
  %3767 = vmatpush2.msra.mxu0 0.0
  %3768 = vmatprep.subr.mxu0 0.0
  %3769 = vmatpush2.msra.mxu0 0.0
  %3770 = vmatprep.subr.mxu0 0.0
  %3771 = vmatpush2.msra.mxu0 0.0
  %3772 = vmatprep.subr.mxu0 0.0
  %3773 = vmatpush2.msra.mxu0 0.0
  %3774 = vmatprep.subr.mxu0 0.0
  %3775 = vmatpush2.msra.mxu0 0.0
  %3776 = vmatprep.subr.mxu0 0.0
  %3777 = vmatpush2.msra.mxu0 0.0
  %3778 = vmatprep.subr.mxu0 0.0
  %3779 = vmatpush2.msra.mxu0 0.0
  %3780 = vmatprep.subr.mxu0 0.0
  %3781 = vmatpush2.msra.mxu0 0.0
  %3782 = vmatprep.subr.mxu0 0.0
  %3783 = vmatpush2.msra.mxu0 0.0
  %3784 = vmatprep.subr.mxu0 0.0
  %3785 = vmatpush2.msra.mxu0 0.0
  %3786 = vmatprep.subr.mxu0 0.0
  %3787 = vmatpush2.msra.mxu0 0.0
  %3788 = vmatprep.subr.mxu0 0.0
  %3789 = vmatpush2.msra.mxu0 0.0
  %3790 = vmatprep.subr.mxu0 0.0
  %3791 = vmatpush2.msra.mxu0 0.0
  %3792 = vmatprep.subr.mxu0 0.0
  %3793 = vmatpush2.msra.mxu0 0.0
  %3794 = vmatprep.subr.mxu0 0.0
  %3795 = vmatpush2.msra.mxu0 0.0
  %3796 = vmatprep.mubr.f32.mxu0 0.0
  %v3797 = vand.u32 %v3691, 4294901760
  %v3798 = vsub.f32 %v3691, %v3797
  %v3799 = vand.u32 %v3798, 4294901760
  %v3800 = vsub.f32 %v3798, %v3799
  %v3801 = vand.u32 %v3800, 4294901760
  %3802 = vmatmul.mubr.f32.gmra.mxu0 %v3801
  %v3803 = vpop.f32.mrf.mxu0
  %v3804 = vadd.f32 0.0, %v3803
  %v3805 = vpop.f32.mrf.mxu0
  %3806 = vmatprep.mubr.f32.mxu0 0.0
  %v3807 = vand.u32 %v3697, 4294901760
  %v3808 = vsub.f32 %v3697, %v3807
  %v3809 = vand.u32 %v3808, 4294901760
  %v3810 = vsub.f32 %v3808, %v3809
  %v3811 = vand.u32 %v3810, 4294901760
  %3812 = vmatmul.mubr.f32.gmra.mxu0 %v3811
  %v3813 = vpop.f32.mrf.mxu0
  %v3814 = vadd.f32 0.0, %v3813
  %v3815 = vpop.f32.mrf.mxu0
  %3816 = vdwg.mxu0
  %3817 = vmatprep.subr.mxu0 0.0
  %v3818 = vand.u32 %v3715, 4294901760
  %v3819 = vsub.f32 %v3715, %v3818
  %v3820 = vand.u32 %v3819, 4294901760
  %v3821 = vsub.f32 %v3819, %v3820
  %v3822 = vand.u32 %v3821, 4294901760
  %3823 = vmatpush1.msra.mxu0 %v3822
  %3824 = vmatprep.subr.mxu0 0.0
  %v3825 = vand.u32 %v3714, 4294901760
  %v3826 = vsub.f32 %v3714, %v3825
  %v3827 = vand.u32 %v3826, 4294901760
  %v3828 = vsub.f32 %v3826, %v3827
  %v3829 = vand.u32 %v3828, 4294901760
  %3830 = vmatpush1.msra.mxu0 %v3829
  %3831 = vmatprep.subr.mxu0 0.0
  %v3832 = vand.u32 %v3713, 4294901760
  %v3833 = vsub.f32 %v3713, %v3832
  %v3834 = vand.u32 %v3833, 4294901760
  %v3835 = vsub.f32 %v3833, %v3834
  %v3836 = vand.u32 %v3835, 4294901760
  %3837 = vmatpush1.msra.mxu0 %v3836
  %3838 = vmatprep.subr.mxu0 0.0
  %v3839 = vand.u32 %v3712, 4294901760
  %v3840 = vsub.f32 %v3712, %v3839
  %v3841 = vand.u32 %v3840, 4294901760
  %v3842 = vsub.f32 %v3840, %v3841
  %v3843 = vand.u32 %v3842, 4294901760
  %3844 = vmatpush1.msra.mxu0 %v3843
  %3845 = vmatprep.subr.mxu0 0.0
  %v3846 = vand.u32 %v3711, 4294901760
  %v3847 = vsub.f32 %v3711, %v3846
  %v3848 = vand.u32 %v3847, 4294901760
  %v3849 = vsub.f32 %v3847, %v3848
  %v3850 = vand.u32 %v3849, 4294901760
  %3851 = vmatpush1.msra.mxu0 %v3850
  %3852 = vmatprep.subr.mxu0 0.0
  %v3853 = vand.u32 %v3710, 4294901760
  %v3854 = vsub.f32 %v3710, %v3853
  %v3855 = vand.u32 %v3854, 4294901760
  %v3856 = vsub.f32 %v3854, %v3855
  %v3857 = vand.u32 %v3856, 4294901760
  %3858 = vmatpush1.msra.mxu0 %v3857
  %3859 = vmatprep.subr.mxu0 0.0
  %v3860 = vand.u32 %v3709, 4294901760
  %v3861 = vsub.f32 %v3709, %v3860
  %v3862 = vand.u32 %v3861, 4294901760
  %v3863 = vsub.f32 %v3861, %v3862
  %v3864 = vand.u32 %v3863, 4294901760
  %3865 = vmatpush1.msra.mxu0 %v3864
  %3866 = vmatprep.subr.mxu0 0.0
  %v3867 = vand.u32 %v3708, 4294901760
  %v3868 = vsub.f32 %v3708, %v3867
  %v3869 = vand.u32 %v3868, 4294901760
  %v3870 = vsub.f32 %v3868, %v3869
  %v3871 = vand.u32 %v3870, 4294901760
  %3872 = vmatpush1.msra.mxu0 %v3871
  %3873 = vmatprep.subr.mxu0 0.0
  %v3874 = vand.u32 %v3707, 4294901760
  %v3875 = vsub.f32 %v3707, %v3874
  %v3876 = vand.u32 %v3875, 4294901760
  %v3877 = vsub.f32 %v3875, %v3876
  %v3878 = vand.u32 %v3877, 4294901760
  %3879 = vmatpush1.msra.mxu0 %v3878
  %3880 = vmatprep.subr.mxu0 0.0
  %v3881 = vand.u32 %v3706, 4294901760
  %v3882 = vsub.f32 %v3706, %v3881
  %v3883 = vand.u32 %v3882, 4294901760
  %v3884 = vsub.f32 %v3882, %v3883
  %v3885 = vand.u32 %v3884, 4294901760
  %3886 = vmatpush1.msra.mxu0 %v3885
  %3887 = vmatprep.subr.mxu0 0.0
  %v3888 = vand.u32 %v3705, 4294901760
  %v3889 = vsub.f32 %v3705, %v3888
  %v3890 = vand.u32 %v3889, 4294901760
  %v3891 = vsub.f32 %v3889, %v3890
  %v3892 = vand.u32 %v3891, 4294901760
  %3893 = vmatpush1.msra.mxu0 %v3892
  %3894 = vmatprep.subr.mxu0 0.0
  %v3895 = vand.u32 %v3704, 4294901760
  %v3896 = vsub.f32 %v3704, %v3895
  %v3897 = vand.u32 %v3896, 4294901760
  %v3898 = vsub.f32 %v3896, %v3897
  %v3899 = vand.u32 %v3898, 4294901760
  %3900 = vmatpush1.msra.mxu0 %v3899
  %3901 = vmatprep.subr.mxu0 0.0
  %v3902 = vand.u32 %v3703, 4294901760
  %v3903 = vsub.f32 %v3703, %v3902
  %v3904 = vand.u32 %v3903, 4294901760
  %v3905 = vsub.f32 %v3903, %v3904
  %v3906 = vand.u32 %v3905, 4294901760
  %3907 = vmatpush1.msra.mxu0 %v3906
  %3908 = vmatprep.subr.mxu0 0.0
  %v3909 = vand.u32 %v3702, 4294901760
  %v3910 = vsub.f32 %v3702, %v3909
  %v3911 = vand.u32 %v3910, 4294901760
  %v3912 = vsub.f32 %v3910, %v3911
  %v3913 = vand.u32 %v3912, 4294901760
  %3914 = vmatpush1.msra.mxu0 %v3913
  %3915 = vmatprep.subr.mxu0 0.0
  %v3916 = vand.u32 %v3701, 4294901760
  %v3917 = vsub.f32 %v3701, %v3916
  %v3918 = vand.u32 %v3917, 4294901760
  %v3919 = vsub.f32 %v3917, %v3918
  %v3920 = vand.u32 %v3919, 4294901760
  %3921 = vmatpush1.msra.mxu0 %v3920
  %3922 = vmatprep.subr.mxu0 0.0
  %v3923 = vand.u32 %v3700, 4294901760
  %v3924 = vsub.f32 %v3700, %v3923
  %v3925 = vand.u32 %v3924, 4294901760
  %v3926 = vsub.f32 %v3924, %v3925
  %v3927 = vand.u32 %v3926, 4294901760
  %3928 = vmatpush1.msra.mxu0 %v3927
  %3929 = vmatprep.subr.mxu0 0.0
  %3930 = vmatpush2.msra.mxu0 0.0
  %3931 = vmatprep.subr.mxu0 0.0
  %3932 = vmatpush2.msra.mxu0 0.0
  %3933 = vmatprep.subr.mxu0 0.0
  %3934 = vmatpush2.msra.mxu0 0.0
  %3935 = vmatprep.subr.mxu0 0.0
  %3936 = vmatpush2.msra.mxu0 0.0
  %3937 = vmatprep.subr.mxu0 0.0
  %3938 = vmatpush2.msra.mxu0 0.0
  %3939 = vmatprep.subr.mxu0 0.0
  %3940 = vmatpush2.msra.mxu0 0.0
  %3941 = vmatprep.subr.mxu0 0.0
  %3942 = vmatpush2.msra.mxu0 0.0
  %3943 = vmatprep.subr.mxu0 0.0
  %3944 = vmatpush2.msra.mxu0 0.0
  %3945 = vmatprep.subr.mxu0 0.0
  %3946 = vmatpush2.msra.mxu0 0.0
  %3947 = vmatprep.subr.mxu0 0.0
  %3948 = vmatpush2.msra.mxu0 0.0
  %3949 = vmatprep.subr.mxu0 0.0
  %3950 = vmatpush2.msra.mxu0 0.0
  %3951 = vmatprep.subr.mxu0 0.0
  %3952 = vmatpush2.msra.mxu0 0.0
  %3953 = vmatprep.subr.mxu0 0.0
  %3954 = vmatpush2.msra.mxu0 0.0
  %3955 = vmatprep.subr.mxu0 0.0
  %3956 = vmatpush2.msra.mxu0 0.0
  %3957 = vmatprep.subr.mxu0 0.0
  %3958 = vmatpush2.msra.mxu0 0.0
  %3959 = vmatprep.subr.mxu0 0.0
  %3960 = vmatpush2.msra.mxu0 0.0
  %3961 = vmatprep.mubr.f32.mxu0 0.0
  %v3962 = vand.u32 %v3691, 4294901760
  %3963 = vmatmul.mubr.f32.gmra.mxu0 %v3962
  %v3964 = vpop.f32.mrf.mxu0
  %v3965 = vadd.f32 %v3804, %v3964
  %v3966 = vpop.f32.mrf.mxu0
  %3967 = vmatprep.mubr.f32.mxu0 0.0
  %v3968 = vand.u32 %v3697, 4294901760
  %3969 = vmatmul.mubr.f32.gmra.mxu0 %v3968
  %v3970 = vpop.f32.mrf.mxu0
  %v3971 = vadd.f32 %v3814, %v3970
  %v3972 = vpop.f32.mrf.mxu0
  %3973 = vdwg.mxu0
  %3974 = vmatprep.subr.mxu0 0.0
  %v3975 = vand.u32 %v3715, 4294901760
  %v3976 = vsub.f32 %v3715, %v3975
  %3977 = vmatpush1.msra.mxu0 %v3976
  %3978 = vmatprep.subr.mxu0 0.0
  %v3979 = vand.u32 %v3714, 4294901760
  %v3980 = vsub.f32 %v3714, %v3979
  %3981 = vmatpush1.msra.mxu0 %v3980
  %3982 = vmatprep.subr.mxu0 0.0
  %v3983 = vand.u32 %v3713, 4294901760
  %v3984 = vsub.f32 %v3713, %v3983
  %3985 = vmatpush1.msra.mxu0 %v3984
  %3986 = vmatprep.subr.mxu0 0.0
  %v3987 = vand.u32 %v3712, 4294901760
  %v3988 = vsub.f32 %v3712, %v3987
  %3989 = vmatpush1.msra.mxu0 %v3988
  %3990 = vmatprep.subr.mxu0 0.0
  %v3991 = vand.u32 %v3711, 4294901760
  %v3992 = vsub.f32 %v3711, %v3991
  %3993 = vmatpush1.msra.mxu0 %v3992
  %3994 = vmatprep.subr.mxu0 0.0
  %v3995 = vand.u32 %v3710, 4294901760
  %v3996 = vsub.f32 %v3710, %v3995
  %3997 = vmatpush1.msra.mxu0 %v3996
  %3998 = vmatprep.subr.mxu0 0.0
  %v3999 = vand.u32 %v3709, 4294901760
  %v4000 = vsub.f32 %v3709, %v3999
  %4001 = vmatpush1.msra.mxu0 %v4000
  %4002 = vmatprep.subr.mxu0 0.0
  %v4003 = vand.u32 %v3708, 4294901760
  %v4004 = vsub.f32 %v3708, %v4003
  %4005 = vmatpush1.msra.mxu0 %v4004
  %4006 = vmatprep.subr.mxu0 0.0
  %v4007 = vand.u32 %v3707, 4294901760
  %v4008 = vsub.f32 %v3707, %v4007
  %4009 = vmatpush1.msra.mxu0 %v4008
  %4010 = vmatprep.subr.mxu0 0.0
  %v4011 = vand.u32 %v3706, 4294901760
  %v4012 = vsub.f32 %v3706, %v4011
  %4013 = vmatpush1.msra.mxu0 %v4012
  %4014 = vmatprep.subr.mxu0 0.0
  %v4015 = vand.u32 %v3705, 4294901760
  %v4016 = vsub.f32 %v3705, %v4015
  %4017 = vmatpush1.msra.mxu0 %v4016
  %4018 = vmatprep.subr.mxu0 0.0
  %v4019 = vand.u32 %v3704, 4294901760
  %v4020 = vsub.f32 %v3704, %v4019
  %4021 = vmatpush1.msra.mxu0 %v4020
  %4022 = vmatprep.subr.mxu0 0.0
  %v4023 = vand.u32 %v3703, 4294901760
  %v4024 = vsub.f32 %v3703, %v4023
  %4025 = vmatpush1.msra.mxu0 %v4024
  %4026 = vmatprep.subr.mxu0 0.0
  %v4027 = vand.u32 %v3702, 4294901760
  %v4028 = vsub.f32 %v3702, %v4027
  %4029 = vmatpush1.msra.mxu0 %v4028
  %4030 = vmatprep.subr.mxu0 0.0
  %v4031 = vand.u32 %v3701, 4294901760
  %v4032 = vsub.f32 %v3701, %v4031
  %4033 = vmatpush1.msra.mxu0 %v4032
  %4034 = vmatprep.subr.mxu0 0.0
  %v4035 = vand.u32 %v3700, 4294901760
  %v4036 = vsub.f32 %v3700, %v4035
  %4037 = vmatpush1.msra.mxu0 %v4036
  %4038 = vmatprep.subr.mxu0 0.0
  %4039 = vmatpush2.msra.mxu0 0.0
  %4040 = vmatprep.subr.mxu0 0.0
  %4041 = vmatpush2.msra.mxu0 0.0
  %4042 = vmatprep.subr.mxu0 0.0
  %4043 = vmatpush2.msra.mxu0 0.0
  %4044 = vmatprep.subr.mxu0 0.0
  %4045 = vmatpush2.msra.mxu0 0.0
  %4046 = vmatprep.subr.mxu0 0.0
  %4047 = vmatpush2.msra.mxu0 0.0
  %4048 = vmatprep.subr.mxu0 0.0
  %4049 = vmatpush2.msra.mxu0 0.0
  %4050 = vmatprep.subr.mxu0 0.0
  %4051 = vmatpush2.msra.mxu0 0.0
  %4052 = vmatprep.subr.mxu0 0.0
  %4053 = vmatpush2.msra.mxu0 0.0
  %4054 = vmatprep.subr.mxu0 0.0
  %4055 = vmatpush2.msra.mxu0 0.0
  %4056 = vmatprep.subr.mxu0 0.0
  %4057 = vmatpush2.msra.mxu0 0.0
  %4058 = vmatprep.subr.mxu0 0.0
  %4059 = vmatpush2.msra.mxu0 0.0
  %4060 = vmatprep.subr.mxu0 0.0
  %4061 = vmatpush2.msra.mxu0 0.0
  %4062 = vmatprep.subr.mxu0 0.0
  %4063 = vmatpush2.msra.mxu0 0.0
  %4064 = vmatprep.subr.mxu0 0.0
  %4065 = vmatpush2.msra.mxu0 0.0
  %4066 = vmatprep.subr.mxu0 0.0
  %4067 = vmatpush2.msra.mxu0 0.0
  %4068 = vmatprep.subr.mxu0 0.0
  %4069 = vmatpush2.msra.mxu0 0.0
  %4070 = vmatprep.mubr.f32.mxu0 0.0
  %v4071 = vand.u32 %v3691, 4294901760
  %v4072 = vsub.f32 %v3691, %v4071
  %4073 = vmatmul.mubr.f32.gmra.mxu0 %v4072
  %v4074 = vpop.f32.mrf.mxu0
  %v4075 = vadd.f32 %v3965, %v4074
  %v4076 = vpop.f32.mrf.mxu0
  %4077 = vmatprep.mubr.f32.mxu0 0.0
  %v4078 = vand.u32 %v3697, 4294901760
  %v4079 = vsub.f32 %v3697, %v4078
  %4080 = vmatmul.mubr.f32.gmra.mxu0 %v4079
  %v4081 = vpop.f32.mrf.mxu0
  %v4082 = vadd.f32 %v3971, %v4081
  %v4083 = vpop.f32.mrf.mxu0
  %4084 = vdwg.mxu0
  %4085 = vmatprep.subr.mxu0 0.0
  %v4086 = vand.u32 %v3715, 4294901760
  %4087 = vmatpush1.msra.mxu0 %v4086
  %4088 = vmatprep.subr.mxu0 0.0
  %v4089 = vand.u32 %v3714, 4294901760
  %4090 = vmatpush1.msra.mxu0 %v4089
  %4091 = vmatprep.subr.mxu0 0.0
  %v4092 = vand.u32 %v3713, 4294901760
  %4093 = vmatpush1.msra.mxu0 %v4092
  %4094 = vmatprep.subr.mxu0 0.0
  %v4095 = vand.u32 %v3712, 4294901760
  %4096 = vmatpush1.msra.mxu0 %v4095
  %4097 = vmatprep.subr.mxu0 0.0
  %v4098 = vand.u32 %v3711, 4294901760
  %4099 = vmatpush1.msra.mxu0 %v4098
  %4100 = vmatprep.subr.mxu0 0.0
  %v4101 = vand.u32 %v3710, 4294901760
  %4102 = vmatpush1.msra.mxu0 %v4101
  %4103 = vmatprep.subr.mxu0 0.0
  %v4104 = vand.u32 %v3709, 4294901760
  %4105 = vmatpush1.msra.mxu0 %v4104
  %4106 = vmatprep.subr.mxu0 0.0
  %v4107 = vand.u32 %v3708, 4294901760
  %4108 = vmatpush1.msra.mxu0 %v4107
  %4109 = vmatprep.subr.mxu0 0.0
  %v4110 = vand.u32 %v3707, 4294901760
  %4111 = vmatpush1.msra.mxu0 %v4110
  %4112 = vmatprep.subr.mxu0 0.0
  %v4113 = vand.u32 %v3706, 4294901760
  %4114 = vmatpush1.msra.mxu0 %v4113
  %4115 = vmatprep.subr.mxu0 0.0
  %v4116 = vand.u32 %v3705, 4294901760
  %4117 = vmatpush1.msra.mxu0 %v4116
  %4118 = vmatprep.subr.mxu0 0.0
  %v4119 = vand.u32 %v3704, 4294901760
  %4120 = vmatpush1.msra.mxu0 %v4119
  %4121 = vmatprep.subr.mxu0 0.0
  %v4122 = vand.u32 %v3703, 4294901760
  %4123 = vmatpush1.msra.mxu0 %v4122
  %4124 = vmatprep.subr.mxu0 0.0
  %v4125 = vand.u32 %v3702, 4294901760
  %4126 = vmatpush1.msra.mxu0 %v4125
  %4127 = vmatprep.subr.mxu0 0.0
  %v4128 = vand.u32 %v3701, 4294901760
  %4129 = vmatpush1.msra.mxu0 %v4128
  %4130 = vmatprep.subr.mxu0 0.0
  %v4131 = vand.u32 %v3700, 4294901760
  %4132 = vmatpush1.msra.mxu0 %v4131
  %4133 = vmatprep.subr.mxu0 0.0
  %4134 = vmatpush2.msra.mxu0 0.0
  %4135 = vmatprep.subr.mxu0 0.0
  %4136 = vmatpush2.msra.mxu0 0.0
  %4137 = vmatprep.subr.mxu0 0.0
  %4138 = vmatpush2.msra.mxu0 0.0
  %4139 = vmatprep.subr.mxu0 0.0
  %4140 = vmatpush2.msra.mxu0 0.0
  %4141 = vmatprep.subr.mxu0 0.0
  %4142 = vmatpush2.msra.mxu0 0.0
  %4143 = vmatprep.subr.mxu0 0.0
  %4144 = vmatpush2.msra.mxu0 0.0
  %4145 = vmatprep.subr.mxu0 0.0
  %4146 = vmatpush2.msra.mxu0 0.0
  %4147 = vmatprep.subr.mxu0 0.0
  %4148 = vmatpush2.msra.mxu0 0.0
  %4149 = vmatprep.subr.mxu0 0.0
  %4150 = vmatpush2.msra.mxu0 0.0
  %4151 = vmatprep.subr.mxu0 0.0
  %4152 = vmatpush2.msra.mxu0 0.0
  %4153 = vmatprep.subr.mxu0 0.0
  %4154 = vmatpush2.msra.mxu0 0.0
  %4155 = vmatprep.subr.mxu0 0.0
  %4156 = vmatpush2.msra.mxu0 0.0
  %4157 = vmatprep.subr.mxu0 0.0
  %4158 = vmatpush2.msra.mxu0 0.0
  %4159 = vmatprep.subr.mxu0 0.0
  %4160 = vmatpush2.msra.mxu0 0.0
  %4161 = vmatprep.subr.mxu0 0.0
  %4162 = vmatpush2.msra.mxu0 0.0
  %4163 = vmatprep.subr.mxu0 0.0
  %4164 = vmatpush2.msra.mxu0 0.0
  %4165 = vmatprep.mubr.f32.mxu0 0.0
  %v4166 = vand.u32 %v3691, 4294901760
  %v4167 = vsub.f32 %v3691, %v4166
  %v4168 = vand.u32 %v4167, 4294901760
  %4169 = vmatmul.mubr.f32.gmra.mxu0 %v4168
  %v4170 = vpop.f32.mrf.mxu0
  %v4171 = vadd.f32 %v4075, %v4170
  %v4172 = vpop.f32.mrf.mxu0
  %4173 = vmatprep.mubr.f32.mxu0 0.0
  %v4174 = vand.u32 %v3697, 4294901760
  %v4175 = vsub.f32 %v3697, %v4174
  %v4176 = vand.u32 %v4175, 4294901760
  %4177 = vmatmul.mubr.f32.gmra.mxu0 %v4176
  %v4178 = vpop.f32.mrf.mxu0
  %v4179 = vadd.f32 %v4082, %v4178
  %v4180 = vpop.f32.mrf.mxu0
  %4181 = vdwg.mxu0
  %4182 = vmatprep.subr.mxu0 0.0
  %v4183 = vand.u32 %v3715, 4294901760
  %v4184 = vsub.f32 %v3715, %v4183
  %v4185 = vand.u32 %v4184, 4294901760
  %4186 = vmatpush1.msra.mxu0 %v4185
  %4187 = vmatprep.subr.mxu0 0.0
  %v4188 = vand.u32 %v3714, 4294901760
  %v4189 = vsub.f32 %v3714, %v4188
  %v4190 = vand.u32 %v4189, 4294901760
  %4191 = vmatpush1.msra.mxu0 %v4190
  %4192 = vmatprep.subr.mxu0 0.0
  %v4193 = vand.u32 %v3713, 4294901760
  %v4194 = vsub.f32 %v3713, %v4193
  %v4195 = vand.u32 %v4194, 4294901760
  %4196 = vmatpush1.msra.mxu0 %v4195
  %4197 = vmatprep.subr.mxu0 0.0
  %v4198 = vand.u32 %v3712, 4294901760
  %v4199 = vsub.f32 %v3712, %v4198
  %v4200 = vand.u32 %v4199, 4294901760
  %4201 = vmatpush1.msra.mxu0 %v4200
  %4202 = vmatprep.subr.mxu0 0.0
  %v4203 = vand.u32 %v3711, 4294901760
  %v4204 = vsub.f32 %v3711, %v4203
  %v4205 = vand.u32 %v4204, 4294901760
  %4206 = vmatpush1.msra.mxu0 %v4205
  %4207 = vmatprep.subr.mxu0 0.0
  %v4208 = vand.u32 %v3710, 4294901760
  %v4209 = vsub.f32 %v3710, %v4208
  %v4210 = vand.u32 %v4209, 4294901760
  %4211 = vmatpush1.msra.mxu0 %v4210
  %4212 = vmatprep.subr.mxu0 0.0
  %v4213 = vand.u32 %v3709, 4294901760
  %v4214 = vsub.f32 %v3709, %v4213
  %v4215 = vand.u32 %v4214, 4294901760
  %4216 = vmatpush1.msra.mxu0 %v4215
  %4217 = vmatprep.subr.mxu0 0.0
  %v4218 = vand.u32 %v3708, 4294901760
  %v4219 = vsub.f32 %v3708, %v4218
  %v4220 = vand.u32 %v4219, 4294901760
  %4221 = vmatpush1.msra.mxu0 %v4220
  %4222 = vmatprep.subr.mxu0 0.0
  %v4223 = vand.u32 %v3707, 4294901760
  %v4224 = vsub.f32 %v3707, %v4223
  %v4225 = vand.u32 %v4224, 4294901760
  %4226 = vmatpush1.msra.mxu0 %v4225
  %4227 = vmatprep.subr.mxu0 0.0
  %v4228 = vand.u32 %v3706, 4294901760
  %v4229 = vsub.f32 %v3706, %v4228
  %v4230 = vand.u32 %v4229, 4294901760
  %4231 = vmatpush1.msra.mxu0 %v4230
  %4232 = vmatprep.subr.mxu0 0.0
  %v4233 = vand.u32 %v3705, 4294901760
  %v4234 = vsub.f32 %v3705, %v4233
  %v4235 = vand.u32 %v4234, 4294901760
  %4236 = vmatpush1.msra.mxu0 %v4235
  %4237 = vmatprep.subr.mxu0 0.0
  %v4238 = vand.u32 %v3704, 4294901760
  %v4239 = vsub.f32 %v3704, %v4238
  %v4240 = vand.u32 %v4239, 4294901760
  %4241 = vmatpush1.msra.mxu0 %v4240
  %4242 = vmatprep.subr.mxu0 0.0
  %v4243 = vand.u32 %v3703, 4294901760
  %v4244 = vsub.f32 %v3703, %v4243
  %v4245 = vand.u32 %v4244, 4294901760
  %4246 = vmatpush1.msra.mxu0 %v4245
  %4247 = vmatprep.subr.mxu0 0.0
  %v4248 = vand.u32 %v3702, 4294901760
  %v4249 = vsub.f32 %v3702, %v4248
  %v4250 = vand.u32 %v4249, 4294901760
  %4251 = vmatpush1.msra.mxu0 %v4250
  %4252 = vmatprep.subr.mxu0 0.0
  %v4253 = vand.u32 %v3701, 4294901760
  %v4254 = vsub.f32 %v3701, %v4253
  %v4255 = vand.u32 %v4254, 4294901760
  %4256 = vmatpush1.msra.mxu0 %v4255
  %4257 = vmatprep.subr.mxu0 0.0
  %v4258 = vand.u32 %v3700, 4294901760
  %v4259 = vsub.f32 %v3700, %v4258
  %v4260 = vand.u32 %v4259, 4294901760
  %4261 = vmatpush1.msra.mxu0 %v4260
  %4262 = vmatprep.subr.mxu0 0.0
  %4263 = vmatpush2.msra.mxu0 0.0
  %4264 = vmatprep.subr.mxu0 0.0
  %4265 = vmatpush2.msra.mxu0 0.0
  %4266 = vmatprep.subr.mxu0 0.0
  %4267 = vmatpush2.msra.mxu0 0.0
  %4268 = vmatprep.subr.mxu0 0.0
  %4269 = vmatpush2.msra.mxu0 0.0
  %4270 = vmatprep.subr.mxu0 0.0
  %4271 = vmatpush2.msra.mxu0 0.0
  %4272 = vmatprep.subr.mxu0 0.0
  %4273 = vmatpush2.msra.mxu0 0.0
  %4274 = vmatprep.subr.mxu0 0.0
  %4275 = vmatpush2.msra.mxu0 0.0
  %4276 = vmatprep.subr.mxu0 0.0
  %4277 = vmatpush2.msra.mxu0 0.0
  %4278 = vmatprep.subr.mxu0 0.0
  %4279 = vmatpush2.msra.mxu0 0.0
  %4280 = vmatprep.subr.mxu0 0.0
  %4281 = vmatpush2.msra.mxu0 0.0
  %4282 = vmatprep.subr.mxu0 0.0
  %4283 = vmatpush2.msra.mxu0 0.0
  %4284 = vmatprep.subr.mxu0 0.0
  %4285 = vmatpush2.msra.mxu0 0.0
  %4286 = vmatprep.subr.mxu0 0.0
  %4287 = vmatpush2.msra.mxu0 0.0
  %4288 = vmatprep.subr.mxu0 0.0
  %4289 = vmatpush2.msra.mxu0 0.0
  %4290 = vmatprep.subr.mxu0 0.0
  %4291 = vmatpush2.msra.mxu0 0.0
  %4292 = vmatprep.subr.mxu0 0.0
  %4293 = vmatpush2.msra.mxu0 0.0
  %4294 = vmatprep.mubr.f32.mxu0 0.0
  %v4295 = vand.u32 %v3691, 4294901760
  %4296 = vmatmul.mubr.f32.gmra.mxu0 %v4295
  %v4297 = vpop.f32.mrf.mxu0
  %v4298 = vadd.f32 %v4171, %v4297
  %v4299 = vpop.f32.mrf.mxu0
  %4300 = vmatprep.mubr.f32.mxu0 0.0
  %v4301 = vand.u32 %v3697, 4294901760
  %4302 = vmatmul.mubr.f32.gmra.mxu0 %v4301
  %v4303 = vpop.f32.mrf.mxu0
  %v4304 = vadd.f32 %v4179, %v4303
  %v4305 = vpop.f32.mrf.mxu0
  %4306 = vdwg.mxu0
  %4307 = vmatprep.subr.mxu0 0.0
  %v4308 = vand.u32 %v3715, 4294901760
  %4309 = vmatpush1.msra.mxu0 %v4308
  %4310 = vmatprep.subr.mxu0 0.0
  %v4311 = vand.u32 %v3714, 4294901760
  %4312 = vmatpush1.msra.mxu0 %v4311
  %4313 = vmatprep.subr.mxu0 0.0
  %v4314 = vand.u32 %v3713, 4294901760
  %4315 = vmatpush1.msra.mxu0 %v4314
  %4316 = vmatprep.subr.mxu0 0.0
  %v4317 = vand.u32 %v3712, 4294901760
  %4318 = vmatpush1.msra.mxu0 %v4317
  %4319 = vmatprep.subr.mxu0 0.0
  %v4320 = vand.u32 %v3711, 4294901760
  %4321 = vmatpush1.msra.mxu0 %v4320
  %4322 = vmatprep.subr.mxu0 0.0
  %v4323 = vand.u32 %v3710, 4294901760
  %4324 = vmatpush1.msra.mxu0 %v4323
  %4325 = vmatprep.subr.mxu0 0.0
  %v4326 = vand.u32 %v3709, 4294901760
  %4327 = vmatpush1.msra.mxu0 %v4326
  %4328 = vmatprep.subr.mxu0 0.0
  %v4329 = vand.u32 %v3708, 4294901760
  %4330 = vmatpush1.msra.mxu0 %v4329
  %4331 = vmatprep.subr.mxu0 0.0
  %v4332 = vand.u32 %v3707, 4294901760
  %4333 = vmatpush1.msra.mxu0 %v4332
  %4334 = vmatprep.subr.mxu0 0.0
  %v4335 = vand.u32 %v3706, 4294901760
  %4336 = vmatpush1.msra.mxu0 %v4335
  %4337 = vmatprep.subr.mxu0 0.0
  %v4338 = vand.u32 %v3705, 4294901760
  %4339 = vmatpush1.msra.mxu0 %v4338
  %4340 = vmatprep.subr.mxu0 0.0
  %v4341 = vand.u32 %v3704, 4294901760
  %4342 = vmatpush1.msra.mxu0 %v4341
  %4343 = vmatprep.subr.mxu0 0.0
  %v4344 = vand.u32 %v3703, 4294901760
  %4345 = vmatpush1.msra.mxu0 %v4344
  %4346 = vmatprep.subr.mxu0 0.0
  %v4347 = vand.u32 %v3702, 4294901760
  %4348 = vmatpush1.msra.mxu0 %v4347
  %4349 = vmatprep.subr.mxu0 0.0
  %v4350 = vand.u32 %v3701, 4294901760
  %4351 = vmatpush1.msra.mxu0 %v4350
  %4352 = vmatprep.subr.mxu0 0.0
  %v4353 = vand.u32 %v3700, 4294901760
  %4354 = vmatpush1.msra.mxu0 %v4353
  %4355 = vmatprep.subr.mxu0 0.0
  %4356 = vmatpush2.msra.mxu0 0.0
  %4357 = vmatprep.subr.mxu0 0.0
  %4358 = vmatpush2.msra.mxu0 0.0
  %4359 = vmatprep.subr.mxu0 0.0
  %4360 = vmatpush2.msra.mxu0 0.0
  %4361 = vmatprep.subr.mxu0 0.0
  %4362 = vmatpush2.msra.mxu0 0.0
  %4363 = vmatprep.subr.mxu0 0.0
  %4364 = vmatpush2.msra.mxu0 0.0
  %4365 = vmatprep.subr.mxu0 0.0
  %4366 = vmatpush2.msra.mxu0 0.0
  %4367 = vmatprep.subr.mxu0 0.0
  %4368 = vmatpush2.msra.mxu0 0.0
  %4369 = vmatprep.subr.mxu0 0.0
  %4370 = vmatpush2.msra.mxu0 0.0
  %4371 = vmatprep.subr.mxu0 0.0
  %4372 = vmatpush2.msra.mxu0 0.0
  %4373 = vmatprep.subr.mxu0 0.0
  %4374 = vmatpush2.msra.mxu0 0.0
  %4375 = vmatprep.subr.mxu0 0.0
  %4376 = vmatpush2.msra.mxu0 0.0
  %4377 = vmatprep.subr.mxu0 0.0
  %4378 = vmatpush2.msra.mxu0 0.0
  %4379 = vmatprep.subr.mxu0 0.0
  %4380 = vmatpush2.msra.mxu0 0.0
  %4381 = vmatprep.subr.mxu0 0.0
  %4382 = vmatpush2.msra.mxu0 0.0
  %4383 = vmatprep.subr.mxu0 0.0
  %4384 = vmatpush2.msra.mxu0 0.0
  %4385 = vmatprep.subr.mxu0 0.0
  %4386 = vmatpush2.msra.mxu0 0.0
  %4387 = vmatprep.mubr.f32.mxu0 0.0
  %v4388 = vand.u32 %v3691, 4294901760
  %4389 = vmatmul.mubr.f32.gmra.mxu0 %v4388
  %v4390 = vpop.f32.mrf.mxu0
  %v4391 = vadd.f32 %v4298, %v4390
  %v4392 = vpop.f32.mrf.mxu0
  %4393 = vmatprep.mubr.f32.mxu0 0.0
  %v4394 = vand.u32 %v3697, 4294901760
  %4395 = vmatmul.mubr.f32.gmra.mxu0 %v4394
  %v4396 = vpop.f32.mrf.mxu0
  %v4397 = vadd.f32 %v4304, %v4396
  %v4398 = vpop.f32.mrf.mxu0
  %4399 = vdwg.mxu0
  %v4400 = vtanh.pop %v4391
  %v4401 = vtanh.pop %v4397
  %4402 = vmatprep.subr.mxu0 0.0
  %4403 = vmatpush1.msra.mxu0 0.0
  %4404 = vmatprep.subr.mxu0 0.0
  %4405 = vmatpush1.msra.mxu0 0.0
  %4406 = vmatprep.subr.mxu0 0.0
  %4407 = vmatpush1.msra.mxu0 0.0
  %4408 = vmatprep.subr.mxu0 0.0
  %4409 = vmatpush1.msra.mxu0 0.0
  %4410 = vmatprep.subr.mxu0 0.0
  %4411 = vmatpush1.msra.mxu0 0.0
  %4412 = vmatprep.subr.mxu0 0.0
  %4413 = vmatpush1.msra.mxu0 0.0
  %4414 = vmatprep.subr.mxu0 0.0
  %4415 = vmatpush1.msra.mxu0 0.0
  %4416 = vmatprep.subr.mxu0 0.0
  %4417 = vmatpush1.msra.mxu0 0.0
  %4418 = vmatprep.subr.mxu0 0.0
  %4419 = vmatpush1.msra.mxu0 0.0
  %4420 = vmatprep.subr.mxu0 0.0
  %4421 = vmatpush1.msra.mxu0 0.0
  %4422 = vmatprep.subr.mxu0 0.0
  %4423 = vmatpush1.msra.mxu0 0.0
  %4424 = vmatprep.subr.mxu0 0.0
  %4425 = vmatpush1.msra.mxu0 0.0
  %4426 = vmatprep.subr.mxu0 0.0
  %4427 = vmatpush1.msra.mxu0 0.0
  %4428 = vmatprep.subr.mxu0 0.0
  %4429 = vmatpush1.msra.mxu0 0.0
  %4430 = vmatprep.subr.mxu0 0.0
  %v4431 = vand.u32 %v4401, 4294901760
  %4432 = vmatpush1.msra.mxu0 %v4431
  %4433 = vmatprep.subr.mxu0 0.0
  %v4434 = vand.u32 %v4400, 4294901760
  %4435 = vmatpush1.msra.mxu0 %v4434
  %4436 = vmatprep.subr.mxu0 0.0
  %4437 = vmatpush2.msra.mxu0 0.0
  %4438 = vmatprep.subr.mxu0 0.0
  %4439 = vmatpush2.msra.mxu0 0.0
  %4440 = vmatprep.subr.mxu0 0.0
  %4441 = vmatpush2.msra.mxu0 0.0
  %4442 = vmatprep.subr.mxu0 0.0
  %4443 = vmatpush2.msra.mxu0 0.0
  %4444 = vmatprep.subr.mxu0 0.0
  %4445 = vmatpush2.msra.mxu0 0.0
  %4446 = vmatprep.subr.mxu0 0.0
  %4447 = vmatpush2.msra.mxu0 0.0
  %4448 = vmatprep.subr.mxu0 0.0
  %4449 = vmatpush2.msra.mxu0 0.0
  %4450 = vmatprep.subr.mxu0 0.0
  %4451 = vmatpush2.msra.mxu0 0.0
  %4452 = vmatprep.subr.mxu0 0.0
  %4453 = vmatpush2.msra.mxu0 0.0
  %4454 = vmatprep.subr.mxu0 0.0
  %4455 = vmatpush2.msra.mxu0 0.0
  %4456 = vmatprep.subr.mxu0 0.0
  %4457 = vmatpush2.msra.mxu0 0.0
  %4458 = vmatprep.subr.mxu0 0.0
  %4459 = vmatpush2.msra.mxu0 0.0
  %4460 = vmatprep.subr.mxu0 0.0
  %4461 = vmatpush2.msra.mxu0 0.0
  %4462 = vmatprep.subr.mxu0 0.0
  %4463 = vmatpush2.msra.mxu0 0.0
  %4464 = vmatprep.subr.mxu0 0.0
  %4465 = vmatpush2.msra.mxu0 0.0
  %4466 = vmatprep.subr.mxu0 0.0
  %4467 = vmatpush2.msra.mxu0 0.0
  %4468 = vmatprep.mubr.f32.mxu0 0.0
  %v4469 = vand.u32 %v785, 4294901760
  %v4470 = vsub.f32 %v785, %v4469
  %v4471 = vand.u32 %v4470, 4294901760
  %v4472 = vsub.f32 %v4470, %v4471
  %v4473 = vand.u32 %v4472, 4294901760
  %4474 = vmatmul.mubr.f32.gmra.mxu0 %v4473
  %v4475 = vpop.f32.mrf.mxu0
  %v4476 = vadd.f32 0.0, %v4475
  %v4477 = vpop.f32.mrf.mxu0
  %4478 = vmatprep.mubr.f32.mxu0 0.0
  %v4479 = vand.u32 %v788, 4294901760
  %v4480 = vsub.f32 %v788, %v4479
  %v4481 = vand.u32 %v4480, 4294901760
  %v4482 = vsub.f32 %v4480, %v4481
  %v4483 = vand.u32 %v4482, 4294901760
  %4484 = vmatmul.mubr.f32.gmra.mxu0 %v4483
  %v4485 = vpop.f32.mrf.mxu0
  %v4486 = vadd.f32 0.0, %v4485
  %v4487 = vpop.f32.mrf.mxu0
  %4488 = vdwg.mxu0
  %4489 = vmatprep.subr.mxu0 0.0
  %4490 = vmatpush1.msra.mxu0 0.0
  %4491 = vmatprep.subr.mxu0 0.0
  %4492 = vmatpush1.msra.mxu0 0.0
  %4493 = vmatprep.subr.mxu0 0.0
  %4494 = vmatpush1.msra.mxu0 0.0
  %4495 = vmatprep.subr.mxu0 0.0
  %4496 = vmatpush1.msra.mxu0 0.0
  %4497 = vmatprep.subr.mxu0 0.0
  %4498 = vmatpush1.msra.mxu0 0.0
  %4499 = vmatprep.subr.mxu0 0.0
  %4500 = vmatpush1.msra.mxu0 0.0
  %4501 = vmatprep.subr.mxu0 0.0
  %4502 = vmatpush1.msra.mxu0 0.0
  %4503 = vmatprep.subr.mxu0 0.0
  %4504 = vmatpush1.msra.mxu0 0.0
  %4505 = vmatprep.subr.mxu0 0.0
  %4506 = vmatpush1.msra.mxu0 0.0
  %4507 = vmatprep.subr.mxu0 0.0
  %4508 = vmatpush1.msra.mxu0 0.0
  %4509 = vmatprep.subr.mxu0 0.0
  %4510 = vmatpush1.msra.mxu0 0.0
  %4511 = vmatprep.subr.mxu0 0.0
  %4512 = vmatpush1.msra.mxu0 0.0
  %4513 = vmatprep.subr.mxu0 0.0
  %4514 = vmatpush1.msra.mxu0 0.0
  %4515 = vmatprep.subr.mxu0 0.0
  %4516 = vmatpush1.msra.mxu0 0.0
  %4517 = vmatprep.subr.mxu0 0.0
  %v4518 = vand.u32 %v4401, 4294901760
  %v4519 = vsub.f32 %v4401, %v4518
  %v4520 = vand.u32 %v4519, 4294901760
  %v4521 = vsub.f32 %v4519, %v4520
  %v4522 = vand.u32 %v4521, 4294901760
  %4523 = vmatpush1.msra.mxu0 %v4522
  %4524 = vmatprep.subr.mxu0 0.0
  %v4525 = vand.u32 %v4400, 4294901760
  %v4526 = vsub.f32 %v4400, %v4525
  %v4527 = vand.u32 %v4526, 4294901760
  %v4528 = vsub.f32 %v4526, %v4527
  %v4529 = vand.u32 %v4528, 4294901760
  %4530 = vmatpush1.msra.mxu0 %v4529
  %4531 = vmatprep.subr.mxu0 0.0
  %4532 = vmatpush2.msra.mxu0 0.0
  %4533 = vmatprep.subr.mxu0 0.0
  %4534 = vmatpush2.msra.mxu0 0.0
  %4535 = vmatprep.subr.mxu0 0.0
  %4536 = vmatpush2.msra.mxu0 0.0
  %4537 = vmatprep.subr.mxu0 0.0
  %4538 = vmatpush2.msra.mxu0 0.0
  %4539 = vmatprep.subr.mxu0 0.0
  %4540 = vmatpush2.msra.mxu0 0.0
  %4541 = vmatprep.subr.mxu0 0.0
  %4542 = vmatpush2.msra.mxu0 0.0
  %4543 = vmatprep.subr.mxu0 0.0
  %4544 = vmatpush2.msra.mxu0 0.0
  %4545 = vmatprep.subr.mxu0 0.0
  %4546 = vmatpush2.msra.mxu0 0.0
  %4547 = vmatprep.subr.mxu0 0.0
  %4548 = vmatpush2.msra.mxu0 0.0
  %4549 = vmatprep.subr.mxu0 0.0
  %4550 = vmatpush2.msra.mxu0 0.0
  %4551 = vmatprep.subr.mxu0 0.0
  %4552 = vmatpush2.msra.mxu0 0.0
  %4553 = vmatprep.subr.mxu0 0.0
  %4554 = vmatpush2.msra.mxu0 0.0
  %4555 = vmatprep.subr.mxu0 0.0
  %4556 = vmatpush2.msra.mxu0 0.0
  %4557 = vmatprep.subr.mxu0 0.0
  %4558 = vmatpush2.msra.mxu0 0.0
  %4559 = vmatprep.subr.mxu0 0.0
  %4560 = vmatpush2.msra.mxu0 0.0
  %4561 = vmatprep.subr.mxu0 0.0
  %4562 = vmatpush2.msra.mxu0 0.0
  %4563 = vmatprep.mubr.f32.mxu0 0.0
  %v4564 = vand.u32 %v785, 4294901760
  %4565 = vmatmul.mubr.f32.gmra.mxu0 %v4564
  %v4566 = vpop.f32.mrf.mxu0
  %v4567 = vadd.f32 %v4476, %v4566
  %v4568 = vpop.f32.mrf.mxu0
  %4569 = vmatprep.mubr.f32.mxu0 0.0
  %v4570 = vand.u32 %v788, 4294901760
  %4571 = vmatmul.mubr.f32.gmra.mxu0 %v4570
  %v4572 = vpop.f32.mrf.mxu0
  %v4573 = vadd.f32 %v4486, %v4572
  %v4574 = vpop.f32.mrf.mxu0
  %4575 = vdwg.mxu0
  %4576 = vmatprep.subr.mxu0 0.0
  %4577 = vmatpush1.msra.mxu0 0.0
  %4578 = vmatprep.subr.mxu0 0.0
  %4579 = vmatpush1.msra.mxu0 0.0
  %4580 = vmatprep.subr.mxu0 0.0
  %4581 = vmatpush1.msra.mxu0 0.0
  %4582 = vmatprep.subr.mxu0 0.0
  %4583 = vmatpush1.msra.mxu0 0.0
  %4584 = vmatprep.subr.mxu0 0.0
  %4585 = vmatpush1.msra.mxu0 0.0
  %4586 = vmatprep.subr.mxu0 0.0
  %4587 = vmatpush1.msra.mxu0 0.0
  %4588 = vmatprep.subr.mxu0 0.0
  %4589 = vmatpush1.msra.mxu0 0.0
  %4590 = vmatprep.subr.mxu0 0.0
  %4591 = vmatpush1.msra.mxu0 0.0
  %4592 = vmatprep.subr.mxu0 0.0
  %4593 = vmatpush1.msra.mxu0 0.0
  %4594 = vmatprep.subr.mxu0 0.0
  %4595 = vmatpush1.msra.mxu0 0.0
  %4596 = vmatprep.subr.mxu0 0.0
  %4597 = vmatpush1.msra.mxu0 0.0
  %4598 = vmatprep.subr.mxu0 0.0
  %4599 = vmatpush1.msra.mxu0 0.0
  %4600 = vmatprep.subr.mxu0 0.0
  %4601 = vmatpush1.msra.mxu0 0.0
  %4602 = vmatprep.subr.mxu0 0.0
  %4603 = vmatpush1.msra.mxu0 0.0
  %4604 = vmatprep.subr.mxu0 0.0
  %v4605 = vand.u32 %v4401, 4294901760
  %v4606 = vsub.f32 %v4401, %v4605
  %4607 = vmatpush1.msra.mxu0 %v4606
  %4608 = vmatprep.subr.mxu0 0.0
  %v4609 = vand.u32 %v4400, 4294901760
  %v4610 = vsub.f32 %v4400, %v4609
  %4611 = vmatpush1.msra.mxu0 %v4610
  %4612 = vmatprep.subr.mxu0 0.0
  %4613 = vmatpush2.msra.mxu0 0.0
  %4614 = vmatprep.subr.mxu0 0.0
  %4615 = vmatpush2.msra.mxu0 0.0
  %4616 = vmatprep.subr.mxu0 0.0
  %4617 = vmatpush2.msra.mxu0 0.0
  %4618 = vmatprep.subr.mxu0 0.0
  %4619 = vmatpush2.msra.mxu0 0.0
  %4620 = vmatprep.subr.mxu0 0.0
  %4621 = vmatpush2.msra.mxu0 0.0
  %4622 = vmatprep.subr.mxu0 0.0
  %4623 = vmatpush2.msra.mxu0 0.0
  %4624 = vmatprep.subr.mxu0 0.0
  %4625 = vmatpush2.msra.mxu0 0.0
  %4626 = vmatprep.subr.mxu0 0.0
  %4627 = vmatpush2.msra.mxu0 0.0
  %4628 = vmatprep.subr.mxu0 0.0
  %4629 = vmatpush2.msra.mxu0 0.0
  %4630 = vmatprep.subr.mxu0 0.0
  %4631 = vmatpush2.msra.mxu0 0.0
  %4632 = vmatprep.subr.mxu0 0.0
  %4633 = vmatpush2.msra.mxu0 0.0
  %4634 = vmatprep.subr.mxu0 0.0
  %4635 = vmatpush2.msra.mxu0 0.0
  %4636 = vmatprep.subr.mxu0 0.0
  %4637 = vmatpush2.msra.mxu0 0.0
  %4638 = vmatprep.subr.mxu0 0.0
  %4639 = vmatpush2.msra.mxu0 0.0
  %4640 = vmatprep.subr.mxu0 0.0
  %4641 = vmatpush2.msra.mxu0 0.0
  %4642 = vmatprep.subr.mxu0 0.0
  %4643 = vmatpush2.msra.mxu0 0.0
  %4644 = vmatprep.mubr.f32.mxu0 0.0
  %v4645 = vand.u32 %v785, 4294901760
  %v4646 = vsub.f32 %v785, %v4645
  %4647 = vmatmul.mubr.f32.gmra.mxu0 %v4646
  %v4648 = vpop.f32.mrf.mxu0
  %v4649 = vadd.f32 %v4567, %v4648
  %v4650 = vpop.f32.mrf.mxu0
  %4651 = vmatprep.mubr.f32.mxu0 0.0
  %v4652 = vand.u32 %v788, 4294901760
  %v4653 = vsub.f32 %v788, %v4652
  %4654 = vmatmul.mubr.f32.gmra.mxu0 %v4653
  %v4655 = vpop.f32.mrf.mxu0
  %v4656 = vadd.f32 %v4573, %v4655
  %v4657 = vpop.f32.mrf.mxu0
  %4658 = vdwg.mxu0
  %4659 = vmatprep.subr.mxu0 0.0
  %4660 = vmatpush1.msra.mxu0 0.0
  %4661 = vmatprep.subr.mxu0 0.0
  %4662 = vmatpush1.msra.mxu0 0.0
  %4663 = vmatprep.subr.mxu0 0.0
  %4664 = vmatpush1.msra.mxu0 0.0
  %4665 = vmatprep.subr.mxu0 0.0
  %4666 = vmatpush1.msra.mxu0 0.0
  %4667 = vmatprep.subr.mxu0 0.0
  %4668 = vmatpush1.msra.mxu0 0.0
  %4669 = vmatprep.subr.mxu0 0.0
  %4670 = vmatpush1.msra.mxu0 0.0
  %4671 = vmatprep.subr.mxu0 0.0
  %4672 = vmatpush1.msra.mxu0 0.0
  %4673 = vmatprep.subr.mxu0 0.0
  %4674 = vmatpush1.msra.mxu0 0.0
  %4675 = vmatprep.subr.mxu0 0.0
  %4676 = vmatpush1.msra.mxu0 0.0
  %4677 = vmatprep.subr.mxu0 0.0
  %4678 = vmatpush1.msra.mxu0 0.0
  %4679 = vmatprep.subr.mxu0 0.0
  %4680 = vmatpush1.msra.mxu0 0.0
  %4681 = vmatprep.subr.mxu0 0.0
  %4682 = vmatpush1.msra.mxu0 0.0
  %4683 = vmatprep.subr.mxu0 0.0
  %4684 = vmatpush1.msra.mxu0 0.0
  %4685 = vmatprep.subr.mxu0 0.0
  %4686 = vmatpush1.msra.mxu0 0.0
  %4687 = vmatprep.subr.mxu0 0.0
  %v4688 = vand.u32 %v4401, 4294901760
  %4689 = vmatpush1.msra.mxu0 %v4688
  %4690 = vmatprep.subr.mxu0 0.0
  %v4691 = vand.u32 %v4400, 4294901760
  %4692 = vmatpush1.msra.mxu0 %v4691
  %4693 = vmatprep.subr.mxu0 0.0
  %4694 = vmatpush2.msra.mxu0 0.0
  %4695 = vmatprep.subr.mxu0 0.0
  %4696 = vmatpush2.msra.mxu0 0.0
  %4697 = vmatprep.subr.mxu0 0.0
  %4698 = vmatpush2.msra.mxu0 0.0
  %4699 = vmatprep.subr.mxu0 0.0
  %4700 = vmatpush2.msra.mxu0 0.0
  %4701 = vmatprep.subr.mxu0 0.0
  %4702 = vmatpush2.msra.mxu0 0.0
  %4703 = vmatprep.subr.mxu0 0.0
  %4704 = vmatpush2.msra.mxu0 0.0
  %4705 = vmatprep.subr.mxu0 0.0
  %4706 = vmatpush2.msra.mxu0 0.0
  %4707 = vmatprep.subr.mxu0 0.0
  %4708 = vmatpush2.msra.mxu0 0.0
  %4709 = vmatprep.subr.mxu0 0.0
  %4710 = vmatpush2.msra.mxu0 0.0
  %4711 = vmatprep.subr.mxu0 0.0
  %4712 = vmatpush2.msra.mxu0 0.0
  %4713 = vmatprep.subr.mxu0 0.0
  %4714 = vmatpush2.msra.mxu0 0.0
  %4715 = vmatprep.subr.mxu0 0.0
  %4716 = vmatpush2.msra.mxu0 0.0
  %4717 = vmatprep.subr.mxu0 0.0
  %4718 = vmatpush2.msra.mxu0 0.0
  %4719 = vmatprep.subr.mxu0 0.0
  %4720 = vmatpush2.msra.mxu0 0.0
  %4721 = vmatprep.subr.mxu0 0.0
  %4722 = vmatpush2.msra.mxu0 0.0
  %4723 = vmatprep.subr.mxu0 0.0
  %4724 = vmatpush2.msra.mxu0 0.0
  %4725 = vmatprep.mubr.f32.mxu0 0.0
  %v4726 = vand.u32 %v785, 4294901760
  %v4727 = vsub.f32 %v785, %v4726
  %v4728 = vand.u32 %v4727, 4294901760
  %4729 = vmatmul.mubr.f32.gmra.mxu0 %v4728
  %v4730 = vpop.f32.mrf.mxu0
  %v4731 = vadd.f32 %v4649, %v4730
  %v4732 = vpop.f32.mrf.mxu0
  %4733 = vmatprep.mubr.f32.mxu0 0.0
  %v4734 = vand.u32 %v788, 4294901760
  %v4735 = vsub.f32 %v788, %v4734
  %v4736 = vand.u32 %v4735, 4294901760
  %4737 = vmatmul.mubr.f32.gmra.mxu0 %v4736
  %v4738 = vpop.f32.mrf.mxu0
  %v4739 = vadd.f32 %v4656, %v4738
  %v4740 = vpop.f32.mrf.mxu0
  %4741 = vdwg.mxu0
  %4742 = vmatprep.subr.mxu0 0.0
  %4743 = vmatpush1.msra.mxu0 0.0
  %4744 = vmatprep.subr.mxu0 0.0
  %4745 = vmatpush1.msra.mxu0 0.0
  %4746 = vmatprep.subr.mxu0 0.0
  %4747 = vmatpush1.msra.mxu0 0.0
  %4748 = vmatprep.subr.mxu0 0.0
  %4749 = vmatpush1.msra.mxu0 0.0
  %4750 = vmatprep.subr.mxu0 0.0
  %4751 = vmatpush1.msra.mxu0 0.0
  %4752 = vmatprep.subr.mxu0 0.0
  %4753 = vmatpush1.msra.mxu0 0.0
  %4754 = vmatprep.subr.mxu0 0.0
  %4755 = vmatpush1.msra.mxu0 0.0
  %4756 = vmatprep.subr.mxu0 0.0
  %4757 = vmatpush1.msra.mxu0 0.0
  %4758 = vmatprep.subr.mxu0 0.0
  %4759 = vmatpush1.msra.mxu0 0.0
  %4760 = vmatprep.subr.mxu0 0.0
  %4761 = vmatpush1.msra.mxu0 0.0
  %4762 = vmatprep.subr.mxu0 0.0
  %4763 = vmatpush1.msra.mxu0 0.0
  %4764 = vmatprep.subr.mxu0 0.0
  %4765 = vmatpush1.msra.mxu0 0.0
  %4766 = vmatprep.subr.mxu0 0.0
  %4767 = vmatpush1.msra.mxu0 0.0
  %4768 = vmatprep.subr.mxu0 0.0
  %4769 = vmatpush1.msra.mxu0 0.0
  %4770 = vmatprep.subr.mxu0 0.0
  %v4771 = vand.u32 %v4401, 4294901760
  %v4772 = vsub.f32 %v4401, %v4771
  %v4773 = vand.u32 %v4772, 4294901760
  %4774 = vmatpush1.msra.mxu0 %v4773
  %4775 = vmatprep.subr.mxu0 0.0
  %v4776 = vand.u32 %v4400, 4294901760
  %v4777 = vsub.f32 %v4400, %v4776
  %v4778 = vand.u32 %v4777, 4294901760
  %4779 = vmatpush1.msra.mxu0 %v4778
  %4780 = vmatprep.subr.mxu0 0.0
  %4781 = vmatpush2.msra.mxu0 0.0
  %4782 = vmatprep.subr.mxu0 0.0
  %4783 = vmatpush2.msra.mxu0 0.0
  %4784 = vmatprep.subr.mxu0 0.0
  %4785 = vmatpush2.msra.mxu0 0.0
  %4786 = vmatprep.subr.mxu0 0.0
  %4787 = vmatpush2.msra.mxu0 0.0
  %4788 = vmatprep.subr.mxu0 0.0
  %4789 = vmatpush2.msra.mxu0 0.0
  %4790 = vmatprep.subr.mxu0 0.0
  %4791 = vmatpush2.msra.mxu0 0.0
  %4792 = vmatprep.subr.mxu0 0.0
  %4793 = vmatpush2.msra.mxu0 0.0
  %4794 = vmatprep.subr.mxu0 0.0
  %4795 = vmatpush2.msra.mxu0 0.0
  %4796 = vmatprep.subr.mxu0 0.0
  %4797 = vmatpush2.msra.mxu0 0.0
  %4798 = vmatprep.subr.mxu0 0.0
  %4799 = vmatpush2.msra.mxu0 0.0
  %4800 = vmatprep.subr.mxu0 0.0
  %4801 = vmatpush2.msra.mxu0 0.0
  %4802 = vmatprep.subr.mxu0 0.0
  %4803 = vmatpush2.msra.mxu0 0.0
  %4804 = vmatprep.subr.mxu0 0.0
  %4805 = vmatpush2.msra.mxu0 0.0
  %4806 = vmatprep.subr.mxu0 0.0
  %4807 = vmatpush2.msra.mxu0 0.0
  %4808 = vmatprep.subr.mxu0 0.0
  %4809 = vmatpush2.msra.mxu0 0.0
  %4810 = vmatprep.subr.mxu0 0.0
  %4811 = vmatpush2.msra.mxu0 0.0
  %4812 = vmatprep.mubr.f32.mxu0 0.0
  %v4813 = vand.u32 %v785, 4294901760
  %4814 = vmatmul.mubr.f32.gmra.mxu0 %v4813
  %v4815 = vpop.f32.mrf.mxu0
  %v4816 = vadd.f32 %v4731, %v4815
  %v4817 = vpop.f32.mrf.mxu0
  %4818 = vmatprep.mubr.f32.mxu0 0.0
  %v4819 = vand.u32 %v788, 4294901760
  %4820 = vmatmul.mubr.f32.gmra.mxu0 %v4819
  %v4821 = vpop.f32.mrf.mxu0
  %v4822 = vadd.f32 %v4739, %v4821
  %v4823 = vpop.f32.mrf.mxu0
  %4824 = vdwg.mxu0
  %4825 = vmatprep.subr.mxu0 0.0
  %4826 = vmatpush1.msra.mxu0 0.0
  %4827 = vmatprep.subr.mxu0 0.0
  %4828 = vmatpush1.msra.mxu0 0.0
  %4829 = vmatprep.subr.mxu0 0.0
  %4830 = vmatpush1.msra.mxu0 0.0
  %4831 = vmatprep.subr.mxu0 0.0
  %4832 = vmatpush1.msra.mxu0 0.0
  %4833 = vmatprep.subr.mxu0 0.0
  %4834 = vmatpush1.msra.mxu0 0.0
  %4835 = vmatprep.subr.mxu0 0.0
  %4836 = vmatpush1.msra.mxu0 0.0
  %4837 = vmatprep.subr.mxu0 0.0
  %4838 = vmatpush1.msra.mxu0 0.0
  %4839 = vmatprep.subr.mxu0 0.0
  %4840 = vmatpush1.msra.mxu0 0.0
  %4841 = vmatprep.subr.mxu0 0.0
  %4842 = vmatpush1.msra.mxu0 0.0
  %4843 = vmatprep.subr.mxu0 0.0
  %4844 = vmatpush1.msra.mxu0 0.0
  %4845 = vmatprep.subr.mxu0 0.0
  %4846 = vmatpush1.msra.mxu0 0.0
  %4847 = vmatprep.subr.mxu0 0.0
  %4848 = vmatpush1.msra.mxu0 0.0
  %4849 = vmatprep.subr.mxu0 0.0
  %4850 = vmatpush1.msra.mxu0 0.0
  %4851 = vmatprep.subr.mxu0 0.0
  %4852 = vmatpush1.msra.mxu0 0.0
  %4853 = vmatprep.subr.mxu0 0.0
  %v4854 = vand.u32 %v4401, 4294901760
  %4855 = vmatpush1.msra.mxu0 %v4854
  %4856 = vmatprep.subr.mxu0 0.0
  %v4857 = vand.u32 %v4400, 4294901760
  %4858 = vmatpush1.msra.mxu0 %v4857
  %4859 = vmatprep.subr.mxu0 0.0
  %4860 = vmatpush2.msra.mxu0 0.0
  %4861 = vmatprep.subr.mxu0 0.0
  %4862 = vmatpush2.msra.mxu0 0.0
  %4863 = vmatprep.subr.mxu0 0.0
  %4864 = vmatpush2.msra.mxu0 0.0
  %4865 = vmatprep.subr.mxu0 0.0
  %4866 = vmatpush2.msra.mxu0 0.0
  %4867 = vmatprep.subr.mxu0 0.0
  %4868 = vmatpush2.msra.mxu0 0.0
  %4869 = vmatprep.subr.mxu0 0.0
  %4870 = vmatpush2.msra.mxu0 0.0
  %4871 = vmatprep.subr.mxu0 0.0
  %4872 = vmatpush2.msra.mxu0 0.0
  %4873 = vmatprep.subr.mxu0 0.0
  %4874 = vmatpush2.msra.mxu0 0.0
  %4875 = vmatprep.subr.mxu0 0.0
  %4876 = vmatpush2.msra.mxu0 0.0
  %4877 = vmatprep.subr.mxu0 0.0
  %4878 = vmatpush2.msra.mxu0 0.0
  %4879 = vmatprep.subr.mxu0 0.0
  %4880 = vmatpush2.msra.mxu0 0.0
  %4881 = vmatprep.subr.mxu0 0.0
  %4882 = vmatpush2.msra.mxu0 0.0
  %4883 = vmatprep.subr.mxu0 0.0
  %4884 = vmatpush2.msra.mxu0 0.0
  %4885 = vmatprep.subr.mxu0 0.0
  %4886 = vmatpush2.msra.mxu0 0.0
  %4887 = vmatprep.subr.mxu0 0.0
  %4888 = vmatpush2.msra.mxu0 0.0
  %4889 = vmatprep.subr.mxu0 0.0
  %4890 = vmatpush2.msra.mxu0 0.0
  %4891 = vmatprep.mubr.f32.mxu0 0.0
  %v4892 = vand.u32 %v785, 4294901760
  %4893 = vmatmul.mubr.f32.gmra.mxu0 %v4892
  %v4894 = vpop.f32.mrf.mxu0
  %v4895 = vadd.f32 %v4816, %v4894
  %v4896 = vpop.f32.mrf.mxu0
  %4897 = vmatprep.mubr.f32.mxu0 0.0
  %v4898 = vand.u32 %v788, 4294901760
  %4899 = vmatmul.mubr.f32.gmra.mxu0 %v4898
  %v4900 = vpop.f32.mrf.mxu0
  %v4901 = vadd.f32 %v4822, %v4900
  %v4902 = vpop.f32.mrf.mxu0
  %4903 = vdwg.mxu0
  %v4904 = vld [vmem:[%s6] sm:$0xff]
  %v4905 = vld [vmem:[%s6 + $0x8] sm:$0xff]
  %v4906 = vld [vmem:[%s6 + $0x10] sm:$0xff]
  %v4907 = vld [vmem:[%s6 + $0x18] sm:$0xff]
  %v4908 = vld [vmem:[%s6 + $0x20] sm:$0xff]
  %v4909 = vld [vmem:[%s6 + $0x28] sm:$0xff]
  %v4910 = vld [vmem:[%s6 + $0x30] sm:$0xff]
  %v4911 = vld [vmem:[%s6 + $0x38] sm:$0xff]
  %v4912 = vld [vmem:[%s6 + $0x40] sm:$0xff]
  %v4913 = vld [vmem:[%s6 + $0x48] sm:$0xff]
  %v4914 = vld [vmem:[%s6 + $0x50] sm:$0xff]
  %v4915 = vld [vmem:[%s6 + $0x58] sm:$0xff]
  %v4916 = vld [vmem:[%s6 + $0x60] sm:$0xff]
  %v4917 = vld [vmem:[%s6 + $0x68] sm:$0xff]
  %v4918 = vld [vmem:[%s6 + $0x70] sm:$0xff]
  %v4919 = vld [vmem:[%s6 + $0x78] sm:$0xff]
  %4920 = vmatprep.subr.mxu0 0.0
  %v4921 = vand.u32 %v4919, 4294901760
  %4922 = vmatpush1.msra.mxu0 %v4921
  %4923 = vmatprep.subr.mxu0 0.0
  %v4924 = vand.u32 %v4918, 4294901760
  %4925 = vmatpush1.msra.mxu0 %v4924
  %4926 = vmatprep.subr.mxu0 0.0
  %v4927 = vand.u32 %v4917, 4294901760
  %4928 = vmatpush1.msra.mxu0 %v4927
  %4929 = vmatprep.subr.mxu0 0.0
  %v4930 = vand.u32 %v4916, 4294901760
  %4931 = vmatpush1.msra.mxu0 %v4930
  %4932 = vmatprep.subr.mxu0 0.0
  %v4933 = vand.u32 %v4915, 4294901760
  %4934 = vmatpush1.msra.mxu0 %v4933
  %4935 = vmatprep.subr.mxu0 0.0
  %v4936 = vand.u32 %v4914, 4294901760
  %4937 = vmatpush1.msra.mxu0 %v4936
  %4938 = vmatprep.subr.mxu0 0.0
  %v4939 = vand.u32 %v4913, 4294901760
  %4940 = vmatpush1.msra.mxu0 %v4939
  %4941 = vmatprep.subr.mxu0 0.0
  %v4942 = vand.u32 %v4912, 4294901760
  %4943 = vmatpush1.msra.mxu0 %v4942
  %4944 = vmatprep.subr.mxu0 0.0
  %v4945 = vand.u32 %v4911, 4294901760
  %4946 = vmatpush1.msra.mxu0 %v4945
  %4947 = vmatprep.subr.mxu0 0.0
  %v4948 = vand.u32 %v4910, 4294901760
  %4949 = vmatpush1.msra.mxu0 %v4948
  %4950 = vmatprep.subr.mxu0 0.0
  %v4951 = vand.u32 %v4909, 4294901760
  %4952 = vmatpush1.msra.mxu0 %v4951
  %4953 = vmatprep.subr.mxu0 0.0
  %v4954 = vand.u32 %v4908, 4294901760
  %4955 = vmatpush1.msra.mxu0 %v4954
  %4956 = vmatprep.subr.mxu0 0.0
  %v4957 = vand.u32 %v4907, 4294901760
  %4958 = vmatpush1.msra.mxu0 %v4957
  %4959 = vmatprep.subr.mxu0 0.0
  %v4960 = vand.u32 %v4906, 4294901760
  %4961 = vmatpush1.msra.mxu0 %v4960
  %4962 = vmatprep.subr.mxu0 0.0
  %v4963 = vand.u32 %v4905, 4294901760
  %4964 = vmatpush1.msra.mxu0 %v4963
  %4965 = vmatprep.subr.mxu0 0.0
  %v4966 = vand.u32 %v4904, 4294901760
  %4967 = vmatpush1.msra.mxu0 %v4966
  %4968 = vmatprep.subr.mxu0 0.0
  %4969 = vmatpush2.msra.mxu0 0.0
  %4970 = vmatprep.subr.mxu0 0.0
  %4971 = vmatpush2.msra.mxu0 0.0
  %4972 = vmatprep.subr.mxu0 0.0
  %4973 = vmatpush2.msra.mxu0 0.0
  %4974 = vmatprep.subr.mxu0 0.0
  %4975 = vmatpush2.msra.mxu0 0.0
  %4976 = vmatprep.subr.mxu0 0.0
  %4977 = vmatpush2.msra.mxu0 0.0
  %4978 = vmatprep.subr.mxu0 0.0
  %4979 = vmatpush2.msra.mxu0 0.0
  %4980 = vmatprep.subr.mxu0 0.0
  %4981 = vmatpush2.msra.mxu0 0.0
  %4982 = vmatprep.subr.mxu0 0.0
  %4983 = vmatpush2.msra.mxu0 0.0
  %4984 = vmatprep.subr.mxu0 0.0
  %4985 = vmatpush2.msra.mxu0 0.0
  %4986 = vmatprep.subr.mxu0 0.0
  %4987 = vmatpush2.msra.mxu0 0.0
  %4988 = vmatprep.subr.mxu0 0.0
  %4989 = vmatpush2.msra.mxu0 0.0
  %4990 = vmatprep.subr.mxu0 0.0
  %4991 = vmatpush2.msra.mxu0 0.0
  %4992 = vmatprep.subr.mxu0 0.0
  %4993 = vmatpush2.msra.mxu0 0.0
  %4994 = vmatprep.subr.mxu0 0.0
  %4995 = vmatpush2.msra.mxu0 0.0
  %4996 = vmatprep.subr.mxu0 0.0
  %4997 = vmatpush2.msra.mxu0 0.0
  %4998 = vmatprep.subr.mxu0 0.0
  %4999 = vmatpush2.msra.mxu0 0.0
  %5000 = vmatprep.mubr.f32.mxu0 0.0
  %v5001 = vand.u32 %v4895, 4294901760
  %v5002 = vsub.f32 %v4895, %v5001
  %v5003 = vand.u32 %v5002, 4294901760
  %v5004 = vsub.f32 %v5002, %v5003
  %v5005 = vand.u32 %v5004, 4294901760
  %5006 = vmatmul.mubr.f32.gmra.mxu0 %v5005
  %v5007 = vpop.f32.mrf.mxu0
  %v5008 = vadd.f32 0.0, %v5007
  %v5009 = vpop.f32.mrf.mxu0
  %5010 = vmatprep.mubr.f32.mxu0 0.0
  %v5011 = vand.u32 %v4901, 4294901760
  %v5012 = vsub.f32 %v4901, %v5011
  %v5013 = vand.u32 %v5012, 4294901760
  %v5014 = vsub.f32 %v5012, %v5013
  %v5015 = vand.u32 %v5014, 4294901760
  %5016 = vmatmul.mubr.f32.gmra.mxu0 %v5015
  %v5017 = vpop.f32.mrf.mxu0
  %v5018 = vadd.f32 0.0, %v5017
  %v5019 = vpop.f32.mrf.mxu0
  %5020 = vdwg.mxu0
  %5021 = vmatprep.subr.mxu0 0.0
  %v5022 = vand.u32 %v4919, 4294901760
  %v5023 = vsub.f32 %v4919, %v5022
  %v5024 = vand.u32 %v5023, 4294901760
  %v5025 = vsub.f32 %v5023, %v5024
  %v5026 = vand.u32 %v5025, 4294901760
  %5027 = vmatpush1.msra.mxu0 %v5026
  %5028 = vmatprep.subr.mxu0 0.0
  %v5029 = vand.u32 %v4918, 4294901760
  %v5030 = vsub.f32 %v4918, %v5029
  %v5031 = vand.u32 %v5030, 4294901760
  %v5032 = vsub.f32 %v5030, %v5031
  %v5033 = vand.u32 %v5032, 4294901760
  %5034 = vmatpush1.msra.mxu0 %v5033
  %5035 = vmatprep.subr.mxu0 0.0
  %v5036 = vand.u32 %v4917, 4294901760
  %v5037 = vsub.f32 %v4917, %v5036
  %v5038 = vand.u32 %v5037, 4294901760
  %v5039 = vsub.f32 %v5037, %v5038
  %v5040 = vand.u32 %v5039, 4294901760
  %5041 = vmatpush1.msra.mxu0 %v5040
  %5042 = vmatprep.subr.mxu0 0.0
  %v5043 = vand.u32 %v4916, 4294901760
  %v5044 = vsub.f32 %v4916, %v5043
  %v5045 = vand.u32 %v5044, 4294901760
  %v5046 = vsub.f32 %v5044, %v5045
  %v5047 = vand.u32 %v5046, 4294901760
  %5048 = vmatpush1.msra.mxu0 %v5047
  %5049 = vmatprep.subr.mxu0 0.0
  %v5050 = vand.u32 %v4915, 4294901760
  %v5051 = vsub.f32 %v4915, %v5050
  %v5052 = vand.u32 %v5051, 4294901760
  %v5053 = vsub.f32 %v5051, %v5052
  %v5054 = vand.u32 %v5053, 4294901760
  %5055 = vmatpush1.msra.mxu0 %v5054
  %5056 = vmatprep.subr.mxu0 0.0
  %v5057 = vand.u32 %v4914, 4294901760
  %v5058 = vsub.f32 %v4914, %v5057
  %v5059 = vand.u32 %v5058, 4294901760
  %v5060 = vsub.f32 %v5058, %v5059
  %v5061 = vand.u32 %v5060, 4294901760
  %5062 = vmatpush1.msra.mxu0 %v5061
  %5063 = vmatprep.subr.mxu0 0.0
  %v5064 = vand.u32 %v4913, 4294901760
  %v5065 = vsub.f32 %v4913, %v5064
  %v5066 = vand.u32 %v5065, 4294901760
  %v5067 = vsub.f32 %v5065, %v5066
  %v5068 = vand.u32 %v5067, 4294901760
  %5069 = vmatpush1.msra.mxu0 %v5068
  %5070 = vmatprep.subr.mxu0 0.0
  %v5071 = vand.u32 %v4912, 4294901760
  %v5072 = vsub.f32 %v4912, %v5071
  %v5073 = vand.u32 %v5072, 4294901760
  %v5074 = vsub.f32 %v5072, %v5073
  %v5075 = vand.u32 %v5074, 4294901760
  %5076 = vmatpush1.msra.mxu0 %v5075
  %5077 = vmatprep.subr.mxu0 0.0
  %v5078 = vand.u32 %v4911, 4294901760
  %v5079 = vsub.f32 %v4911, %v5078
  %v5080 = vand.u32 %v5079, 4294901760
  %v5081 = vsub.f32 %v5079, %v5080
  %v5082 = vand.u32 %v5081, 4294901760
  %5083 = vmatpush1.msra.mxu0 %v5082
  %5084 = vmatprep.subr.mxu0 0.0
  %v5085 = vand.u32 %v4910, 4294901760
  %v5086 = vsub.f32 %v4910, %v5085
  %v5087 = vand.u32 %v5086, 4294901760
  %v5088 = vsub.f32 %v5086, %v5087
  %v5089 = vand.u32 %v5088, 4294901760
  %5090 = vmatpush1.msra.mxu0 %v5089
  %5091 = vmatprep.subr.mxu0 0.0
  %v5092 = vand.u32 %v4909, 4294901760
  %v5093 = vsub.f32 %v4909, %v5092
  %v5094 = vand.u32 %v5093, 4294901760
  %v5095 = vsub.f32 %v5093, %v5094
  %v5096 = vand.u32 %v5095, 4294901760
  %5097 = vmatpush1.msra.mxu0 %v5096
  %5098 = vmatprep.subr.mxu0 0.0
  %v5099 = vand.u32 %v4908, 4294901760
  %v5100 = vsub.f32 %v4908, %v5099
  %v5101 = vand.u32 %v5100, 4294901760
  %v5102 = vsub.f32 %v5100, %v5101
  %v5103 = vand.u32 %v5102, 4294901760
  %5104 = vmatpush1.msra.mxu0 %v5103
  %5105 = vmatprep.subr.mxu0 0.0
  %v5106 = vand.u32 %v4907, 4294901760
  %v5107 = vsub.f32 %v4907, %v5106
  %v5108 = vand.u32 %v5107, 4294901760
  %v5109 = vsub.f32 %v5107, %v5108
  %v5110 = vand.u32 %v5109, 4294901760
  %5111 = vmatpush1.msra.mxu0 %v5110
  %5112 = vmatprep.subr.mxu0 0.0
  %v5113 = vand.u32 %v4906, 4294901760
  %v5114 = vsub.f32 %v4906, %v5113
  %v5115 = vand.u32 %v5114, 4294901760
  %v5116 = vsub.f32 %v5114, %v5115
  %v5117 = vand.u32 %v5116, 4294901760
  %5118 = vmatpush1.msra.mxu0 %v5117
  %5119 = vmatprep.subr.mxu0 0.0
  %v5120 = vand.u32 %v4905, 4294901760
  %v5121 = vsub.f32 %v4905, %v5120
  %v5122 = vand.u32 %v5121, 4294901760
  %v5123 = vsub.f32 %v5121, %v5122
  %v5124 = vand.u32 %v5123, 4294901760
  %5125 = vmatpush1.msra.mxu0 %v5124
  %5126 = vmatprep.subr.mxu0 0.0
  %v5127 = vand.u32 %v4904, 4294901760
  %v5128 = vsub.f32 %v4904, %v5127
  %v5129 = vand.u32 %v5128, 4294901760
  %v5130 = vsub.f32 %v5128, %v5129
  %v5131 = vand.u32 %v5130, 4294901760
  %5132 = vmatpush1.msra.mxu0 %v5131
  %5133 = vmatprep.subr.mxu0 0.0
  %5134 = vmatpush2.msra.mxu0 0.0
  %5135 = vmatprep.subr.mxu0 0.0
  %5136 = vmatpush2.msra.mxu0 0.0
  %5137 = vmatprep.subr.mxu0 0.0
  %5138 = vmatpush2.msra.mxu0 0.0
  %5139 = vmatprep.subr.mxu0 0.0
  %5140 = vmatpush2.msra.mxu0 0.0
  %5141 = vmatprep.subr.mxu0 0.0
  %5142 = vmatpush2.msra.mxu0 0.0
  %5143 = vmatprep.subr.mxu0 0.0
  %5144 = vmatpush2.msra.mxu0 0.0
  %5145 = vmatprep.subr.mxu0 0.0
  %5146 = vmatpush2.msra.mxu0 0.0
  %5147 = vmatprep.subr.mxu0 0.0
  %5148 = vmatpush2.msra.mxu0 0.0
  %5149 = vmatprep.subr.mxu0 0.0
  %5150 = vmatpush2.msra.mxu0 0.0
  %5151 = vmatprep.subr.mxu0 0.0
  %5152 = vmatpush2.msra.mxu0 0.0
  %5153 = vmatprep.subr.mxu0 0.0
  %5154 = vmatpush2.msra.mxu0 0.0
  %5155 = vmatprep.subr.mxu0 0.0
  %5156 = vmatpush2.msra.mxu0 0.0
  %5157 = vmatprep.subr.mxu0 0.0
  %5158 = vmatpush2.msra.mxu0 0.0
  %5159 = vmatprep.subr.mxu0 0.0
  %5160 = vmatpush2.msra.mxu0 0.0
  %5161 = vmatprep.subr.mxu0 0.0
  %5162 = vmatpush2.msra.mxu0 0.0
  %5163 = vmatprep.subr.mxu0 0.0
  %5164 = vmatpush2.msra.mxu0 0.0
  %5165 = vmatprep.mubr.f32.mxu0 0.0
  %v5166 = vand.u32 %v4895, 4294901760
  %5167 = vmatmul.mubr.f32.gmra.mxu0 %v5166
  %v5168 = vpop.f32.mrf.mxu0
  %v5169 = vadd.f32 %v5008, %v5168
  %v5170 = vpop.f32.mrf.mxu0
  %5171 = vmatprep.mubr.f32.mxu0 0.0
  %v5172 = vand.u32 %v4901, 4294901760
  %5173 = vmatmul.mubr.f32.gmra.mxu0 %v5172
  %v5174 = vpop.f32.mrf.mxu0
  %v5175 = vadd.f32 %v5018, %v5174
  %v5176 = vpop.f32.mrf.mxu0
  %5177 = vdwg.mxu0
  %5178 = vmatprep.subr.mxu0 0.0
  %v5179 = vand.u32 %v4919, 4294901760
  %v5180 = vsub.f32 %v4919, %v5179
  %5181 = vmatpush1.msra.mxu0 %v5180
  %5182 = vmatprep.subr.mxu0 0.0
  %v5183 = vand.u32 %v4918, 4294901760
  %v5184 = vsub.f32 %v4918, %v5183
  %5185 = vmatpush1.msra.mxu0 %v5184
  %5186 = vmatprep.subr.mxu0 0.0
  %v5187 = vand.u32 %v4917, 4294901760
  %v5188 = vsub.f32 %v4917, %v5187
  %5189 = vmatpush1.msra.mxu0 %v5188
  %5190 = vmatprep.subr.mxu0 0.0
  %v5191 = vand.u32 %v4916, 4294901760
  %v5192 = vsub.f32 %v4916, %v5191
  %5193 = vmatpush1.msra.mxu0 %v5192
  %5194 = vmatprep.subr.mxu0 0.0
  %v5195 = vand.u32 %v4915, 4294901760
  %v5196 = vsub.f32 %v4915, %v5195
  %5197 = vmatpush1.msra.mxu0 %v5196
  %5198 = vmatprep.subr.mxu0 0.0
  %v5199 = vand.u32 %v4914, 4294901760
  %v5200 = vsub.f32 %v4914, %v5199
  %5201 = vmatpush1.msra.mxu0 %v5200
  %5202 = vmatprep.subr.mxu0 0.0
  %v5203 = vand.u32 %v4913, 4294901760
  %v5204 = vsub.f32 %v4913, %v5203
  %5205 = vmatpush1.msra.mxu0 %v5204
  %5206 = vmatprep.subr.mxu0 0.0
  %v5207 = vand.u32 %v4912, 4294901760
  %v5208 = vsub.f32 %v4912, %v5207
  %5209 = vmatpush1.msra.mxu0 %v5208
  %5210 = vmatprep.subr.mxu0 0.0
  %v5211 = vand.u32 %v4911, 4294901760
  %v5212 = vsub.f32 %v4911, %v5211
  %5213 = vmatpush1.msra.mxu0 %v5212
  %5214 = vmatprep.subr.mxu0 0.0
  %v5215 = vand.u32 %v4910, 4294901760
  %v5216 = vsub.f32 %v4910, %v5215
  %5217 = vmatpush1.msra.mxu0 %v5216
  %5218 = vmatprep.subr.mxu0 0.0
  %v5219 = vand.u32 %v4909, 4294901760
  %v5220 = vsub.f32 %v4909, %v5219
  %5221 = vmatpush1.msra.mxu0 %v5220
  %5222 = vmatprep.subr.mxu0 0.0
  %v5223 = vand.u32 %v4908, 4294901760
  %v5224 = vsub.f32 %v4908, %v5223
  %5225 = vmatpush1.msra.mxu0 %v5224
  %5226 = vmatprep.subr.mxu0 0.0
  %v5227 = vand.u32 %v4907, 4294901760
  %v5228 = vsub.f32 %v4907, %v5227
  %5229 = vmatpush1.msra.mxu0 %v5228
  %5230 = vmatprep.subr.mxu0 0.0
  %v5231 = vand.u32 %v4906, 4294901760
  %v5232 = vsub.f32 %v4906, %v5231
  %5233 = vmatpush1.msra.mxu0 %v5232
  %5234 = vmatprep.subr.mxu0 0.0
  %v5235 = vand.u32 %v4905, 4294901760
  %v5236 = vsub.f32 %v4905, %v5235
  %5237 = vmatpush1.msra.mxu0 %v5236
  %5238 = vmatprep.subr.mxu0 0.0
  %v5239 = vand.u32 %v4904, 4294901760
  %v5240 = vsub.f32 %v4904, %v5239
  %5241 = vmatpush1.msra.mxu0 %v5240
  %5242 = vmatprep.subr.mxu0 0.0
  %5243 = vmatpush2.msra.mxu0 0.0
  %5244 = vmatprep.subr.mxu0 0.0
  %5245 = vmatpush2.msra.mxu0 0.0
  %5246 = vmatprep.subr.mxu0 0.0
  %5247 = vmatpush2.msra.mxu0 0.0
  %5248 = vmatprep.subr.mxu0 0.0
  %5249 = vmatpush2.msra.mxu0 0.0
  %5250 = vmatprep.subr.mxu0 0.0
  %5251 = vmatpush2.msra.mxu0 0.0
  %5252 = vmatprep.subr.mxu0 0.0
  %5253 = vmatpush2.msra.mxu0 0.0
  %5254 = vmatprep.subr.mxu0 0.0
  %5255 = vmatpush2.msra.mxu0 0.0
  %5256 = vmatprep.subr.mxu0 0.0
  %5257 = vmatpush2.msra.mxu0 0.0
  %5258 = vmatprep.subr.mxu0 0.0
  %5259 = vmatpush2.msra.mxu0 0.0
  %5260 = vmatprep.subr.mxu0 0.0
  %5261 = vmatpush2.msra.mxu0 0.0
  %5262 = vmatprep.subr.mxu0 0.0
  %5263 = vmatpush2.msra.mxu0 0.0
  %5264 = vmatprep.subr.mxu0 0.0
  %5265 = vmatpush2.msra.mxu0 0.0
  %5266 = vmatprep.subr.mxu0 0.0
  %5267 = vmatpush2.msra.mxu0 0.0
  %5268 = vmatprep.subr.mxu0 0.0
  %5269 = vmatpush2.msra.mxu0 0.0
  %5270 = vmatprep.subr.mxu0 0.0
  %5271 = vmatpush2.msra.mxu0 0.0
  %5272 = vmatprep.subr.mxu0 0.0
  %5273 = vmatpush2.msra.mxu0 0.0
  %5274 = vmatprep.mubr.f32.mxu0 0.0
  %v5275 = vand.u32 %v4895, 4294901760
  %v5276 = vsub.f32 %v4895, %v5275
  %5277 = vmatmul.mubr.f32.gmra.mxu0 %v5276
  %v5278 = vpop.f32.mrf.mxu0
  %v5279 = vadd.f32 %v5169, %v5278
  %v5280 = vpop.f32.mrf.mxu0
  %5281 = vmatprep.mubr.f32.mxu0 0.0
  %v5282 = vand.u32 %v4901, 4294901760
  %v5283 = vsub.f32 %v4901, %v5282
  %5284 = vmatmul.mubr.f32.gmra.mxu0 %v5283
  %v5285 = vpop.f32.mrf.mxu0
  %v5286 = vadd.f32 %v5175, %v5285
  %v5287 = vpop.f32.mrf.mxu0
  %5288 = vdwg.mxu0
  %5289 = vmatprep.subr.mxu0 0.0
  %v5290 = vand.u32 %v4919, 4294901760
  %5291 = vmatpush1.msra.mxu0 %v5290
  %5292 = vmatprep.subr.mxu0 0.0
  %v5293 = vand.u32 %v4918, 4294901760
  %5294 = vmatpush1.msra.mxu0 %v5293
  %5295 = vmatprep.subr.mxu0 0.0
  %v5296 = vand.u32 %v4917, 4294901760
  %5297 = vmatpush1.msra.mxu0 %v5296
  %5298 = vmatprep.subr.mxu0 0.0
  %v5299 = vand.u32 %v4916, 4294901760
  %5300 = vmatpush1.msra.mxu0 %v5299
  %5301 = vmatprep.subr.mxu0 0.0
  %v5302 = vand.u32 %v4915, 4294901760
  %5303 = vmatpush1.msra.mxu0 %v5302
  %5304 = vmatprep.subr.mxu0 0.0
  %v5305 = vand.u32 %v4914, 4294901760
  %5306 = vmatpush1.msra.mxu0 %v5305
  %5307 = vmatprep.subr.mxu0 0.0
  %v5308 = vand.u32 %v4913, 4294901760
  %5309 = vmatpush1.msra.mxu0 %v5308
  %5310 = vmatprep.subr.mxu0 0.0
  %v5311 = vand.u32 %v4912, 4294901760
  %5312 = vmatpush1.msra.mxu0 %v5311
  %5313 = vmatprep.subr.mxu0 0.0
  %v5314 = vand.u32 %v4911, 4294901760
  %5315 = vmatpush1.msra.mxu0 %v5314
  %5316 = vmatprep.subr.mxu0 0.0
  %v5317 = vand.u32 %v4910, 4294901760
  %5318 = vmatpush1.msra.mxu0 %v5317
  %5319 = vmatprep.subr.mxu0 0.0
  %v5320 = vand.u32 %v4909, 4294901760
  %5321 = vmatpush1.msra.mxu0 %v5320
  %5322 = vmatprep.subr.mxu0 0.0
  %v5323 = vand.u32 %v4908, 4294901760
  %5324 = vmatpush1.msra.mxu0 %v5323
  %5325 = vmatprep.subr.mxu0 0.0
  %v5326 = vand.u32 %v4907, 4294901760
  %5327 = vmatpush1.msra.mxu0 %v5326
  %5328 = vmatprep.subr.mxu0 0.0
  %v5329 = vand.u32 %v4906, 4294901760
  %5330 = vmatpush1.msra.mxu0 %v5329
  %5331 = vmatprep.subr.mxu0 0.0
  %v5332 = vand.u32 %v4905, 4294901760
  %5333 = vmatpush1.msra.mxu0 %v5332
  %5334 = vmatprep.subr.mxu0 0.0
  %v5335 = vand.u32 %v4904, 4294901760
  %5336 = vmatpush1.msra.mxu0 %v5335
  %5337 = vmatprep.subr.mxu0 0.0
  %5338 = vmatpush2.msra.mxu0 0.0
  %5339 = vmatprep.subr.mxu0 0.0
  %5340 = vmatpush2.msra.mxu0 0.0
  %5341 = vmatprep.subr.mxu0 0.0
  %5342 = vmatpush2.msra.mxu0 0.0
  %5343 = vmatprep.subr.mxu0 0.0
  %5344 = vmatpush2.msra.mxu0 0.0
  %5345 = vmatprep.subr.mxu0 0.0
  %5346 = vmatpush2.msra.mxu0 0.0
  %5347 = vmatprep.subr.mxu0 0.0
  %5348 = vmatpush2.msra.mxu0 0.0
  %5349 = vmatprep.subr.mxu0 0.0
  %5350 = vmatpush2.msra.mxu0 0.0
  %5351 = vmatprep.subr.mxu0 0.0
  %5352 = vmatpush2.msra.mxu0 0.0
  %5353 = vmatprep.subr.mxu0 0.0
  %5354 = vmatpush2.msra.mxu0 0.0
  %5355 = vmatprep.subr.mxu0 0.0
  %5356 = vmatpush2.msra.mxu0 0.0
  %5357 = vmatprep.subr.mxu0 0.0
  %5358 = vmatpush2.msra.mxu0 0.0
  %5359 = vmatprep.subr.mxu0 0.0
  %5360 = vmatpush2.msra.mxu0 0.0
  %5361 = vmatprep.subr.mxu0 0.0
  %5362 = vmatpush2.msra.mxu0 0.0
  %5363 = vmatprep.subr.mxu0 0.0
  %5364 = vmatpush2.msra.mxu0 0.0
  %5365 = vmatprep.subr.mxu0 0.0
  %5366 = vmatpush2.msra.mxu0 0.0
  %5367 = vmatprep.subr.mxu0 0.0
  %5368 = vmatpush2.msra.mxu0 0.0
  %5369 = vmatprep.mubr.f32.mxu0 0.0
  %v5370 = vand.u32 %v4895, 4294901760
  %v5371 = vsub.f32 %v4895, %v5370
  %v5372 = vand.u32 %v5371, 4294901760
  %5373 = vmatmul.mubr.f32.gmra.mxu0 %v5372
  %v5374 = vpop.f32.mrf.mxu0
  %v5375 = vadd.f32 %v5279, %v5374
  %v5376 = vpop.f32.mrf.mxu0
  %5377 = vmatprep.mubr.f32.mxu0 0.0
  %v5378 = vand.u32 %v4901, 4294901760
  %v5379 = vsub.f32 %v4901, %v5378
  %v5380 = vand.u32 %v5379, 4294901760
  %5381 = vmatmul.mubr.f32.gmra.mxu0 %v5380
  %v5382 = vpop.f32.mrf.mxu0
  %v5383 = vadd.f32 %v5286, %v5382
  %v5384 = vpop.f32.mrf.mxu0
  %5385 = vdwg.mxu0
  %5386 = vmatprep.subr.mxu0 0.0
  %v5387 = vand.u32 %v4919, 4294901760
  %v5388 = vsub.f32 %v4919, %v5387
  %v5389 = vand.u32 %v5388, 4294901760
  %5390 = vmatpush1.msra.mxu0 %v5389
  %5391 = vmatprep.subr.mxu0 0.0
  %v5392 = vand.u32 %v4918, 4294901760
  %v5393 = vsub.f32 %v4918, %v5392
  %v5394 = vand.u32 %v5393, 4294901760
  %5395 = vmatpush1.msra.mxu0 %v5394
  %5396 = vmatprep.subr.mxu0 0.0
  %v5397 = vand.u32 %v4917, 4294901760
  %v5398 = vsub.f32 %v4917, %v5397
  %v5399 = vand.u32 %v5398, 4294901760
  %5400 = vmatpush1.msra.mxu0 %v5399
  %5401 = vmatprep.subr.mxu0 0.0
  %v5402 = vand.u32 %v4916, 4294901760
  %v5403 = vsub.f32 %v4916, %v5402
  %v5404 = vand.u32 %v5403, 4294901760
  %5405 = vmatpush1.msra.mxu0 %v5404
  %5406 = vmatprep.subr.mxu0 0.0
  %v5407 = vand.u32 %v4915, 4294901760
  %v5408 = vsub.f32 %v4915, %v5407
  %v5409 = vand.u32 %v5408, 4294901760
  %5410 = vmatpush1.msra.mxu0 %v5409
  %5411 = vmatprep.subr.mxu0 0.0
  %v5412 = vand.u32 %v4914, 4294901760
  %v5413 = vsub.f32 %v4914, %v5412
  %v5414 = vand.u32 %v5413, 4294901760
  %5415 = vmatpush1.msra.mxu0 %v5414
  %5416 = vmatprep.subr.mxu0 0.0
  %v5417 = vand.u32 %v4913, 4294901760
  %v5418 = vsub.f32 %v4913, %v5417
  %v5419 = vand.u32 %v5418, 4294901760
  %5420 = vmatpush1.msra.mxu0 %v5419
  %5421 = vmatprep.subr.mxu0 0.0
  %v5422 = vand.u32 %v4912, 4294901760
  %v5423 = vsub.f32 %v4912, %v5422
  %v5424 = vand.u32 %v5423, 4294901760
  %5425 = vmatpush1.msra.mxu0 %v5424
  %5426 = vmatprep.subr.mxu0 0.0
  %v5427 = vand.u32 %v4911, 4294901760
  %v5428 = vsub.f32 %v4911, %v5427
  %v5429 = vand.u32 %v5428, 4294901760
  %5430 = vmatpush1.msra.mxu0 %v5429
  %5431 = vmatprep.subr.mxu0 0.0
  %v5432 = vand.u32 %v4910, 4294901760
  %v5433 = vsub.f32 %v4910, %v5432
  %v5434 = vand.u32 %v5433, 4294901760
  %5435 = vmatpush1.msra.mxu0 %v5434
  %5436 = vmatprep.subr.mxu0 0.0
  %v5437 = vand.u32 %v4909, 4294901760
  %v5438 = vsub.f32 %v4909, %v5437
  %v5439 = vand.u32 %v5438, 4294901760
  %5440 = vmatpush1.msra.mxu0 %v5439
  %5441 = vmatprep.subr.mxu0 0.0
  %v5442 = vand.u32 %v4908, 4294901760
  %v5443 = vsub.f32 %v4908, %v5442
  %v5444 = vand.u32 %v5443, 4294901760
  %5445 = vmatpush1.msra.mxu0 %v5444
  %5446 = vmatprep.subr.mxu0 0.0
  %v5447 = vand.u32 %v4907, 4294901760
  %v5448 = vsub.f32 %v4907, %v5447
  %v5449 = vand.u32 %v5448, 4294901760
  %5450 = vmatpush1.msra.mxu0 %v5449
  %5451 = vmatprep.subr.mxu0 0.0
  %v5452 = vand.u32 %v4906, 4294901760
  %v5453 = vsub.f32 %v4906, %v5452
  %v5454 = vand.u32 %v5453, 4294901760
  %5455 = vmatpush1.msra.mxu0 %v5454
  %5456 = vmatprep.subr.mxu0 0.0
  %v5457 = vand.u32 %v4905, 4294901760
  %v5458 = vsub.f32 %v4905, %v5457
  %v5459 = vand.u32 %v5458, 4294901760
  %5460 = vmatpush1.msra.mxu0 %v5459
  %5461 = vmatprep.subr.mxu0 0.0
  %v5462 = vand.u32 %v4904, 4294901760
  %v5463 = vsub.f32 %v4904, %v5462
  %v5464 = vand.u32 %v5463, 4294901760
  %5465 = vmatpush1.msra.mxu0 %v5464
  %5466 = vmatprep.subr.mxu0 0.0
  %5467 = vmatpush2.msra.mxu0 0.0
  %5468 = vmatprep.subr.mxu0 0.0
  %5469 = vmatpush2.msra.mxu0 0.0
  %5470 = vmatprep.subr.mxu0 0.0
  %5471 = vmatpush2.msra.mxu0 0.0
  %5472 = vmatprep.subr.mxu0 0.0
  %5473 = vmatpush2.msra.mxu0 0.0
  %5474 = vmatprep.subr.mxu0 0.0
  %5475 = vmatpush2.msra.mxu0 0.0
  %5476 = vmatprep.subr.mxu0 0.0
  %5477 = vmatpush2.msra.mxu0 0.0
  %5478 = vmatprep.subr.mxu0 0.0
  %5479 = vmatpush2.msra.mxu0 0.0
  %5480 = vmatprep.subr.mxu0 0.0
  %5481 = vmatpush2.msra.mxu0 0.0
  %5482 = vmatprep.subr.mxu0 0.0
  %5483 = vmatpush2.msra.mxu0 0.0
  %5484 = vmatprep.subr.mxu0 0.0
  %5485 = vmatpush2.msra.mxu0 0.0
  %5486 = vmatprep.subr.mxu0 0.0
  %5487 = vmatpush2.msra.mxu0 0.0
  %5488 = vmatprep.subr.mxu0 0.0
  %5489 = vmatpush2.msra.mxu0 0.0
  %5490 = vmatprep.subr.mxu0 0.0
  %5491 = vmatpush2.msra.mxu0 0.0
  %5492 = vmatprep.subr.mxu0 0.0
  %5493 = vmatpush2.msra.mxu0 0.0
  %5494 = vmatprep.subr.mxu0 0.0
  %5495 = vmatpush2.msra.mxu0 0.0
  %5496 = vmatprep.subr.mxu0 0.0
  %5497 = vmatpush2.msra.mxu0 0.0
  %5498 = vmatprep.mubr.f32.mxu0 0.0
  %v5499 = vand.u32 %v4895, 4294901760
  %5500 = vmatmul.mubr.f32.gmra.mxu0 %v5499
  %v5501 = vpop.f32.mrf.mxu0
  %v5502 = vadd.f32 %v5375, %v5501
  %v5503 = vpop.f32.mrf.mxu0
  %5504 = vmatprep.mubr.f32.mxu0 0.0
  %v5505 = vand.u32 %v4901, 4294901760
  %5506 = vmatmul.mubr.f32.gmra.mxu0 %v5505
  %v5507 = vpop.f32.mrf.mxu0
  %v5508 = vadd.f32 %v5383, %v5507
  %v5509 = vpop.f32.mrf.mxu0
  %5510 = vdwg.mxu0
  %5511 = vmatprep.subr.mxu0 0.0
  %v5512 = vand.u32 %v4919, 4294901760
  %5513 = vmatpush1.msra.mxu0 %v5512
  %5514 = vmatprep.subr.mxu0 0.0
  %v5515 = vand.u32 %v4918, 4294901760
  %5516 = vmatpush1.msra.mxu0 %v5515
  %5517 = vmatprep.subr.mxu0 0.0
  %v5518 = vand.u32 %v4917, 4294901760
  %5519 = vmatpush1.msra.mxu0 %v5518
  %5520 = vmatprep.subr.mxu0 0.0
  %v5521 = vand.u32 %v4916, 4294901760
  %5522 = vmatpush1.msra.mxu0 %v5521
  %5523 = vmatprep.subr.mxu0 0.0
  %v5524 = vand.u32 %v4915, 4294901760
  %5525 = vmatpush1.msra.mxu0 %v5524
  %5526 = vmatprep.subr.mxu0 0.0
  %v5527 = vand.u32 %v4914, 4294901760
  %5528 = vmatpush1.msra.mxu0 %v5527
  %5529 = vmatprep.subr.mxu0 0.0
  %v5530 = vand.u32 %v4913, 4294901760
  %5531 = vmatpush1.msra.mxu0 %v5530
  %5532 = vmatprep.subr.mxu0 0.0
  %v5533 = vand.u32 %v4912, 4294901760
  %5534 = vmatpush1.msra.mxu0 %v5533
  %5535 = vmatprep.subr.mxu0 0.0
  %v5536 = vand.u32 %v4911, 4294901760
  %5537 = vmatpush1.msra.mxu0 %v5536
  %5538 = vmatprep.subr.mxu0 0.0
  %v5539 = vand.u32 %v4910, 4294901760
  %5540 = vmatpush1.msra.mxu0 %v5539
  %5541 = vmatprep.subr.mxu0 0.0
  %v5542 = vand.u32 %v4909, 4294901760
  %5543 = vmatpush1.msra.mxu0 %v5542
  %5544 = vmatprep.subr.mxu0 0.0
  %v5545 = vand.u32 %v4908, 4294901760
  %5546 = vmatpush1.msra.mxu0 %v5545
  %5547 = vmatprep.subr.mxu0 0.0
  %v5548 = vand.u32 %v4907, 4294901760
  %5549 = vmatpush1.msra.mxu0 %v5548
  %5550 = vmatprep.subr.mxu0 0.0
  %v5551 = vand.u32 %v4906, 4294901760
  %5552 = vmatpush1.msra.mxu0 %v5551
  %5553 = vmatprep.subr.mxu0 0.0
  %v5554 = vand.u32 %v4905, 4294901760
  %5555 = vmatpush1.msra.mxu0 %v5554
  %5556 = vmatprep.subr.mxu0 0.0
  %v5557 = vand.u32 %v4904, 4294901760
  %5558 = vmatpush1.msra.mxu0 %v5557
  %5559 = vmatprep.subr.mxu0 0.0
  %5560 = vmatpush2.msra.mxu0 0.0
  %5561 = vmatprep.subr.mxu0 0.0
  %5562 = vmatpush2.msra.mxu0 0.0
  %5563 = vmatprep.subr.mxu0 0.0
  %5564 = vmatpush2.msra.mxu0 0.0
  %5565 = vmatprep.subr.mxu0 0.0
  %5566 = vmatpush2.msra.mxu0 0.0
  %5567 = vmatprep.subr.mxu0 0.0
  %5568 = vmatpush2.msra.mxu0 0.0
  %5569 = vmatprep.subr.mxu0 0.0
  %5570 = vmatpush2.msra.mxu0 0.0
  %5571 = vmatprep.subr.mxu0 0.0
  %5572 = vmatpush2.msra.mxu0 0.0
  %5573 = vmatprep.subr.mxu0 0.0
  %5574 = vmatpush2.msra.mxu0 0.0
  %5575 = vmatprep.subr.mxu0 0.0
  %5576 = vmatpush2.msra.mxu0 0.0
  %5577 = vmatprep.subr.mxu0 0.0
  %5578 = vmatpush2.msra.mxu0 0.0
  %5579 = vmatprep.subr.mxu0 0.0
  %5580 = vmatpush2.msra.mxu0 0.0
  %5581 = vmatprep.subr.mxu0 0.0
  %5582 = vmatpush2.msra.mxu0 0.0
  %5583 = vmatprep.subr.mxu0 0.0
  %5584 = vmatpush2.msra.mxu0 0.0
  %5585 = vmatprep.subr.mxu0 0.0
  %5586 = vmatpush2.msra.mxu0 0.0
  %5587 = vmatprep.subr.mxu0 0.0
  %5588 = vmatpush2.msra.mxu0 0.0
  %5589 = vmatprep.subr.mxu0 0.0
  %5590 = vmatpush2.msra.mxu0 0.0
  %5591 = vmatprep.mubr.f32.mxu0 0.0
  %v5592 = vand.u32 %v4895, 4294901760
  %5593 = vmatmul.mubr.f32.gmra.mxu0 %v5592
  %v5594 = vpop.f32.mrf.mxu0
  %v5595 = vadd.f32 %v5502, %v5594
  %v5596 = vpop.f32.mrf.mxu0
  %5597 = vmatprep.mubr.f32.mxu0 0.0
  %v5598 = vand.u32 %v4901, 4294901760
  %5599 = vmatmul.mubr.f32.gmra.mxu0 %v5598
  %v5600 = vpop.f32.mrf.mxu0
  %v5601 = vadd.f32 %v5508, %v5600
  %v5602 = vpop.f32.mrf.mxu0
  %5603 = vdwg.mxu0
  %v5604 = vtanh.pop %v5595
  %v5605 = vtanh.pop %v5601
  %5606 = vmatprep.subr.mxu0 0.0
  %5607 = vmatpush1.msra.mxu0 0.0
  %5608 = vmatprep.subr.mxu0 0.0
  %5609 = vmatpush1.msra.mxu0 0.0
  %5610 = vmatprep.subr.mxu0 0.0
  %5611 = vmatpush1.msra.mxu0 0.0
  %5612 = vmatprep.subr.mxu0 0.0
  %5613 = vmatpush1.msra.mxu0 0.0
  %5614 = vmatprep.subr.mxu0 0.0
  %5615 = vmatpush1.msra.mxu0 0.0
  %5616 = vmatprep.subr.mxu0 0.0
  %5617 = vmatpush1.msra.mxu0 0.0
  %5618 = vmatprep.subr.mxu0 0.0
  %5619 = vmatpush1.msra.mxu0 0.0
  %5620 = vmatprep.subr.mxu0 0.0
  %5621 = vmatpush1.msra.mxu0 0.0
  %5622 = vmatprep.subr.mxu0 0.0
  %5623 = vmatpush1.msra.mxu0 0.0
  %5624 = vmatprep.subr.mxu0 0.0
  %5625 = vmatpush1.msra.mxu0 0.0
  %5626 = vmatprep.subr.mxu0 0.0
  %5627 = vmatpush1.msra.mxu0 0.0
  %5628 = vmatprep.subr.mxu0 0.0
  %5629 = vmatpush1.msra.mxu0 0.0
  %5630 = vmatprep.subr.mxu0 0.0
  %5631 = vmatpush1.msra.mxu0 0.0
  %5632 = vmatprep.subr.mxu0 0.0
  %5633 = vmatpush1.msra.mxu0 0.0
  %5634 = vmatprep.subr.mxu0 0.0
  %v5635 = vand.u32 %v5605, 4294901760
  %5636 = vmatpush1.msra.mxu0 %v5635
  %5637 = vmatprep.subr.mxu0 0.0
  %v5638 = vand.u32 %v5604, 4294901760
  %5639 = vmatpush1.msra.mxu0 %v5638
  %5640 = vmatprep.subr.mxu0 0.0
  %5641 = vmatpush2.msra.mxu0 0.0
  %5642 = vmatprep.subr.mxu0 0.0
  %5643 = vmatpush2.msra.mxu0 0.0
  %5644 = vmatprep.subr.mxu0 0.0
  %5645 = vmatpush2.msra.mxu0 0.0
  %5646 = vmatprep.subr.mxu0 0.0
  %5647 = vmatpush2.msra.mxu0 0.0
  %5648 = vmatprep.subr.mxu0 0.0
  %5649 = vmatpush2.msra.mxu0 0.0
  %5650 = vmatprep.subr.mxu0 0.0
  %5651 = vmatpush2.msra.mxu0 0.0
  %5652 = vmatprep.subr.mxu0 0.0
  %5653 = vmatpush2.msra.mxu0 0.0
  %5654 = vmatprep.subr.mxu0 0.0
  %5655 = vmatpush2.msra.mxu0 0.0
  %5656 = vmatprep.subr.mxu0 0.0
  %5657 = vmatpush2.msra.mxu0 0.0
  %5658 = vmatprep.subr.mxu0 0.0
  %5659 = vmatpush2.msra.mxu0 0.0
  %5660 = vmatprep.subr.mxu0 0.0
  %5661 = vmatpush2.msra.mxu0 0.0
  %5662 = vmatprep.subr.mxu0 0.0
  %5663 = vmatpush2.msra.mxu0 0.0
  %5664 = vmatprep.subr.mxu0 0.0
  %5665 = vmatpush2.msra.mxu0 0.0
  %5666 = vmatprep.subr.mxu0 0.0
  %5667 = vmatpush2.msra.mxu0 0.0
  %5668 = vmatprep.subr.mxu0 0.0
  %5669 = vmatpush2.msra.mxu0 0.0
  %5670 = vmatprep.subr.mxu0 0.0
  %5671 = vmatpush2.msra.mxu0 0.0
  %5672 = vmatprep.mubr.f32.mxu0 0.0
  %v5673 = vand.u32 %v785, 4294901760
  %v5674 = vsub.f32 %v785, %v5673
  %v5675 = vand.u32 %v5674, 4294901760
  %v5676 = vsub.f32 %v5674, %v5675
  %v5677 = vand.u32 %v5676, 4294901760
  %5678 = vmatmul.mubr.f32.gmra.mxu0 %v5677
  %v5679 = vpop.f32.mrf.mxu0
  %v5680 = vadd.f32 0.0, %v5679
  %v5681 = vpop.f32.mrf.mxu0
  %5682 = vmatprep.mubr.f32.mxu0 0.0
  %v5683 = vand.u32 %v788, 4294901760
  %v5684 = vsub.f32 %v788, %v5683
  %v5685 = vand.u32 %v5684, 4294901760
  %v5686 = vsub.f32 %v5684, %v5685
  %v5687 = vand.u32 %v5686, 4294901760
  %5688 = vmatmul.mubr.f32.gmra.mxu0 %v5687
  %v5689 = vpop.f32.mrf.mxu0
  %v5690 = vadd.f32 0.0, %v5689
  %v5691 = vpop.f32.mrf.mxu0
  %5692 = vdwg.mxu0
  %5693 = vmatprep.subr.mxu0 0.0
  %5694 = vmatpush1.msra.mxu0 0.0
  %5695 = vmatprep.subr.mxu0 0.0
  %5696 = vmatpush1.msra.mxu0 0.0
  %5697 = vmatprep.subr.mxu0 0.0
  %5698 = vmatpush1.msra.mxu0 0.0
  %5699 = vmatprep.subr.mxu0 0.0
  %5700 = vmatpush1.msra.mxu0 0.0
  %5701 = vmatprep.subr.mxu0 0.0
  %5702 = vmatpush1.msra.mxu0 0.0
  %5703 = vmatprep.subr.mxu0 0.0
  %5704 = vmatpush1.msra.mxu0 0.0
  %5705 = vmatprep.subr.mxu0 0.0
  %5706 = vmatpush1.msra.mxu0 0.0
  %5707 = vmatprep.subr.mxu0 0.0
  %5708 = vmatpush1.msra.mxu0 0.0
  %5709 = vmatprep.subr.mxu0 0.0
  %5710 = vmatpush1.msra.mxu0 0.0
  %5711 = vmatprep.subr.mxu0 0.0
  %5712 = vmatpush1.msra.mxu0 0.0
  %5713 = vmatprep.subr.mxu0 0.0
  %5714 = vmatpush1.msra.mxu0 0.0
  %5715 = vmatprep.subr.mxu0 0.0
  %5716 = vmatpush1.msra.mxu0 0.0
  %5717 = vmatprep.subr.mxu0 0.0
  %5718 = vmatpush1.msra.mxu0 0.0
  %5719 = vmatprep.subr.mxu0 0.0
  %5720 = vmatpush1.msra.mxu0 0.0
  %5721 = vmatprep.subr.mxu0 0.0
  %v5722 = vand.u32 %v5605, 4294901760
  %v5723 = vsub.f32 %v5605, %v5722
  %v5724 = vand.u32 %v5723, 4294901760
  %v5725 = vsub.f32 %v5723, %v5724
  %v5726 = vand.u32 %v5725, 4294901760
  %5727 = vmatpush1.msra.mxu0 %v5726
  %5728 = vmatprep.subr.mxu0 0.0
  %v5729 = vand.u32 %v5604, 4294901760
  %v5730 = vsub.f32 %v5604, %v5729
  %v5731 = vand.u32 %v5730, 4294901760
  %v5732 = vsub.f32 %v5730, %v5731
  %v5733 = vand.u32 %v5732, 4294901760
  %5734 = vmatpush1.msra.mxu0 %v5733
  %5735 = vmatprep.subr.mxu0 0.0
  %5736 = vmatpush2.msra.mxu0 0.0
  %5737 = vmatprep.subr.mxu0 0.0
  %5738 = vmatpush2.msra.mxu0 0.0
  %5739 = vmatprep.subr.mxu0 0.0
  %5740 = vmatpush2.msra.mxu0 0.0
  %5741 = vmatprep.subr.mxu0 0.0
  %5742 = vmatpush2.msra.mxu0 0.0
  %5743 = vmatprep.subr.mxu0 0.0
  %5744 = vmatpush2.msra.mxu0 0.0
  %5745 = vmatprep.subr.mxu0 0.0
  %5746 = vmatpush2.msra.mxu0 0.0
  %5747 = vmatprep.subr.mxu0 0.0
  %5748 = vmatpush2.msra.mxu0 0.0
  %5749 = vmatprep.subr.mxu0 0.0
  %5750 = vmatpush2.msra.mxu0 0.0
  %5751 = vmatprep.subr.mxu0 0.0
  %5752 = vmatpush2.msra.mxu0 0.0
  %5753 = vmatprep.subr.mxu0 0.0
  %5754 = vmatpush2.msra.mxu0 0.0
  %5755 = vmatprep.subr.mxu0 0.0
  %5756 = vmatpush2.msra.mxu0 0.0
  %5757 = vmatprep.subr.mxu0 0.0
  %5758 = vmatpush2.msra.mxu0 0.0
  %5759 = vmatprep.subr.mxu0 0.0
  %5760 = vmatpush2.msra.mxu0 0.0
  %5761 = vmatprep.subr.mxu0 0.0
  %5762 = vmatpush2.msra.mxu0 0.0
  %5763 = vmatprep.subr.mxu0 0.0
  %5764 = vmatpush2.msra.mxu0 0.0
  %5765 = vmatprep.subr.mxu0 0.0
  %5766 = vmatpush2.msra.mxu0 0.0
  %5767 = vmatprep.mubr.f32.mxu0 0.0
  %v5768 = vand.u32 %v785, 4294901760
  %5769 = vmatmul.mubr.f32.gmra.mxu0 %v5768
  %v5770 = vpop.f32.mrf.mxu0
  %v5771 = vadd.f32 %v5680, %v5770
  %v5772 = vpop.f32.mrf.mxu0
  %5773 = vmatprep.mubr.f32.mxu0 0.0
  %v5774 = vand.u32 %v788, 4294901760
  %5775 = vmatmul.mubr.f32.gmra.mxu0 %v5774
  %v5776 = vpop.f32.mrf.mxu0
  %v5777 = vadd.f32 %v5690, %v5776
  %v5778 = vpop.f32.mrf.mxu0
  %5779 = vdwg.mxu0
  %5780 = vmatprep.subr.mxu0 0.0
  %5781 = vmatpush1.msra.mxu0 0.0
  %5782 = vmatprep.subr.mxu0 0.0
  %5783 = vmatpush1.msra.mxu0 0.0
  %5784 = vmatprep.subr.mxu0 0.0
  %5785 = vmatpush1.msra.mxu0 0.0
  %5786 = vmatprep.subr.mxu0 0.0
  %5787 = vmatpush1.msra.mxu0 0.0
  %5788 = vmatprep.subr.mxu0 0.0
  %5789 = vmatpush1.msra.mxu0 0.0
  %5790 = vmatprep.subr.mxu0 0.0
  %5791 = vmatpush1.msra.mxu0 0.0
  %5792 = vmatprep.subr.mxu0 0.0
  %5793 = vmatpush1.msra.mxu0 0.0
  %5794 = vmatprep.subr.mxu0 0.0
  %5795 = vmatpush1.msra.mxu0 0.0
  %5796 = vmatprep.subr.mxu0 0.0
  %5797 = vmatpush1.msra.mxu0 0.0
  %5798 = vmatprep.subr.mxu0 0.0
  %5799 = vmatpush1.msra.mxu0 0.0
  %5800 = vmatprep.subr.mxu0 0.0
  %5801 = vmatpush1.msra.mxu0 0.0
  %5802 = vmatprep.subr.mxu0 0.0
  %5803 = vmatpush1.msra.mxu0 0.0
  %5804 = vmatprep.subr.mxu0 0.0
  %5805 = vmatpush1.msra.mxu0 0.0
  %5806 = vmatprep.subr.mxu0 0.0
  %5807 = vmatpush1.msra.mxu0 0.0
  %5808 = vmatprep.subr.mxu0 0.0
  %v5809 = vand.u32 %v5605, 4294901760
  %v5810 = vsub.f32 %v5605, %v5809
  %5811 = vmatpush1.msra.mxu0 %v5810
  %5812 = vmatprep.subr.mxu0 0.0
  %v5813 = vand.u32 %v5604, 4294901760
  %v5814 = vsub.f32 %v5604, %v5813
  %5815 = vmatpush1.msra.mxu0 %v5814
  %5816 = vmatprep.subr.mxu0 0.0
  %5817 = vmatpush2.msra.mxu0 0.0
  %5818 = vmatprep.subr.mxu0 0.0
  %5819 = vmatpush2.msra.mxu0 0.0
  %5820 = vmatprep.subr.mxu0 0.0
  %5821 = vmatpush2.msra.mxu0 0.0
  %5822 = vmatprep.subr.mxu0 0.0
  %5823 = vmatpush2.msra.mxu0 0.0
  %5824 = vmatprep.subr.mxu0 0.0
  %5825 = vmatpush2.msra.mxu0 0.0
  %5826 = vmatprep.subr.mxu0 0.0
  %5827 = vmatpush2.msra.mxu0 0.0
  %5828 = vmatprep.subr.mxu0 0.0
  %5829 = vmatpush2.msra.mxu0 0.0
  %5830 = vmatprep.subr.mxu0 0.0
  %5831 = vmatpush2.msra.mxu0 0.0
  %5832 = vmatprep.subr.mxu0 0.0
  %5833 = vmatpush2.msra.mxu0 0.0
  %5834 = vmatprep.subr.mxu0 0.0
  %5835 = vmatpush2.msra.mxu0 0.0
  %5836 = vmatprep.subr.mxu0 0.0
  %5837 = vmatpush2.msra.mxu0 0.0
  %5838 = vmatprep.subr.mxu0 0.0
  %5839 = vmatpush2.msra.mxu0 0.0
  %5840 = vmatprep.subr.mxu0 0.0
  %5841 = vmatpush2.msra.mxu0 0.0
  %5842 = vmatprep.subr.mxu0 0.0
  %5843 = vmatpush2.msra.mxu0 0.0
  %5844 = vmatprep.subr.mxu0 0.0
  %5845 = vmatpush2.msra.mxu0 0.0
  %5846 = vmatprep.subr.mxu0 0.0
  %5847 = vmatpush2.msra.mxu0 0.0
  %5848 = vmatprep.mubr.f32.mxu0 0.0
  %v5849 = vand.u32 %v785, 4294901760
  %v5850 = vsub.f32 %v785, %v5849
  %5851 = vmatmul.mubr.f32.gmra.mxu0 %v5850
  %v5852 = vpop.f32.mrf.mxu0
  %v5853 = vadd.f32 %v5771, %v5852
  %v5854 = vpop.f32.mrf.mxu0
  %5855 = vmatprep.mubr.f32.mxu0 0.0
  %v5856 = vand.u32 %v788, 4294901760
  %v5857 = vsub.f32 %v788, %v5856
  %5858 = vmatmul.mubr.f32.gmra.mxu0 %v5857
  %v5859 = vpop.f32.mrf.mxu0
  %v5860 = vadd.f32 %v5777, %v5859
  %v5861 = vpop.f32.mrf.mxu0
  %5862 = vdwg.mxu0
  %5863 = vmatprep.subr.mxu0 0.0
  %5864 = vmatpush1.msra.mxu0 0.0
  %5865 = vmatprep.subr.mxu0 0.0
  %5866 = vmatpush1.msra.mxu0 0.0
  %5867 = vmatprep.subr.mxu0 0.0
  %5868 = vmatpush1.msra.mxu0 0.0
  %5869 = vmatprep.subr.mxu0 0.0
  %5870 = vmatpush1.msra.mxu0 0.0
  %5871 = vmatprep.subr.mxu0 0.0
  %5872 = vmatpush1.msra.mxu0 0.0
  %5873 = vmatprep.subr.mxu0 0.0
  %5874 = vmatpush1.msra.mxu0 0.0
  %5875 = vmatprep.subr.mxu0 0.0
  %5876 = vmatpush1.msra.mxu0 0.0
  %5877 = vmatprep.subr.mxu0 0.0
  %5878 = vmatpush1.msra.mxu0 0.0
  %5879 = vmatprep.subr.mxu0 0.0
  %5880 = vmatpush1.msra.mxu0 0.0
  %5881 = vmatprep.subr.mxu0 0.0
  %5882 = vmatpush1.msra.mxu0 0.0
  %5883 = vmatprep.subr.mxu0 0.0
  %5884 = vmatpush1.msra.mxu0 0.0
  %5885 = vmatprep.subr.mxu0 0.0
  %5886 = vmatpush1.msra.mxu0 0.0
  %5887 = vmatprep.subr.mxu0 0.0
  %5888 = vmatpush1.msra.mxu0 0.0
  %5889 = vmatprep.subr.mxu0 0.0
  %5890 = vmatpush1.msra.mxu0 0.0
  %5891 = vmatprep.subr.mxu0 0.0
  %v5892 = vand.u32 %v5605, 4294901760
  %5893 = vmatpush1.msra.mxu0 %v5892
  %5894 = vmatprep.subr.mxu0 0.0
  %v5895 = vand.u32 %v5604, 4294901760
  %5896 = vmatpush1.msra.mxu0 %v5895
  %5897 = vmatprep.subr.mxu0 0.0
  %5898 = vmatpush2.msra.mxu0 0.0
  %5899 = vmatprep.subr.mxu0 0.0
  %5900 = vmatpush2.msra.mxu0 0.0
  %5901 = vmatprep.subr.mxu0 0.0
  %5902 = vmatpush2.msra.mxu0 0.0
  %5903 = vmatprep.subr.mxu0 0.0
  %5904 = vmatpush2.msra.mxu0 0.0
  %5905 = vmatprep.subr.mxu0 0.0
  %5906 = vmatpush2.msra.mxu0 0.0
  %5907 = vmatprep.subr.mxu0 0.0
  %5908 = vmatpush2.msra.mxu0 0.0
  %5909 = vmatprep.subr.mxu0 0.0
  %5910 = vmatpush2.msra.mxu0 0.0
  %5911 = vmatprep.subr.mxu0 0.0
  %5912 = vmatpush2.msra.mxu0 0.0
  %5913 = vmatprep.subr.mxu0 0.0
  %5914 = vmatpush2.msra.mxu0 0.0
  %5915 = vmatprep.subr.mxu0 0.0
  %5916 = vmatpush2.msra.mxu0 0.0
  %5917 = vmatprep.subr.mxu0 0.0
  %5918 = vmatpush2.msra.mxu0 0.0
  %5919 = vmatprep.subr.mxu0 0.0
  %5920 = vmatpush2.msra.mxu0 0.0
  %5921 = vmatprep.subr.mxu0 0.0
  %5922 = vmatpush2.msra.mxu0 0.0
  %5923 = vmatprep.subr.mxu0 0.0
  %5924 = vmatpush2.msra.mxu0 0.0
  %5925 = vmatprep.subr.mxu0 0.0
  %5926 = vmatpush2.msra.mxu0 0.0
  %5927 = vmatprep.subr.mxu0 0.0
  %5928 = vmatpush2.msra.mxu0 0.0
  %5929 = vmatprep.mubr.f32.mxu0 0.0
  %v5930 = vand.u32 %v785, 4294901760
  %v5931 = vsub.f32 %v785, %v5930
  %v5932 = vand.u32 %v5931, 4294901760
  %5933 = vmatmul.mubr.f32.gmra.mxu0 %v5932
  %v5934 = vpop.f32.mrf.mxu0
  %v5935 = vadd.f32 %v5853, %v5934
  %v5936 = vpop.f32.mrf.mxu0
  %5937 = vmatprep.mubr.f32.mxu0 0.0
  %v5938 = vand.u32 %v788, 4294901760
  %v5939 = vsub.f32 %v788, %v5938
  %v5940 = vand.u32 %v5939, 4294901760
  %5941 = vmatmul.mubr.f32.gmra.mxu0 %v5940
  %v5942 = vpop.f32.mrf.mxu0
  %v5943 = vadd.f32 %v5860, %v5942
  %v5944 = vpop.f32.mrf.mxu0
  %5945 = vdwg.mxu0
  %5946 = vmatprep.subr.mxu0 0.0
  %5947 = vmatpush1.msra.mxu0 0.0
  %5948 = vmatprep.subr.mxu0 0.0
  %5949 = vmatpush1.msra.mxu0 0.0
  %5950 = vmatprep.subr.mxu0 0.0
  %5951 = vmatpush1.msra.mxu0 0.0
  %5952 = vmatprep.subr.mxu0 0.0
  %5953 = vmatpush1.msra.mxu0 0.0
  %5954 = vmatprep.subr.mxu0 0.0
  %5955 = vmatpush1.msra.mxu0 0.0
  %5956 = vmatprep.subr.mxu0 0.0
  %5957 = vmatpush1.msra.mxu0 0.0
  %5958 = vmatprep.subr.mxu0 0.0
  %5959 = vmatpush1.msra.mxu0 0.0
  %5960 = vmatprep.subr.mxu0 0.0
  %5961 = vmatpush1.msra.mxu0 0.0
  %5962 = vmatprep.subr.mxu0 0.0
  %5963 = vmatpush1.msra.mxu0 0.0
  %5964 = vmatprep.subr.mxu0 0.0
  %5965 = vmatpush1.msra.mxu0 0.0
  %5966 = vmatprep.subr.mxu0 0.0
  %5967 = vmatpush1.msra.mxu0 0.0
  %5968 = vmatprep.subr.mxu0 0.0
  %5969 = vmatpush1.msra.mxu0 0.0
  %5970 = vmatprep.subr.mxu0 0.0
  %5971 = vmatpush1.msra.mxu0 0.0
  %5972 = vmatprep.subr.mxu0 0.0
  %5973 = vmatpush1.msra.mxu0 0.0
  %5974 = vmatprep.subr.mxu0 0.0
  %v5975 = vand.u32 %v5605, 4294901760
  %v5976 = vsub.f32 %v5605, %v5975
  %v5977 = vand.u32 %v5976, 4294901760
  %5978 = vmatpush1.msra.mxu0 %v5977
  %5979 = vmatprep.subr.mxu0 0.0
  %v5980 = vand.u32 %v5604, 4294901760
  %v5981 = vsub.f32 %v5604, %v5980
  %v5982 = vand.u32 %v5981, 4294901760
  %5983 = vmatpush1.msra.mxu0 %v5982
  %5984 = vmatprep.subr.mxu0 0.0
  %5985 = vmatpush2.msra.mxu0 0.0
  %5986 = vmatprep.subr.mxu0 0.0
  %5987 = vmatpush2.msra.mxu0 0.0
  %5988 = vmatprep.subr.mxu0 0.0
  %5989 = vmatpush2.msra.mxu0 0.0
  %5990 = vmatprep.subr.mxu0 0.0
  %5991 = vmatpush2.msra.mxu0 0.0
  %5992 = vmatprep.subr.mxu0 0.0
  %5993 = vmatpush2.msra.mxu0 0.0
  %5994 = vmatprep.subr.mxu0 0.0
  %5995 = vmatpush2.msra.mxu0 0.0
  %5996 = vmatprep.subr.mxu0 0.0
  %5997 = vmatpush2.msra.mxu0 0.0
  %5998 = vmatprep.subr.mxu0 0.0
  %5999 = vmatpush2.msra.mxu0 0.0
  %6000 = vmatprep.subr.mxu0 0.0
  %6001 = vmatpush2.msra.mxu0 0.0
  %6002 = vmatprep.subr.mxu0 0.0
  %6003 = vmatpush2.msra.mxu0 0.0
  %6004 = vmatprep.subr.mxu0 0.0
  %6005 = vmatpush2.msra.mxu0 0.0
  %6006 = vmatprep.subr.mxu0 0.0
  %6007 = vmatpush2.msra.mxu0 0.0
  %6008 = vmatprep.subr.mxu0 0.0
  %6009 = vmatpush2.msra.mxu0 0.0
  %6010 = vmatprep.subr.mxu0 0.0
  %6011 = vmatpush2.msra.mxu0 0.0
  %6012 = vmatprep.subr.mxu0 0.0
  %6013 = vmatpush2.msra.mxu0 0.0
  %6014 = vmatprep.subr.mxu0 0.0
  %6015 = vmatpush2.msra.mxu0 0.0
  %6016 = vmatprep.mubr.f32.mxu0 0.0
  %v6017 = vand.u32 %v785, 4294901760
  %6018 = vmatmul.mubr.f32.gmra.mxu0 %v6017
  %v6019 = vpop.f32.mrf.mxu0
  %v6020 = vadd.f32 %v5935, %v6019
  %v6021 = vpop.f32.mrf.mxu0
  %6022 = vmatprep.mubr.f32.mxu0 0.0
  %v6023 = vand.u32 %v788, 4294901760
  %6024 = vmatmul.mubr.f32.gmra.mxu0 %v6023
  %v6025 = vpop.f32.mrf.mxu0
  %v6026 = vadd.f32 %v5943, %v6025
  %v6027 = vpop.f32.mrf.mxu0
  %6028 = vdwg.mxu0
  %6029 = vmatprep.subr.mxu0 0.0
  %6030 = vmatpush1.msra.mxu0 0.0
  %6031 = vmatprep.subr.mxu0 0.0
  %6032 = vmatpush1.msra.mxu0 0.0
  %6033 = vmatprep.subr.mxu0 0.0
  %6034 = vmatpush1.msra.mxu0 0.0
  %6035 = vmatprep.subr.mxu0 0.0
  %6036 = vmatpush1.msra.mxu0 0.0
  %6037 = vmatprep.subr.mxu0 0.0
  %6038 = vmatpush1.msra.mxu0 0.0
  %6039 = vmatprep.subr.mxu0 0.0
  %6040 = vmatpush1.msra.mxu0 0.0
  %6041 = vmatprep.subr.mxu0 0.0
  %6042 = vmatpush1.msra.mxu0 0.0
  %6043 = vmatprep.subr.mxu0 0.0
  %6044 = vmatpush1.msra.mxu0 0.0
  %6045 = vmatprep.subr.mxu0 0.0
  %6046 = vmatpush1.msra.mxu0 0.0
  %6047 = vmatprep.subr.mxu0 0.0
  %6048 = vmatpush1.msra.mxu0 0.0
  %6049 = vmatprep.subr.mxu0 0.0
  %6050 = vmatpush1.msra.mxu0 0.0
  %6051 = vmatprep.subr.mxu0 0.0
  %6052 = vmatpush1.msra.mxu0 0.0
  %6053 = vmatprep.subr.mxu0 0.0
  %6054 = vmatpush1.msra.mxu0 0.0
  %6055 = vmatprep.subr.mxu0 0.0
  %6056 = vmatpush1.msra.mxu0 0.0
  %6057 = vmatprep.subr.mxu0 0.0
  %v6058 = vand.u32 %v5605, 4294901760
  %6059 = vmatpush1.msra.mxu0 %v6058
  %6060 = vmatprep.subr.mxu0 0.0
  %v6061 = vand.u32 %v5604, 4294901760
  %6062 = vmatpush1.msra.mxu0 %v6061
  %6063 = vmatprep.subr.mxu0 0.0
  %6064 = vmatpush2.msra.mxu0 0.0
  %6065 = vmatprep.subr.mxu0 0.0
  %6066 = vmatpush2.msra.mxu0 0.0
  %6067 = vmatprep.subr.mxu0 0.0
  %6068 = vmatpush2.msra.mxu0 0.0
  %6069 = vmatprep.subr.mxu0 0.0
  %6070 = vmatpush2.msra.mxu0 0.0
  %6071 = vmatprep.subr.mxu0 0.0
  %6072 = vmatpush2.msra.mxu0 0.0
  %6073 = vmatprep.subr.mxu0 0.0
  %6074 = vmatpush2.msra.mxu0 0.0
  %6075 = vmatprep.subr.mxu0 0.0
  %6076 = vmatpush2.msra.mxu0 0.0
  %6077 = vmatprep.subr.mxu0 0.0
  %6078 = vmatpush2.msra.mxu0 0.0
  %6079 = vmatprep.subr.mxu0 0.0
  %6080 = vmatpush2.msra.mxu0 0.0
  %6081 = vmatprep.subr.mxu0 0.0
  %6082 = vmatpush2.msra.mxu0 0.0
  %6083 = vmatprep.subr.mxu0 0.0
  %6084 = vmatpush2.msra.mxu0 0.0
  %6085 = vmatprep.subr.mxu0 0.0
  %6086 = vmatpush2.msra.mxu0 0.0
  %6087 = vmatprep.subr.mxu0 0.0
  %6088 = vmatpush2.msra.mxu0 0.0
  %6089 = vmatprep.subr.mxu0 0.0
  %6090 = vmatpush2.msra.mxu0 0.0
  %6091 = vmatprep.subr.mxu0 0.0
  %6092 = vmatpush2.msra.mxu0 0.0
  %6093 = vmatprep.subr.mxu0 0.0
  %6094 = vmatpush2.msra.mxu0 0.0
  %6095 = vmatprep.mubr.f32.mxu0 0.0
  %v6096 = vand.u32 %v785, 4294901760
  %6097 = vmatmul.mubr.f32.gmra.mxu0 %v6096
  %v6098 = vpop.f32.mrf.mxu0
  %v6099 = vadd.f32 %v6020, %v6098
  %v6100 = vpop.f32.mrf.mxu0
  %6101 = vmatprep.mubr.f32.mxu0 0.0
  %v6102 = vand.u32 %v788, 4294901760
  %6103 = vmatmul.mubr.f32.gmra.mxu0 %v6102
  %v6104 = vpop.f32.mrf.mxu0
  %v6105 = vadd.f32 %v6026, %v6104
  %v6106 = vpop.f32.mrf.mxu0
  %6107 = vdwg.mxu0
  %v6108 = vld [vmem:[%s7] sm:$0xff]
  %v6109 = vld [vmem:[%s7 + $0x8] sm:$0xff]
  %v6110 = vld [vmem:[%s7 + $0x10] sm:$0xff]
  %v6111 = vld [vmem:[%s7 + $0x18] sm:$0xff]
  %v6112 = vld [vmem:[%s7 + $0x20] sm:$0xff]
  %v6113 = vld [vmem:[%s7 + $0x28] sm:$0xff]
  %v6114 = vld [vmem:[%s7 + $0x30] sm:$0xff]
  %v6115 = vld [vmem:[%s7 + $0x38] sm:$0xff]
  %v6116 = vld [vmem:[%s7 + $0x40] sm:$0xff]
  %v6117 = vld [vmem:[%s7 + $0x48] sm:$0xff]
  %v6118 = vld [vmem:[%s7 + $0x50] sm:$0xff]
  %v6119 = vld [vmem:[%s7 + $0x58] sm:$0xff]
  %v6120 = vld [vmem:[%s7 + $0x60] sm:$0xff]
  %v6121 = vld [vmem:[%s7 + $0x68] sm:$0xff]
  %v6122 = vld [vmem:[%s7 + $0x70] sm:$0xff]
  %v6123 = vld [vmem:[%s7 + $0x78] sm:$0xff]
  %6124 = vmatprep.subr.mxu0 0.0
  %v6125 = vand.u32 %v6123, 4294901760
  %6126 = vmatpush1.msra.mxu0 %v6125
  %6127 = vmatprep.subr.mxu0 0.0
  %v6128 = vand.u32 %v6122, 4294901760
  %6129 = vmatpush1.msra.mxu0 %v6128
  %6130 = vmatprep.subr.mxu0 0.0
  %v6131 = vand.u32 %v6121, 4294901760
  %6132 = vmatpush1.msra.mxu0 %v6131
  %6133 = vmatprep.subr.mxu0 0.0
  %v6134 = vand.u32 %v6120, 4294901760
  %6135 = vmatpush1.msra.mxu0 %v6134
  %6136 = vmatprep.subr.mxu0 0.0
  %v6137 = vand.u32 %v6119, 4294901760
  %6138 = vmatpush1.msra.mxu0 %v6137
  %6139 = vmatprep.subr.mxu0 0.0
  %v6140 = vand.u32 %v6118, 4294901760
  %6141 = vmatpush1.msra.mxu0 %v6140
  %6142 = vmatprep.subr.mxu0 0.0
  %v6143 = vand.u32 %v6117, 4294901760
  %6144 = vmatpush1.msra.mxu0 %v6143
  %6145 = vmatprep.subr.mxu0 0.0
  %v6146 = vand.u32 %v6116, 4294901760
  %6147 = vmatpush1.msra.mxu0 %v6146
  %6148 = vmatprep.subr.mxu0 0.0
  %v6149 = vand.u32 %v6115, 4294901760
  %6150 = vmatpush1.msra.mxu0 %v6149
  %6151 = vmatprep.subr.mxu0 0.0
  %v6152 = vand.u32 %v6114, 4294901760
  %6153 = vmatpush1.msra.mxu0 %v6152
  %6154 = vmatprep.subr.mxu0 0.0
  %v6155 = vand.u32 %v6113, 4294901760
  %6156 = vmatpush1.msra.mxu0 %v6155
  %6157 = vmatprep.subr.mxu0 0.0
  %v6158 = vand.u32 %v6112, 4294901760
  %6159 = vmatpush1.msra.mxu0 %v6158
  %6160 = vmatprep.subr.mxu0 0.0
  %v6161 = vand.u32 %v6111, 4294901760
  %6162 = vmatpush1.msra.mxu0 %v6161
  %6163 = vmatprep.subr.mxu0 0.0
  %v6164 = vand.u32 %v6110, 4294901760
  %6165 = vmatpush1.msra.mxu0 %v6164
  %6166 = vmatprep.subr.mxu0 0.0
  %v6167 = vand.u32 %v6109, 4294901760
  %6168 = vmatpush1.msra.mxu0 %v6167
  %6169 = vmatprep.subr.mxu0 0.0
  %v6170 = vand.u32 %v6108, 4294901760
  %6171 = vmatpush1.msra.mxu0 %v6170
  %6172 = vmatprep.subr.mxu0 0.0
  %6173 = vmatpush2.msra.mxu0 0.0
  %6174 = vmatprep.subr.mxu0 0.0
  %6175 = vmatpush2.msra.mxu0 0.0
  %6176 = vmatprep.subr.mxu0 0.0
  %6177 = vmatpush2.msra.mxu0 0.0
  %6178 = vmatprep.subr.mxu0 0.0
  %6179 = vmatpush2.msra.mxu0 0.0
  %6180 = vmatprep.subr.mxu0 0.0
  %6181 = vmatpush2.msra.mxu0 0.0
  %6182 = vmatprep.subr.mxu0 0.0
  %6183 = vmatpush2.msra.mxu0 0.0
  %6184 = vmatprep.subr.mxu0 0.0
  %6185 = vmatpush2.msra.mxu0 0.0
  %6186 = vmatprep.subr.mxu0 0.0
  %6187 = vmatpush2.msra.mxu0 0.0
  %6188 = vmatprep.subr.mxu0 0.0
  %6189 = vmatpush2.msra.mxu0 0.0
  %6190 = vmatprep.subr.mxu0 0.0
  %6191 = vmatpush2.msra.mxu0 0.0
  %6192 = vmatprep.subr.mxu0 0.0
  %6193 = vmatpush2.msra.mxu0 0.0
  %6194 = vmatprep.subr.mxu0 0.0
  %6195 = vmatpush2.msra.mxu0 0.0
  %6196 = vmatprep.subr.mxu0 0.0
  %6197 = vmatpush2.msra.mxu0 0.0
  %6198 = vmatprep.subr.mxu0 0.0
  %6199 = vmatpush2.msra.mxu0 0.0
  %6200 = vmatprep.subr.mxu0 0.0
  %6201 = vmatpush2.msra.mxu0 0.0
  %6202 = vmatprep.subr.mxu0 0.0
  %6203 = vmatpush2.msra.mxu0 0.0
  %6204 = vmatprep.mubr.f32.mxu0 0.0
  %v6205 = vand.u32 %v6099, 4294901760
  %v6206 = vsub.f32 %v6099, %v6205
  %v6207 = vand.u32 %v6206, 4294901760
  %v6208 = vsub.f32 %v6206, %v6207
  %v6209 = vand.u32 %v6208, 4294901760
  %6210 = vmatmul.mubr.f32.gmra.mxu0 %v6209
  %v6211 = vpop.f32.mrf.mxu0
  %v6212 = vadd.f32 0.0, %v6211
  %v6213 = vpop.f32.mrf.mxu0
  %6214 = vmatprep.mubr.f32.mxu0 0.0
  %v6215 = vand.u32 %v6105, 4294901760
  %v6216 = vsub.f32 %v6105, %v6215
  %v6217 = vand.u32 %v6216, 4294901760
  %v6218 = vsub.f32 %v6216, %v6217
  %v6219 = vand.u32 %v6218, 4294901760
  %6220 = vmatmul.mubr.f32.gmra.mxu0 %v6219
  %v6221 = vpop.f32.mrf.mxu0
  %v6222 = vadd.f32 0.0, %v6221
  %v6223 = vpop.f32.mrf.mxu0
  %6224 = vdwg.mxu0
  %6225 = vmatprep.subr.mxu0 0.0
  %v6226 = vand.u32 %v6123, 4294901760
  %v6227 = vsub.f32 %v6123, %v6226
  %v6228 = vand.u32 %v6227, 4294901760
  %v6229 = vsub.f32 %v6227, %v6228
  %v6230 = vand.u32 %v6229, 4294901760
  %6231 = vmatpush1.msra.mxu0 %v6230
  %6232 = vmatprep.subr.mxu0 0.0
  %v6233 = vand.u32 %v6122, 4294901760
  %v6234 = vsub.f32 %v6122, %v6233
  %v6235 = vand.u32 %v6234, 4294901760
  %v6236 = vsub.f32 %v6234, %v6235
  %v6237 = vand.u32 %v6236, 4294901760
  %6238 = vmatpush1.msra.mxu0 %v6237
  %6239 = vmatprep.subr.mxu0 0.0
  %v6240 = vand.u32 %v6121, 4294901760
  %v6241 = vsub.f32 %v6121, %v6240
  %v6242 = vand.u32 %v6241, 4294901760
  %v6243 = vsub.f32 %v6241, %v6242
  %v6244 = vand.u32 %v6243, 4294901760
  %6245 = vmatpush1.msra.mxu0 %v6244
  %6246 = vmatprep.subr.mxu0 0.0
  %v6247 = vand.u32 %v6120, 4294901760
  %v6248 = vsub.f32 %v6120, %v6247
  %v6249 = vand.u32 %v6248, 4294901760
  %v6250 = vsub.f32 %v6248, %v6249
  %v6251 = vand.u32 %v6250, 4294901760
  %6252 = vmatpush1.msra.mxu0 %v6251
  %6253 = vmatprep.subr.mxu0 0.0
  %v6254 = vand.u32 %v6119, 4294901760
  %v6255 = vsub.f32 %v6119, %v6254
  %v6256 = vand.u32 %v6255, 4294901760
  %v6257 = vsub.f32 %v6255, %v6256
  %v6258 = vand.u32 %v6257, 4294901760
  %6259 = vmatpush1.msra.mxu0 %v6258
  %6260 = vmatprep.subr.mxu0 0.0
  %v6261 = vand.u32 %v6118, 4294901760
  %v6262 = vsub.f32 %v6118, %v6261
  %v6263 = vand.u32 %v6262, 4294901760
  %v6264 = vsub.f32 %v6262, %v6263
  %v6265 = vand.u32 %v6264, 4294901760
  %6266 = vmatpush1.msra.mxu0 %v6265
  %6267 = vmatprep.subr.mxu0 0.0
  %v6268 = vand.u32 %v6117, 4294901760
  %v6269 = vsub.f32 %v6117, %v6268
  %v6270 = vand.u32 %v6269, 4294901760
  %v6271 = vsub.f32 %v6269, %v6270
  %v6272 = vand.u32 %v6271, 4294901760
  %6273 = vmatpush1.msra.mxu0 %v6272
  %6274 = vmatprep.subr.mxu0 0.0
  %v6275 = vand.u32 %v6116, 4294901760
  %v6276 = vsub.f32 %v6116, %v6275
  %v6277 = vand.u32 %v6276, 4294901760
  %v6278 = vsub.f32 %v6276, %v6277
  %v6279 = vand.u32 %v6278, 4294901760
  %6280 = vmatpush1.msra.mxu0 %v6279
  %6281 = vmatprep.subr.mxu0 0.0
  %v6282 = vand.u32 %v6115, 4294901760
  %v6283 = vsub.f32 %v6115, %v6282
  %v6284 = vand.u32 %v6283, 4294901760
  %v6285 = vsub.f32 %v6283, %v6284
  %v6286 = vand.u32 %v6285, 4294901760
  %6287 = vmatpush1.msra.mxu0 %v6286
  %6288 = vmatprep.subr.mxu0 0.0
  %v6289 = vand.u32 %v6114, 4294901760
  %v6290 = vsub.f32 %v6114, %v6289
  %v6291 = vand.u32 %v6290, 4294901760
  %v6292 = vsub.f32 %v6290, %v6291
  %v6293 = vand.u32 %v6292, 4294901760
  %6294 = vmatpush1.msra.mxu0 %v6293
  %6295 = vmatprep.subr.mxu0 0.0
  %v6296 = vand.u32 %v6113, 4294901760
  %v6297 = vsub.f32 %v6113, %v6296
  %v6298 = vand.u32 %v6297, 4294901760
  %v6299 = vsub.f32 %v6297, %v6298
  %v6300 = vand.u32 %v6299, 4294901760
  %6301 = vmatpush1.msra.mxu0 %v6300
  %6302 = vmatprep.subr.mxu0 0.0
  %v6303 = vand.u32 %v6112, 4294901760
  %v6304 = vsub.f32 %v6112, %v6303
  %v6305 = vand.u32 %v6304, 4294901760
  %v6306 = vsub.f32 %v6304, %v6305
  %v6307 = vand.u32 %v6306, 4294901760
  %6308 = vmatpush1.msra.mxu0 %v6307
  %6309 = vmatprep.subr.mxu0 0.0
  %v6310 = vand.u32 %v6111, 4294901760
  %v6311 = vsub.f32 %v6111, %v6310
  %v6312 = vand.u32 %v6311, 4294901760
  %v6313 = vsub.f32 %v6311, %v6312
  %v6314 = vand.u32 %v6313, 4294901760
  %6315 = vmatpush1.msra.mxu0 %v6314
  %6316 = vmatprep.subr.mxu0 0.0
  %v6317 = vand.u32 %v6110, 4294901760
  %v6318 = vsub.f32 %v6110, %v6317
  %v6319 = vand.u32 %v6318, 4294901760
  %v6320 = vsub.f32 %v6318, %v6319
  %v6321 = vand.u32 %v6320, 4294901760
  %6322 = vmatpush1.msra.mxu0 %v6321
  %6323 = vmatprep.subr.mxu0 0.0
  %v6324 = vand.u32 %v6109, 4294901760
  %v6325 = vsub.f32 %v6109, %v6324
  %v6326 = vand.u32 %v6325, 4294901760
  %v6327 = vsub.f32 %v6325, %v6326
  %v6328 = vand.u32 %v6327, 4294901760
  %6329 = vmatpush1.msra.mxu0 %v6328
  %6330 = vmatprep.subr.mxu0 0.0
  %v6331 = vand.u32 %v6108, 4294901760
  %v6332 = vsub.f32 %v6108, %v6331
  %v6333 = vand.u32 %v6332, 4294901760
  %v6334 = vsub.f32 %v6332, %v6333
  %v6335 = vand.u32 %v6334, 4294901760
  %6336 = vmatpush1.msra.mxu0 %v6335
  %6337 = vmatprep.subr.mxu0 0.0
  %6338 = vmatpush2.msra.mxu0 0.0
  %6339 = vmatprep.subr.mxu0 0.0
  %6340 = vmatpush2.msra.mxu0 0.0
  %6341 = vmatprep.subr.mxu0 0.0
  %6342 = vmatpush2.msra.mxu0 0.0
  %6343 = vmatprep.subr.mxu0 0.0
  %6344 = vmatpush2.msra.mxu0 0.0
  %6345 = vmatprep.subr.mxu0 0.0
  %6346 = vmatpush2.msra.mxu0 0.0
  %6347 = vmatprep.subr.mxu0 0.0
  %6348 = vmatpush2.msra.mxu0 0.0
  %6349 = vmatprep.subr.mxu0 0.0
  %6350 = vmatpush2.msra.mxu0 0.0
  %6351 = vmatprep.subr.mxu0 0.0
  %6352 = vmatpush2.msra.mxu0 0.0
  %6353 = vmatprep.subr.mxu0 0.0
  %6354 = vmatpush2.msra.mxu0 0.0
  %6355 = vmatprep.subr.mxu0 0.0
  %6356 = vmatpush2.msra.mxu0 0.0
  %6357 = vmatprep.subr.mxu0 0.0
  %6358 = vmatpush2.msra.mxu0 0.0
  %6359 = vmatprep.subr.mxu0 0.0
  %6360 = vmatpush2.msra.mxu0 0.0
  %6361 = vmatprep.subr.mxu0 0.0
  %6362 = vmatpush2.msra.mxu0 0.0
  %6363 = vmatprep.subr.mxu0 0.0
  %6364 = vmatpush2.msra.mxu0 0.0
  %6365 = vmatprep.subr.mxu0 0.0
  %6366 = vmatpush2.msra.mxu0 0.0
  %6367 = vmatprep.subr.mxu0 0.0
  %6368 = vmatpush2.msra.mxu0 0.0
  %6369 = vmatprep.mubr.f32.mxu0 0.0
  %v6370 = vand.u32 %v6099, 4294901760
  %6371 = vmatmul.mubr.f32.gmra.mxu0 %v6370
  %v6372 = vpop.f32.mrf.mxu0
  %v6373 = vadd.f32 %v6212, %v6372
  %v6374 = vpop.f32.mrf.mxu0
  %6375 = vmatprep.mubr.f32.mxu0 0.0
  %v6376 = vand.u32 %v6105, 4294901760
  %6377 = vmatmul.mubr.f32.gmra.mxu0 %v6376
  %v6378 = vpop.f32.mrf.mxu0
  %v6379 = vadd.f32 %v6222, %v6378
  %v6380 = vpop.f32.mrf.mxu0
  %6381 = vdwg.mxu0
  %6382 = vmatprep.subr.mxu0 0.0
  %v6383 = vand.u32 %v6123, 4294901760
  %v6384 = vsub.f32 %v6123, %v6383
  %6385 = vmatpush1.msra.mxu0 %v6384
  %6386 = vmatprep.subr.mxu0 0.0
  %v6387 = vand.u32 %v6122, 4294901760
  %v6388 = vsub.f32 %v6122, %v6387
  %6389 = vmatpush1.msra.mxu0 %v6388
  %6390 = vmatprep.subr.mxu0 0.0
  %v6391 = vand.u32 %v6121, 4294901760
  %v6392 = vsub.f32 %v6121, %v6391
  %6393 = vmatpush1.msra.mxu0 %v6392
  %6394 = vmatprep.subr.mxu0 0.0
  %v6395 = vand.u32 %v6120, 4294901760
  %v6396 = vsub.f32 %v6120, %v6395
  %6397 = vmatpush1.msra.mxu0 %v6396
  %6398 = vmatprep.subr.mxu0 0.0
  %v6399 = vand.u32 %v6119, 4294901760
  %v6400 = vsub.f32 %v6119, %v6399
  %6401 = vmatpush1.msra.mxu0 %v6400
  %6402 = vmatprep.subr.mxu0 0.0
  %v6403 = vand.u32 %v6118, 4294901760
  %v6404 = vsub.f32 %v6118, %v6403
  %6405 = vmatpush1.msra.mxu0 %v6404
  %6406 = vmatprep.subr.mxu0 0.0
  %v6407 = vand.u32 %v6117, 4294901760
  %v6408 = vsub.f32 %v6117, %v6407
  %6409 = vmatpush1.msra.mxu0 %v6408
  %6410 = vmatprep.subr.mxu0 0.0
  %v6411 = vand.u32 %v6116, 4294901760
  %v6412 = vsub.f32 %v6116, %v6411
  %6413 = vmatpush1.msra.mxu0 %v6412
  %6414 = vmatprep.subr.mxu0 0.0
  %v6415 = vand.u32 %v6115, 4294901760
  %v6416 = vsub.f32 %v6115, %v6415
  %6417 = vmatpush1.msra.mxu0 %v6416
  %6418 = vmatprep.subr.mxu0 0.0
  %v6419 = vand.u32 %v6114, 4294901760
  %v6420 = vsub.f32 %v6114, %v6419
  %6421 = vmatpush1.msra.mxu0 %v6420
  %6422 = vmatprep.subr.mxu0 0.0
  %v6423 = vand.u32 %v6113, 4294901760
  %v6424 = vsub.f32 %v6113, %v6423
  %6425 = vmatpush1.msra.mxu0 %v6424
  %6426 = vmatprep.subr.mxu0 0.0
  %v6427 = vand.u32 %v6112, 4294901760
  %v6428 = vsub.f32 %v6112, %v6427
  %6429 = vmatpush1.msra.mxu0 %v6428
  %6430 = vmatprep.subr.mxu0 0.0
  %v6431 = vand.u32 %v6111, 4294901760
  %v6432 = vsub.f32 %v6111, %v6431
  %6433 = vmatpush1.msra.mxu0 %v6432
  %6434 = vmatprep.subr.mxu0 0.0
  %v6435 = vand.u32 %v6110, 4294901760
  %v6436 = vsub.f32 %v6110, %v6435
  %6437 = vmatpush1.msra.mxu0 %v6436
  %6438 = vmatprep.subr.mxu0 0.0
  %v6439 = vand.u32 %v6109, 4294901760
  %v6440 = vsub.f32 %v6109, %v6439
  %6441 = vmatpush1.msra.mxu0 %v6440
  %6442 = vmatprep.subr.mxu0 0.0
  %v6443 = vand.u32 %v6108, 4294901760
  %v6444 = vsub.f32 %v6108, %v6443
  %6445 = vmatpush1.msra.mxu0 %v6444
  %6446 = vmatprep.subr.mxu0 0.0
  %6447 = vmatpush2.msra.mxu0 0.0
  %6448 = vmatprep.subr.mxu0 0.0
  %6449 = vmatpush2.msra.mxu0 0.0
  %6450 = vmatprep.subr.mxu0 0.0
  %6451 = vmatpush2.msra.mxu0 0.0
  %6452 = vmatprep.subr.mxu0 0.0
  %6453 = vmatpush2.msra.mxu0 0.0
  %6454 = vmatprep.subr.mxu0 0.0
  %6455 = vmatpush2.msra.mxu0 0.0
  %6456 = vmatprep.subr.mxu0 0.0
  %6457 = vmatpush2.msra.mxu0 0.0
  %6458 = vmatprep.subr.mxu0 0.0
  %6459 = vmatpush2.msra.mxu0 0.0
  %6460 = vmatprep.subr.mxu0 0.0
  %6461 = vmatpush2.msra.mxu0 0.0
  %6462 = vmatprep.subr.mxu0 0.0
  %6463 = vmatpush2.msra.mxu0 0.0
  %6464 = vmatprep.subr.mxu0 0.0
  %6465 = vmatpush2.msra.mxu0 0.0
  %6466 = vmatprep.subr.mxu0 0.0
  %6467 = vmatpush2.msra.mxu0 0.0
  %6468 = vmatprep.subr.mxu0 0.0
  %6469 = vmatpush2.msra.mxu0 0.0
  %6470 = vmatprep.subr.mxu0 0.0
  %6471 = vmatpush2.msra.mxu0 0.0
  %6472 = vmatprep.subr.mxu0 0.0
  %6473 = vmatpush2.msra.mxu0 0.0
  %6474 = vmatprep.subr.mxu0 0.0
  %6475 = vmatpush2.msra.mxu0 0.0
  %6476 = vmatprep.subr.mxu0 0.0
  %6477 = vmatpush2.msra.mxu0 0.0
  %6478 = vmatprep.mubr.f32.mxu0 0.0
  %v6479 = vand.u32 %v6099, 4294901760
  %v6480 = vsub.f32 %v6099, %v6479
  %6481 = vmatmul.mubr.f32.gmra.mxu0 %v6480
  %v6482 = vpop.f32.mrf.mxu0
  %v6483 = vadd.f32 %v6373, %v6482
  %v6484 = vpop.f32.mrf.mxu0
  %6485 = vmatprep.mubr.f32.mxu0 0.0
  %v6486 = vand.u32 %v6105, 4294901760
  %v6487 = vsub.f32 %v6105, %v6486
  %6488 = vmatmul.mubr.f32.gmra.mxu0 %v6487
  %v6489 = vpop.f32.mrf.mxu0
  %v6490 = vadd.f32 %v6379, %v6489
  %v6491 = vpop.f32.mrf.mxu0
  %6492 = vdwg.mxu0
  %6493 = vmatprep.subr.mxu0 0.0
  %v6494 = vand.u32 %v6123, 4294901760
  %6495 = vmatpush1.msra.mxu0 %v6494
  %6496 = vmatprep.subr.mxu0 0.0
  %v6497 = vand.u32 %v6122, 4294901760
  %6498 = vmatpush1.msra.mxu0 %v6497
  %6499 = vmatprep.subr.mxu0 0.0
  %v6500 = vand.u32 %v6121, 4294901760
  %6501 = vmatpush1.msra.mxu0 %v6500
  %6502 = vmatprep.subr.mxu0 0.0
  %v6503 = vand.u32 %v6120, 4294901760
  %6504 = vmatpush1.msra.mxu0 %v6503
  %6505 = vmatprep.subr.mxu0 0.0
  %v6506 = vand.u32 %v6119, 4294901760
  %6507 = vmatpush1.msra.mxu0 %v6506
  %6508 = vmatprep.subr.mxu0 0.0
  %v6509 = vand.u32 %v6118, 4294901760
  %6510 = vmatpush1.msra.mxu0 %v6509
  %6511 = vmatprep.subr.mxu0 0.0
  %v6512 = vand.u32 %v6117, 4294901760
  %6513 = vmatpush1.msra.mxu0 %v6512
  %6514 = vmatprep.subr.mxu0 0.0
  %v6515 = vand.u32 %v6116, 4294901760
  %6516 = vmatpush1.msra.mxu0 %v6515
  %6517 = vmatprep.subr.mxu0 0.0
  %v6518 = vand.u32 %v6115, 4294901760
  %6519 = vmatpush1.msra.mxu0 %v6518
  %6520 = vmatprep.subr.mxu0 0.0
  %v6521 = vand.u32 %v6114, 4294901760
  %6522 = vmatpush1.msra.mxu0 %v6521
  %6523 = vmatprep.subr.mxu0 0.0
  %v6524 = vand.u32 %v6113, 4294901760
  %6525 = vmatpush1.msra.mxu0 %v6524
  %6526 = vmatprep.subr.mxu0 0.0
  %v6527 = vand.u32 %v6112, 4294901760
  %6528 = vmatpush1.msra.mxu0 %v6527
  %6529 = vmatprep.subr.mxu0 0.0
  %v6530 = vand.u32 %v6111, 4294901760
  %6531 = vmatpush1.msra.mxu0 %v6530
  %6532 = vmatprep.subr.mxu0 0.0
  %v6533 = vand.u32 %v6110, 4294901760
  %6534 = vmatpush1.msra.mxu0 %v6533
  %6535 = vmatprep.subr.mxu0 0.0
  %v6536 = vand.u32 %v6109, 4294901760
  %6537 = vmatpush1.msra.mxu0 %v6536
  %6538 = vmatprep.subr.mxu0 0.0
  %v6539 = vand.u32 %v6108, 4294901760
  %6540 = vmatpush1.msra.mxu0 %v6539
  %6541 = vmatprep.subr.mxu0 0.0
  %6542 = vmatpush2.msra.mxu0 0.0
  %6543 = vmatprep.subr.mxu0 0.0
  %6544 = vmatpush2.msra.mxu0 0.0
  %6545 = vmatprep.subr.mxu0 0.0
  %6546 = vmatpush2.msra.mxu0 0.0
  %6547 = vmatprep.subr.mxu0 0.0
  %6548 = vmatpush2.msra.mxu0 0.0
  %6549 = vmatprep.subr.mxu0 0.0
  %6550 = vmatpush2.msra.mxu0 0.0
  %6551 = vmatprep.subr.mxu0 0.0
  %6552 = vmatpush2.msra.mxu0 0.0
  %6553 = vmatprep.subr.mxu0 0.0
  %6554 = vmatpush2.msra.mxu0 0.0
  %6555 = vmatprep.subr.mxu0 0.0
  %6556 = vmatpush2.msra.mxu0 0.0
  %6557 = vmatprep.subr.mxu0 0.0
  %6558 = vmatpush2.msra.mxu0 0.0
  %6559 = vmatprep.subr.mxu0 0.0
  %6560 = vmatpush2.msra.mxu0 0.0
  %6561 = vmatprep.subr.mxu0 0.0
  %6562 = vmatpush2.msra.mxu0 0.0
  %6563 = vmatprep.subr.mxu0 0.0
  %6564 = vmatpush2.msra.mxu0 0.0
  %6565 = vmatprep.subr.mxu0 0.0
  %6566 = vmatpush2.msra.mxu0 0.0
  %6567 = vmatprep.subr.mxu0 0.0
  %6568 = vmatpush2.msra.mxu0 0.0
  %6569 = vmatprep.subr.mxu0 0.0
  %6570 = vmatpush2.msra.mxu0 0.0
  %6571 = vmatprep.subr.mxu0 0.0
  %6572 = vmatpush2.msra.mxu0 0.0
  %6573 = vmatprep.mubr.f32.mxu0 0.0
  %v6574 = vand.u32 %v6099, 4294901760
  %v6575 = vsub.f32 %v6099, %v6574
  %v6576 = vand.u32 %v6575, 4294901760
  %6577 = vmatmul.mubr.f32.gmra.mxu0 %v6576
  %v6578 = vpop.f32.mrf.mxu0
  %v6579 = vadd.f32 %v6483, %v6578
  %v6580 = vpop.f32.mrf.mxu0
  %6581 = vmatprep.mubr.f32.mxu0 0.0
  %v6582 = vand.u32 %v6105, 4294901760
  %v6583 = vsub.f32 %v6105, %v6582
  %v6584 = vand.u32 %v6583, 4294901760
  %6585 = vmatmul.mubr.f32.gmra.mxu0 %v6584
  %v6586 = vpop.f32.mrf.mxu0
  %v6587 = vadd.f32 %v6490, %v6586
  %v6588 = vpop.f32.mrf.mxu0
  %6589 = vdwg.mxu0
  %6590 = vmatprep.subr.mxu0 0.0
  %v6591 = vand.u32 %v6123, 4294901760
  %v6592 = vsub.f32 %v6123, %v6591
  %v6593 = vand.u32 %v6592, 4294901760
  %6594 = vmatpush1.msra.mxu0 %v6593
  %6595 = vmatprep.subr.mxu0 0.0
  %v6596 = vand.u32 %v6122, 4294901760
  %v6597 = vsub.f32 %v6122, %v6596
  %v6598 = vand.u32 %v6597, 4294901760
  %6599 = vmatpush1.msra.mxu0 %v6598
  %6600 = vmatprep.subr.mxu0 0.0
  %v6601 = vand.u32 %v6121, 4294901760
  %v6602 = vsub.f32 %v6121, %v6601
  %v6603 = vand.u32 %v6602, 4294901760
  %6604 = vmatpush1.msra.mxu0 %v6603
  %6605 = vmatprep.subr.mxu0 0.0
  %v6606 = vand.u32 %v6120, 4294901760
  %v6607 = vsub.f32 %v6120, %v6606
  %v6608 = vand.u32 %v6607, 4294901760
  %6609 = vmatpush1.msra.mxu0 %v6608
  %6610 = vmatprep.subr.mxu0 0.0
  %v6611 = vand.u32 %v6119, 4294901760
  %v6612 = vsub.f32 %v6119, %v6611
  %v6613 = vand.u32 %v6612, 4294901760
  %6614 = vmatpush1.msra.mxu0 %v6613
  %6615 = vmatprep.subr.mxu0 0.0
  %v6616 = vand.u32 %v6118, 4294901760
  %v6617 = vsub.f32 %v6118, %v6616
  %v6618 = vand.u32 %v6617, 4294901760
  %6619 = vmatpush1.msra.mxu0 %v6618
  %6620 = vmatprep.subr.mxu0 0.0
  %v6621 = vand.u32 %v6117, 4294901760
  %v6622 = vsub.f32 %v6117, %v6621
  %v6623 = vand.u32 %v6622, 4294901760
  %6624 = vmatpush1.msra.mxu0 %v6623
  %6625 = vmatprep.subr.mxu0 0.0
  %v6626 = vand.u32 %v6116, 4294901760
  %v6627 = vsub.f32 %v6116, %v6626
  %v6628 = vand.u32 %v6627, 4294901760
  %6629 = vmatpush1.msra.mxu0 %v6628
  %6630 = vmatprep.subr.mxu0 0.0
  %v6631 = vand.u32 %v6115, 4294901760
  %v6632 = vsub.f32 %v6115, %v6631
  %v6633 = vand.u32 %v6632, 4294901760
  %6634 = vmatpush1.msra.mxu0 %v6633
  %6635 = vmatprep.subr.mxu0 0.0
  %v6636 = vand.u32 %v6114, 4294901760
  %v6637 = vsub.f32 %v6114, %v6636
  %v6638 = vand.u32 %v6637, 4294901760
  %6639 = vmatpush1.msra.mxu0 %v6638
  %6640 = vmatprep.subr.mxu0 0.0
  %v6641 = vand.u32 %v6113, 4294901760
  %v6642 = vsub.f32 %v6113, %v6641
  %v6643 = vand.u32 %v6642, 4294901760
  %6644 = vmatpush1.msra.mxu0 %v6643
  %6645 = vmatprep.subr.mxu0 0.0
  %v6646 = vand.u32 %v6112, 4294901760
  %v6647 = vsub.f32 %v6112, %v6646
  %v6648 = vand.u32 %v6647, 4294901760
  %6649 = vmatpush1.msra.mxu0 %v6648
  %6650 = vmatprep.subr.mxu0 0.0
  %v6651 = vand.u32 %v6111, 4294901760
  %v6652 = vsub.f32 %v6111, %v6651
  %v6653 = vand.u32 %v6652, 4294901760
  %6654 = vmatpush1.msra.mxu0 %v6653
  %6655 = vmatprep.subr.mxu0 0.0
  %v6656 = vand.u32 %v6110, 4294901760
  %v6657 = vsub.f32 %v6110, %v6656
  %v6658 = vand.u32 %v6657, 4294901760
  %6659 = vmatpush1.msra.mxu0 %v6658
  %6660 = vmatprep.subr.mxu0 0.0
  %v6661 = vand.u32 %v6109, 4294901760
  %v6662 = vsub.f32 %v6109, %v6661
  %v6663 = vand.u32 %v6662, 4294901760
  %6664 = vmatpush1.msra.mxu0 %v6663
  %6665 = vmatprep.subr.mxu0 0.0
  %v6666 = vand.u32 %v6108, 4294901760
  %v6667 = vsub.f32 %v6108, %v6666
  %v6668 = vand.u32 %v6667, 4294901760
  %6669 = vmatpush1.msra.mxu0 %v6668
  %6670 = vmatprep.subr.mxu0 0.0
  %6671 = vmatpush2.msra.mxu0 0.0
  %6672 = vmatprep.subr.mxu0 0.0
  %6673 = vmatpush2.msra.mxu0 0.0
  %6674 = vmatprep.subr.mxu0 0.0
  %6675 = vmatpush2.msra.mxu0 0.0
  %6676 = vmatprep.subr.mxu0 0.0
  %6677 = vmatpush2.msra.mxu0 0.0
  %6678 = vmatprep.subr.mxu0 0.0
  %6679 = vmatpush2.msra.mxu0 0.0
  %6680 = vmatprep.subr.mxu0 0.0
  %6681 = vmatpush2.msra.mxu0 0.0
  %6682 = vmatprep.subr.mxu0 0.0
  %6683 = vmatpush2.msra.mxu0 0.0
  %6684 = vmatprep.subr.mxu0 0.0
  %6685 = vmatpush2.msra.mxu0 0.0
  %6686 = vmatprep.subr.mxu0 0.0
  %6687 = vmatpush2.msra.mxu0 0.0
  %6688 = vmatprep.subr.mxu0 0.0
  %6689 = vmatpush2.msra.mxu0 0.0
  %6690 = vmatprep.subr.mxu0 0.0
  %6691 = vmatpush2.msra.mxu0 0.0
  %6692 = vmatprep.subr.mxu0 0.0
  %6693 = vmatpush2.msra.mxu0 0.0
  %6694 = vmatprep.subr.mxu0 0.0
  %6695 = vmatpush2.msra.mxu0 0.0
  %6696 = vmatprep.subr.mxu0 0.0
  %6697 = vmatpush2.msra.mxu0 0.0
  %6698 = vmatprep.subr.mxu0 0.0
  %6699 = vmatpush2.msra.mxu0 0.0
  %6700 = vmatprep.subr.mxu0 0.0
  %6701 = vmatpush2.msra.mxu0 0.0
  %6702 = vmatprep.mubr.f32.mxu0 0.0
  %v6703 = vand.u32 %v6099, 4294901760
  %6704 = vmatmul.mubr.f32.gmra.mxu0 %v6703
  %v6705 = vpop.f32.mrf.mxu0
  %v6706 = vadd.f32 %v6579, %v6705
  %v6707 = vpop.f32.mrf.mxu0
  %6708 = vmatprep.mubr.f32.mxu0 0.0
  %v6709 = vand.u32 %v6105, 4294901760
  %6710 = vmatmul.mubr.f32.gmra.mxu0 %v6709
  %v6711 = vpop.f32.mrf.mxu0
  %v6712 = vadd.f32 %v6587, %v6711
  %v6713 = vpop.f32.mrf.mxu0
  %6714 = vdwg.mxu0
  %6715 = vmatprep.subr.mxu0 0.0
  %v6716 = vand.u32 %v6123, 4294901760
  %6717 = vmatpush1.msra.mxu0 %v6716
  %6718 = vmatprep.subr.mxu0 0.0
  %v6719 = vand.u32 %v6122, 4294901760
  %6720 = vmatpush1.msra.mxu0 %v6719
  %6721 = vmatprep.subr.mxu0 0.0
  %v6722 = vand.u32 %v6121, 4294901760
  %6723 = vmatpush1.msra.mxu0 %v6722
  %6724 = vmatprep.subr.mxu0 0.0
  %v6725 = vand.u32 %v6120, 4294901760
  %6726 = vmatpush1.msra.mxu0 %v6725
  %6727 = vmatprep.subr.mxu0 0.0
  %v6728 = vand.u32 %v6119, 4294901760
  %6729 = vmatpush1.msra.mxu0 %v6728
  %6730 = vmatprep.subr.mxu0 0.0
  %v6731 = vand.u32 %v6118, 4294901760
  %6732 = vmatpush1.msra.mxu0 %v6731
  %6733 = vmatprep.subr.mxu0 0.0
  %v6734 = vand.u32 %v6117, 4294901760
  %6735 = vmatpush1.msra.mxu0 %v6734
  %6736 = vmatprep.subr.mxu0 0.0
  %v6737 = vand.u32 %v6116, 4294901760
  %6738 = vmatpush1.msra.mxu0 %v6737
  %6739 = vmatprep.subr.mxu0 0.0
  %v6740 = vand.u32 %v6115, 4294901760
  %6741 = vmatpush1.msra.mxu0 %v6740
  %6742 = vmatprep.subr.mxu0 0.0
  %v6743 = vand.u32 %v6114, 4294901760
  %6744 = vmatpush1.msra.mxu0 %v6743
  %6745 = vmatprep.subr.mxu0 0.0
  %v6746 = vand.u32 %v6113, 4294901760
  %6747 = vmatpush1.msra.mxu0 %v6746
  %6748 = vmatprep.subr.mxu0 0.0
  %v6749 = vand.u32 %v6112, 4294901760
  %6750 = vmatpush1.msra.mxu0 %v6749
  %6751 = vmatprep.subr.mxu0 0.0
  %v6752 = vand.u32 %v6111, 4294901760
  %6753 = vmatpush1.msra.mxu0 %v6752
  %6754 = vmatprep.subr.mxu0 0.0
  %v6755 = vand.u32 %v6110, 4294901760
  %6756 = vmatpush1.msra.mxu0 %v6755
  %6757 = vmatprep.subr.mxu0 0.0
  %v6758 = vand.u32 %v6109, 4294901760
  %6759 = vmatpush1.msra.mxu0 %v6758
  %6760 = vmatprep.subr.mxu0 0.0
  %v6761 = vand.u32 %v6108, 4294901760
  %6762 = vmatpush1.msra.mxu0 %v6761
  %6763 = vmatprep.subr.mxu0 0.0
  %6764 = vmatpush2.msra.mxu0 0.0
  %6765 = vmatprep.subr.mxu0 0.0
  %6766 = vmatpush2.msra.mxu0 0.0
  %6767 = vmatprep.subr.mxu0 0.0
  %6768 = vmatpush2.msra.mxu0 0.0
  %6769 = vmatprep.subr.mxu0 0.0
  %6770 = vmatpush2.msra.mxu0 0.0
  %6771 = vmatprep.subr.mxu0 0.0
  %6772 = vmatpush2.msra.mxu0 0.0
  %6773 = vmatprep.subr.mxu0 0.0
  %6774 = vmatpush2.msra.mxu0 0.0
  %6775 = vmatprep.subr.mxu0 0.0
  %6776 = vmatpush2.msra.mxu0 0.0
  %6777 = vmatprep.subr.mxu0 0.0
  %6778 = vmatpush2.msra.mxu0 0.0
  %6779 = vmatprep.subr.mxu0 0.0
  %6780 = vmatpush2.msra.mxu0 0.0
  %6781 = vmatprep.subr.mxu0 0.0
  %6782 = vmatpush2.msra.mxu0 0.0
  %6783 = vmatprep.subr.mxu0 0.0
  %6784 = vmatpush2.msra.mxu0 0.0
  %6785 = vmatprep.subr.mxu0 0.0
  %6786 = vmatpush2.msra.mxu0 0.0
  %6787 = vmatprep.subr.mxu0 0.0
  %6788 = vmatpush2.msra.mxu0 0.0
  %6789 = vmatprep.subr.mxu0 0.0
  %6790 = vmatpush2.msra.mxu0 0.0
  %6791 = vmatprep.subr.mxu0 0.0
  %6792 = vmatpush2.msra.mxu0 0.0
  %6793 = vmatprep.subr.mxu0 0.0
  %6794 = vmatpush2.msra.mxu0 0.0
  %6795 = vmatprep.mubr.f32.mxu0 0.0
  %v6796 = vand.u32 %v6099, 4294901760
  %6797 = vmatmul.mubr.f32.gmra.mxu0 %v6796
  %v6798 = vpop.f32.mrf.mxu0
  %v6799 = vadd.f32 %v6706, %v6798
  %v6800 = vpop.f32.mrf.mxu0
  %6801 = vmatprep.mubr.f32.mxu0 0.0
  %v6802 = vand.u32 %v6105, 4294901760
  %6803 = vmatmul.mubr.f32.gmra.mxu0 %v6802
  %v6804 = vpop.f32.mrf.mxu0
  %v6805 = vadd.f32 %v6712, %v6804
  %v6806 = vpop.f32.mrf.mxu0
  %6807 = vdwg.mxu0
  %v6808 = vtanh.pop %v6799
  %v6809 = vtanh.pop %v6805
  %6810 = vmatprep.subr.mxu0 0.0
  %6811 = vmatpush1.msra.mxu0 0.0
  %6812 = vmatprep.subr.mxu0 0.0
  %6813 = vmatpush1.msra.mxu0 0.0
  %6814 = vmatprep.subr.mxu0 0.0
  %6815 = vmatpush1.msra.mxu0 0.0
  %6816 = vmatprep.subr.mxu0 0.0
  %6817 = vmatpush1.msra.mxu0 0.0
  %6818 = vmatprep.subr.mxu0 0.0
  %6819 = vmatpush1.msra.mxu0 0.0
  %6820 = vmatprep.subr.mxu0 0.0
  %6821 = vmatpush1.msra.mxu0 0.0
  %6822 = vmatprep.subr.mxu0 0.0
  %6823 = vmatpush1.msra.mxu0 0.0
  %6824 = vmatprep.subr.mxu0 0.0
  %6825 = vmatpush1.msra.mxu0 0.0
  %6826 = vmatprep.subr.mxu0 0.0
  %6827 = vmatpush1.msra.mxu0 0.0
  %6828 = vmatprep.subr.mxu0 0.0
  %6829 = vmatpush1.msra.mxu0 0.0
  %6830 = vmatprep.subr.mxu0 0.0
  %6831 = vmatpush1.msra.mxu0 0.0
  %6832 = vmatprep.subr.mxu0 0.0
  %6833 = vmatpush1.msra.mxu0 0.0
  %6834 = vmatprep.subr.mxu0 0.0
  %6835 = vmatpush1.msra.mxu0 0.0
  %6836 = vmatprep.subr.mxu0 0.0
  %6837 = vmatpush1.msra.mxu0 0.0
  %6838 = vmatprep.subr.mxu0 0.0
  %v6839 = vand.u32 %v6809, 4294901760
  %6840 = vmatpush1.msra.mxu0 %v6839
  %6841 = vmatprep.subr.mxu0 0.0
  %v6842 = vand.u32 %v6808, 4294901760
  %6843 = vmatpush1.msra.mxu0 %v6842
  %6844 = vmatprep.subr.mxu0 0.0
  %6845 = vmatpush2.msra.mxu0 0.0
  %6846 = vmatprep.subr.mxu0 0.0
  %6847 = vmatpush2.msra.mxu0 0.0
  %6848 = vmatprep.subr.mxu0 0.0
  %6849 = vmatpush2.msra.mxu0 0.0
  %6850 = vmatprep.subr.mxu0 0.0
  %6851 = vmatpush2.msra.mxu0 0.0
  %6852 = vmatprep.subr.mxu0 0.0
  %6853 = vmatpush2.msra.mxu0 0.0
  %6854 = vmatprep.subr.mxu0 0.0
  %6855 = vmatpush2.msra.mxu0 0.0
  %6856 = vmatprep.subr.mxu0 0.0
  %6857 = vmatpush2.msra.mxu0 0.0
  %6858 = vmatprep.subr.mxu0 0.0
  %6859 = vmatpush2.msra.mxu0 0.0
  %6860 = vmatprep.subr.mxu0 0.0
  %6861 = vmatpush2.msra.mxu0 0.0
  %6862 = vmatprep.subr.mxu0 0.0
  %6863 = vmatpush2.msra.mxu0 0.0
  %6864 = vmatprep.subr.mxu0 0.0
  %6865 = vmatpush2.msra.mxu0 0.0
  %6866 = vmatprep.subr.mxu0 0.0
  %6867 = vmatpush2.msra.mxu0 0.0
  %6868 = vmatprep.subr.mxu0 0.0
  %6869 = vmatpush2.msra.mxu0 0.0
  %6870 = vmatprep.subr.mxu0 0.0
  %6871 = vmatpush2.msra.mxu0 0.0
  %6872 = vmatprep.subr.mxu0 0.0
  %6873 = vmatpush2.msra.mxu0 0.0
  %6874 = vmatprep.subr.mxu0 0.0
  %6875 = vmatpush2.msra.mxu0 0.0
  %6876 = vmatprep.mubr.f32.mxu0 0.0
  %v6877 = vand.u32 %v785, 4294901760
  %v6878 = vsub.f32 %v785, %v6877
  %v6879 = vand.u32 %v6878, 4294901760
  %v6880 = vsub.f32 %v6878, %v6879
  %v6881 = vand.u32 %v6880, 4294901760
  %6882 = vmatmul.mubr.f32.gmra.mxu0 %v6881
  %v6883 = vpop.f32.mrf.mxu0
  %v6884 = vadd.f32 0.0, %v6883
  %v6885 = vpop.f32.mrf.mxu0
  %6886 = vmatprep.mubr.f32.mxu0 0.0
  %v6887 = vand.u32 %v788, 4294901760
  %v6888 = vsub.f32 %v788, %v6887
  %v6889 = vand.u32 %v6888, 4294901760
  %v6890 = vsub.f32 %v6888, %v6889
  %v6891 = vand.u32 %v6890, 4294901760
  %6892 = vmatmul.mubr.f32.gmra.mxu0 %v6891
  %v6893 = vpop.f32.mrf.mxu0
  %v6894 = vadd.f32 0.0, %v6893
  %v6895 = vpop.f32.mrf.mxu0
  %6896 = vdwg.mxu0
  %6897 = vmatprep.subr.mxu0 0.0
  %6898 = vmatpush1.msra.mxu0 0.0
  %6899 = vmatprep.subr.mxu0 0.0
  %6900 = vmatpush1.msra.mxu0 0.0
  %6901 = vmatprep.subr.mxu0 0.0
  %6902 = vmatpush1.msra.mxu0 0.0
  %6903 = vmatprep.subr.mxu0 0.0
  %6904 = vmatpush1.msra.mxu0 0.0
  %6905 = vmatprep.subr.mxu0 0.0
  %6906 = vmatpush1.msra.mxu0 0.0
  %6907 = vmatprep.subr.mxu0 0.0
  %6908 = vmatpush1.msra.mxu0 0.0
  %6909 = vmatprep.subr.mxu0 0.0
  %6910 = vmatpush1.msra.mxu0 0.0
  %6911 = vmatprep.subr.mxu0 0.0
  %6912 = vmatpush1.msra.mxu0 0.0
  %6913 = vmatprep.subr.mxu0 0.0
  %6914 = vmatpush1.msra.mxu0 0.0
  %6915 = vmatprep.subr.mxu0 0.0
  %6916 = vmatpush1.msra.mxu0 0.0
  %6917 = vmatprep.subr.mxu0 0.0
  %6918 = vmatpush1.msra.mxu0 0.0
  %6919 = vmatprep.subr.mxu0 0.0
  %6920 = vmatpush1.msra.mxu0 0.0
  %6921 = vmatprep.subr.mxu0 0.0
  %6922 = vmatpush1.msra.mxu0 0.0
  %6923 = vmatprep.subr.mxu0 0.0
  %6924 = vmatpush1.msra.mxu0 0.0
  %6925 = vmatprep.subr.mxu0 0.0
  %v6926 = vand.u32 %v6809, 4294901760
  %v6927 = vsub.f32 %v6809, %v6926
  %v6928 = vand.u32 %v6927, 4294901760
  %v6929 = vsub.f32 %v6927, %v6928
  %v6930 = vand.u32 %v6929, 4294901760
  %6931 = vmatpush1.msra.mxu0 %v6930
  %6932 = vmatprep.subr.mxu0 0.0
  %v6933 = vand.u32 %v6808, 4294901760
  %v6934 = vsub.f32 %v6808, %v6933
  %v6935 = vand.u32 %v6934, 4294901760
  %v6936 = vsub.f32 %v6934, %v6935
  %v6937 = vand.u32 %v6936, 4294901760
  %6938 = vmatpush1.msra.mxu0 %v6937
  %6939 = vmatprep.subr.mxu0 0.0
  %6940 = vmatpush2.msra.mxu0 0.0
  %6941 = vmatprep.subr.mxu0 0.0
  %6942 = vmatpush2.msra.mxu0 0.0
  %6943 = vmatprep.subr.mxu0 0.0
  %6944 = vmatpush2.msra.mxu0 0.0
  %6945 = vmatprep.subr.mxu0 0.0
  %6946 = vmatpush2.msra.mxu0 0.0
  %6947 = vmatprep.subr.mxu0 0.0
  %6948 = vmatpush2.msra.mxu0 0.0
  %6949 = vmatprep.subr.mxu0 0.0
  %6950 = vmatpush2.msra.mxu0 0.0
  %6951 = vmatprep.subr.mxu0 0.0
  %6952 = vmatpush2.msra.mxu0 0.0
  %6953 = vmatprep.subr.mxu0 0.0
  %6954 = vmatpush2.msra.mxu0 0.0
  %6955 = vmatprep.subr.mxu0 0.0
  %6956 = vmatpush2.msra.mxu0 0.0
  %6957 = vmatprep.subr.mxu0 0.0
  %6958 = vmatpush2.msra.mxu0 0.0
  %6959 = vmatprep.subr.mxu0 0.0
  %6960 = vmatpush2.msra.mxu0 0.0
  %6961 = vmatprep.subr.mxu0 0.0
  %6962 = vmatpush2.msra.mxu0 0.0
  %6963 = vmatprep.subr.mxu0 0.0
  %6964 = vmatpush2.msra.mxu0 0.0
  %6965 = vmatprep.subr.mxu0 0.0
  %6966 = vmatpush2.msra.mxu0 0.0
  %6967 = vmatprep.subr.mxu0 0.0
  %6968 = vmatpush2.msra.mxu0 0.0
  %6969 = vmatprep.subr.mxu0 0.0
  %6970 = vmatpush2.msra.mxu0 0.0
  %6971 = vmatprep.mubr.f32.mxu0 0.0
  %v6972 = vand.u32 %v785, 4294901760
  %6973 = vmatmul.mubr.f32.gmra.mxu0 %v6972
  %v6974 = vpop.f32.mrf.mxu0
  %v6975 = vadd.f32 %v6884, %v6974
  %v6976 = vpop.f32.mrf.mxu0
  %6977 = vmatprep.mubr.f32.mxu0 0.0
  %v6978 = vand.u32 %v788, 4294901760
  %6979 = vmatmul.mubr.f32.gmra.mxu0 %v6978
  %v6980 = vpop.f32.mrf.mxu0
  %v6981 = vadd.f32 %v6894, %v6980
  %v6982 = vpop.f32.mrf.mxu0
  %6983 = vdwg.mxu0
  %6984 = vmatprep.subr.mxu0 0.0
  %6985 = vmatpush1.msra.mxu0 0.0
  %6986 = vmatprep.subr.mxu0 0.0
  %6987 = vmatpush1.msra.mxu0 0.0
  %6988 = vmatprep.subr.mxu0 0.0
  %6989 = vmatpush1.msra.mxu0 0.0
  %6990 = vmatprep.subr.mxu0 0.0
  %6991 = vmatpush1.msra.mxu0 0.0
  %6992 = vmatprep.subr.mxu0 0.0
  %6993 = vmatpush1.msra.mxu0 0.0
  %6994 = vmatprep.subr.mxu0 0.0
  %6995 = vmatpush1.msra.mxu0 0.0
  %6996 = vmatprep.subr.mxu0 0.0
  %6997 = vmatpush1.msra.mxu0 0.0
  %6998 = vmatprep.subr.mxu0 0.0
  %6999 = vmatpush1.msra.mxu0 0.0
  %7000 = vmatprep.subr.mxu0 0.0
  %7001 = vmatpush1.msra.mxu0 0.0
  %7002 = vmatprep.subr.mxu0 0.0
  %7003 = vmatpush1.msra.mxu0 0.0
  %7004 = vmatprep.subr.mxu0 0.0
  %7005 = vmatpush1.msra.mxu0 0.0
  %7006 = vmatprep.subr.mxu0 0.0
  %7007 = vmatpush1.msra.mxu0 0.0
  %7008 = vmatprep.subr.mxu0 0.0
  %7009 = vmatpush1.msra.mxu0 0.0
  %7010 = vmatprep.subr.mxu0 0.0
  %7011 = vmatpush1.msra.mxu0 0.0
  %7012 = vmatprep.subr.mxu0 0.0
  %v7013 = vand.u32 %v6809, 4294901760
  %v7014 = vsub.f32 %v6809, %v7013
  %7015 = vmatpush1.msra.mxu0 %v7014
  %7016 = vmatprep.subr.mxu0 0.0
  %v7017 = vand.u32 %v6808, 4294901760
  %v7018 = vsub.f32 %v6808, %v7017
  %7019 = vmatpush1.msra.mxu0 %v7018
  %7020 = vmatprep.subr.mxu0 0.0
  %7021 = vmatpush2.msra.mxu0 0.0
  %7022 = vmatprep.subr.mxu0 0.0
  %7023 = vmatpush2.msra.mxu0 0.0
  %7024 = vmatprep.subr.mxu0 0.0
  %7025 = vmatpush2.msra.mxu0 0.0
  %7026 = vmatprep.subr.mxu0 0.0
  %7027 = vmatpush2.msra.mxu0 0.0
  %7028 = vmatprep.subr.mxu0 0.0
  %7029 = vmatpush2.msra.mxu0 0.0
  %7030 = vmatprep.subr.mxu0 0.0
  %7031 = vmatpush2.msra.mxu0 0.0
  %7032 = vmatprep.subr.mxu0 0.0
  %7033 = vmatpush2.msra.mxu0 0.0
  %7034 = vmatprep.subr.mxu0 0.0
  %7035 = vmatpush2.msra.mxu0 0.0
  %7036 = vmatprep.subr.mxu0 0.0
  %7037 = vmatpush2.msra.mxu0 0.0
  %7038 = vmatprep.subr.mxu0 0.0
  %7039 = vmatpush2.msra.mxu0 0.0
  %7040 = vmatprep.subr.mxu0 0.0
  %7041 = vmatpush2.msra.mxu0 0.0
  %7042 = vmatprep.subr.mxu0 0.0
  %7043 = vmatpush2.msra.mxu0 0.0
  %7044 = vmatprep.subr.mxu0 0.0
  %7045 = vmatpush2.msra.mxu0 0.0
  %7046 = vmatprep.subr.mxu0 0.0
  %7047 = vmatpush2.msra.mxu0 0.0
  %7048 = vmatprep.subr.mxu0 0.0
  %7049 = vmatpush2.msra.mxu0 0.0
  %7050 = vmatprep.subr.mxu0 0.0
  %7051 = vmatpush2.msra.mxu0 0.0
  %7052 = vmatprep.mubr.f32.mxu0 0.0
  %v7053 = vand.u32 %v785, 4294901760
  %v7054 = vsub.f32 %v785, %v7053
  %7055 = vmatmul.mubr.f32.gmra.mxu0 %v7054
  %v7056 = vpop.f32.mrf.mxu0
  %v7057 = vadd.f32 %v6975, %v7056
  %v7058 = vpop.f32.mrf.mxu0
  %7059 = vmatprep.mubr.f32.mxu0 0.0
  %v7060 = vand.u32 %v788, 4294901760
  %v7061 = vsub.f32 %v788, %v7060
  %7062 = vmatmul.mubr.f32.gmra.mxu0 %v7061
  %v7063 = vpop.f32.mrf.mxu0
  %v7064 = vadd.f32 %v6981, %v7063
  %v7065 = vpop.f32.mrf.mxu0
  %7066 = vdwg.mxu0
  %7067 = vmatprep.subr.mxu0 0.0
  %7068 = vmatpush1.msra.mxu0 0.0
  %7069 = vmatprep.subr.mxu0 0.0
  %7070 = vmatpush1.msra.mxu0 0.0
  %7071 = vmatprep.subr.mxu0 0.0
  %7072 = vmatpush1.msra.mxu0 0.0
  %7073 = vmatprep.subr.mxu0 0.0
  %7074 = vmatpush1.msra.mxu0 0.0
  %7075 = vmatprep.subr.mxu0 0.0
  %7076 = vmatpush1.msra.mxu0 0.0
  %7077 = vmatprep.subr.mxu0 0.0
  %7078 = vmatpush1.msra.mxu0 0.0
  %7079 = vmatprep.subr.mxu0 0.0
  %7080 = vmatpush1.msra.mxu0 0.0
  %7081 = vmatprep.subr.mxu0 0.0
  %7082 = vmatpush1.msra.mxu0 0.0
  %7083 = vmatprep.subr.mxu0 0.0
  %7084 = vmatpush1.msra.mxu0 0.0
  %7085 = vmatprep.subr.mxu0 0.0
  %7086 = vmatpush1.msra.mxu0 0.0
  %7087 = vmatprep.subr.mxu0 0.0
  %7088 = vmatpush1.msra.mxu0 0.0
  %7089 = vmatprep.subr.mxu0 0.0
  %7090 = vmatpush1.msra.mxu0 0.0
  %7091 = vmatprep.subr.mxu0 0.0
  %7092 = vmatpush1.msra.mxu0 0.0
  %7093 = vmatprep.subr.mxu0 0.0
  %7094 = vmatpush1.msra.mxu0 0.0
  %7095 = vmatprep.subr.mxu0 0.0
  %v7096 = vand.u32 %v6809, 4294901760
  %7097 = vmatpush1.msra.mxu0 %v7096
  %7098 = vmatprep.subr.mxu0 0.0
  %v7099 = vand.u32 %v6808, 4294901760
  %7100 = vmatpush1.msra.mxu0 %v7099
  %7101 = vmatprep.subr.mxu0 0.0
  %7102 = vmatpush2.msra.mxu0 0.0
  %7103 = vmatprep.subr.mxu0 0.0
  %7104 = vmatpush2.msra.mxu0 0.0
  %7105 = vmatprep.subr.mxu0 0.0
  %7106 = vmatpush2.msra.mxu0 0.0
  %7107 = vmatprep.subr.mxu0 0.0
  %7108 = vmatpush2.msra.mxu0 0.0
  %7109 = vmatprep.subr.mxu0 0.0
  %7110 = vmatpush2.msra.mxu0 0.0
  %7111 = vmatprep.subr.mxu0 0.0
  %7112 = vmatpush2.msra.mxu0 0.0
  %7113 = vmatprep.subr.mxu0 0.0
  %7114 = vmatpush2.msra.mxu0 0.0
  %7115 = vmatprep.subr.mxu0 0.0
  %7116 = vmatpush2.msra.mxu0 0.0
  %7117 = vmatprep.subr.mxu0 0.0
  %7118 = vmatpush2.msra.mxu0 0.0
  %7119 = vmatprep.subr.mxu0 0.0
  %7120 = vmatpush2.msra.mxu0 0.0
  %7121 = vmatprep.subr.mxu0 0.0
  %7122 = vmatpush2.msra.mxu0 0.0
  %7123 = vmatprep.subr.mxu0 0.0
  %7124 = vmatpush2.msra.mxu0 0.0
  %7125 = vmatprep.subr.mxu0 0.0
  %7126 = vmatpush2.msra.mxu0 0.0
  %7127 = vmatprep.subr.mxu0 0.0
  %7128 = vmatpush2.msra.mxu0 0.0
  %7129 = vmatprep.subr.mxu0 0.0
  %7130 = vmatpush2.msra.mxu0 0.0
  %7131 = vmatprep.subr.mxu0 0.0
  %7132 = vmatpush2.msra.mxu0 0.0
  %7133 = vmatprep.mubr.f32.mxu0 0.0
  %v7134 = vand.u32 %v785, 4294901760
  %v7135 = vsub.f32 %v785, %v7134
  %v7136 = vand.u32 %v7135, 4294901760
  %7137 = vmatmul.mubr.f32.gmra.mxu0 %v7136
  %v7138 = vpop.f32.mrf.mxu0
  %v7139 = vadd.f32 %v7057, %v7138
  %v7140 = vpop.f32.mrf.mxu0
  %7141 = vmatprep.mubr.f32.mxu0 0.0
  %v7142 = vand.u32 %v788, 4294901760
  %v7143 = vsub.f32 %v788, %v7142
  %v7144 = vand.u32 %v7143, 4294901760
  %7145 = vmatmul.mubr.f32.gmra.mxu0 %v7144
  %v7146 = vpop.f32.mrf.mxu0
  %v7147 = vadd.f32 %v7064, %v7146
  %v7148 = vpop.f32.mrf.mxu0
  %7149 = vdwg.mxu0
  %7150 = vmatprep.subr.mxu0 0.0
  %7151 = vmatpush1.msra.mxu0 0.0
  %7152 = vmatprep.subr.mxu0 0.0
  %7153 = vmatpush1.msra.mxu0 0.0
  %7154 = vmatprep.subr.mxu0 0.0
  %7155 = vmatpush1.msra.mxu0 0.0
  %7156 = vmatprep.subr.mxu0 0.0
  %7157 = vmatpush1.msra.mxu0 0.0
  %7158 = vmatprep.subr.mxu0 0.0
  %7159 = vmatpush1.msra.mxu0 0.0
  %7160 = vmatprep.subr.mxu0 0.0
  %7161 = vmatpush1.msra.mxu0 0.0
  %7162 = vmatprep.subr.mxu0 0.0
  %7163 = vmatpush1.msra.mxu0 0.0
  %7164 = vmatprep.subr.mxu0 0.0
  %7165 = vmatpush1.msra.mxu0 0.0
  %7166 = vmatprep.subr.mxu0 0.0
  %7167 = vmatpush1.msra.mxu0 0.0
  %7168 = vmatprep.subr.mxu0 0.0
  %7169 = vmatpush1.msra.mxu0 0.0
  %7170 = vmatprep.subr.mxu0 0.0
  %7171 = vmatpush1.msra.mxu0 0.0
  %7172 = vmatprep.subr.mxu0 0.0
  %7173 = vmatpush1.msra.mxu0 0.0
  %7174 = vmatprep.subr.mxu0 0.0
  %7175 = vmatpush1.msra.mxu0 0.0
  %7176 = vmatprep.subr.mxu0 0.0
  %7177 = vmatpush1.msra.mxu0 0.0
  %7178 = vmatprep.subr.mxu0 0.0
  %v7179 = vand.u32 %v6809, 4294901760
  %v7180 = vsub.f32 %v6809, %v7179
  %v7181 = vand.u32 %v7180, 4294901760
  %7182 = vmatpush1.msra.mxu0 %v7181
  %7183 = vmatprep.subr.mxu0 0.0
  %v7184 = vand.u32 %v6808, 4294901760
  %v7185 = vsub.f32 %v6808, %v7184
  %v7186 = vand.u32 %v7185, 4294901760
  %7187 = vmatpush1.msra.mxu0 %v7186
  %7188 = vmatprep.subr.mxu0 0.0
  %7189 = vmatpush2.msra.mxu0 0.0
  %7190 = vmatprep.subr.mxu0 0.0
  %7191 = vmatpush2.msra.mxu0 0.0
  %7192 = vmatprep.subr.mxu0 0.0
  %7193 = vmatpush2.msra.mxu0 0.0
  %7194 = vmatprep.subr.mxu0 0.0
  %7195 = vmatpush2.msra.mxu0 0.0
  %7196 = vmatprep.subr.mxu0 0.0
  %7197 = vmatpush2.msra.mxu0 0.0
  %7198 = vmatprep.subr.mxu0 0.0
  %7199 = vmatpush2.msra.mxu0 0.0
  %7200 = vmatprep.subr.mxu0 0.0
  %7201 = vmatpush2.msra.mxu0 0.0
  %7202 = vmatprep.subr.mxu0 0.0
  %7203 = vmatpush2.msra.mxu0 0.0
  %7204 = vmatprep.subr.mxu0 0.0
  %7205 = vmatpush2.msra.mxu0 0.0
  %7206 = vmatprep.subr.mxu0 0.0
  %7207 = vmatpush2.msra.mxu0 0.0
  %7208 = vmatprep.subr.mxu0 0.0
  %7209 = vmatpush2.msra.mxu0 0.0
  %7210 = vmatprep.subr.mxu0 0.0
  %7211 = vmatpush2.msra.mxu0 0.0
  %7212 = vmatprep.subr.mxu0 0.0
  %7213 = vmatpush2.msra.mxu0 0.0
  %7214 = vmatprep.subr.mxu0 0.0
  %7215 = vmatpush2.msra.mxu0 0.0
  %7216 = vmatprep.subr.mxu0 0.0
  %7217 = vmatpush2.msra.mxu0 0.0
  %7218 = vmatprep.subr.mxu0 0.0
  %7219 = vmatpush2.msra.mxu0 0.0
  %7220 = vmatprep.mubr.f32.mxu0 0.0
  %v7221 = vand.u32 %v785, 4294901760
  %7222 = vmatmul.mubr.f32.gmra.mxu0 %v7221
  %v7223 = vpop.f32.mrf.mxu0
  %v7224 = vadd.f32 %v7139, %v7223
  %v7225 = vpop.f32.mrf.mxu0
  %7226 = vmatprep.mubr.f32.mxu0 0.0
  %v7227 = vand.u32 %v788, 4294901760
  %7228 = vmatmul.mubr.f32.gmra.mxu0 %v7227
  %v7229 = vpop.f32.mrf.mxu0
  %v7230 = vadd.f32 %v7147, %v7229
  %v7231 = vpop.f32.mrf.mxu0
  %7232 = vdwg.mxu0
  %7233 = vmatprep.subr.mxu0 0.0
  %7234 = vmatpush1.msra.mxu0 0.0
  %7235 = vmatprep.subr.mxu0 0.0
  %7236 = vmatpush1.msra.mxu0 0.0
  %7237 = vmatprep.subr.mxu0 0.0
  %7238 = vmatpush1.msra.mxu0 0.0
  %7239 = vmatprep.subr.mxu0 0.0
  %7240 = vmatpush1.msra.mxu0 0.0
  %7241 = vmatprep.subr.mxu0 0.0
  %7242 = vmatpush1.msra.mxu0 0.0
  %7243 = vmatprep.subr.mxu0 0.0
  %7244 = vmatpush1.msra.mxu0 0.0
  %7245 = vmatprep.subr.mxu0 0.0
  %7246 = vmatpush1.msra.mxu0 0.0
  %7247 = vmatprep.subr.mxu0 0.0
  %7248 = vmatpush1.msra.mxu0 0.0
  %7249 = vmatprep.subr.mxu0 0.0
  %7250 = vmatpush1.msra.mxu0 0.0
  %7251 = vmatprep.subr.mxu0 0.0
  %7252 = vmatpush1.msra.mxu0 0.0
  %7253 = vmatprep.subr.mxu0 0.0
  %7254 = vmatpush1.msra.mxu0 0.0
  %7255 = vmatprep.subr.mxu0 0.0
  %7256 = vmatpush1.msra.mxu0 0.0
  %7257 = vmatprep.subr.mxu0 0.0
  %7258 = vmatpush1.msra.mxu0 0.0
  %7259 = vmatprep.subr.mxu0 0.0
  %7260 = vmatpush1.msra.mxu0 0.0
  %7261 = vmatprep.subr.mxu0 0.0
  %v7262 = vand.u32 %v6809, 4294901760
  %7263 = vmatpush1.msra.mxu0 %v7262
  %7264 = vmatprep.subr.mxu0 0.0
  %v7265 = vand.u32 %v6808, 4294901760
  %7266 = vmatpush1.msra.mxu0 %v7265
  %7267 = vmatprep.subr.mxu0 0.0
  %7268 = vmatpush2.msra.mxu0 0.0
  %7269 = vmatprep.subr.mxu0 0.0
  %7270 = vmatpush2.msra.mxu0 0.0
  %7271 = vmatprep.subr.mxu0 0.0
  %7272 = vmatpush2.msra.mxu0 0.0
  %7273 = vmatprep.subr.mxu0 0.0
  %7274 = vmatpush2.msra.mxu0 0.0
  %7275 = vmatprep.subr.mxu0 0.0
  %7276 = vmatpush2.msra.mxu0 0.0
  %7277 = vmatprep.subr.mxu0 0.0
  %7278 = vmatpush2.msra.mxu0 0.0
  %7279 = vmatprep.subr.mxu0 0.0
  %7280 = vmatpush2.msra.mxu0 0.0
  %7281 = vmatprep.subr.mxu0 0.0
  %7282 = vmatpush2.msra.mxu0 0.0
  %7283 = vmatprep.subr.mxu0 0.0
  %7284 = vmatpush2.msra.mxu0 0.0
  %7285 = vmatprep.subr.mxu0 0.0
  %7286 = vmatpush2.msra.mxu0 0.0
  %7287 = vmatprep.subr.mxu0 0.0
  %7288 = vmatpush2.msra.mxu0 0.0
  %7289 = vmatprep.subr.mxu0 0.0
  %7290 = vmatpush2.msra.mxu0 0.0
  %7291 = vmatprep.subr.mxu0 0.0
  %7292 = vmatpush2.msra.mxu0 0.0
  %7293 = vmatprep.subr.mxu0 0.0
  %7294 = vmatpush2.msra.mxu0 0.0
  %7295 = vmatprep.subr.mxu0 0.0
  %7296 = vmatpush2.msra.mxu0 0.0
  %7297 = vmatprep.subr.mxu0 0.0
  %7298 = vmatpush2.msra.mxu0 0.0
  %7299 = vmatprep.mubr.f32.mxu0 0.0
  %v7300 = vand.u32 %v785, 4294901760
  %7301 = vmatmul.mubr.f32.gmra.mxu0 %v7300
  %v7302 = vpop.f32.mrf.mxu0
  %v7303 = vadd.f32 %v7224, %v7302
  %v7304 = vpop.f32.mrf.mxu0
  %7305 = vmatprep.mubr.f32.mxu0 0.0
  %v7306 = vand.u32 %v788, 4294901760
  %7307 = vmatmul.mubr.f32.gmra.mxu0 %v7306
  %v7308 = vpop.f32.mrf.mxu0
  %v7309 = vadd.f32 %v7230, %v7308
  %v7310 = vpop.f32.mrf.mxu0
  %7311 = vdwg.mxu0
  %7312 = vst [vmem:[%s8] sm:$0xff] %v3691
  %7313 = vst [vmem:[%s8 + $0x8] sm:$0xff] %v3697
  %7314 = vst [vmem:[%s9] sm:$0xff] %v7303
  %7315 = vst [vmem:[%s9 + $0x8] sm:$0xff] %v7309
  // Predicated region
  $region64: #{igae_forward.2} parent=0 // pred_check
    _
  $region65: #{igae_forward.2} parent=0 // pred_check_branch
    %7317 = sbr.rel (0) target = $region67
  $region66: #{igae_forward.2} parent=0 // pred_region
    _
  $region67: #{igae_forward.2} parent=0 // pred_fallthru
    _
  // Predicated region
  $region68: #{igae_forward.2} parent=0 // pred_check
    _
  $region69: #{igae_forward.2} parent=0 // pred_check_branch
    %7319 = sbr.rel (0) target = $region71
  $region70: #{igae_forward.2} parent=0 // pred_region
    _
  $region71: #{igae_forward.2} parent=0 // pred_fallthru
    _
  // Predicated region
  $region72: #{igae_forward.2} parent=0 // pred_check
    _
  $region73: #{igae_forward.2} parent=0 // pred_check_branch
    %7321 = sbr.rel (0) target = $region75
  $region74: #{igae_forward.2} parent=0 // pred_region
    _
  $region75: #{igae_forward.2} parent=0 // pred_fallthru
    _
  // Predicated region
  $region76: #{igae_forward.2} parent=0 // pred_check
    _
  $region77: #{igae_forward.2} parent=0 // pred_check_branch
    %7323 = sbr.rel (0) target = $region79
  $region78: #{igae_forward.2} parent=0 // pred_region
    _
  $region79: #{igae_forward.2} parent=0 // pred_fallthru
    _
  %7324 = vsyncmov [#allocation3]
  %s7325 = vpop.sfrf %7324
  %p7326 = scmp.eq.s32.totalorder %s7325, 0
  %p7327 = pneg %p7326
  %7329 = shalt.err (%p7327)

</llo_original>
